<compile_context>
chip_gen: v7x
topology: tpu7x:2x2x1
jax: 0.10.0
libtpu: 0.0.40
codegen_flags: <defaults>
</compile_context>

<pallas_src>
import jax
import jax.numpy as jnp
from jax.experimental import pallas as pl
from jax.experimental.pallas import tpu as pltpu

B_TILE = 8  # samples per grid step (M ~= 256 rows per matmul)


# ------------------------- one-time weight folding --------------------------

def _band(w_i, wv_in):
    # w_i: (KW, Cin, Cout).  Returns Z: (OW, Wv, Cin, Cout) with
    # Z[ow, wv] = w_i[wv - ow] inside the band, 0 outside.
    KW, Cin, Cout = w_i.shape
    OW = wv_in - KW + 1
    row = jnp.concatenate(
        [w_i, jnp.zeros((wv_in + 1 - KW, Cin, Cout), w_i.dtype)], axis=0)
    rows = jnp.broadcast_to(row[None], (OW, wv_in + 1, Cin, Cout))
    flat = rows.reshape(OW * (wv_in + 1), Cin, Cout)
    return flat[: OW * wv_in].reshape(OW, wv_in, Cin, Cout)


def _conv_toeplitz(w, wv_in):
    # w: (KH, KW, Cin, Cout) HWIO.  Returns (KH, Wv*Cin, OW*Cout) with
    # T[i][wv*Cin + c, ow*Cout + d] = w[i, wv - ow, c, d] (0 outside band).
    KH, KW, Cin, Cout = w.shape
    OW = wv_in - KW + 1
    ts = []
    for i in range(KH):
        z = _band(w[i], wv_in)                                # (OW, Wv, Cin, Cout)
        ts.append(jnp.transpose(z, (1, 2, 0, 3)).reshape(wv_in * Cin, OW * Cout))
    return jnp.stack(ts, 0)


def _col_selectors(win, c):
    # Even / odd W-block (width-c) lane selectors: (2, win*c, (win//2)*c), 0/1.
    wo = win // 2
    sa = (jnp.arange(win)[:, None] == 2 * jnp.arange(wo)[None, :]).astype(jnp.float32)
    sb = (jnp.arange(win)[:, None] == 2 * jnp.arange(wo)[None, :] + 1).astype(jnp.float32)
    eye_c = jnp.eye(c, dtype=jnp.float32)
    return jnp.stack([jnp.kron(sa, eye_c), jnp.kron(sb, eye_c)], 0)


def _fc_matrices(wfc, c, hp, wp):
    # wfc: (c*hp*wp, Nout), row index = c_i*hp*wp + h*wp + w (torch NCHW .view).
    # Returns G: (hp, wp*c, Nout) with G[h][w*c + c_i, n] = wfc[c_i*hp*wp+h*wp+w, n]
    nout = wfc.shape[1]
    w_r = wfc.reshape(c, hp, wp, nout)
    gs = [jnp.transpose(w_r[:, h, :, :], (1, 0, 2)).reshape(wp * c, nout)
          for h in range(hp)]
    return jnp.stack(gs, 0)


def prepare_params(p, b_tile=B_TILE):
    # Fold PyTorch-style params (HWIO convs, (in,out) FC) into kernel operands.
    bf16 = jnp.bfloat16
    # Row count of the in-kernel pool2 output (see kernel row budget): 32*Bt-27.
    m_fc = 32 * b_tile - 27
    q = jnp.arange(m_fc)[None, :]
    base = 32 * jnp.arange(b_tile)[:, None]
    s01 = jnp.stack([(q == base).astype(jnp.float32),          # pooled row 0 (phys 32b)
                     (q == base + 4).astype(jnp.float32)], 0)  # pooled row 1 (phys 32b+4)
    return dict(
        t1=_conv_toeplitz(p["w1"], 32).astype(bf16),            # (5,  96, 224)
        t2=_conv_toeplitz(p["w2"], 28).astype(bf16),            # (5, 224, 192)
        t3=_conv_toeplitz(p["w3"], 12).astype(bf16),            # (5,  96, 128)
        t4=_conv_toeplitz(p["w4"], 8).astype(bf16),             # (5, 128,  64)
        b1=jnp.tile(p["b1"], 28)[None, :],                      # (1, 224) f32
        b2=jnp.tile(p["b2"], 24)[None, :],                      # (1, 192) f32
        b3=jnp.tile(p["b3"], 8)[None, :],                       # (1, 128) f32
        b4=jnp.tile(p["b4"], 4)[None, :],                       # (1,  64) f32
        sc1=_col_selectors(24, 8).astype(bf16),                 # (2, 192, 96)
        sc2=_col_selectors(4, 16).astype(bf16),                 # (2,  64, 32)
        s01=s01.astype(bf16),                                   # (2, Bt, 32*Bt-27)
        g=_fc_matrices(p["wfc"], 16, 2, 2).astype(bf16),        # (2, 32, 10)
        bfc=p["bfc"][None, :],                                  # (1, 10) f32
    )


# ------------------------------ Pallas kernel -------------------------------

def _cnn_kernel(x_ref, t1_ref, b1_ref, t2_ref, b2_ref, sc1_ref,
                t3_ref, b3_ref, t4_ref, b4_ref, sc2_ref,
                s01_ref, g_ref, bfc_ref, o_ref):
    # Row layout: sample b occupies physical rows [b*32, (b+1)*32).  Convs /
    # pools operate on ALL stacked rows at once (M ~= B_TILE*32); rows beyond a
    # sample's valid region hold garbage that valid rows never read.
    f32, bf16 = jnp.float32, jnp.bfloat16

    def conv(a, t_ref, b_ref, step):
        # Banded Toeplitz conv: out[p] = relu(sum_i a[p + i*step] @ T_i + b).
        # `step` is the physical row stride of logical rows (2 after a pool).
        m = a.shape[0] - 4 * step
        acc = jnp.dot(a[:m], t_ref[0], preferred_element_type=f32)
        for i in range(1, 5):
            acc = acc + jnp.dot(a[i * step: i * step + m], t_ref[i],
                                preferred_element_type=f32)
        return jnp.maximum(acc + b_ref[...], 0.0).astype(bf16)

    def pool(a, sc_ref, step):
        # 2x2 maxpool: rows via shifted elementwise max (pooled rows keep a
        # 2*step physical stride), W-blocks via exact 0/1 selection matmuls.
        m = a.shape[0] - step
        r = jnp.maximum(a[:m], a[step: step + m])
        return jnp.maximum(
            jnp.dot(r, sc_ref[0], preferred_element_type=f32),
            jnp.dot(r, sc_ref[1], preferred_element_type=f32)).astype(bf16)

    h = conv(x_ref[...], t1_ref, b1_ref, 1)   # 28x28x8  (row oh at phys oh)
    h = conv(h, t2_ref, b2_ref, 1)            # 24x24x8
    h = pool(h, sc1_ref, 1)                   # 12x12x8  (row j  at phys 2j)
    h = conv(h, t3_ref, b3_ref, 2)            #  8x8x16  (row oh at phys 2oh)
    h = conv(h, t4_ref, b4_ref, 2)            #  4x4x16
    h = pool(h, sc2_ref, 2)                   #  2x2x16  (row r  at phys 4r)

    # FC: extract pooled rows 0 / 1 of every sample (phys 32b / 32b+4) with
    # exact 0/1 row-selection matmuls, then the folded FC matmuls (torch NCHW
    # flatten is baked into g).
    x0 = jnp.dot(s01_ref[0], h, preferred_element_type=f32)   # (Bt, 32)
    x1 = jnp.dot(s01_ref[1], h, preferred_element_type=f32)   # (Bt, 32)
    logits = (jnp.dot(x0.astype(bf16), g_ref[0], preferred_element_type=f32) +
              jnp.dot(x1.astype(bf16), g_ref[1], preferred_element_type=f32) +
              bfc_ref[...])                                    # (Bt, 10)
    o_ref[...] = logits.astype(o_ref.dtype)


# --------------------------------- wrapper ----------------------------------

def simple_cnn_forward(x_nchw, kp):
    # x_nchw: (B, 3, 32, 32) float32 (PyTorch convention).  The NCHW -> (H, W*C)
    # layout transform is one-time wrapper glue, outside the kernel hot path.
    B = x_nchw.shape[0]
    Bp = ((B + B_TILE - 1) // B_TILE) * B_TILE
    x2d = jnp.transpose(x_nchw, (0, 2, 3, 1)).reshape(B, 32, 32 * 3)
    if Bp != B:
        x2d = jnp.concatenate(
            [x2d, jnp.zeros((Bp - B, 32, 96), x2d.dtype)], axis=0)
    x2d = x2d.reshape(Bp * 32, 96).astype(jnp.bfloat16)

    consts = (kp["t1"], kp["b1"], kp["t2"], kp["b2"], kp["sc1"],
              kp["t3"], kp["b3"], kp["t4"], kp["b4"], kp["sc2"],
              kp["s01"], kp["g"], kp["bfc"])

    def const_spec(arr):
        return pl.BlockSpec(arr.shape, lambda b, nd=arr.ndim: (0,) * nd)

    out = pl.pallas_call(
        _cnn_kernel,
        out_shape=jax.ShapeDtypeStruct((Bp, 10), jnp.float32),
        grid=(Bp // B_TILE,),
        in_specs=[pl.BlockSpec((B_TILE * 32, 96), lambda b: (b, 0))] +
                 [const_spec(c) for c in consts],
        out_specs=pl.BlockSpec((B_TILE, 10), lambda b: (b, 0)),
        compiler_params=pltpu.CompilerParams(
            dimension_semantics=("parallel",)),
    )(x2d, *consts)
    return out[:B]


# ------------------------- pure-JAX reference (check) ------------------------

def _ref_forward(x_nchw, p):
    dn = ("NHWC", "HWIO", "NHWC")

    def conv(x, w, b):
        y = jax.lax.conv_general_dilated(x, w, (1, 1), "VALID",
                                         dimension_numbers=dn)
        return jax.nn.relu(y + b)

    def pool(x):
        return jax.lax.reduce_window(x, -jnp.inf, jax.lax.max,
                                     (1, 2, 2, 1), (1, 2, 2, 1), "VALID")

    x = jnp.transpose(x_nchw, (0, 2, 3, 1))
    x = conv(x, p["w1"], p["b1"])
    x = conv(x, p["w2"], p["b2"])
    x = pool(x)
    x = conv(x, p["w3"], p["b3"])
    x = conv(x, p["w4"], p["b4"])
    x = pool(x)
    B = x.shape[0]
    xf = jnp.transpose(x, (0, 3, 1, 2)).reshape(B, -1)
    return xf @ p["wfc"] + p["bfc"]


# ----------------------------------- main ------------------------------------

if __name__ == "__main__":
    key = jax.random.PRNGKey(0)
    ks = jax.random.split(key, 11)

    def init(k, shape, scale=0.1):
        return (scale * jax.random.normal(k, shape)).astype(jnp.float32)

    params = {
        "w1": init(ks[0], (5, 5, 3, 8)),   "b1": init(ks[1], (8,)),
        "w2": init(ks[2], (5, 5, 8, 8)),   "b2": init(ks[3], (8,)),
        "w3": init(ks[4], (5, 5, 8, 16)),  "b3": init(ks[5], (16,)),
        "w4": init(ks[6], (5, 5, 16, 16)), "b4": init(ks[7], (16,)),
        "wfc": init(ks[8], (16 * 2 * 2, 10)), "bfc": init(ks[9], (10,)),
    }
    # Batch 16 = 2 grid blocks of B_TILE=8 (exercises the batched path and
    # gives both v7x TensorCores a block).
    x = jax.random.normal(ks[10], (16, 3, 32, 32), dtype=jnp.float32)

    kp = prepare_params(params)
    fwd = jax.jit(simple_cnn_forward)

    out = jax.block_until_ready(fwd(x, kp))
    assert out.shape == (16, 10), out.shape

    ref = jax.block_until_ready(_ref_forward(x, params))
    err = float(jnp.max(jnp.abs(out - ref)))
    # Tolerance sized for bf16 matmul operands (accumulation stays f32); any
    # structural bug (wrong band / row / selector) would be orders larger.
    assert jnp.allclose(out, ref, atol=5e-2, rtol=5e-2), f"max abs err {err}"

    print("KERNEL_OK")
</pallas_src>

<mosaic_0001>
module attributes {stable_mosaic.version = 11 : i64} {
  func.func @_cnn_kernel(%arg0: i32, %arg1: memref<256x96xbf16, #tpu.memory_space<vmem>>, %arg2: memref<5x96x224xbf16, #tpu.memory_space<vmem>>, %arg3: memref<1x224xf32, #tpu.memory_space<vmem>>, %arg4: memref<5x224x192xbf16, #tpu.memory_space<vmem>>, %arg5: memref<1x192xf32, #tpu.memory_space<vmem>>, %arg6: memref<2x192x96xbf16, #tpu.memory_space<vmem>>, %arg7: memref<5x96x128xbf16, #tpu.memory_space<vmem>>, %arg8: memref<1x128xf32, #tpu.memory_space<vmem>>, %arg9: memref<5x128x64xbf16, #tpu.memory_space<vmem>>, %arg10: memref<1x64xf32, #tpu.memory_space<vmem>>, %arg11: memref<2x64x32xbf16, #tpu.memory_space<vmem>>, %arg12: memref<2x8x229xbf16, #tpu.memory_space<vmem>>, %arg13: memref<2x32x10xbf16, #tpu.memory_space<vmem>>, %arg14: memref<1x10xf32, #tpu.memory_space<vmem>>, %arg15: memref<8x10xf32, #tpu.memory_space<vmem>>) attributes {dimension_semantics = [#tpu.dimension_semantics<parallel>], iteration_bounds = array<i64: 2>, scalar_prefetch = 0 : i64, scratch_operands = 0 : i64, tpu.core_type = #tpu.core_type<tc>, window_params = [{transform_indices = @transform_0, window_bounds = array<i64: 256, 96>}, {pipeline_mode = #tpu.pipeline_mode<synchronous>, transform_indices = @transform_1, window_bounds = array<i64: 5, 96, 224>}, {pipeline_mode = #tpu.pipeline_mode<synchronous>, transform_indices = @transform_2, window_bounds = array<i64: 1, 224>}, {pipeline_mode = #tpu.pipeline_mode<synchronous>, transform_indices = @transform_3, window_bounds = array<i64: 5, 224, 192>}, {pipeline_mode = #tpu.pipeline_mode<synchronous>, transform_indices = @transform_4, window_bounds = array<i64: 1, 192>}, {pipeline_mode = #tpu.pipeline_mode<synchronous>, transform_indices = @transform_5, window_bounds = array<i64: 2, 192, 96>}, {pipeline_mode = #tpu.pipeline_mode<synchronous>, transform_indices = @transform_6, window_bounds = array<i64: 5, 96, 128>}, {pipeline_mode = #tpu.pipeline_mode<synchronous>, transform_indices = @transform_7, window_bounds = array<i64: 1, 128>}, {pipeline_mode = #tpu.pipeline_mode<synchronous>, transform_indices = @transform_8, window_bounds = array<i64: 5, 128, 64>}, {pipeline_mode = #tpu.pipeline_mode<synchronous>, transform_indices = @transform_9, window_bounds = array<i64: 1, 64>}, {pipeline_mode = #tpu.pipeline_mode<synchronous>, transform_indices = @transform_10, window_bounds = array<i64: 2, 64, 32>}, {pipeline_mode = #tpu.pipeline_mode<synchronous>, transform_indices = @transform_11, window_bounds = array<i64: 2, 8, 229>}, {pipeline_mode = #tpu.pipeline_mode<synchronous>, transform_indices = @transform_12, window_bounds = array<i64: 2, 32, 10>}, {pipeline_mode = #tpu.pipeline_mode<synchronous>, transform_indices = @transform_13, window_bounds = array<i64: 1, 10>}, {transform_indices = @transform_14, window_bounds = array<i64: 8, 10>}]} {
    %c0 = arith.constant 0 : index
    %c0_0 = arith.constant 0 : index
    %0 = vector.load %arg1[%c0, %c0_0] : memref<256x96xbf16, #tpu.memory_space<vmem>>, vector<256x96xbf16>
    %1 = vector.extract_strided_slice %0 {offsets = [0, 0], sizes = [252, 96], strides = [1, 1]} : vector<256x96xbf16> to vector<252x96xbf16>
    %c0_1 = arith.constant 0 : index
    %c0_2 = arith.constant 0 : index
    %c0_3 = arith.constant 0 : index
    %2 = vector.load %arg2[%c0_1, %c0_2, %c0_3] : memref<5x96x224xbf16, #tpu.memory_space<vmem>>, vector<1x96x224xbf16>
    %3 = vector.shape_cast %2 : vector<1x96x224xbf16> to vector<96x224xbf16>
    %cst = arith.constant dense<0.000000e+00> : vector<252x224xf32>
    %4 = tpu.matmul %1, %3, %cst {dimension_numbers = #tpu.dot_dimension_numbers<[1], [0], [0], [1], [0, 0, 1, 1], [], []>} : vector<252x96xbf16>, vector<96x224xbf16>, vector<252x224xf32> -> vector<252x224xf32>
    %5 = vector.extract_strided_slice %0 {offsets = [1, 0], sizes = [252, 96], strides = [1, 1]} : vector<256x96xbf16> to vector<252x96xbf16>
    %c1 = arith.constant 1 : index
    %c0_4 = arith.constant 0 : index
    %c0_5 = arith.constant 0 : index
    %6 = vector.load %arg2[%c1, %c0_4, %c0_5] : memref<5x96x224xbf16, #tpu.memory_space<vmem>>, vector<1x96x224xbf16>
    %7 = vector.shape_cast %6 : vector<1x96x224xbf16> to vector<96x224xbf16>
    %cst_6 = arith.constant dense<0.000000e+00> : vector<252x224xf32>
    %8 = tpu.matmul %5, %7, %cst_6 {dimension_numbers = #tpu.dot_dimension_numbers<[1], [0], [0], [1], [0, 0, 1, 1], [], []>} : vector<252x96xbf16>, vector<96x224xbf16>, vector<252x224xf32> -> vector<252x224xf32>
    %9 = arith.addf %4, %8 : vector<252x224xf32>
    %10 = vector.extract_strided_slice %0 {offsets = [2, 0], sizes = [252, 96], strides = [1, 1]} : vector<256x96xbf16> to vector<252x96xbf16>
    %c2 = arith.constant 2 : index
    %c0_7 = arith.constant 0 : index
    %c0_8 = arith.constant 0 : index
    %11 = vector.load %arg2[%c2, %c0_7, %c0_8] : memref<5x96x224xbf16, #tpu.memory_space<vmem>>, vector<1x96x224xbf16>
    %12 = vector.shape_cast %11 : vector<1x96x224xbf16> to vector<96x224xbf16>
    %cst_9 = arith.constant dense<0.000000e+00> : vector<252x224xf32>
    %13 = tpu.matmul %10, %12, %cst_9 {dimension_numbers = #tpu.dot_dimension_numbers<[1], [0], [0], [1], [0, 0, 1, 1], [], []>} : vector<252x96xbf16>, vector<96x224xbf16>, vector<252x224xf32> -> vector<252x224xf32>
    %14 = arith.addf %9, %13 : vector<252x224xf32>
    %15 = vector.extract_strided_slice %0 {offsets = [3, 0], sizes = [252, 96], strides = [1, 1]} : vector<256x96xbf16> to vector<252x96xbf16>
    %c3 = arith.constant 3 : index
    %c0_10 = arith.constant 0 : index
    %c0_11 = arith.constant 0 : index
    %16 = vector.load %arg2[%c3, %c0_10, %c0_11] : memref<5x96x224xbf16, #tpu.memory_space<vmem>>, vector<1x96x224xbf16>
    %17 = vector.shape_cast %16 : vector<1x96x224xbf16> to vector<96x224xbf16>
    %cst_12 = arith.constant dense<0.000000e+00> : vector<252x224xf32>
    %18 = tpu.matmul %15, %17, %cst_12 {dimension_numbers = #tpu.dot_dimension_numbers<[1], [0], [0], [1], [0, 0, 1, 1], [], []>} : vector<252x96xbf16>, vector<96x224xbf16>, vector<252x224xf32> -> vector<252x224xf32>
    %19 = arith.addf %14, %18 : vector<252x224xf32>
    %20 = vector.extract_strided_slice %0 {offsets = [4, 0], sizes = [252, 96], strides = [1, 1]} : vector<256x96xbf16> to vector<252x96xbf16>
    %c4 = arith.constant 4 : index
    %c0_13 = arith.constant 0 : index
    %c0_14 = arith.constant 0 : index
    %21 = vector.load %arg2[%c4, %c0_13, %c0_14] : memref<5x96x224xbf16, #tpu.memory_space<vmem>>, vector<1x96x224xbf16>
    %22 = vector.shape_cast %21 : vector<1x96x224xbf16> to vector<96x224xbf16>
    %cst_15 = arith.constant dense<0.000000e+00> : vector<252x224xf32>
    %23 = tpu.matmul %20, %22, %cst_15 {dimension_numbers = #tpu.dot_dimension_numbers<[1], [0], [0], [1], [0, 0, 1, 1], [], []>} : vector<252x96xbf16>, vector<96x224xbf16>, vector<252x224xf32> -> vector<252x224xf32>
    %24 = arith.addf %19, %23 : vector<252x224xf32>
    %c0_16 = arith.constant 0 : index
    %c0_17 = arith.constant 0 : index
    %25 = vector.load %arg3[%c0_16, %c0_17] : memref<1x224xf32, #tpu.memory_space<vmem>>, vector<1x224xf32>
    %26 = vector.broadcast %25 : vector<1x224xf32> to vector<252x224xf32>
    %27 = arith.addf %24, %26 : vector<252x224xf32>
    %cst_18 = arith.constant 0.000000e+00 : f32
    %28 = vector.broadcast %cst_18 : f32 to vector<252x224xf32>
    %29 = arith.maximumf %27, %28 : vector<252x224xf32>
    %30 = arith.truncf %29 : vector<252x224xf32> to vector<252x224xbf16>
    %31 = vector.extract_strided_slice %30 {offsets = [0, 0], sizes = [248, 224], strides = [1, 1]} : vector<252x224xbf16> to vector<248x224xbf16>
    %c0_19 = arith.constant 0 : index
    %c0_20 = arith.constant 0 : index
    %c0_21 = arith.constant 0 : index
    %32 = vector.load %arg4[%c0_19, %c0_20, %c0_21] : memref<5x224x192xbf16, #tpu.memory_space<vmem>>, vector<1x224x192xbf16>
    %33 = vector.shape_cast %32 : vector<1x224x192xbf16> to vector<224x192xbf16>
    %cst_22 = arith.constant dense<0.000000e+00> : vector<248x192xf32>
    %34 = tpu.matmul %31, %33, %cst_22 {dimension_numbers = #tpu.dot_dimension_numbers<[1], [0], [0], [1], [0, 0, 1, 1], [], []>} : vector<248x224xbf16>, vector<224x192xbf16>, vector<248x192xf32> -> vector<248x192xf32>
    %35 = vector.extract_strided_slice %30 {offsets = [1, 0], sizes = [248, 224], strides = [1, 1]} : vector<252x224xbf16> to vector<248x224xbf16>
    %c1_23 = arith.constant 1 : index
    %c0_24 = arith.constant 0 : index
    %c0_25 = arith.constant 0 : index
    %36 = vector.load %arg4[%c1_23, %c0_24, %c0_25] : memref<5x224x192xbf16, #tpu.memory_space<vmem>>, vector<1x224x192xbf16>
    %37 = vector.shape_cast %36 : vector<1x224x192xbf16> to vector<224x192xbf16>
    %cst_26 = arith.constant dense<0.000000e+00> : vector<248x192xf32>
    %38 = tpu.matmul %35, %37, %cst_26 {dimension_numbers = #tpu.dot_dimension_numbers<[1], [0], [0], [1], [0, 0, 1, 1], [], []>} : vector<248x224xbf16>, vector<224x192xbf16>, vector<248x192xf32> -> vector<248x192xf32>
    %39 = arith.addf %34, %38 : vector<248x192xf32>
    %40 = vector.extract_strided_slice %30 {offsets = [2, 0], sizes = [248, 224], strides = [1, 1]} : vector<252x224xbf16> to vector<248x224xbf16>
    %c2_27 = arith.constant 2 : index
    %c0_28 = arith.constant 0 : index
    %c0_29 = arith.constant 0 : index
    %41 = vector.load %arg4[%c2_27, %c0_28, %c0_29] : memref<5x224x192xbf16, #tpu.memory_space<vmem>>, vector<1x224x192xbf16>
    %42 = vector.shape_cast %41 : vector<1x224x192xbf16> to vector<224x192xbf16>
    %cst_30 = arith.constant dense<0.000000e+00> : vector<248x192xf32>
    %43 = tpu.matmul %40, %42, %cst_30 {dimension_numbers = #tpu.dot_dimension_numbers<[1], [0], [0], [1], [0, 0, 1, 1], [], []>} : vector<248x224xbf16>, vector<224x192xbf16>, vector<248x192xf32> -> vector<248x192xf32>
    %44 = arith.addf %39, %43 : vector<248x192xf32>
    %45 = vector.extract_strided_slice %30 {offsets = [3, 0], sizes = [248, 224], strides = [1, 1]} : vector<252x224xbf16> to vector<248x224xbf16>
    %c3_31 = arith.constant 3 : index
    %c0_32 = arith.constant 0 : index
    %c0_33 = arith.constant 0 : index
    %46 = vector.load %arg4[%c3_31, %c0_32, %c0_33] : memref<5x224x192xbf16, #tpu.memory_space<vmem>>, vector<1x224x192xbf16>
    %47 = vector.shape_cast %46 : vector<1x224x192xbf16> to vector<224x192xbf16>
    %cst_34 = arith.constant dense<0.000000e+00> : vector<248x192xf32>
    %48 = tpu.matmul %45, %47, %cst_34 {dimension_numbers = #tpu.dot_dimension_numbers<[1], [0], [0], [1], [0, 0, 1, 1], [], []>} : vector<248x224xbf16>, vector<224x192xbf16>, vector<248x192xf32> -> vector<248x192xf32>
    %49 = arith.addf %44, %48 : vector<248x192xf32>
    %50 = vector.extract_strided_slice %30 {offsets = [4, 0], sizes = [248, 224], strides = [1, 1]} : vector<252x224xbf16> to vector<248x224xbf16>
    %c4_35 = arith.constant 4 : index
    %c0_36 = arith.constant 0 : index
    %c0_37 = arith.constant 0 : index
    %51 = vector.load %arg4[%c4_35, %c0_36, %c0_37] : memref<5x224x192xbf16, #tpu.memory_space<vmem>>, vector<1x224x192xbf16>
    %52 = vector.shape_cast %51 : vector<1x224x192xbf16> to vector<224x192xbf16>
    %cst_38 = arith.constant dense<0.000000e+00> : vector<248x192xf32>
    %53 = tpu.matmul %50, %52, %cst_38 {dimension_numbers = #tpu.dot_dimension_numbers<[1], [0], [0], [1], [0, 0, 1, 1], [], []>} : vector<248x224xbf16>, vector<224x192xbf16>, vector<248x192xf32> -> vector<248x192xf32>
    %54 = arith.addf %49, %53 : vector<248x192xf32>
    %c0_39 = arith.constant 0 : index
    %c0_40 = arith.constant 0 : index
    %55 = vector.load %arg5[%c0_39, %c0_40] : memref<1x192xf32, #tpu.memory_space<vmem>>, vector<1x192xf32>
    %56 = vector.broadcast %55 : vector<1x192xf32> to vector<248x192xf32>
    %57 = arith.addf %54, %56 : vector<248x192xf32>
    %cst_41 = arith.constant 0.000000e+00 : f32
    %58 = vector.broadcast %cst_41 : f32 to vector<248x192xf32>
    %59 = arith.maximumf %57, %58 : vector<248x192xf32>
    %60 = arith.truncf %59 : vector<248x192xf32> to vector<248x192xbf16>
    %61 = vector.extract_strided_slice %60 {offsets = [0, 0], sizes = [247, 192], strides = [1, 1]} : vector<248x192xbf16> to vector<247x192xbf16>
    %62 = vector.extract_strided_slice %60 {offsets = [1, 0], sizes = [247, 192], strides = [1, 1]} : vector<248x192xbf16> to vector<247x192xbf16>
    %63 = arith.maximumf %61, %62 : vector<247x192xbf16>
    %c0_42 = arith.constant 0 : index
    %c0_43 = arith.constant 0 : index
    %c0_44 = arith.constant 0 : index
    %64 = vector.load %arg6[%c0_42, %c0_43, %c0_44] : memref<2x192x96xbf16, #tpu.memory_space<vmem>>, vector<1x192x96xbf16>
    %65 = vector.shape_cast %64 : vector<1x192x96xbf16> to vector<192x96xbf16>
    %cst_45 = arith.constant dense<0.000000e+00> : vector<247x96xf32>
    %66 = tpu.matmul %63, %65, %cst_45 {dimension_numbers = #tpu.dot_dimension_numbers<[1], [0], [0], [1], [0, 0, 1, 1], [], []>} : vector<247x192xbf16>, vector<192x96xbf16>, vector<247x96xf32> -> vector<247x96xf32>
    %c1_46 = arith.constant 1 : index
    %c0_47 = arith.constant 0 : index
    %c0_48 = arith.constant 0 : index
    %67 = vector.load %arg6[%c1_46, %c0_47, %c0_48] : memref<2x192x96xbf16, #tpu.memory_space<vmem>>, vector<1x192x96xbf16>
    %68 = vector.shape_cast %67 : vector<1x192x96xbf16> to vector<192x96xbf16>
    %cst_49 = arith.constant dense<0.000000e+00> : vector<247x96xf32>
    %69 = tpu.matmul %63, %68, %cst_49 {dimension_numbers = #tpu.dot_dimension_numbers<[1], [0], [0], [1], [0, 0, 1, 1], [], []>} : vector<247x192xbf16>, vector<192x96xbf16>, vector<247x96xf32> -> vector<247x96xf32>
    %70 = arith.maximumf %66, %69 : vector<247x96xf32>
    %71 = arith.truncf %70 : vector<247x96xf32> to vector<247x96xbf16>
    %72 = vector.extract_strided_slice %71 {offsets = [0, 0], sizes = [239, 96], strides = [1, 1]} : vector<247x96xbf16> to vector<239x96xbf16>
    %c0_50 = arith.constant 0 : index
    %c0_51 = arith.constant 0 : index
    %c0_52 = arith.constant 0 : index
    %73 = vector.load %arg7[%c0_50, %c0_51, %c0_52] : memref<5x96x128xbf16, #tpu.memory_space<vmem>>, vector<1x96x128xbf16>
    %74 = vector.shape_cast %73 : vector<1x96x128xbf16> to vector<96x128xbf16>
    %cst_53 = arith.constant dense<0.000000e+00> : vector<239x128xf32>
    %75 = tpu.matmul %72, %74, %cst_53 {dimension_numbers = #tpu.dot_dimension_numbers<[1], [0], [0], [1], [0, 0, 1, 1], [], []>} : vector<239x96xbf16>, vector<96x128xbf16>, vector<239x128xf32> -> vector<239x128xf32>
    %76 = vector.extract_strided_slice %71 {offsets = [2, 0], sizes = [239, 96], strides = [1, 1]} : vector<247x96xbf16> to vector<239x96xbf16>
    %c1_54 = arith.constant 1 : index
    %c0_55 = arith.constant 0 : index
    %c0_56 = arith.constant 0 : index
    %77 = vector.load %arg7[%c1_54, %c0_55, %c0_56] : memref<5x96x128xbf16, #tpu.memory_space<vmem>>, vector<1x96x128xbf16>
    %78 = vector.shape_cast %77 : vector<1x96x128xbf16> to vector<96x128xbf16>
    %cst_57 = arith.constant dense<0.000000e+00> : vector<239x128xf32>
    %79 = tpu.matmul %76, %78, %cst_57 {dimension_numbers = #tpu.dot_dimension_numbers<[1], [0], [0], [1], [0, 0, 1, 1], [], []>} : vector<239x96xbf16>, vector<96x128xbf16>, vector<239x128xf32> -> vector<239x128xf32>
    %80 = arith.addf %75, %79 : vector<239x128xf32>
    %81 = vector.extract_strided_slice %71 {offsets = [4, 0], sizes = [239, 96], strides = [1, 1]} : vector<247x96xbf16> to vector<239x96xbf16>
    %c2_58 = arith.constant 2 : index
    %c0_59 = arith.constant 0 : index
    %c0_60 = arith.constant 0 : index
    %82 = vector.load %arg7[%c2_58, %c0_59, %c0_60] : memref<5x96x128xbf16, #tpu.memory_space<vmem>>, vector<1x96x128xbf16>
    %83 = vector.shape_cast %82 : vector<1x96x128xbf16> to vector<96x128xbf16>
    %cst_61 = arith.constant dense<0.000000e+00> : vector<239x128xf32>
    %84 = tpu.matmul %81, %83, %cst_61 {dimension_numbers = #tpu.dot_dimension_numbers<[1], [0], [0], [1], [0, 0, 1, 1], [], []>} : vector<239x96xbf16>, vector<96x128xbf16>, vector<239x128xf32> -> vector<239x128xf32>
    %85 = arith.addf %80, %84 : vector<239x128xf32>
    %86 = vector.extract_strided_slice %71 {offsets = [6, 0], sizes = [239, 96], strides = [1, 1]} : vector<247x96xbf16> to vector<239x96xbf16>
    %c3_62 = arith.constant 3 : index
    %c0_63 = arith.constant 0 : index
    %c0_64 = arith.constant 0 : index
    %87 = vector.load %arg7[%c3_62, %c0_63, %c0_64] : memref<5x96x128xbf16, #tpu.memory_space<vmem>>, vector<1x96x128xbf16>
    %88 = vector.shape_cast %87 : vector<1x96x128xbf16> to vector<96x128xbf16>
    %cst_65 = arith.constant dense<0.000000e+00> : vector<239x128xf32>
    %89 = tpu.matmul %86, %88, %cst_65 {dimension_numbers = #tpu.dot_dimension_numbers<[1], [0], [0], [1], [0, 0, 1, 1], [], []>} : vector<239x96xbf16>, vector<96x128xbf16>, vector<239x128xf32> -> vector<239x128xf32>
    %90 = arith.addf %85, %89 : vector<239x128xf32>
    %91 = vector.extract_strided_slice %71 {offsets = [8, 0], sizes = [239, 96], strides = [1, 1]} : vector<247x96xbf16> to vector<239x96xbf16>
    %c4_66 = arith.constant 4 : index
    %c0_67 = arith.constant 0 : index
    %c0_68 = arith.constant 0 : index
    %92 = vector.load %arg7[%c4_66, %c0_67, %c0_68] : memref<5x96x128xbf16, #tpu.memory_space<vmem>>, vector<1x96x128xbf16>
    %93 = vector.shape_cast %92 : vector<1x96x128xbf16> to vector<96x128xbf16>
    %cst_69 = arith.constant dense<0.000000e+00> : vector<239x128xf32>
    %94 = tpu.matmul %91, %93, %cst_69 {dimension_numbers = #tpu.dot_dimension_numbers<[1], [0], [0], [1], [0, 0, 1, 1], [], []>} : vector<239x96xbf16>, vector<96x128xbf16>, vector<239x128xf32> -> vector<239x128xf32>
    %95 = arith.addf %90, %94 : vector<239x128xf32>
    %c0_70 = arith.constant 0 : index
    %c0_71 = arith.constant 0 : index
    %96 = vector.load %arg8[%c0_70, %c0_71] : memref<1x128xf32, #tpu.memory_space<vmem>>, vector<1x128xf32>
    %97 = vector.broadcast %96 : vector<1x128xf32> to vector<239x128xf32>
    %98 = arith.addf %95, %97 : vector<239x128xf32>
    %cst_72 = arith.constant 0.000000e+00 : f32
    %99 = vector.broadcast %cst_72 : f32 to vector<239x128xf32>
    %100 = arith.maximumf %98, %99 : vector<239x128xf32>
    %101 = arith.truncf %100 : vector<239x128xf32> to vector<239x128xbf16>
    %102 = vector.extract_strided_slice %101 {offsets = [0, 0], sizes = [231, 128], strides = [1, 1]} : vector<239x128xbf16> to vector<231x128xbf16>
    %c0_73 = arith.constant 0 : index
    %c0_74 = arith.constant 0 : index
    %c0_75 = arith.constant 0 : index
    %103 = vector.load %arg9[%c0_73, %c0_74, %c0_75] : memref<5x128x64xbf16, #tpu.memory_space<vmem>>, vector<1x128x64xbf16>
    %104 = vector.shape_cast %103 : vector<1x128x64xbf16> to vector<128x64xbf16>
    %cst_76 = arith.constant dense<0.000000e+00> : vector<231x64xf32>
    %105 = tpu.matmul %102, %104, %cst_76 {dimension_numbers = #tpu.dot_dimension_numbers<[1], [0], [0], [1], [0, 0, 1, 1], [], []>} : vector<231x128xbf16>, vector<128x64xbf16>, vector<231x64xf32> -> vector<231x64xf32>
    %106 = vector.extract_strided_slice %101 {offsets = [2, 0], sizes = [231, 128], strides = [1, 1]} : vector<239x128xbf16> to vector<231x128xbf16>
    %c1_77 = arith.constant 1 : index
    %c0_78 = arith.constant 0 : index
    %c0_79 = arith.constant 0 : index
    %107 = vector.load %arg9[%c1_77, %c0_78, %c0_79] : memref<5x128x64xbf16, #tpu.memory_space<vmem>>, vector<1x128x64xbf16>
    %108 = vector.shape_cast %107 : vector<1x128x64xbf16> to vector<128x64xbf16>
    %cst_80 = arith.constant dense<0.000000e+00> : vector<231x64xf32>
    %109 = tpu.matmul %106, %108, %cst_80 {dimension_numbers = #tpu.dot_dimension_numbers<[1], [0], [0], [1], [0, 0, 1, 1], [], []>} : vector<231x128xbf16>, vector<128x64xbf16>, vector<231x64xf32> -> vector<231x64xf32>
    %110 = arith.addf %105, %109 : vector<231x64xf32>
    %111 = vector.extract_strided_slice %101 {offsets = [4, 0], sizes = [231, 128], strides = [1, 1]} : vector<239x128xbf16> to vector<231x128xbf16>
    %c2_81 = arith.constant 2 : index
    %c0_82 = arith.constant 0 : index
    %c0_83 = arith.constant 0 : index
    %112 = vector.load %arg9[%c2_81, %c0_82, %c0_83] : memref<5x128x64xbf16, #tpu.memory_space<vmem>>, vector<1x128x64xbf16>
    %113 = vector.shape_cast %112 : vector<1x128x64xbf16> to vector<128x64xbf16>
    %cst_84 = arith.constant dense<0.000000e+00> : vector<231x64xf32>
    %114 = tpu.matmul %111, %113, %cst_84 {dimension_numbers = #tpu.dot_dimension_numbers<[1], [0], [0], [1], [0, 0, 1, 1], [], []>} : vector<231x128xbf16>, vector<128x64xbf16>, vector<231x64xf32> -> vector<231x64xf32>
    %115 = arith.addf %110, %114 : vector<231x64xf32>
    %116 = vector.extract_strided_slice %101 {offsets = [6, 0], sizes = [231, 128], strides = [1, 1]} : vector<239x128xbf16> to vector<231x128xbf16>
    %c3_85 = arith.constant 3 : index
    %c0_86 = arith.constant 0 : index
    %c0_87 = arith.constant 0 : index
    %117 = vector.load %arg9[%c3_85, %c0_86, %c0_87] : memref<5x128x64xbf16, #tpu.memory_space<vmem>>, vector<1x128x64xbf16>
    %118 = vector.shape_cast %117 : vector<1x128x64xbf16> to vector<128x64xbf16>
    %cst_88 = arith.constant dense<0.000000e+00> : vector<231x64xf32>
    %119 = tpu.matmul %116, %118, %cst_88 {dimension_numbers = #tpu.dot_dimension_numbers<[1], [0], [0], [1], [0, 0, 1, 1], [], []>} : vector<231x128xbf16>, vector<128x64xbf16>, vector<231x64xf32> -> vector<231x64xf32>
    %120 = arith.addf %115, %119 : vector<231x64xf32>
    %121 = vector.extract_strided_slice %101 {offsets = [8, 0], sizes = [231, 128], strides = [1, 1]} : vector<239x128xbf16> to vector<231x128xbf16>
    %c4_89 = arith.constant 4 : index
    %c0_90 = arith.constant 0 : index
    %c0_91 = arith.constant 0 : index
    %122 = vector.load %arg9[%c4_89, %c0_90, %c0_91] : memref<5x128x64xbf16, #tpu.memory_space<vmem>>, vector<1x128x64xbf16>
    %123 = vector.shape_cast %122 : vector<1x128x64xbf16> to vector<128x64xbf16>
    %cst_92 = arith.constant dense<0.000000e+00> : vector<231x64xf32>
    %124 = tpu.matmul %121, %123, %cst_92 {dimension_numbers = #tpu.dot_dimension_numbers<[1], [0], [0], [1], [0, 0, 1, 1], [], []>} : vector<231x128xbf16>, vector<128x64xbf16>, vector<231x64xf32> -> vector<231x64xf32>
    %125 = arith.addf %120, %124 : vector<231x64xf32>
    %c0_93 = arith.constant 0 : index
    %c0_94 = arith.constant 0 : index
    %126 = vector.load %arg10[%c0_93, %c0_94] : memref<1x64xf32, #tpu.memory_space<vmem>>, vector<1x64xf32>
    %127 = vector.broadcast %126 : vector<1x64xf32> to vector<231x64xf32>
    %128 = arith.addf %125, %127 : vector<231x64xf32>
    %cst_95 = arith.constant 0.000000e+00 : f32
    %129 = vector.broadcast %cst_95 : f32 to vector<231x64xf32>
    %130 = arith.maximumf %128, %129 : vector<231x64xf32>
    %131 = arith.truncf %130 : vector<231x64xf32> to vector<231x64xbf16>
    %132 = vector.extract_strided_slice %131 {offsets = [0, 0], sizes = [229, 64], strides = [1, 1]} : vector<231x64xbf16> to vector<229x64xbf16>
    %133 = vector.extract_strided_slice %131 {offsets = [2, 0], sizes = [229, 64], strides = [1, 1]} : vector<231x64xbf16> to vector<229x64xbf16>
    %134 = arith.maximumf %132, %133 : vector<229x64xbf16>
    %c0_96 = arith.constant 0 : index
    %c0_97 = arith.constant 0 : index
    %c0_98 = arith.constant 0 : index
    %135 = vector.load %arg11[%c0_96, %c0_97, %c0_98] : memref<2x64x32xbf16, #tpu.memory_space<vmem>>, vector<1x64x32xbf16>
    %136 = vector.shape_cast %135 : vector<1x64x32xbf16> to vector<64x32xbf16>
    %cst_99 = arith.constant dense<0.000000e+00> : vector<229x32xf32>
    %137 = tpu.matmul %134, %136, %cst_99 {dimension_numbers = #tpu.dot_dimension_numbers<[1], [0], [0], [1], [0, 0, 1, 1], [], []>} : vector<229x64xbf16>, vector<64x32xbf16>, vector<229x32xf32> -> vector<229x32xf32>
    %c1_100 = arith.constant 1 : index
    %c0_101 = arith.constant 0 : index
    %c0_102 = arith.constant 0 : index
    %138 = vector.load %arg11[%c1_100, %c0_101, %c0_102] : memref<2x64x32xbf16, #tpu.memory_space<vmem>>, vector<1x64x32xbf16>
    %139 = vector.shape_cast %138 : vector<1x64x32xbf16> to vector<64x32xbf16>
    %cst_103 = arith.constant dense<0.000000e+00> : vector<229x32xf32>
    %140 = tpu.matmul %134, %139, %cst_103 {dimension_numbers = #tpu.dot_dimension_numbers<[1], [0], [0], [1], [0, 0, 1, 1], [], []>} : vector<229x64xbf16>, vector<64x32xbf16>, vector<229x32xf32> -> vector<229x32xf32>
    %141 = arith.maximumf %137, %140 : vector<229x32xf32>
    %142 = arith.truncf %141 : vector<229x32xf32> to vector<229x32xbf16>
    %c0_104 = arith.constant 0 : index
    %c0_105 = arith.constant 0 : index
    %c0_106 = arith.constant 0 : index
    %143 = vector.load %arg12[%c0_104, %c0_105, %c0_106] : memref<2x8x229xbf16, #tpu.memory_space<vmem>>, vector<1x8x229xbf16>
    %144 = vector.shape_cast %143 : vector<1x8x229xbf16> to vector<8x229xbf16>
    %cst_107 = arith.constant dense<0.000000e+00> : vector<8x32xf32>
    %145 = tpu.matmul %144, %142, %cst_107 {dimension_numbers = #tpu.dot_dimension_numbers<[1], [0], [0], [1], [0, 0, 1, 1], [], []>} : vector<8x229xbf16>, vector<229x32xbf16>, vector<8x32xf32> -> vector<8x32xf32>
    %c1_108 = arith.constant 1 : index
    %c0_109 = arith.constant 0 : index
    %c0_110 = arith.constant 0 : index
    %146 = vector.load %arg12[%c1_108, %c0_109, %c0_110] : memref<2x8x229xbf16, #tpu.memory_space<vmem>>, vector<1x8x229xbf16>
    %147 = vector.shape_cast %146 : vector<1x8x229xbf16> to vector<8x229xbf16>
    %cst_111 = arith.constant dense<0.000000e+00> : vector<8x32xf32>
    %148 = tpu.matmul %147, %142, %cst_111 {dimension_numbers = #tpu.dot_dimension_numbers<[1], [0], [0], [1], [0, 0, 1, 1], [], []>} : vector<8x229xbf16>, vector<229x32xbf16>, vector<8x32xf32> -> vector<8x32xf32>
    %149 = arith.truncf %145 : vector<8x32xf32> to vector<8x32xbf16>
    %c0_112 = arith.constant 0 : index
    %c0_113 = arith.constant 0 : index
    %c0_114 = arith.constant 0 : index
    %150 = vector.load %arg13[%c0_112, %c0_113, %c0_114] : memref<2x32x10xbf16, #tpu.memory_space<vmem>>, vector<1x32x10xbf16>
    %151 = vector.shape_cast %150 : vector<1x32x10xbf16> to vector<32x10xbf16>
    %cst_115 = arith.constant dense<0.000000e+00> : vector<8x10xf32>
    %152 = tpu.matmul %149, %151, %cst_115 {dimension_numbers = #tpu.dot_dimension_numbers<[1], [0], [0], [1], [0, 0, 1, 1], [], []>} : vector<8x32xbf16>, vector<32x10xbf16>, vector<8x10xf32> -> vector<8x10xf32>
    %153 = arith.truncf %148 : vector<8x32xf32> to vector<8x32xbf16>
    %c1_116 = arith.constant 1 : index
    %c0_117 = arith.constant 0 : index
    %c0_118 = arith.constant 0 : index
    %154 = vector.load %arg13[%c1_116, %c0_117, %c0_118] : memref<2x32x10xbf16, #tpu.memory_space<vmem>>, vector<1x32x10xbf16>
    %155 = vector.shape_cast %154 : vector<1x32x10xbf16> to vector<32x10xbf16>
    %cst_119 = arith.constant dense<0.000000e+00> : vector<8x10xf32>
    %156 = tpu.matmul %153, %155, %cst_119 {dimension_numbers = #tpu.dot_dimension_numbers<[1], [0], [0], [1], [0, 0, 1, 1], [], []>} : vector<8x32xbf16>, vector<32x10xbf16>, vector<8x10xf32> -> vector<8x10xf32>
    %157 = arith.addf %152, %156 : vector<8x10xf32>
    %c0_120 = arith.constant 0 : index
    %c0_121 = arith.constant 0 : index
    %158 = vector.load %arg14[%c0_120, %c0_121] : memref<1x10xf32, #tpu.memory_space<vmem>>, vector<1x10xf32>
    %159 = vector.broadcast %158 : vector<1x10xf32> to vector<8x10xf32>
    %160 = arith.addf %157, %159 : vector<8x10xf32>
    %c0_122 = arith.constant 0 : index
    %c0_123 = arith.constant 0 : index
    %161 = vector.load %arg15[%c0_122, %c0_123] : memref<8x10xf32, #tpu.memory_space<vmem>>, vector<8x10xf32>
    tpu.vector_store %arg15[%c0_122, %c0_123], %160 {strides = array<i32>} : memref<8x10xf32, #tpu.memory_space<vmem>>, vector<8x10xf32>,
    return
  }
  func.func @transform_0(%arg0: i32) -> (i32, i32) {
    %c0_i32 = arith.constant 0 : i32
    %c0_i32_0 = arith.constant 0 : i32
    return %arg0, %c0_i32 : i32, i32
  }
  func.func @transform_1(%arg0: i32) -> (i32, i32, i32) {
    %c0_i32 = arith.constant 0 : i32
    %c0_i32_0 = arith.constant 0 : i32
    %c0_i32_1 = arith.constant 0 : i32
    %c0_i32_2 = arith.constant 0 : i32
    return %c0_i32, %c0_i32_0, %c0_i32_1 : i32, i32, i32
  }
  func.func @transform_2(%arg0: i32) -> (i32, i32) {
    %c0_i32 = arith.constant 0 : i32
    %c0_i32_0 = arith.constant 0 : i32
    %c0_i32_1 = arith.constant 0 : i32
    return %c0_i32, %c0_i32_0 : i32, i32
  }
  func.func @transform_3(%arg0: i32) -> (i32, i32, i32) {
    %c0_i32 = arith.constant 0 : i32
    %c0_i32_0 = arith.constant 0 : i32
    %c0_i32_1 = arith.constant 0 : i32
    %c0_i32_2 = arith.constant 0 : i32
    return %c0_i32, %c0_i32_0, %c0_i32_1 : i32, i32, i32
  }
  func.func @transform_4(%arg0: i32) -> (i32, i32) {
    %c0_i32 = arith.constant 0 : i32
    %c0_i32_0 = arith.constant 0 : i32
    %c0_i32_1 = arith.constant 0 : i32
    return %c0_i32, %c0_i32_0 : i32, i32
  }
  func.func @transform_5(%arg0: i32) -> (i32, i32, i32) {
    %c0_i32 = arith.constant 0 : i32
    %c0_i32_0 = arith.constant 0 : i32
    %c0_i32_1 = arith.constant 0 : i32
    %c0_i32_2 = arith.constant 0 : i32
    return %c0_i32, %c0_i32_0, %c0_i32_1 : i32, i32, i32
  }
  func.func @transform_6(%arg0: i32) -> (i32, i32, i32) {
    %c0_i32 = arith.constant 0 : i32
    %c0_i32_0 = arith.constant 0 : i32
    %c0_i32_1 = arith.constant 0 : i32
    %c0_i32_2 = arith.constant 0 : i32
    return %c0_i32, %c0_i32_0, %c0_i32_1 : i32, i32, i32
  }
  func.func @transform_7(%arg0: i32) -> (i32, i32) {
    %c0_i32 = arith.constant 0 : i32
    %c0_i32_0 = arith.constant 0 : i32
    %c0_i32_1 = arith.constant 0 : i32
    return %c0_i32, %c0_i32_0 : i32, i32
  }
  func.func @transform_8(%arg0: i32) -> (i32, i32, i32) {
    %c0_i32 = arith.constant 0 : i32
    %c0_i32_0 = arith.constant 0 : i32
    %c0_i32_1 = arith.constant 0 : i32
    %c0_i32_2 = arith.constant 0 : i32
    return %c0_i32, %c0_i32_0, %c0_i32_1 : i32, i32, i32
  }
  func.func @transform_9(%arg0: i32) -> (i32, i32) {
    %c0_i32 = arith.constant 0 : i32
    %c0_i32_0 = arith.constant 0 : i32
    %c0_i32_1 = arith.constant 0 : i32
    return %c0_i32, %c0_i32_0 : i32, i32
  }
  func.func @transform_10(%arg0: i32) -> (i32, i32, i32) {
    %c0_i32 = arith.constant 0 : i32
    %c0_i32_0 = arith.constant 0 : i32
    %c0_i32_1 = arith.constant 0 : i32
    %c0_i32_2 = arith.constant 0 : i32
    return %c0_i32, %c0_i32_0, %c0_i32_1 : i32, i32, i32
  }
  func.func @transform_11(%arg0: i32) -> (i32, i32, i32) {
    %c0_i32 = arith.constant 0 : i32
    %c0_i32_0 = arith.constant 0 : i32
    %c0_i32_1 = arith.constant 0 : i32
    %c0_i32_2 = arith.constant 0 : i32
    return %c0_i32, %c0_i32_0, %c0_i32_1 : i32, i32, i32
  }
  func.func @transform_12(%arg0: i32) -> (i32, i32, i32) {
    %c0_i32 = arith.constant 0 : i32
    %c0_i32_0 = arith.constant 0 : i32
    %c0_i32_1 = arith.constant 0 : i32
    %c0_i32_2 = arith.constant 0 : i32
    return %c0_i32, %c0_i32_0, %c0_i32_1 : i32, i32, i32
  }
  func.func @transform_13(%arg0: i32) -> (i32, i32) {
    %c0_i32 = arith.constant 0 : i32
    %c0_i32_0 = arith.constant 0 : i32
    %c0_i32_1 = arith.constant 0 : i32
    return %c0_i32, %c0_i32_0 : i32, i32
  }
  func.func @transform_14(%arg0: i32) -> (i32, i32) {
    %c0_i32 = arith.constant 0 : i32
    %c0_i32_0 = arith.constant 0 : i32
    return %arg0, %c0_i32 : i32, i32
  }
}

</mosaic_0001>

<llo_original>
// kernel: simple_cnn_forward.1
$region0: #{simple_cnn_forward.1}
  #allocation0 [shape = 'u32[]', space=smem, size = 0x4, offset = 0x4, fixed_abs, tag = 'smem constant byte address 0x4 - core index']
  #allocation1 [shape = 'u32[144,128]{1,0:T(1,128)}', space=vmem, size = 0x12000, scoped, tag = 'internal scratch']
  %s0 = inlined_call_operand.vmem [shape: bf16[512,96], index: 0, kind: input, shape index: {}]
  %s1 = inlined_call_operand.vmem [shape: bf16[5,96,224], index: 1, kind: input, shape index: {}]
  %s2 = inlined_call_operand.vmem [shape: f32[1,224], index: 2, kind: input, shape index: {}]
  %s3 = inlined_call_operand.vmem [shape: bf16[5,224,192], index: 3, kind: input, shape index: {}]
  %s4 = inlined_call_operand.vmem [shape: f32[1,192], index: 4, kind: input, shape index: {}]
  %s5 = inlined_call_operand.vmem [shape: bf16[2,192,96], index: 5, kind: input, shape index: {}]
  %s6 = inlined_call_operand.vmem [shape: bf16[5,96,128], index: 6, kind: input, shape index: {}]
  %s7 = inlined_call_operand.vmem [shape: f32[1,128], index: 7, kind: input, shape index: {}]
  %s8 = inlined_call_operand.vmem [shape: bf16[5,128,64], index: 8, kind: input, shape index: {}]
  %s9 = inlined_call_operand.vmem [shape: f32[1,64], index: 9, kind: input, shape index: {}]
  %s10 = inlined_call_operand.vmem [shape: bf16[2,64,32], index: 10, kind: input, shape index: {}]
  %s11 = inlined_call_operand.vmem [shape: bf16[2,8,229], index: 11, kind: input, shape index: {}]
  %s12 = inlined_call_operand.vmem [shape: bf16[2,32,10], index: 12, kind: input, shape index: {}]
  %s13 = inlined_call_operand.vmem [shape: f32[1,10], index: 13, kind: input, shape index: {}]
  %s14 = inlined_call_operand.hbm [shape: f32[16,10], index: 14, kind: output, shape index: {}]
  %s15 = sld [smem:[#allocation0]]
  $region89: #{simple_cnn_forward.1} parent=0
    _
  %s17 = ssub.s32 1, %s15
  %s18 = scalar_select 0, %s17, %s15
  $region1: #{simple_cnn_forward.1} parent=0
    #allocation2 [shape = 'u8[8192]{0}', space=vmem, size = 0x2000, scoped, tag = 'output window, operand 0']
    #allocation3 [shape = 's32[2]{0}', space=sflag, size = 0x8, scoped, tag = 'scoped memory for simple_cnn_forward.1']
    %19 = vsyncpa [#allocation3], 0
    %s20 = scalar_lea.sflag [#allocation3], 1
    %21 = vsyncpa %s20, 0
    loop: start=0, step=1, limit=4
    $region2: #{simple_cnn_forward.1} parent=1 // loop_pre_header
      _
    $region3: #{simple_cnn_forward.1} parent=1 // loop_header
      %s23 = sphi 0, %s27
      %p24 = scmp.ge.s32.totalorder %s23, 4
      %s33 = sphi 0, %s35
      %s36 = sphi 0, %s33
      %s37 = sphi 0, %s36
      %s53 = sphi 0, %s37
      %s57 = sphi 0, %s57
      %s59 = sphi 0, %s57
      %s60 = sphi 0, %s59
      %s74 = sphi 0, %s60
      %s78 = sphi 0, %s78
      %s80 = sphi 0, %s78
      %s81 = sphi 0, %s80
      %s95 = sphi 0, %s81
      %s99 = sphi 0, %s99
      %s101 = sphi 0, %s99
      %s102 = sphi 0, %s101
      %s116 = sphi 0, %s102
      %s120 = sphi 0, %s120
      %s122 = sphi 0, %s120
      %s123 = sphi 0, %s122
      %s137 = sphi 0, %s123
      %s141 = sphi 0, %s141
      %s143 = sphi 0, %s141
      %s144 = sphi 0, %s143
      %s158 = sphi 0, %s144
      %s162 = sphi 0, %s162
      %s164 = sphi 0, %s162
      %s165 = sphi 0, %s164
      %s179 = sphi 0, %s165
      %s183 = sphi 0, %s183
      %s185 = sphi 0, %s183
      %s186 = sphi 0, %s185
      %s200 = sphi 0, %s186
      %s204 = sphi 0, %s204
      %s206 = sphi 0, %s204
      %s207 = sphi 0, %s206
      %s221 = sphi 0, %s207
      %s225 = sphi 0, %s225
      %s227 = sphi 0, %s225
      %s228 = sphi 0, %s227
      %s242 = sphi 0, %s228
      %s246 = sphi 0, %s246
      %s248 = sphi 0, %s246
      %s249 = sphi 0, %s248
      %s263 = sphi 0, %s249
      %s267 = sphi 0, %s267
      %s269 = sphi 0, %s267
      %s270 = sphi 0, %s269
      %s284 = sphi 0, %s270
      %s288 = sphi 0, %s288
      %s290 = sphi 0, %s288
      %s291 = sphi 0, %s290
      %s305 = sphi 0, %s291
      %s309 = sphi 0, %s309
      %s311 = sphi 0, %s309
      %s312 = sphi 0, %s311
      %s326 = sphi 0, %s312
      %s332 = sphi 0, %s334
      %s335 = sphi 0, %s332
      %s336 = sphi 0, %s335
      %s352 = sphi 0, %s336
    $region4: #{simple_cnn_forward.1} parent=1 // loop_header_branch
      %26 = sbr.rel (%p24) target = $region8
    $region5: #{simple_cnn_forward.1} parent=1 // loop_body
      %s28 = ssub.s32 %s23, 1
      %s29 = ssub.s32 %s23, 2
      %s30 = sadd.s32 %s23, 1
      %s31 = ssub.s32 %s23, %s30
      %p32 = scmp.eq.s32.totalorder %s31, 0
      %s34 = sadd.s32 %s33, 1
      %s35 = scalar_select %p32, %s33, %s34
      %p38 = pneg %p32
      %p39 = scmp.eq.s32.totalorder %s23, 1
      %p40 = por %p38, %p39
      %p41 = scmp.ne.s32.totalorder %s33, %s36
      %p42 = scmp.eq.s32.totalorder %s23, 0
      %p43 = por %p41, %p42
      %p44 = scmp.ne.s32.totalorder %s33, %s36
      %p45 = scmp.eq.s32.totalorder %s28, 1
      %p46 = por %p44, %p45
      %p47 = scmp.ne.s32.totalorder %s36, %s37
      %p48 = scmp.eq.s32.totalorder %s28, 0
      %p49 = por %p47, %p48
      %p50 = scmp.ne.s32.totalorder %s36, %s37
      %p51 = scmp.eq.s32.totalorder %s29, 1
      %p52 = por %p50, %p51
      %p54 = scmp.ne.s32.totalorder %s37, %s53
      %p55 = scmp.eq.s32.totalorder %s29, 0
      %p56 = por %p54, %p55
      %s58 = sadd.s32 %s57, 1
      %p61 = scmp.eq.s32.totalorder %s23, 1
      %p62 = scmp.ne.s32.totalorder %s57, %s59
      %p63 = scmp.eq.s32.totalorder %s23, 0
      %p64 = por %p62, %p63
      %p65 = scmp.ne.s32.totalorder %s57, %s59
      %p66 = scmp.eq.s32.totalorder %s28, 1
      %p67 = por %p65, %p66
      %p68 = scmp.ne.s32.totalorder %s59, %s60
      %p69 = scmp.eq.s32.totalorder %s28, 0
      %p70 = por %p68, %p69
      %p71 = scmp.ne.s32.totalorder %s59, %s60
      %p72 = scmp.eq.s32.totalorder %s29, 1
      %p73 = por %p71, %p72
      %p75 = scmp.ne.s32.totalorder %s60, %s74
      %p76 = scmp.eq.s32.totalorder %s29, 0
      %p77 = por %p75, %p76
      %s79 = sadd.s32 %s78, 1
      %p82 = scmp.eq.s32.totalorder %s23, 1
      %p83 = scmp.ne.s32.totalorder %s78, %s80
      %p84 = scmp.eq.s32.totalorder %s23, 0
      %p85 = por %p83, %p84
      %p86 = scmp.ne.s32.totalorder %s78, %s80
      %p87 = scmp.eq.s32.totalorder %s28, 1
      %p88 = por %p86, %p87
      %p89 = scmp.ne.s32.totalorder %s80, %s81
      %p90 = scmp.eq.s32.totalorder %s28, 0
      %p91 = por %p89, %p90
      %p92 = scmp.ne.s32.totalorder %s80, %s81
      %p93 = scmp.eq.s32.totalorder %s29, 1
      %p94 = por %p92, %p93
      %p96 = scmp.ne.s32.totalorder %s81, %s95
      %p97 = scmp.eq.s32.totalorder %s29, 0
      %p98 = por %p96, %p97
      %s100 = sadd.s32 %s99, 1
      %p103 = scmp.eq.s32.totalorder %s23, 1
      %p104 = scmp.ne.s32.totalorder %s99, %s101
      %p105 = scmp.eq.s32.totalorder %s23, 0
      %p106 = por %p104, %p105
      %p107 = scmp.ne.s32.totalorder %s99, %s101
      %p108 = scmp.eq.s32.totalorder %s28, 1
      %p109 = por %p107, %p108
      %p110 = scmp.ne.s32.totalorder %s101, %s102
      %p111 = scmp.eq.s32.totalorder %s28, 0
      %p112 = por %p110, %p111
      %p113 = scmp.ne.s32.totalorder %s101, %s102
      %p114 = scmp.eq.s32.totalorder %s29, 1
      %p115 = por %p113, %p114
      %p117 = scmp.ne.s32.totalorder %s102, %s116
      %p118 = scmp.eq.s32.totalorder %s29, 0
      %p119 = por %p117, %p118
      %s121 = sadd.s32 %s120, 1
      %p124 = scmp.eq.s32.totalorder %s23, 1
      %p125 = scmp.ne.s32.totalorder %s120, %s122
      %p126 = scmp.eq.s32.totalorder %s23, 0
      %p127 = por %p125, %p126
      %p128 = scmp.ne.s32.totalorder %s120, %s122
      %p129 = scmp.eq.s32.totalorder %s28, 1
      %p130 = por %p128, %p129
      %p131 = scmp.ne.s32.totalorder %s122, %s123
      %p132 = scmp.eq.s32.totalorder %s28, 0
      %p133 = por %p131, %p132
      %p134 = scmp.ne.s32.totalorder %s122, %s123
      %p135 = scmp.eq.s32.totalorder %s29, 1
      %p136 = por %p134, %p135
      %p138 = scmp.ne.s32.totalorder %s123, %s137
      %p139 = scmp.eq.s32.totalorder %s29, 0
      %p140 = por %p138, %p139
      %s142 = sadd.s32 %s141, 1
      %p145 = scmp.eq.s32.totalorder %s23, 1
      %p146 = scmp.ne.s32.totalorder %s141, %s143
      %p147 = scmp.eq.s32.totalorder %s23, 0
      %p148 = por %p146, %p147
      %p149 = scmp.ne.s32.totalorder %s141, %s143
      %p150 = scmp.eq.s32.totalorder %s28, 1
      %p151 = por %p149, %p150
      %p152 = scmp.ne.s32.totalorder %s143, %s144
      %p153 = scmp.eq.s32.totalorder %s28, 0
      %p154 = por %p152, %p153
      %p155 = scmp.ne.s32.totalorder %s143, %s144
      %p156 = scmp.eq.s32.totalorder %s29, 1
      %p157 = por %p155, %p156
      %p159 = scmp.ne.s32.totalorder %s144, %s158
      %p160 = scmp.eq.s32.totalorder %s29, 0
      %p161 = por %p159, %p160
      %s163 = sadd.s32 %s162, 1
      %p166 = scmp.eq.s32.totalorder %s23, 1
      %p167 = scmp.ne.s32.totalorder %s162, %s164
      %p168 = scmp.eq.s32.totalorder %s23, 0
      %p169 = por %p167, %p168
      %p170 = scmp.ne.s32.totalorder %s162, %s164
      %p171 = scmp.eq.s32.totalorder %s28, 1
      %p172 = por %p170, %p171
      %p173 = scmp.ne.s32.totalorder %s164, %s165
      %p174 = scmp.eq.s32.totalorder %s28, 0
      %p175 = por %p173, %p174
      %p176 = scmp.ne.s32.totalorder %s164, %s165
      %p177 = scmp.eq.s32.totalorder %s29, 1
      %p178 = por %p176, %p177
      %p180 = scmp.ne.s32.totalorder %s165, %s179
      %p181 = scmp.eq.s32.totalorder %s29, 0
      %p182 = por %p180, %p181
      %s184 = sadd.s32 %s183, 1
      %p187 = scmp.eq.s32.totalorder %s23, 1
      %p188 = scmp.ne.s32.totalorder %s183, %s185
      %p189 = scmp.eq.s32.totalorder %s23, 0
      %p190 = por %p188, %p189
      %p191 = scmp.ne.s32.totalorder %s183, %s185
      %p192 = scmp.eq.s32.totalorder %s28, 1
      %p193 = por %p191, %p192
      %p194 = scmp.ne.s32.totalorder %s185, %s186
      %p195 = scmp.eq.s32.totalorder %s28, 0
      %p196 = por %p194, %p195
      %p197 = scmp.ne.s32.totalorder %s185, %s186
      %p198 = scmp.eq.s32.totalorder %s29, 1
      %p199 = por %p197, %p198
      %p201 = scmp.ne.s32.totalorder %s186, %s200
      %p202 = scmp.eq.s32.totalorder %s29, 0
      %p203 = por %p201, %p202
      %s205 = sadd.s32 %s204, 1
      %p208 = scmp.eq.s32.totalorder %s23, 1
      %p209 = scmp.ne.s32.totalorder %s204, %s206
      %p210 = scmp.eq.s32.totalorder %s23, 0
      %p211 = por %p209, %p210
      %p212 = scmp.ne.s32.totalorder %s204, %s206
      %p213 = scmp.eq.s32.totalorder %s28, 1
      %p214 = por %p212, %p213
      %p215 = scmp.ne.s32.totalorder %s206, %s207
      %p216 = scmp.eq.s32.totalorder %s28, 0
      %p217 = por %p215, %p216
      %p218 = scmp.ne.s32.totalorder %s206, %s207
      %p219 = scmp.eq.s32.totalorder %s29, 1
      %p220 = por %p218, %p219
      %p222 = scmp.ne.s32.totalorder %s207, %s221
      %p223 = scmp.eq.s32.totalorder %s29, 0
      %p224 = por %p222, %p223
      %s226 = sadd.s32 %s225, 1
      %p229 = scmp.eq.s32.totalorder %s23, 1
      %p230 = scmp.ne.s32.totalorder %s225, %s227
      %p231 = scmp.eq.s32.totalorder %s23, 0
      %p232 = por %p230, %p231
      %p233 = scmp.ne.s32.totalorder %s225, %s227
      %p234 = scmp.eq.s32.totalorder %s28, 1
      %p235 = por %p233, %p234
      %p236 = scmp.ne.s32.totalorder %s227, %s228
      %p237 = scmp.eq.s32.totalorder %s28, 0
      %p238 = por %p236, %p237
      %p239 = scmp.ne.s32.totalorder %s227, %s228
      %p240 = scmp.eq.s32.totalorder %s29, 1
      %p241 = por %p239, %p240
      %p243 = scmp.ne.s32.totalorder %s228, %s242
      %p244 = scmp.eq.s32.totalorder %s29, 0
      %p245 = por %p243, %p244
      %s247 = sadd.s32 %s246, 1
      %p250 = scmp.eq.s32.totalorder %s23, 1
      %p251 = scmp.ne.s32.totalorder %s246, %s248
      %p252 = scmp.eq.s32.totalorder %s23, 0
      %p253 = por %p251, %p252
      %p254 = scmp.ne.s32.totalorder %s246, %s248
      %p255 = scmp.eq.s32.totalorder %s28, 1
      %p256 = por %p254, %p255
      %p257 = scmp.ne.s32.totalorder %s248, %s249
      %p258 = scmp.eq.s32.totalorder %s28, 0
      %p259 = por %p257, %p258
      %p260 = scmp.ne.s32.totalorder %s248, %s249
      %p261 = scmp.eq.s32.totalorder %s29, 1
      %p262 = por %p260, %p261
      %p264 = scmp.ne.s32.totalorder %s249, %s263
      %p265 = scmp.eq.s32.totalorder %s29, 0
      %p266 = por %p264, %p265
      %s268 = sadd.s32 %s267, 1
      %p271 = scmp.eq.s32.totalorder %s23, 1
      %p272 = scmp.ne.s32.totalorder %s267, %s269
      %p273 = scmp.eq.s32.totalorder %s23, 0
      %p274 = por %p272, %p273
      %p275 = scmp.ne.s32.totalorder %s267, %s269
      %p276 = scmp.eq.s32.totalorder %s28, 1
      %p277 = por %p275, %p276
      %p278 = scmp.ne.s32.totalorder %s269, %s270
      %p279 = scmp.eq.s32.totalorder %s28, 0
      %p280 = por %p278, %p279
      %p281 = scmp.ne.s32.totalorder %s269, %s270
      %p282 = scmp.eq.s32.totalorder %s29, 1
      %p283 = por %p281, %p282
      %p285 = scmp.ne.s32.totalorder %s270, %s284
      %p286 = scmp.eq.s32.totalorder %s29, 0
      %p287 = por %p285, %p286
      %s289 = sadd.s32 %s288, 1
      %p292 = scmp.eq.s32.totalorder %s23, 1
      %p293 = scmp.ne.s32.totalorder %s288, %s290
      %p294 = scmp.eq.s32.totalorder %s23, 0
      %p295 = por %p293, %p294
      %p296 = scmp.ne.s32.totalorder %s288, %s290
      %p297 = scmp.eq.s32.totalorder %s28, 1
      %p298 = por %p296, %p297
      %p299 = scmp.ne.s32.totalorder %s290, %s291
      %p300 = scmp.eq.s32.totalorder %s28, 0
      %p301 = por %p299, %p300
      %p302 = scmp.ne.s32.totalorder %s290, %s291
      %p303 = scmp.eq.s32.totalorder %s29, 1
      %p304 = por %p302, %p303
      %p306 = scmp.ne.s32.totalorder %s291, %s305
      %p307 = scmp.eq.s32.totalorder %s29, 0
      %p308 = por %p306, %p307
      %s310 = sadd.s32 %s309, 1
      %p313 = scmp.eq.s32.totalorder %s23, 1
      %p314 = scmp.ne.s32.totalorder %s309, %s311
      %p315 = scmp.eq.s32.totalorder %s23, 0
      %p316 = por %p314, %p315
      %p317 = scmp.ne.s32.totalorder %s309, %s311
      %p318 = scmp.eq.s32.totalorder %s28, 1
      %p319 = por %p317, %p318
      %p320 = scmp.ne.s32.totalorder %s311, %s312
      %p321 = scmp.eq.s32.totalorder %s28, 0
      %p322 = por %p320, %p321
      %p323 = scmp.ne.s32.totalorder %s311, %s312
      %p324 = scmp.eq.s32.totalorder %s29, 1
      %p325 = por %p323, %p324
      %p327 = scmp.ne.s32.totalorder %s312, %s326
      %p328 = scmp.eq.s32.totalorder %s29, 0
      %p329 = por %p327, %p328
      %s330 = ssub.s32 %s23, %s30
      %p331 = scmp.eq.s32.totalorder %s330, 0
      %s333 = sadd.s32 %s332, 1
      %s334 = scalar_select %p331, %s332, %s333
      %p337 = pneg %p331
      %p338 = scmp.eq.s32.totalorder %s23, 1
      %p339 = por %p337, %p338
      %p340 = scmp.ne.s32.totalorder %s332, %s335
      %p341 = scmp.eq.s32.totalorder %s23, 0
      %p342 = por %p340, %p341
      %p343 = scmp.ne.s32.totalorder %s332, %s335
      %p344 = scmp.eq.s32.totalorder %s28, 1
      %p345 = por %p343, %p344
      %p346 = scmp.ne.s32.totalorder %s335, %s336
      %p347 = scmp.eq.s32.totalorder %s28, 0
      %p348 = por %p346, %p347
      %p349 = scmp.ne.s32.totalorder %s335, %s336
      %p350 = scmp.eq.s32.totalorder %s29, 1
      %p351 = por %p349, %p350
      %p353 = scmp.ne.s32.totalorder %s336, %s352
      %p354 = scmp.eq.s32.totalorder %s29, 0
      %p355 = por %p353, %p354
      %p356 = scmp.le.s32.totalorder 1, %s23
      %p357 = scmp.lt.s32.totalorder %s23, 3
      %p358 = pnand %p356, %p357
      %p359 = pneg %p358
      // Predicated region
      $region9: #{simple_cnn_forward.1} parent=5 // pred_check
        _
      $region10: #{simple_cnn_forward.1} parent=5 // pred_check_branch
        %361 = sbr.rel (%p358) target = $region12
      $region11: #{simple_cnn_forward.1} parent=5 // pred_region
        %s362 = ssub.s32 %s23, 1
        // Predicated region
        $region13: #{simple_cnn_forward.1} parent=11 // pred_check
          %p363 = pneg %p70
        $region14: #{simple_cnn_forward.1} parent=11 // pred_check_branch
          %365 = sbr.rel (%p363) target = $region16
        $region15: #{simple_cnn_forward.1} parent=11 // pred_region
          _
        $region16: #{simple_cnn_forward.1} parent=11 // pred_fallthru
          _
        // Predicated region
        $region17: #{simple_cnn_forward.1} parent=11 // pred_check
          %p366 = pneg %p91
        $region18: #{simple_cnn_forward.1} parent=11 // pred_check_branch
          %368 = sbr.rel (%p366) target = $region20
        $region19: #{simple_cnn_forward.1} parent=11 // pred_region
          _
        $region20: #{simple_cnn_forward.1} parent=11 // pred_fallthru
          _
        // Predicated region
        $region21: #{simple_cnn_forward.1} parent=11 // pred_check
          %p369 = pneg %p112
        $region22: #{simple_cnn_forward.1} parent=11 // pred_check_branch
          %371 = sbr.rel (%p369) target = $region24
        $region23: #{simple_cnn_forward.1} parent=11 // pred_region
          _
        $region24: #{simple_cnn_forward.1} parent=11 // pred_fallthru
          _
        // Predicated region
        $region25: #{simple_cnn_forward.1} parent=11 // pred_check
          %p372 = pneg %p133
        $region26: #{simple_cnn_forward.1} parent=11 // pred_check_branch
          %374 = sbr.rel (%p372) target = $region28
        $region27: #{simple_cnn_forward.1} parent=11 // pred_region
          _
        $region28: #{simple_cnn_forward.1} parent=11 // pred_fallthru
          _
        // Predicated region
        $region29: #{simple_cnn_forward.1} parent=11 // pred_check
          %p375 = pneg %p154
        $region30: #{simple_cnn_forward.1} parent=11 // pred_check_branch
          %377 = sbr.rel (%p375) target = $region32
        $region31: #{simple_cnn_forward.1} parent=11 // pred_region
          _
        $region32: #{simple_cnn_forward.1} parent=11 // pred_fallthru
          _
        // Predicated region
        $region33: #{simple_cnn_forward.1} parent=11 // pred_check
          %p378 = pneg %p175
        $region34: #{simple_cnn_forward.1} parent=11 // pred_check_branch
          %380 = sbr.rel (%p378) target = $region36
        $region35: #{simple_cnn_forward.1} parent=11 // pred_region
          _
        $region36: #{simple_cnn_forward.1} parent=11 // pred_fallthru
          _
        // Predicated region
        $region37: #{simple_cnn_forward.1} parent=11 // pred_check
          %p381 = pneg %p196
        $region38: #{simple_cnn_forward.1} parent=11 // pred_check_branch
          %383 = sbr.rel (%p381) target = $region40
        $region39: #{simple_cnn_forward.1} parent=11 // pred_region
          _
        $region40: #{simple_cnn_forward.1} parent=11 // pred_fallthru
          _
        // Predicated region
        $region41: #{simple_cnn_forward.1} parent=11 // pred_check
          %p384 = pneg %p217
        $region42: #{simple_cnn_forward.1} parent=11 // pred_check_branch
          %386 = sbr.rel (%p384) target = $region44
        $region43: #{simple_cnn_forward.1} parent=11 // pred_region
          _
        $region44: #{simple_cnn_forward.1} parent=11 // pred_fallthru
          _
        // Predicated region
        $region45: #{simple_cnn_forward.1} parent=11 // pred_check
          %p387 = pneg %p238
        $region46: #{simple_cnn_forward.1} parent=11 // pred_check_branch
          %389 = sbr.rel (%p387) target = $region48
        $region47: #{simple_cnn_forward.1} parent=11 // pred_region
          _
        $region48: #{simple_cnn_forward.1} parent=11 // pred_fallthru
          _
        // Predicated region
        $region49: #{simple_cnn_forward.1} parent=11 // pred_check
          %p390 = pneg %p259
        $region50: #{simple_cnn_forward.1} parent=11 // pred_check_branch
          %392 = sbr.rel (%p390) target = $region52
        $region51: #{simple_cnn_forward.1} parent=11 // pred_region
          _
        $region52: #{simple_cnn_forward.1} parent=11 // pred_fallthru
          _
        // Predicated region
        $region53: #{simple_cnn_forward.1} parent=11 // pred_check
          %p393 = pneg %p280
        $region54: #{simple_cnn_forward.1} parent=11 // pred_check_branch
          %395 = sbr.rel (%p393) target = $region56
        $region55: #{simple_cnn_forward.1} parent=11 // pred_region
          _
        $region56: #{simple_cnn_forward.1} parent=11 // pred_fallthru
          _
        // Predicated region
        $region57: #{simple_cnn_forward.1} parent=11 // pred_check
          %p396 = pneg %p301
        $region58: #{simple_cnn_forward.1} parent=11 // pred_check_branch
          %398 = sbr.rel (%p396) target = $region60
        $region59: #{simple_cnn_forward.1} parent=11 // pred_region
          _
        $region60: #{simple_cnn_forward.1} parent=11 // pred_fallthru
          _
        // Predicated region
        $region61: #{simple_cnn_forward.1} parent=11 // pred_check
          %p399 = pneg %p322
        $region62: #{simple_cnn_forward.1} parent=11 // pred_check_branch
          %401 = sbr.rel (%p399) target = $region64
        $region63: #{simple_cnn_forward.1} parent=11 // pred_region
          _
        $region64: #{simple_cnn_forward.1} parent=11 // pred_fallthru
          _
      $region12: #{simple_cnn_forward.1} parent=5 // pred_fallthru
        _
      %p402 = scmp.lt.s32.totalorder %s23, 2
      // Predicated region
      $region65: #{simple_cnn_forward.1} parent=5 // pred_check
        %p403 = pneg %p402
      $region66: #{simple_cnn_forward.1} parent=5 // pred_check_branch
        %405 = sbr.rel (%p403) target = $region68
      $region67: #{simple_cnn_forward.1} parent=5 // pred_region
        // Predicated region
        $region69: #{simple_cnn_forward.1} parent=67 // pred_check
          %p406 = pneg %p43
        $region70: #{simple_cnn_forward.1} parent=67 // pred_check_branch
          %408 = sbr.rel (%p406) target = $region72
        $region71: #{simple_cnn_forward.1} parent=67 // pred_region
          %s409 = smul.u32 32, %s23
          %p410 = scmp.lt.s32.totalorder %s409, 63
          %s411 = scalar_select %p410, %s409, 63
          %s412 = smul.addr %s411, 4
          %s413 = scalar_lea.vmem %s0, %s412
          %s414 = smul.u32 32, %s23
        $region72: #{simple_cnn_forward.1} parent=67 // pred_fallthru
          _
      $region68: #{simple_cnn_forward.1} parent=5 // pred_fallthru
        _
      %p415 = scmp.le.s32.totalorder 1, %s23
      %p416 = scmp.lt.s32.totalorder %s23, 3
      %p417 = pnand %p415, %p416
      %p418 = pneg %p417
      // Predicated region
      $region73: #{simple_cnn_forward.1} parent=5 // pred_check
        _
      $region74: #{simple_cnn_forward.1} parent=5 // pred_check_branch
        %420 = sbr.rel (%p417) target = $region76
      $region75: #{simple_cnn_forward.1} parent=5 // pred_region
        %s421 = ssub.s32 %s23, 1
        %s422 = smul.u32 32, %s28
        %p423 = scmp.lt.s32.totalorder %s422, 63
        %s424 = scalar_select %p423, %s422, 63
        %s425 = smul.addr %s424, 4
        %s426 = scalar_lea.vmem %s0, %s425
        %p427 = pneg %p49
        %p428 = pneg %p46
        %p429 = pneg %p70
        %p430 = pneg %p67
        %p431 = pneg %p91
        %p432 = pneg %p88
        %p433 = pneg %p112
        %p434 = pneg %p109
        %p435 = pneg %p133
        %p436 = pneg %p130
        %p437 = pneg %p154
        %p438 = pneg %p151
        %p439 = pneg %p175
        %p440 = pneg %p172
        %p441 = pneg %p196
        %p442 = pneg %p193
        %p443 = pneg %p217
        %p444 = pneg %p214
        %p445 = pneg %p238
        %p446 = pneg %p235
        %p447 = pneg %p259
        %p448 = pneg %p256
        %p449 = pneg %p280
        %p450 = pneg %p277
        %p451 = pneg %p301
        %p452 = pneg %p298
        %p453 = pneg %p322
        %p454 = pneg %p319
        %p455 = pneg %p348
        %p456 = pneg %p345
        %s457 = sand.u32 %s335, 1
        %s458 = scalar_lea.sflag [#allocation3], %s457
        %s459 = sand.u32 %s335, 1
        %s460 = smul.addr %s459, 8
        %s461 = scalar_lea.vmem [#allocation2], %s460
        %s462 = smul.u32 32, %s28
        %p463 = scmp.lt.s32.totalorder %s462, 63
        %s464 = scalar_select %p463, %s462, 63
        %s465 = smul.addr %s464, 4
        %s466 = scalar_lea.vmem %s0, %s465
        %s467 = smul.u32 32, %s28
        %v469 = vld [vmem:[%s466] sm:$0xf]
        %v470 = vld [vmem:[%s466 + $0x4] sm:$0xf]
        %v471 = vld [vmem:[%s466 + $0x8] sm:$0xf]
        %v472 = vld [vmem:[%s466 + $0xc] sm:$0xf]
        %v473 = vld [vmem:[%s466 + $0x10] sm:$0xf]
        %v474 = vld [vmem:[%s466 + $0x14] sm:$0xf]
        %v475 = vld [vmem:[%s466 + $0x18] sm:$0xf]
        %v476 = vld [vmem:[%s466 + $0x1c] sm:$0xf]
        %v477 = vld [vmem:[%s466 + $0x20] sm:$0xf]
        %v478 = vld [vmem:[%s466 + $0x24] sm:$0xf]
        %v479 = vld [vmem:[%s466 + $0x28] sm:$0xf]
        %v480 = vld [vmem:[%s466 + $0x2c] sm:$0xf]
        %v481 = vld [vmem:[%s466 + $0x30] sm:$0xf]
        %v482 = vld [vmem:[%s466 + $0x34] sm:$0xf]
        %v483 = vld [vmem:[%s466 + $0x38] sm:$0xf]
        %v484 = vld [vmem:[%s466 + $0x3c] sm:$0xf]
        %v485 = vld [vmem:[%s466 + $0x40] sm:$0xf]
        %v486 = vld [vmem:[%s466 + $0x44] sm:$0xf]
        %v487 = vld [vmem:[%s466 + $0x48] sm:$0xf]
        %v488 = vld [vmem:[%s466 + $0x4c] sm:$0xf]
        %v489 = vld [vmem:[%s466 + $0x50] sm:$0xf]
        %v490 = vld [vmem:[%s466 + $0x54] sm:$0xf]
        %v491 = vld [vmem:[%s466 + $0x58] sm:$0xf]
        %v492 = vld [vmem:[%s466 + $0x5c] sm:$0xf]
        %v493 = vld [vmem:[%s466 + $0x60] sm:$0xf]
        %v494 = vld [vmem:[%s466 + $0x64] sm:$0xf]
        %v495 = vld [vmem:[%s466 + $0x68] sm:$0xf]
        %v496 = vld [vmem:[%s466 + $0x6c] sm:$0xf]
        %v497 = vld [vmem:[%s466 + $0x70] sm:$0xf]
        %v498 = vld [vmem:[%s466 + $0x74] sm:$0xf]
        %v499 = vld [vmem:[%s466 + $0x78] sm:$0xf]
        %v500 = vld [vmem:[%s466 + $0x7c] sm:$0xf]
        %v501 = vld [vmem:[%s1] sm:$0xff]
        %v502 = vld [vmem:[%s1 + $0x8] sm:$0xff]
        %v503 = vld [vmem:[%s1 + $0x10] sm:$0xff]
        %v504 = vld [vmem:[%s1 + $0x18] sm:$0xff]
        %v505 = vld [vmem:[%s1 + $0x20] sm:$0xff]
        %v506 = vld [vmem:[%s1 + $0x28] sm:$0xff]
        %v507 = vld [vmem:[%s1 + $0x30] sm:$0xff]
        %v508 = vld [vmem:[%s1 + $0x38] sm:$0xff]
        %v509 = vld [vmem:[%s1 + $0x40] sm:$0xff]
        %v510 = vld [vmem:[%s1 + $0x48] sm:$0xff]
        %v511 = vld [vmem:[%s1 + $0x50] sm:$0xff]
        %v512 = vld [vmem:[%s1 + $0x58] sm:$0xff]
        %s513 = scalar_lea.vmem %s1, 96
        %v514 = vld [vmem:[%s513] sm:$0xff]
        %v515 = vld [vmem:[%s513 + $0x8] sm:$0xff]
        %v516 = vld [vmem:[%s513 + $0x10] sm:$0xff]
        %v517 = vld [vmem:[%s513 + $0x18] sm:$0xff]
        %v518 = vld [vmem:[%s513 + $0x20] sm:$0xff]
        %v519 = vld [vmem:[%s513 + $0x28] sm:$0xff]
        %v520 = vld [vmem:[%s513 + $0x30] sm:$0xff]
        %v521 = vld [vmem:[%s513 + $0x38] sm:$0xff]
        %v522 = vld [vmem:[%s513 + $0x40] sm:$0xff]
        %v523 = vld [vmem:[%s513 + $0x48] sm:$0xff]
        %v524 = vld [vmem:[%s513 + $0x50] sm:$0xff]
        %v525 = vld [vmem:[%s513 + $0x58] sm:$0xff]
        %v558 = vunpack.c.l.b16 %v469
        %v559 = vunpack.c.l.b16 %v470
        %v560 = vunpack.c.l.b16 %v471
        %v561 = vunpack.c.l.b16 %v472
        %v562 = vunpack.c.l.b16 %v473
        %v563 = vunpack.c.l.b16 %v474
        %v564 = vunpack.c.l.b16 %v475
        %v565 = vunpack.c.l.b16 %v476
        %v566 = vunpack.c.l.b16 %v477
        %v567 = vunpack.c.l.b16 %v478
        %v568 = vunpack.c.l.b16 %v479
        %v569 = vunpack.c.l.b16 %v480
        %v570 = vunpack.c.l.b16 %v481
        %v571 = vunpack.c.l.b16 %v482
        %v572 = vunpack.c.l.b16 %v483
        %v573 = vunpack.c.l.b16 %v484
        %v574 = vunpack.c.l.b16 %v485
        %v575 = vunpack.c.l.b16 %v486
        %v576 = vunpack.c.l.b16 %v487
        %v577 = vunpack.c.l.b16 %v488
        %v578 = vunpack.c.l.b16 %v489
        %v579 = vunpack.c.l.b16 %v490
        %v580 = vunpack.c.l.b16 %v491
        %v581 = vunpack.c.l.b16 %v492
        %v582 = vunpack.c.l.b16 %v493
        %v583 = vunpack.c.l.b16 %v494
        %v584 = vunpack.c.l.b16 %v495
        %v585 = vunpack.c.l.b16 %v496
        %v586 = vunpack.c.l.b16 %v497
        %v587 = vunpack.c.l.b16 %v498
        %v588 = vunpack.c.l.b16 %v499
        %v589 = vunpack.c.l.b16 %v500
        %v590 = vpack.c.b16 %v559, %v558
        %v591 = vpack.c.b16 %v561, %v560
        %v592 = vpack.c.b16 %v563, %v562
        %v593 = vpack.c.b16 %v565, %v564
        %v594 = vpack.c.b16 %v567, %v566
        %v595 = vpack.c.b16 %v569, %v568
        %v596 = vpack.c.b16 %v571, %v570
        %v597 = vpack.c.b16 %v573, %v572
        %v598 = vpack.c.b16 %v575, %v574
        %v599 = vpack.c.b16 %v577, %v576
        %v600 = vpack.c.b16 %v579, %v578
        %v601 = vpack.c.b16 %v581, %v580
        %v602 = vpack.c.b16 %v583, %v582
        %v603 = vpack.c.b16 %v585, %v584
        %v604 = vpack.c.b16 %v587, %v586
        %v605 = vpack.c.b16 %v589, %v588
        %vm606 = vsmask.f32 7424
        %v608 = vshrl.u32 %v590, 16
        %v610 = vshll.u32 %v590, 16
        %v612 = vrot.slane %v610, 1
        %v613 = vor.u32 %v608, %v612
        %v615 = vshll.u32 %v591, 16
        %v617 = vrot.slane %v615, 1
        %v618 = vsel %vm606, %v613, %v617
        %v619 = vshrl.u32 %v591, 16
        %v621 = vor.u32 %v619, %v617
        %v623 = vshll.u32 %v592, 16
        %v625 = vrot.slane %v623, 1
        %v626 = vsel %vm606, %v621, %v625
        %v627 = vshrl.u32 %v592, 16
        %v629 = vor.u32 %v627, %v625
        %v631 = vshll.u32 %v593, 16
        %v633 = vrot.slane %v631, 1
        %v634 = vsel %vm606, %v629, %v633
        %v635 = vshrl.u32 %v593, 16
        %v637 = vor.u32 %v635, %v633
        %v639 = vshll.u32 %v594, 16
        %v641 = vrot.slane %v639, 1
        %v642 = vsel %vm606, %v637, %v641
        %v643 = vshrl.u32 %v594, 16
        %v645 = vor.u32 %v643, %v641
        %v647 = vshll.u32 %v595, 16
        %v649 = vrot.slane %v647, 1
        %v650 = vsel %vm606, %v645, %v649
        %v651 = vshrl.u32 %v595, 16
        %v653 = vor.u32 %v651, %v649
        %v655 = vshll.u32 %v596, 16
        %v657 = vrot.slane %v655, 1
        %v658 = vsel %vm606, %v653, %v657
        %v659 = vshrl.u32 %v596, 16
        %v661 = vor.u32 %v659, %v657
        %v663 = vshll.u32 %v597, 16
        %v665 = vrot.slane %v663, 1
        %v666 = vsel %vm606, %v661, %v665
        %v667 = vshrl.u32 %v597, 16
        %v669 = vor.u32 %v667, %v665
        %v671 = vshll.u32 %v598, 16
        %v673 = vrot.slane %v671, 1
        %v674 = vsel %vm606, %v669, %v673
        %v675 = vshrl.u32 %v598, 16
        %v677 = vor.u32 %v675, %v673
        %v679 = vshll.u32 %v599, 16
        %v681 = vrot.slane %v679, 1
        %v682 = vsel %vm606, %v677, %v681
        %v683 = vshrl.u32 %v599, 16
        %v685 = vor.u32 %v683, %v681
        %v687 = vshll.u32 %v600, 16
        %v689 = vrot.slane %v687, 1
        %v690 = vsel %vm606, %v685, %v689
        %v691 = vshrl.u32 %v600, 16
        %v693 = vor.u32 %v691, %v689
        %v695 = vshll.u32 %v601, 16
        %v697 = vrot.slane %v695, 1
        %v698 = vsel %vm606, %v693, %v697
        %v699 = vshrl.u32 %v601, 16
        %v701 = vor.u32 %v699, %v697
        %v703 = vshll.u32 %v602, 16
        %v705 = vrot.slane %v703, 1
        %v706 = vsel %vm606, %v701, %v705
        %v707 = vshrl.u32 %v602, 16
        %v709 = vor.u32 %v707, %v705
        %v711 = vshll.u32 %v603, 16
        %v713 = vrot.slane %v711, 1
        %v714 = vsel %vm606, %v709, %v713
        %v715 = vshrl.u32 %v603, 16
        %v717 = vor.u32 %v715, %v713
        %v719 = vshll.u32 %v604, 16
        %v721 = vrot.slane %v719, 1
        %v722 = vsel %vm606, %v717, %v721
        %v723 = vshrl.u32 %v604, 16
        %v725 = vor.u32 %v723, %v721
        %v727 = vshll.u32 %v605, 16
        %v729 = vrot.slane %v727, 1
        %v730 = vsel %vm606, %v725, %v729
        %v731 = vshrl.u32 %v605, 16
        %v733 = vor.u32 %v731, %v729
        %v746 = vunpack.c.l.b16 %v514
        %v747 = vunpack.c.h.b16 %v514
        %v748 = vunpack.c.l.b16 %v515
        %v749 = vunpack.c.h.b16 %v515
        %v750 = vunpack.c.l.b16 %v516
        %v751 = vunpack.c.h.b16 %v516
        %v752 = vunpack.c.l.b16 %v517
        %v753 = vunpack.c.h.b16 %v517
        %v754 = vunpack.c.l.b16 %v518
        %v755 = vunpack.c.h.b16 %v518
        %v756 = vunpack.c.l.b16 %v519
        %v757 = vunpack.c.h.b16 %v519
        %v758 = vunpack.c.l.b16 %v520
        %v759 = vunpack.c.h.b16 %v520
        %v760 = vunpack.c.l.b16 %v521
        %v761 = vunpack.c.h.b16 %v521
        %v762 = vunpack.c.l.b16 %v522
        %v763 = vunpack.c.h.b16 %v522
        %v764 = vunpack.c.l.b16 %v523
        %v765 = vunpack.c.h.b16 %v523
        %v766 = vunpack.c.l.b16 %v524
        %v767 = vunpack.c.h.b16 %v524
        %v768 = vunpack.c.l.b16 %v525
        %v769 = vunpack.c.h.b16 %v525
        %v770 = vpack.c.b16 %v748, %v746
        %v771 = vpack.c.b16 %v749, %v747
        %v772 = vpack.c.b16 %v752, %v750
        %v773 = vpack.c.b16 %v753, %v751
        %v774 = vpack.c.b16 %v756, %v754
        %v775 = vpack.c.b16 %v757, %v755
        %v776 = vpack.c.b16 %v760, %v758
        %v777 = vpack.c.b16 %v761, %v759
        %v778 = vpack.c.b16 %v764, %v762
        %v779 = vpack.c.b16 %v765, %v763
        %v780 = vpack.c.b16 %v768, %v766
        %v781 = vpack.c.b16 %v769, %v767
        %vm794 = vcmask 785408
        %v796 = vsel %vm794, %v618, 0
        %v799 = vsel %vm794, %v626, 0
        %v802 = vsel %vm794, %v634, 0
        %v805 = vsel %vm794, %v642, 0
        %v808 = vsel %vm794, %v650, 0
        %v811 = vsel %vm794, %v658, 0
        %v814 = vsel %vm794, %v666, 0
        %v817 = vsel %vm794, %v674, 0
        %v820 = vsel %vm794, %v682, 0
        %v823 = vsel %vm794, %v690, 0
        %v826 = vsel %vm794, %v698, 0
        %v829 = vsel %vm794, %v706, 0
        %v832 = vsel %vm794, %v714, 0
        %v835 = vsel %vm794, %v722, 0
        %v838 = vsel %vm794, %v730, 0
        %v841 = vsel %vm794, %v733, 0
        %843 = vmatprep.subr.bf16.mxu0 %v771
        %844 = vmatpush1.bf16.msra.mxu0 %v770
        %845 = vmatprep.subr.bf16.mxu0 %v773
        %846 = vmatpush1.bf16.msra.mxu0 %v772
        %847 = vmatprep.subr.bf16.mxu0 %v775
        %848 = vmatpush1.bf16.msra.mxu0 %v774
        %849 = vmatprep.subr.bf16.mxu0 %v777
        %850 = vmatpush1.bf16.msra.mxu0 %v776
        %851 = vmatprep.subr.bf16.mxu0 %v779
        %852 = vmatpush1.bf16.msra.mxu0 %v778
        %853 = vmatprep.subr.bf16.mxu0 %v781
        %854 = vmatpush1.bf16.msra.mxu0 %v780
        %855 = vmatprep.subr.bf16.mxu0 0
        %856 = vmatpush1.bf16.msra.mxu0 0
        %857 = vmatprep.subr.bf16.mxu0 0
        %858 = vmatpush1.bf16.msra.mxu0 0
        %859 = vmatprep.subr.bf16.mxu0 0
        %860 = vmatpush1.bf16.msra.mxu0 0
        %861 = vmatprep.subr.bf16.mxu0 0
        %862 = vmatpush1.bf16.msra.mxu0 0
        %863 = vmatprep.subr.bf16.mxu0 0
        %864 = vmatpush1.bf16.msra.mxu0 0
        %865 = vmatprep.subr.bf16.mxu0 0
        %866 = vmatpush1.bf16.msra.mxu0 0
        %867 = vmatprep.subr.bf16.mxu0 0
        %868 = vmatpush1.bf16.msra.mxu0 0
        %869 = vmatprep.subr.bf16.mxu0 0
        %870 = vmatpush1.bf16.msra.mxu0 0
        %871 = vmatprep.subr.bf16.mxu0 0
        %872 = vmatpush1.bf16.msra.mxu0 0
        %873 = vmatprep.subr.bf16.mxu0 0
        %874 = vmatpush1.bf16.msra.mxu0 0
        %875 = vmatprep.mubr.bf16.mxu0 0
        %876 = vmatmul.mubr.bf16.gmra.mrb[0].mxu0 %v796
        %v877 = vpop.f32.mrb[0].mxu0
        %v878 = vadd.f32 0.0, %v877
        %v879 = vpop.f32.mrb[0].mxu0
        %v880 = vadd.f32 0.0, %v879
        %v881 = vpop.f32.mrb[0].mxu0
        %v882 = vadd.f32 0.0, %v881
        %v883 = vpop.f32.mrb[0].mxu0
        %v884 = vadd.f32 0.0, %v883
        %885 = vmatprep.mubr.bf16.mxu0 0
        %886 = vmatmul.mubr.bf16.gmra.mrb[0].mxu0 %v799
        %v887 = vpop.f32.mrb[0].mxu0
        %v888 = vadd.f32 0.0, %v887
        %v889 = vpop.f32.mrb[0].mxu0
        %v890 = vadd.f32 0.0, %v889
        %v891 = vpop.f32.mrb[0].mxu0
        %v892 = vadd.f32 0.0, %v891
        %v893 = vpop.f32.mrb[0].mxu0
        %v894 = vadd.f32 0.0, %v893
        %895 = vmatprep.mubr.bf16.mxu0 0
        %896 = vmatmul.mubr.bf16.gmra.mrb[0].mxu0 %v802
        %v897 = vpop.f32.mrb[0].mxu0
        %v898 = vadd.f32 0.0, %v897
        %v899 = vpop.f32.mrb[0].mxu0
        %v900 = vadd.f32 0.0, %v899
        %v901 = vpop.f32.mrb[0].mxu0
        %v902 = vadd.f32 0.0, %v901
        %v903 = vpop.f32.mrb[0].mxu0
        %v904 = vadd.f32 0.0, %v903
        %905 = vmatprep.mubr.bf16.mxu0 0
        %906 = vmatmul.mubr.bf16.gmra.mrb[0].mxu0 %v805
        %v907 = vpop.f32.mrb[0].mxu0
        %v908 = vadd.f32 0.0, %v907
        %v909 = vpop.f32.mrb[0].mxu0
        %v910 = vadd.f32 0.0, %v909
        %v911 = vpop.f32.mrb[0].mxu0
        %v912 = vadd.f32 0.0, %v911
        %v913 = vpop.f32.mrb[0].mxu0
        %v914 = vadd.f32 0.0, %v913
        %915 = vmatprep.mubr.bf16.mxu0 0
        %916 = vmatmul.mubr.bf16.gmra.mrb[0].mxu0 %v808
        %v917 = vpop.f32.mrb[0].mxu0
        %v918 = vadd.f32 0.0, %v917
        %v919 = vpop.f32.mrb[0].mxu0
        %v920 = vadd.f32 0.0, %v919
        %v921 = vpop.f32.mrb[0].mxu0
        %v922 = vadd.f32 0.0, %v921
        %v923 = vpop.f32.mrb[0].mxu0
        %v924 = vadd.f32 0.0, %v923
        %925 = vmatprep.mubr.bf16.mxu0 0
        %926 = vmatmul.mubr.bf16.gmra.mrb[0].mxu0 %v811
        %v927 = vpop.f32.mrb[0].mxu0
        %v928 = vadd.f32 0.0, %v927
        %v929 = vpop.f32.mrb[0].mxu0
        %v930 = vadd.f32 0.0, %v929
        %v931 = vpop.f32.mrb[0].mxu0
        %v932 = vadd.f32 0.0, %v931
        %v933 = vpop.f32.mrb[0].mxu0
        %v934 = vadd.f32 0.0, %v933
        %935 = vmatprep.mubr.bf16.mxu0 0
        %936 = vmatmul.mubr.bf16.gmra.mrb[0].mxu0 %v814
        %v937 = vpop.f32.mrb[0].mxu0
        %v938 = vadd.f32 0.0, %v937
        %v939 = vpop.f32.mrb[0].mxu0
        %v940 = vadd.f32 0.0, %v939
        %v941 = vpop.f32.mrb[0].mxu0
        %v942 = vadd.f32 0.0, %v941
        %v943 = vpop.f32.mrb[0].mxu0
        %v944 = vadd.f32 0.0, %v943
        %945 = vmatprep.mubr.bf16.mxu0 0
        %946 = vmatmul.mubr.bf16.gmra.mrb[0].mxu0 %v817
        %v947 = vpop.f32.mrb[0].mxu0
        %v948 = vadd.f32 0.0, %v947
        %v949 = vpop.f32.mrb[0].mxu0
        %v950 = vadd.f32 0.0, %v949
        %v951 = vpop.f32.mrb[0].mxu0
        %v952 = vadd.f32 0.0, %v951
        %v953 = vpop.f32.mrb[0].mxu0
        %v954 = vadd.f32 0.0, %v953
        %955 = vmatprep.mubr.bf16.mxu0 0
        %956 = vmatmul.mubr.bf16.gmra.mrb[0].mxu0 %v820
        %v957 = vpop.f32.mrb[0].mxu0
        %v958 = vadd.f32 0.0, %v957
        %v959 = vpop.f32.mrb[0].mxu0
        %v960 = vadd.f32 0.0, %v959
        %v961 = vpop.f32.mrb[0].mxu0
        %v962 = vadd.f32 0.0, %v961
        %v963 = vpop.f32.mrb[0].mxu0
        %v964 = vadd.f32 0.0, %v963
        %965 = vmatprep.mubr.bf16.mxu0 0
        %966 = vmatmul.mubr.bf16.gmra.mrb[0].mxu0 %v823
        %v967 = vpop.f32.mrb[0].mxu0
        %v968 = vadd.f32 0.0, %v967
        %v969 = vpop.f32.mrb[0].mxu0
        %v970 = vadd.f32 0.0, %v969
        %v971 = vpop.f32.mrb[0].mxu0
        %v972 = vadd.f32 0.0, %v971
        %v973 = vpop.f32.mrb[0].mxu0
        %v974 = vadd.f32 0.0, %v973
        %975 = vmatprep.mubr.bf16.mxu0 0
        %976 = vmatmul.mubr.bf16.gmra.mrb[0].mxu0 %v826
        %v977 = vpop.f32.mrb[0].mxu0
        %v978 = vadd.f32 0.0, %v977
        %v979 = vpop.f32.mrb[0].mxu0
        %v980 = vadd.f32 0.0, %v979
        %v981 = vpop.f32.mrb[0].mxu0
        %v982 = vadd.f32 0.0, %v981
        %v983 = vpop.f32.mrb[0].mxu0
        %v984 = vadd.f32 0.0, %v983
        %985 = vmatprep.mubr.bf16.mxu0 0
        %986 = vmatmul.mubr.bf16.gmra.mrb[0].mxu0 %v829
        %v987 = vpop.f32.mrb[0].mxu0
        %v988 = vadd.f32 0.0, %v987
        %v989 = vpop.f32.mrb[0].mxu0
        %v990 = vadd.f32 0.0, %v989
        %v991 = vpop.f32.mrb[0].mxu0
        %v992 = vadd.f32 0.0, %v991
        %v993 = vpop.f32.mrb[0].mxu0
        %v994 = vadd.f32 0.0, %v993
        %995 = vmatprep.mubr.bf16.mxu0 0
        %996 = vmatmul.mubr.bf16.gmra.mrb[0].mxu0 %v832
        %v997 = vpop.f32.mrb[0].mxu0
        %v998 = vadd.f32 0.0, %v997
        %v999 = vpop.f32.mrb[0].mxu0
        %v1000 = vadd.f32 0.0, %v999
        %v1001 = vpop.f32.mrb[0].mxu0
        %v1002 = vadd.f32 0.0, %v1001
        %v1003 = vpop.f32.mrb[0].mxu0
        %v1004 = vadd.f32 0.0, %v1003
        %1005 = vmatprep.mubr.bf16.mxu0 0
        %1006 = vmatmul.mubr.bf16.gmra.mrb[0].mxu0 %v835
        %v1007 = vpop.f32.mrb[0].mxu0
        %v1008 = vadd.f32 0.0, %v1007
        %v1009 = vpop.f32.mrb[0].mxu0
        %v1010 = vadd.f32 0.0, %v1009
        %v1011 = vpop.f32.mrb[0].mxu0
        %v1012 = vadd.f32 0.0, %v1011
        %v1013 = vpop.f32.mrb[0].mxu0
        %v1014 = vadd.f32 0.0, %v1013
        %1015 = vmatprep.mubr.bf16.mxu0 0
        %1016 = vmatmul.mubr.bf16.gmra.mrb[0].mxu0 %v838
        %v1017 = vpop.f32.mrb[0].mxu0
        %v1018 = vadd.f32 0.0, %v1017
        %v1019 = vpop.f32.mrb[0].mxu0
        %v1020 = vadd.f32 0.0, %v1019
        %v1021 = vpop.f32.mrb[0].mxu0
        %v1022 = vadd.f32 0.0, %v1021
        %v1023 = vpop.f32.mrb[0].mxu0
        %v1024 = vadd.f32 0.0, %v1023
        %1025 = vmatprep.mubr.bf16.mxu0 0
        %1026 = vmatmul.mubr.bf16.gmra.mrb[0].mxu0 %v841
        %v1027 = vpop.f32.mrb[0].mxu0
        %v1028 = vadd.f32 0.0, %v1027
        %v1029 = vpop.f32.mrb[0].mxu0
        %v1030 = vadd.f32 0.0, %v1029
        %v1031 = vpop.f32.mrb[0].mxu0
        %v1032 = vadd.f32 0.0, %v1031
        %v1033 = vpop.f32.mrb[0].mxu0
        %v1034 = vadd.f32 0.0, %v1033
        %1035 = vdwg.mxu0
        %v1048 = vunpack.c.l.b16 %v501
        %v1049 = vunpack.c.h.b16 %v501
        %v1050 = vunpack.c.l.b16 %v502
        %v1051 = vunpack.c.h.b16 %v502
        %v1052 = vunpack.c.l.b16 %v503
        %v1053 = vunpack.c.h.b16 %v503
        %v1054 = vunpack.c.l.b16 %v504
        %v1055 = vunpack.c.h.b16 %v504
        %v1056 = vunpack.c.l.b16 %v505
        %v1057 = vunpack.c.h.b16 %v505
        %v1058 = vunpack.c.l.b16 %v506
        %v1059 = vunpack.c.h.b16 %v506
        %v1060 = vunpack.c.l.b16 %v507
        %v1061 = vunpack.c.h.b16 %v507
        %v1062 = vunpack.c.l.b16 %v508
        %v1063 = vunpack.c.h.b16 %v508
        %v1064 = vunpack.c.l.b16 %v509
        %v1065 = vunpack.c.h.b16 %v509
        %v1066 = vunpack.c.l.b16 %v510
        %v1067 = vunpack.c.h.b16 %v510
        %v1068 = vunpack.c.l.b16 %v511
        %v1069 = vunpack.c.h.b16 %v511
        %v1070 = vunpack.c.l.b16 %v512
        %v1071 = vunpack.c.h.b16 %v512
        %v1072 = vpack.c.b16 %v1050, %v1048
        %v1073 = vpack.c.b16 %v1051, %v1049
        %v1074 = vpack.c.b16 %v1054, %v1052
        %v1075 = vpack.c.b16 %v1055, %v1053
        %v1076 = vpack.c.b16 %v1058, %v1056
        %v1077 = vpack.c.b16 %v1059, %v1057
        %v1078 = vpack.c.b16 %v1062, %v1060
        %v1079 = vpack.c.b16 %v1063, %v1061
        %v1080 = vpack.c.b16 %v1066, %v1064
        %v1081 = vpack.c.b16 %v1067, %v1065
        %v1082 = vpack.c.b16 %v1070, %v1068
        %v1083 = vpack.c.b16 %v1071, %v1069
        %v1096 = vsel %vm794, %v590, 0
        %v1098 = vsel %vm794, %v591, 0
        %v1100 = vsel %vm794, %v592, 0
        %v1102 = vsel %vm794, %v593, 0
        %v1104 = vsel %vm794, %v594, 0
        %v1106 = vsel %vm794, %v595, 0
        %v1108 = vsel %vm794, %v596, 0
        %v1110 = vsel %vm794, %v597, 0
        %v1112 = vsel %vm794, %v598, 0
        %v1114 = vsel %vm794, %v599, 0
        %v1116 = vsel %vm794, %v600, 0
        %v1118 = vsel %vm794, %v601, 0
        %v1120 = vsel %vm794, %v602, 0
        %v1122 = vsel %vm794, %v603, 0
        %v1124 = vsel %vm794, %v604, 0
        %v1126 = vsel %vm794, %v605, 0
        %1128 = vmatprep.subr.bf16.mxu0 %v1073
        %1129 = vmatpush1.bf16.msra.mxu0 %v1072
        %1130 = vmatprep.subr.bf16.mxu0 %v1075
        %1131 = vmatpush1.bf16.msra.mxu0 %v1074
        %1132 = vmatprep.subr.bf16.mxu0 %v1077
        %1133 = vmatpush1.bf16.msra.mxu0 %v1076
        %1134 = vmatprep.subr.bf16.mxu0 %v1079
        %1135 = vmatpush1.bf16.msra.mxu0 %v1078
        %1136 = vmatprep.subr.bf16.mxu0 %v1081
        %1137 = vmatpush1.bf16.msra.mxu0 %v1080
        %1138 = vmatprep.subr.bf16.mxu0 %v1083
        %1139 = vmatpush1.bf16.msra.mxu0 %v1082
        %1140 = vmatprep.subr.bf16.mxu0 0
        %1141 = vmatpush1.bf16.msra.mxu0 0
        %1142 = vmatprep.subr.bf16.mxu0 0
        %1143 = vmatpush1.bf16.msra.mxu0 0
        %1144 = vmatprep.subr.bf16.mxu0 0
        %1145 = vmatpush1.bf16.msra.mxu0 0
        %1146 = vmatprep.subr.bf16.mxu0 0
        %1147 = vmatpush1.bf16.msra.mxu0 0
        %1148 = vmatprep.subr.bf16.mxu0 0
        %1149 = vmatpush1.bf16.msra.mxu0 0
        %1150 = vmatprep.subr.bf16.mxu0 0
        %1151 = vmatpush1.bf16.msra.mxu0 0
        %1152 = vmatprep.subr.bf16.mxu0 0
        %1153 = vmatpush1.bf16.msra.mxu0 0
        %1154 = vmatprep.subr.bf16.mxu0 0
        %1155 = vmatpush1.bf16.msra.mxu0 0
        %1156 = vmatprep.subr.bf16.mxu0 0
        %1157 = vmatpush1.bf16.msra.mxu0 0
        %1158 = vmatprep.subr.bf16.mxu0 0
        %1159 = vmatpush1.bf16.msra.mxu0 0
        %1160 = vmatprep.mubr.bf16.mxu0 0
        %1161 = vmatmul.mubr.bf16.gmra.mrb[0].mxu0 %v1096
        %v1162 = vpop.f32.mrb[0].mxu0
        %v1163 = vadd.f32 %v878, %v1162
        %v1164 = vpop.f32.mrb[0].mxu0
        %v1165 = vadd.f32 %v880, %v1164
        %v1166 = vpop.f32.mrb[0].mxu0
        %v1167 = vadd.f32 %v882, %v1166
        %v1168 = vpop.f32.mrb[0].mxu0
        %v1169 = vadd.f32 %v884, %v1168
        %1170 = vmatprep.mubr.bf16.mxu0 0
        %1171 = vmatmul.mubr.bf16.gmra.mrb[0].mxu0 %v1098
        %v1172 = vpop.f32.mrb[0].mxu0
        %v1173 = vadd.f32 %v888, %v1172
        %v1174 = vpop.f32.mrb[0].mxu0
        %v1175 = vadd.f32 %v890, %v1174
        %v1176 = vpop.f32.mrb[0].mxu0
        %v1177 = vadd.f32 %v892, %v1176
        %v1178 = vpop.f32.mrb[0].mxu0
        %v1179 = vadd.f32 %v894, %v1178
        %1180 = vmatprep.mubr.bf16.mxu0 0
        %1181 = vmatmul.mubr.bf16.gmra.mrb[0].mxu0 %v1100
        %v1182 = vpop.f32.mrb[0].mxu0
        %v1183 = vadd.f32 %v898, %v1182
        %v1184 = vpop.f32.mrb[0].mxu0
        %v1185 = vadd.f32 %v900, %v1184
        %v1186 = vpop.f32.mrb[0].mxu0
        %v1187 = vadd.f32 %v902, %v1186
        %v1188 = vpop.f32.mrb[0].mxu0
        %v1189 = vadd.f32 %v904, %v1188
        %1190 = vmatprep.mubr.bf16.mxu0 0
        %1191 = vmatmul.mubr.bf16.gmra.mrb[0].mxu0 %v1102
        %v1192 = vpop.f32.mrb[0].mxu0
        %v1193 = vadd.f32 %v908, %v1192
        %v1194 = vpop.f32.mrb[0].mxu0
        %v1195 = vadd.f32 %v910, %v1194
        %v1196 = vpop.f32.mrb[0].mxu0
        %v1197 = vadd.f32 %v912, %v1196
        %v1198 = vpop.f32.mrb[0].mxu0
        %v1199 = vadd.f32 %v914, %v1198
        %1200 = vmatprep.mubr.bf16.mxu0 0
        %1201 = vmatmul.mubr.bf16.gmra.mrb[0].mxu0 %v1104
        %v1202 = vpop.f32.mrb[0].mxu0
        %v1203 = vadd.f32 %v918, %v1202
        %v1204 = vpop.f32.mrb[0].mxu0
        %v1205 = vadd.f32 %v920, %v1204
        %v1206 = vpop.f32.mrb[0].mxu0
        %v1207 = vadd.f32 %v922, %v1206
        %v1208 = vpop.f32.mrb[0].mxu0
        %v1209 = vadd.f32 %v924, %v1208
        %1210 = vmatprep.mubr.bf16.mxu0 0
        %1211 = vmatmul.mubr.bf16.gmra.mrb[0].mxu0 %v1106
        %v1212 = vpop.f32.mrb[0].mxu0
        %v1213 = vadd.f32 %v928, %v1212
        %v1214 = vpop.f32.mrb[0].mxu0
        %v1215 = vadd.f32 %v930, %v1214
        %v1216 = vpop.f32.mrb[0].mxu0
        %v1217 = vadd.f32 %v932, %v1216
        %v1218 = vpop.f32.mrb[0].mxu0
        %v1219 = vadd.f32 %v934, %v1218
        %1220 = vmatprep.mubr.bf16.mxu0 0
        %1221 = vmatmul.mubr.bf16.gmra.mrb[0].mxu0 %v1108
        %v1222 = vpop.f32.mrb[0].mxu0
        %v1223 = vadd.f32 %v938, %v1222
        %v1224 = vpop.f32.mrb[0].mxu0
        %v1225 = vadd.f32 %v940, %v1224
        %v1226 = vpop.f32.mrb[0].mxu0
        %v1227 = vadd.f32 %v942, %v1226
        %v1228 = vpop.f32.mrb[0].mxu0
        %v1229 = vadd.f32 %v944, %v1228
        %1230 = vmatprep.mubr.bf16.mxu0 0
        %1231 = vmatmul.mubr.bf16.gmra.mrb[0].mxu0 %v1110
        %v1232 = vpop.f32.mrb[0].mxu0
        %v1233 = vadd.f32 %v948, %v1232
        %v1234 = vpop.f32.mrb[0].mxu0
        %v1235 = vadd.f32 %v950, %v1234
        %v1236 = vpop.f32.mrb[0].mxu0
        %v1237 = vadd.f32 %v952, %v1236
        %v1238 = vpop.f32.mrb[0].mxu0
        %v1239 = vadd.f32 %v954, %v1238
        %1240 = vmatprep.mubr.bf16.mxu0 0
        %1241 = vmatmul.mubr.bf16.gmra.mrb[0].mxu0 %v1112
        %v1242 = vpop.f32.mrb[0].mxu0
        %v1243 = vadd.f32 %v958, %v1242
        %v1244 = vpop.f32.mrb[0].mxu0
        %v1245 = vadd.f32 %v960, %v1244
        %v1246 = vpop.f32.mrb[0].mxu0
        %v1247 = vadd.f32 %v962, %v1246
        %v1248 = vpop.f32.mrb[0].mxu0
        %v1249 = vadd.f32 %v964, %v1248
        %1250 = vmatprep.mubr.bf16.mxu0 0
        %1251 = vmatmul.mubr.bf16.gmra.mrb[0].mxu0 %v1114
        %v1252 = vpop.f32.mrb[0].mxu0
        %v1253 = vadd.f32 %v968, %v1252
        %v1254 = vpop.f32.mrb[0].mxu0
        %v1255 = vadd.f32 %v970, %v1254
        %v1256 = vpop.f32.mrb[0].mxu0
        %v1257 = vadd.f32 %v972, %v1256
        %v1258 = vpop.f32.mrb[0].mxu0
        %v1259 = vadd.f32 %v974, %v1258
        %1260 = vmatprep.mubr.bf16.mxu0 0
        %1261 = vmatmul.mubr.bf16.gmra.mrb[0].mxu0 %v1116
        %v1262 = vpop.f32.mrb[0].mxu0
        %v1263 = vadd.f32 %v978, %v1262
        %v1264 = vpop.f32.mrb[0].mxu0
        %v1265 = vadd.f32 %v980, %v1264
        %v1266 = vpop.f32.mrb[0].mxu0
        %v1267 = vadd.f32 %v982, %v1266
        %v1268 = vpop.f32.mrb[0].mxu0
        %v1269 = vadd.f32 %v984, %v1268
        %1270 = vmatprep.mubr.bf16.mxu0 0
        %1271 = vmatmul.mubr.bf16.gmra.mrb[0].mxu0 %v1118
        %v1272 = vpop.f32.mrb[0].mxu0
        %v1273 = vadd.f32 %v988, %v1272
        %v1274 = vpop.f32.mrb[0].mxu0
        %v1275 = vadd.f32 %v990, %v1274
        %v1276 = vpop.f32.mrb[0].mxu0
        %v1277 = vadd.f32 %v992, %v1276
        %v1278 = vpop.f32.mrb[0].mxu0
        %v1279 = vadd.f32 %v994, %v1278
        %1280 = vmatprep.mubr.bf16.mxu0 0
        %1281 = vmatmul.mubr.bf16.gmra.mrb[0].mxu0 %v1120
        %v1282 = vpop.f32.mrb[0].mxu0
        %v1283 = vadd.f32 %v998, %v1282
        %v1284 = vpop.f32.mrb[0].mxu0
        %v1285 = vadd.f32 %v1000, %v1284
        %v1286 = vpop.f32.mrb[0].mxu0
        %v1287 = vadd.f32 %v1002, %v1286
        %v1288 = vpop.f32.mrb[0].mxu0
        %v1289 = vadd.f32 %v1004, %v1288
        %1290 = vmatprep.mubr.bf16.mxu0 0
        %1291 = vmatmul.mubr.bf16.gmra.mrb[0].mxu0 %v1122
        %v1292 = vpop.f32.mrb[0].mxu0
        %v1293 = vadd.f32 %v1008, %v1292
        %v1294 = vpop.f32.mrb[0].mxu0
        %v1295 = vadd.f32 %v1010, %v1294
        %v1296 = vpop.f32.mrb[0].mxu0
        %v1297 = vadd.f32 %v1012, %v1296
        %v1298 = vpop.f32.mrb[0].mxu0
        %v1299 = vadd.f32 %v1014, %v1298
        %1300 = vmatprep.mubr.bf16.mxu0 0
        %1301 = vmatmul.mubr.bf16.gmra.mrb[0].mxu0 %v1124
        %v1302 = vpop.f32.mrb[0].mxu0
        %v1303 = vadd.f32 %v1018, %v1302
        %v1304 = vpop.f32.mrb[0].mxu0
        %v1305 = vadd.f32 %v1020, %v1304
        %v1306 = vpop.f32.mrb[0].mxu0
        %v1307 = vadd.f32 %v1022, %v1306
        %v1308 = vpop.f32.mrb[0].mxu0
        %v1309 = vadd.f32 %v1024, %v1308
        %1310 = vmatprep.mubr.bf16.mxu0 0
        %1311 = vmatmul.mubr.bf16.gmra.mrb[0].mxu0 %v1126
        %v1312 = vpop.f32.mrb[0].mxu0
        %v1313 = vadd.f32 %v1028, %v1312
        %v1314 = vpop.f32.mrb[0].mxu0
        %v1315 = vadd.f32 %v1030, %v1314
        %v1316 = vpop.f32.mrb[0].mxu0
        %v1317 = vadd.f32 %v1032, %v1316
        %v1318 = vpop.f32.mrb[0].mxu0
        %v1319 = vadd.f32 %v1034, %v1318
        %1320 = vdwg.mxu0
        %s1321 = scalar_lea.vmem %s1, 192
        %v1322 = vld [vmem:[%s1321] sm:$0xff]
        %v1323 = vld [vmem:[%s1321 + $0x8] sm:$0xff]
        %v1324 = vld [vmem:[%s1321 + $0x10] sm:$0xff]
        %v1325 = vld [vmem:[%s1321 + $0x18] sm:$0xff]
        %v1326 = vld [vmem:[%s1321 + $0x20] sm:$0xff]
        %v1327 = vld [vmem:[%s1321 + $0x28] sm:$0xff]
        %v1328 = vld [vmem:[%s1321 + $0x30] sm:$0xff]
        %v1329 = vld [vmem:[%s1321 + $0x38] sm:$0xff]
        %v1330 = vld [vmem:[%s1321 + $0x40] sm:$0xff]
        %v1331 = vld [vmem:[%s1321 + $0x48] sm:$0xff]
        %v1332 = vld [vmem:[%s1321 + $0x50] sm:$0xff]
        %v1333 = vld [vmem:[%s1321 + $0x58] sm:$0xff]
        %vm1334 = vcmask 1046528
        %v1335 = vrot.slane %v590, 1
        %v1336 = vrot.slane %v591, 1
        %v1337 = vsel %vm1334, %v1335, %v1336
        %v1338 = vrot.slane %v592, 1
        %v1339 = vsel %vm1334, %v1336, %v1338
        %v1340 = vrot.slane %v593, 1
        %v1341 = vsel %vm1334, %v1338, %v1340
        %v1342 = vrot.slane %v594, 1
        %v1343 = vsel %vm1334, %v1340, %v1342
        %v1344 = vrot.slane %v595, 1
        %v1345 = vsel %vm1334, %v1342, %v1344
        %v1346 = vrot.slane %v596, 1
        %v1347 = vsel %vm1334, %v1344, %v1346
        %v1348 = vrot.slane %v597, 1
        %v1349 = vsel %vm1334, %v1346, %v1348
        %v1350 = vrot.slane %v598, 1
        %v1351 = vsel %vm1334, %v1348, %v1350
        %v1352 = vrot.slane %v599, 1
        %v1353 = vsel %vm1334, %v1350, %v1352
        %v1354 = vrot.slane %v600, 1
        %v1355 = vsel %vm1334, %v1352, %v1354
        %v1356 = vrot.slane %v601, 1
        %v1357 = vsel %vm1334, %v1354, %v1356
        %v1358 = vrot.slane %v602, 1
        %v1359 = vsel %vm1334, %v1356, %v1358
        %v1360 = vrot.slane %v603, 1
        %v1361 = vsel %vm1334, %v1358, %v1360
        %v1362 = vrot.slane %v604, 1
        %v1363 = vsel %vm1334, %v1360, %v1362
        %v1364 = vrot.slane %v605, 1
        %v1365 = vsel %vm1334, %v1362, %v1364
        %v1378 = vunpack.c.l.b16 %v1322
        %v1379 = vunpack.c.h.b16 %v1322
        %v1380 = vunpack.c.l.b16 %v1323
        %v1381 = vunpack.c.h.b16 %v1323
        %v1382 = vunpack.c.l.b16 %v1324
        %v1383 = vunpack.c.h.b16 %v1324
        %v1384 = vunpack.c.l.b16 %v1325
        %v1385 = vunpack.c.h.b16 %v1325
        %v1386 = vunpack.c.l.b16 %v1326
        %v1387 = vunpack.c.h.b16 %v1326
        %v1388 = vunpack.c.l.b16 %v1327
        %v1389 = vunpack.c.h.b16 %v1327
        %v1390 = vunpack.c.l.b16 %v1328
        %v1391 = vunpack.c.h.b16 %v1328
        %v1392 = vunpack.c.l.b16 %v1329
        %v1393 = vunpack.c.h.b16 %v1329
        %v1394 = vunpack.c.l.b16 %v1330
        %v1395 = vunpack.c.h.b16 %v1330
        %v1396 = vunpack.c.l.b16 %v1331
        %v1397 = vunpack.c.h.b16 %v1331
        %v1398 = vunpack.c.l.b16 %v1332
        %v1399 = vunpack.c.h.b16 %v1332
        %v1400 = vunpack.c.l.b16 %v1333
        %v1401 = vunpack.c.h.b16 %v1333
        %v1402 = vpack.c.b16 %v1380, %v1378
        %v1403 = vpack.c.b16 %v1381, %v1379
        %v1404 = vpack.c.b16 %v1384, %v1382
        %v1405 = vpack.c.b16 %v1385, %v1383
        %v1406 = vpack.c.b16 %v1388, %v1386
        %v1407 = vpack.c.b16 %v1389, %v1387
        %v1408 = vpack.c.b16 %v1392, %v1390
        %v1409 = vpack.c.b16 %v1393, %v1391
        %v1410 = vpack.c.b16 %v1396, %v1394
        %v1411 = vpack.c.b16 %v1397, %v1395
        %v1412 = vpack.c.b16 %v1400, %v1398
        %v1413 = vpack.c.b16 %v1401, %v1399
        %v1427 = vsel %vm794, %v1337, 0
        %v1430 = vsel %vm794, %v1339, 0
        %v1433 = vsel %vm794, %v1341, 0
        %v1436 = vsel %vm794, %v1343, 0
        %v1439 = vsel %vm794, %v1345, 0
        %v1442 = vsel %vm794, %v1347, 0
        %v1445 = vsel %vm794, %v1349, 0
        %v1448 = vsel %vm794, %v1351, 0
        %v1451 = vsel %vm794, %v1353, 0
        %v1454 = vsel %vm794, %v1355, 0
        %v1457 = vsel %vm794, %v1357, 0
        %v1460 = vsel %vm794, %v1359, 0
        %v1463 = vsel %vm794, %v1361, 0
        %v1466 = vsel %vm794, %v1363, 0
        %v1469 = vsel %vm794, %v1365, 0
        %v1472 = vsel %vm794, %v1364, 0
        %1474 = vmatprep.subr.bf16.mxu0 %v1403
        %1475 = vmatpush1.bf16.msra.mxu0 %v1402
        %1476 = vmatprep.subr.bf16.mxu0 %v1405
        %1477 = vmatpush1.bf16.msra.mxu0 %v1404
        %1478 = vmatprep.subr.bf16.mxu0 %v1407
        %1479 = vmatpush1.bf16.msra.mxu0 %v1406
        %1480 = vmatprep.subr.bf16.mxu0 %v1409
        %1481 = vmatpush1.bf16.msra.mxu0 %v1408
        %1482 = vmatprep.subr.bf16.mxu0 %v1411
        %1483 = vmatpush1.bf16.msra.mxu0 %v1410
        %1484 = vmatprep.subr.bf16.mxu0 %v1413
        %1485 = vmatpush1.bf16.msra.mxu0 %v1412
        %1486 = vmatprep.subr.bf16.mxu0 0
        %1487 = vmatpush1.bf16.msra.mxu0 0
        %1488 = vmatprep.subr.bf16.mxu0 0
        %1489 = vmatpush1.bf16.msra.mxu0 0
        %1490 = vmatprep.subr.bf16.mxu0 0
        %1491 = vmatpush1.bf16.msra.mxu0 0
        %1492 = vmatprep.subr.bf16.mxu0 0
        %1493 = vmatpush1.bf16.msra.mxu0 0
        %1494 = vmatprep.subr.bf16.mxu0 0
        %1495 = vmatpush1.bf16.msra.mxu0 0
        %1496 = vmatprep.subr.bf16.mxu0 0
        %1497 = vmatpush1.bf16.msra.mxu0 0
        %1498 = vmatprep.subr.bf16.mxu0 0
        %1499 = vmatpush1.bf16.msra.mxu0 0
        %1500 = vmatprep.subr.bf16.mxu0 0
        %1501 = vmatpush1.bf16.msra.mxu0 0
        %1502 = vmatprep.subr.bf16.mxu0 0
        %1503 = vmatpush1.bf16.msra.mxu0 0
        %1504 = vmatprep.subr.bf16.mxu0 0
        %1505 = vmatpush1.bf16.msra.mxu0 0
        %1506 = vmatprep.mubr.bf16.mxu0 0
        %1507 = vmatmul.mubr.bf16.gmra.mrb[0].mxu0 %v1427
        %v1508 = vpop.f32.mrb[0].mxu0
        %v1509 = vadd.f32 0.0, %v1508
        %v1510 = vpop.f32.mrb[0].mxu0
        %v1511 = vadd.f32 0.0, %v1510
        %v1512 = vpop.f32.mrb[0].mxu0
        %v1513 = vadd.f32 0.0, %v1512
        %v1514 = vpop.f32.mrb[0].mxu0
        %v1515 = vadd.f32 0.0, %v1514
        %1516 = vmatprep.mubr.bf16.mxu0 0
        %1517 = vmatmul.mubr.bf16.gmra.mrb[0].mxu0 %v1430
        %v1518 = vpop.f32.mrb[0].mxu0
        %v1519 = vadd.f32 0.0, %v1518
        %v1520 = vpop.f32.mrb[0].mxu0
        %v1521 = vadd.f32 0.0, %v1520
        %v1522 = vpop.f32.mrb[0].mxu0
        %v1523 = vadd.f32 0.0, %v1522
        %v1524 = vpop.f32.mrb[0].mxu0
        %v1525 = vadd.f32 0.0, %v1524
        %1526 = vmatprep.mubr.bf16.mxu0 0
        %1527 = vmatmul.mubr.bf16.gmra.mrb[0].mxu0 %v1433
        %v1528 = vpop.f32.mrb[0].mxu0
        %v1529 = vadd.f32 0.0, %v1528
        %v1530 = vpop.f32.mrb[0].mxu0
        %v1531 = vadd.f32 0.0, %v1530
        %v1532 = vpop.f32.mrb[0].mxu0
        %v1533 = vadd.f32 0.0, %v1532
        %v1534 = vpop.f32.mrb[0].mxu0
        %v1535 = vadd.f32 0.0, %v1534
        %1536 = vmatprep.mubr.bf16.mxu0 0
        %1537 = vmatmul.mubr.bf16.gmra.mrb[0].mxu0 %v1436
        %v1538 = vpop.f32.mrb[0].mxu0
        %v1539 = vadd.f32 0.0, %v1538
        %v1540 = vpop.f32.mrb[0].mxu0
        %v1541 = vadd.f32 0.0, %v1540
        %v1542 = vpop.f32.mrb[0].mxu0
        %v1543 = vadd.f32 0.0, %v1542
        %v1544 = vpop.f32.mrb[0].mxu0
        %v1545 = vadd.f32 0.0, %v1544
        %1546 = vmatprep.mubr.bf16.mxu0 0
        %1547 = vmatmul.mubr.bf16.gmra.mrb[0].mxu0 %v1439
        %v1548 = vpop.f32.mrb[0].mxu0
        %v1549 = vadd.f32 0.0, %v1548
        %v1550 = vpop.f32.mrb[0].mxu0
        %v1551 = vadd.f32 0.0, %v1550
        %v1552 = vpop.f32.mrb[0].mxu0
        %v1553 = vadd.f32 0.0, %v1552
        %v1554 = vpop.f32.mrb[0].mxu0
        %v1555 = vadd.f32 0.0, %v1554
        %1556 = vmatprep.mubr.bf16.mxu0 0
        %1557 = vmatmul.mubr.bf16.gmra.mrb[0].mxu0 %v1442
        %v1558 = vpop.f32.mrb[0].mxu0
        %v1559 = vadd.f32 0.0, %v1558
        %v1560 = vpop.f32.mrb[0].mxu0
        %v1561 = vadd.f32 0.0, %v1560
        %v1562 = vpop.f32.mrb[0].mxu0
        %v1563 = vadd.f32 0.0, %v1562
        %v1564 = vpop.f32.mrb[0].mxu0
        %v1565 = vadd.f32 0.0, %v1564
        %1566 = vmatprep.mubr.bf16.mxu0 0
        %1567 = vmatmul.mubr.bf16.gmra.mrb[0].mxu0 %v1445
        %v1568 = vpop.f32.mrb[0].mxu0
        %v1569 = vadd.f32 0.0, %v1568
        %v1570 = vpop.f32.mrb[0].mxu0
        %v1571 = vadd.f32 0.0, %v1570
        %v1572 = vpop.f32.mrb[0].mxu0
        %v1573 = vadd.f32 0.0, %v1572
        %v1574 = vpop.f32.mrb[0].mxu0
        %v1575 = vadd.f32 0.0, %v1574
        %1576 = vmatprep.mubr.bf16.mxu0 0
        %1577 = vmatmul.mubr.bf16.gmra.mrb[0].mxu0 %v1448
        %v1578 = vpop.f32.mrb[0].mxu0
        %v1579 = vadd.f32 0.0, %v1578
        %v1580 = vpop.f32.mrb[0].mxu0
        %v1581 = vadd.f32 0.0, %v1580
        %v1582 = vpop.f32.mrb[0].mxu0
        %v1583 = vadd.f32 0.0, %v1582
        %v1584 = vpop.f32.mrb[0].mxu0
        %v1585 = vadd.f32 0.0, %v1584
        %1586 = vmatprep.mubr.bf16.mxu0 0
        %1587 = vmatmul.mubr.bf16.gmra.mrb[0].mxu0 %v1451
        %v1588 = vpop.f32.mrb[0].mxu0
        %v1589 = vadd.f32 0.0, %v1588
        %v1590 = vpop.f32.mrb[0].mxu0
        %v1591 = vadd.f32 0.0, %v1590
        %v1592 = vpop.f32.mrb[0].mxu0
        %v1593 = vadd.f32 0.0, %v1592
        %v1594 = vpop.f32.mrb[0].mxu0
        %v1595 = vadd.f32 0.0, %v1594
        %1596 = vmatprep.mubr.bf16.mxu0 0
        %1597 = vmatmul.mubr.bf16.gmra.mrb[0].mxu0 %v1454
        %v1598 = vpop.f32.mrb[0].mxu0
        %v1599 = vadd.f32 0.0, %v1598
        %v1600 = vpop.f32.mrb[0].mxu0
        %v1601 = vadd.f32 0.0, %v1600
        %v1602 = vpop.f32.mrb[0].mxu0
        %v1603 = vadd.f32 0.0, %v1602
        %v1604 = vpop.f32.mrb[0].mxu0
        %v1605 = vadd.f32 0.0, %v1604
        %1606 = vmatprep.mubr.bf16.mxu0 0
        %1607 = vmatmul.mubr.bf16.gmra.mrb[0].mxu0 %v1457
        %v1608 = vpop.f32.mrb[0].mxu0
        %v1609 = vadd.f32 0.0, %v1608
        %v1610 = vpop.f32.mrb[0].mxu0
        %v1611 = vadd.f32 0.0, %v1610
        %v1612 = vpop.f32.mrb[0].mxu0
        %v1613 = vadd.f32 0.0, %v1612
        %v1614 = vpop.f32.mrb[0].mxu0
        %v1615 = vadd.f32 0.0, %v1614
        %1616 = vmatprep.mubr.bf16.mxu0 0
        %1617 = vmatmul.mubr.bf16.gmra.mrb[0].mxu0 %v1460
        %v1618 = vpop.f32.mrb[0].mxu0
        %v1619 = vadd.f32 0.0, %v1618
        %v1620 = vpop.f32.mrb[0].mxu0
        %v1621 = vadd.f32 0.0, %v1620
        %v1622 = vpop.f32.mrb[0].mxu0
        %v1623 = vadd.f32 0.0, %v1622
        %v1624 = vpop.f32.mrb[0].mxu0
        %v1625 = vadd.f32 0.0, %v1624
        %1626 = vmatprep.mubr.bf16.mxu0 0
        %1627 = vmatmul.mubr.bf16.gmra.mrb[0].mxu0 %v1463
        %v1628 = vpop.f32.mrb[0].mxu0
        %v1629 = vadd.f32 0.0, %v1628
        %v1630 = vpop.f32.mrb[0].mxu0
        %v1631 = vadd.f32 0.0, %v1630
        %v1632 = vpop.f32.mrb[0].mxu0
        %v1633 = vadd.f32 0.0, %v1632
        %v1634 = vpop.f32.mrb[0].mxu0
        %v1635 = vadd.f32 0.0, %v1634
        %1636 = vmatprep.mubr.bf16.mxu0 0
        %1637 = vmatmul.mubr.bf16.gmra.mrb[0].mxu0 %v1466
        %v1638 = vpop.f32.mrb[0].mxu0
        %v1639 = vadd.f32 0.0, %v1638
        %v1640 = vpop.f32.mrb[0].mxu0
        %v1641 = vadd.f32 0.0, %v1640
        %v1642 = vpop.f32.mrb[0].mxu0
        %v1643 = vadd.f32 0.0, %v1642
        %v1644 = vpop.f32.mrb[0].mxu0
        %v1645 = vadd.f32 0.0, %v1644
        %1646 = vmatprep.mubr.bf16.mxu0 0
        %1647 = vmatmul.mubr.bf16.gmra.mrb[0].mxu0 %v1469
        %v1648 = vpop.f32.mrb[0].mxu0
        %v1649 = vadd.f32 0.0, %v1648
        %v1650 = vpop.f32.mrb[0].mxu0
        %v1651 = vadd.f32 0.0, %v1650
        %v1652 = vpop.f32.mrb[0].mxu0
        %v1653 = vadd.f32 0.0, %v1652
        %v1654 = vpop.f32.mrb[0].mxu0
        %v1655 = vadd.f32 0.0, %v1654
        %1656 = vmatprep.mubr.bf16.mxu0 0
        %1657 = vmatmul.mubr.bf16.gmra.mrb[0].mxu0 %v1472
        %v1658 = vpop.f32.mrb[0].mxu0
        %v1659 = vadd.f32 0.0, %v1658
        %v1660 = vpop.f32.mrb[0].mxu0
        %v1661 = vadd.f32 0.0, %v1660
        %v1662 = vpop.f32.mrb[0].mxu0
        %v1663 = vadd.f32 0.0, %v1662
        %v1664 = vpop.f32.mrb[0].mxu0
        %v1665 = vadd.f32 0.0, %v1664
        %1666 = vdwg.mxu0
        %v1667 = vadd.f32 %v1163, %v1509
        %v1668 = vadd.f32 %v1165, %v1511
        %v1669 = vadd.f32 %v1167, %v1513
        %v1670 = vadd.f32 %v1169, %v1515
        %v1671 = vadd.f32 %v1173, %v1519
        %v1672 = vadd.f32 %v1175, %v1521
        %v1673 = vadd.f32 %v1177, %v1523
        %v1674 = vadd.f32 %v1179, %v1525
        %v1675 = vadd.f32 %v1183, %v1529
        %v1676 = vadd.f32 %v1185, %v1531
        %v1677 = vadd.f32 %v1187, %v1533
        %v1678 = vadd.f32 %v1189, %v1535
        %v1679 = vadd.f32 %v1193, %v1539
        %v1680 = vadd.f32 %v1195, %v1541
        %v1681 = vadd.f32 %v1197, %v1543
        %v1682 = vadd.f32 %v1199, %v1545
        %v1683 = vadd.f32 %v1203, %v1549
        %v1684 = vadd.f32 %v1205, %v1551
        %v1685 = vadd.f32 %v1207, %v1553
        %v1686 = vadd.f32 %v1209, %v1555
        %v1687 = vadd.f32 %v1213, %v1559
        %v1688 = vadd.f32 %v1215, %v1561
        %v1689 = vadd.f32 %v1217, %v1563
        %v1690 = vadd.f32 %v1219, %v1565
        %v1691 = vadd.f32 %v1223, %v1569
        %v1692 = vadd.f32 %v1225, %v1571
        %v1693 = vadd.f32 %v1227, %v1573
        %v1694 = vadd.f32 %v1229, %v1575
        %v1695 = vadd.f32 %v1233, %v1579
        %v1696 = vadd.f32 %v1235, %v1581
        %v1697 = vadd.f32 %v1237, %v1583
        %v1698 = vadd.f32 %v1239, %v1585
        %v1699 = vadd.f32 %v1243, %v1589
        %v1700 = vadd.f32 %v1245, %v1591
        %v1701 = vadd.f32 %v1247, %v1593
        %v1702 = vadd.f32 %v1249, %v1595
        %v1703 = vadd.f32 %v1253, %v1599
        %v1704 = vadd.f32 %v1255, %v1601
        %v1705 = vadd.f32 %v1257, %v1603
        %v1706 = vadd.f32 %v1259, %v1605
        %v1707 = vadd.f32 %v1263, %v1609
        %v1708 = vadd.f32 %v1265, %v1611
        %v1709 = vadd.f32 %v1267, %v1613
        %v1710 = vadd.f32 %v1269, %v1615
        %v1711 = vadd.f32 %v1273, %v1619
        %v1712 = vadd.f32 %v1275, %v1621
        %v1713 = vadd.f32 %v1277, %v1623
        %v1714 = vadd.f32 %v1279, %v1625
        %v1715 = vadd.f32 %v1283, %v1629
        %v1716 = vadd.f32 %v1285, %v1631
        %v1717 = vadd.f32 %v1287, %v1633
        %v1718 = vadd.f32 %v1289, %v1635
        %v1719 = vadd.f32 %v1293, %v1639
        %v1720 = vadd.f32 %v1295, %v1641
        %v1721 = vadd.f32 %v1297, %v1643
        %v1722 = vadd.f32 %v1299, %v1645
        %v1723 = vadd.f32 %v1303, %v1649
        %v1724 = vadd.f32 %v1305, %v1651
        %v1725 = vadd.f32 %v1307, %v1653
        %v1726 = vadd.f32 %v1309, %v1655
        %v1727 = vadd.f32 %v1313, %v1659
        %v1728 = vadd.f32 %v1315, %v1661
        %v1729 = vadd.f32 %v1317, %v1663
        %v1730 = vadd.f32 %v1319, %v1665
        %s1731 = scalar_lea.vmem %s1, 288
        %v1732 = vld [vmem:[%s1731] sm:$0xff]
        %v1733 = vld [vmem:[%s1731 + $0x8] sm:$0xff]
        %v1734 = vld [vmem:[%s1731 + $0x10] sm:$0xff]
        %v1735 = vld [vmem:[%s1731 + $0x18] sm:$0xff]
        %v1736 = vld [vmem:[%s1731 + $0x20] sm:$0xff]
        %v1737 = vld [vmem:[%s1731 + $0x28] sm:$0xff]
        %v1738 = vld [vmem:[%s1731 + $0x30] sm:$0xff]
        %v1739 = vld [vmem:[%s1731 + $0x38] sm:$0xff]
        %v1740 = vld [vmem:[%s1731 + $0x40] sm:$0xff]
        %v1741 = vld [vmem:[%s1731 + $0x48] sm:$0xff]
        %v1742 = vld [vmem:[%s1731 + $0x50] sm:$0xff]
        %v1743 = vld [vmem:[%s1731 + $0x58] sm:$0xff]
        %vm1744 = vsmask.f32 6400
        %v1745 = vrot.slane %v608, 1
        %v1746 = vrot.slane %v610, 2
        %v1747 = vor.u32 %v1745, %v1746
        %v1748 = vrot.slane %v619, 1
        %v1749 = vrot.slane %v615, 2
        %v1750 = vor.u32 %v1748, %v1749
        %v1751 = vsel %vm1744, %v1747, %v1750
        %v1752 = vrot.slane %v627, 1
        %v1753 = vrot.slane %v623, 2
        %v1754 = vor.u32 %v1752, %v1753
        %v1755 = vsel %vm1744, %v1750, %v1754
        %v1756 = vrot.slane %v635, 1
        %v1757 = vrot.slane %v631, 2
        %v1758 = vor.u32 %v1756, %v1757
        %v1759 = vsel %vm1744, %v1754, %v1758
        %v1760 = vrot.slane %v643, 1
        %v1761 = vrot.slane %v639, 2
        %v1762 = vor.u32 %v1760, %v1761
        %v1763 = vsel %vm1744, %v1758, %v1762
        %v1764 = vrot.slane %v651, 1
        %v1765 = vrot.slane %v647, 2
        %v1766 = vor.u32 %v1764, %v1765
        %v1767 = vsel %vm1744, %v1762, %v1766
        %v1768 = vrot.slane %v659, 1
        %v1769 = vrot.slane %v655, 2
        %v1770 = vor.u32 %v1768, %v1769
        %v1771 = vsel %vm1744, %v1766, %v1770
        %v1772 = vrot.slane %v667, 1
        %v1773 = vrot.slane %v663, 2
        %v1774 = vor.u32 %v1772, %v1773
        %v1775 = vsel %vm1744, %v1770, %v1774
        %v1776 = vrot.slane %v675, 1
        %v1777 = vrot.slane %v671, 2
        %v1778 = vor.u32 %v1776, %v1777
        %v1779 = vsel %vm1744, %v1774, %v1778
        %v1780 = vrot.slane %v683, 1
        %v1781 = vrot.slane %v679, 2
        %v1782 = vor.u32 %v1780, %v1781
        %v1783 = vsel %vm1744, %v1778, %v1782
        %v1784 = vrot.slane %v691, 1
        %v1785 = vrot.slane %v687, 2
        %v1786 = vor.u32 %v1784, %v1785
        %v1787 = vsel %vm1744, %v1782, %v1786
        %v1788 = vrot.slane %v699, 1
        %v1789 = vrot.slane %v695, 2
        %v1790 = vor.u32 %v1788, %v1789
        %v1791 = vsel %vm1744, %v1786, %v1790
        %v1792 = vrot.slane %v707, 1
        %v1793 = vrot.slane %v703, 2
        %v1794 = vor.u32 %v1792, %v1793
        %v1795 = vsel %vm1744, %v1790, %v1794
        %v1796 = vrot.slane %v715, 1
        %v1797 = vrot.slane %v711, 2
        %v1798 = vor.u32 %v1796, %v1797
        %v1799 = vsel %vm1744, %v1794, %v1798
        %v1800 = vrot.slane %v723, 1
        %v1801 = vrot.slane %v719, 2
        %v1802 = vor.u32 %v1800, %v1801
        %v1803 = vsel %vm1744, %v1798, %v1802
        %v1804 = vrot.slane %v731, 1
        %v1805 = vrot.slane %v727, 2
        %v1806 = vor.u32 %v1804, %v1805
        %v1807 = vsel %vm1744, %v1802, %v1806
        %v1820 = vunpack.c.l.b16 %v1732
        %v1821 = vunpack.c.h.b16 %v1732
        %v1822 = vunpack.c.l.b16 %v1733
        %v1823 = vunpack.c.h.b16 %v1733
        %v1824 = vunpack.c.l.b16 %v1734
        %v1825 = vunpack.c.h.b16 %v1734
        %v1826 = vunpack.c.l.b16 %v1735
        %v1827 = vunpack.c.h.b16 %v1735
        %v1828 = vunpack.c.l.b16 %v1736
        %v1829 = vunpack.c.h.b16 %v1736
        %v1830 = vunpack.c.l.b16 %v1737
        %v1831 = vunpack.c.h.b16 %v1737
        %v1832 = vunpack.c.l.b16 %v1738
        %v1833 = vunpack.c.h.b16 %v1738
        %v1834 = vunpack.c.l.b16 %v1739
        %v1835 = vunpack.c.h.b16 %v1739
        %v1836 = vunpack.c.l.b16 %v1740
        %v1837 = vunpack.c.h.b16 %v1740
        %v1838 = vunpack.c.l.b16 %v1741
        %v1839 = vunpack.c.h.b16 %v1741
        %v1840 = vunpack.c.l.b16 %v1742
        %v1841 = vunpack.c.h.b16 %v1742
        %v1842 = vunpack.c.l.b16 %v1743
        %v1843 = vunpack.c.h.b16 %v1743
        %v1844 = vpack.c.b16 %v1822, %v1820
        %v1845 = vpack.c.b16 %v1823, %v1821
        %v1846 = vpack.c.b16 %v1826, %v1824
        %v1847 = vpack.c.b16 %v1827, %v1825
        %v1848 = vpack.c.b16 %v1830, %v1828
        %v1849 = vpack.c.b16 %v1831, %v1829
        %v1850 = vpack.c.b16 %v1834, %v1832
        %v1851 = vpack.c.b16 %v1835, %v1833
        %v1852 = vpack.c.b16 %v1838, %v1836
        %v1853 = vpack.c.b16 %v1839, %v1837
        %v1854 = vpack.c.b16 %v1842, %v1840
        %v1855 = vpack.c.b16 %v1843, %v1841
        %v1869 = vsel %vm794, %v1751, 0
        %v1872 = vsel %vm794, %v1755, 0
        %v1875 = vsel %vm794, %v1759, 0
        %v1878 = vsel %vm794, %v1763, 0
        %v1881 = vsel %vm794, %v1767, 0
        %v1884 = vsel %vm794, %v1771, 0
        %v1887 = vsel %vm794, %v1775, 0
        %v1890 = vsel %vm794, %v1779, 0
        %v1893 = vsel %vm794, %v1783, 0
        %v1896 = vsel %vm794, %v1787, 0
        %v1899 = vsel %vm794, %v1791, 0
        %v1902 = vsel %vm794, %v1795, 0
        %v1905 = vsel %vm794, %v1799, 0
        %v1908 = vsel %vm794, %v1803, 0
        %v1911 = vsel %vm794, %v1807, 0
        %v1914 = vsel %vm794, %v1806, 0
        %1916 = vmatprep.subr.bf16.mxu0 %v1845
        %1917 = vmatpush1.bf16.msra.mxu0 %v1844
        %1918 = vmatprep.subr.bf16.mxu0 %v1847
        %1919 = vmatpush1.bf16.msra.mxu0 %v1846
        %1920 = vmatprep.subr.bf16.mxu0 %v1849
        %1921 = vmatpush1.bf16.msra.mxu0 %v1848
        %1922 = vmatprep.subr.bf16.mxu0 %v1851
        %1923 = vmatpush1.bf16.msra.mxu0 %v1850
        %1924 = vmatprep.subr.bf16.mxu0 %v1853
        %1925 = vmatpush1.bf16.msra.mxu0 %v1852
        %1926 = vmatprep.subr.bf16.mxu0 %v1855
        %1927 = vmatpush1.bf16.msra.mxu0 %v1854
        %1928 = vmatprep.subr.bf16.mxu0 0
        %1929 = vmatpush1.bf16.msra.mxu0 0
        %1930 = vmatprep.subr.bf16.mxu0 0
        %1931 = vmatpush1.bf16.msra.mxu0 0
        %1932 = vmatprep.subr.bf16.mxu0 0
        %1933 = vmatpush1.bf16.msra.mxu0 0
        %1934 = vmatprep.subr.bf16.mxu0 0
        %1935 = vmatpush1.bf16.msra.mxu0 0
        %1936 = vmatprep.subr.bf16.mxu0 0
        %1937 = vmatpush1.bf16.msra.mxu0 0
        %1938 = vmatprep.subr.bf16.mxu0 0
        %1939 = vmatpush1.bf16.msra.mxu0 0
        %1940 = vmatprep.subr.bf16.mxu0 0
        %1941 = vmatpush1.bf16.msra.mxu0 0
        %1942 = vmatprep.subr.bf16.mxu0 0
        %1943 = vmatpush1.bf16.msra.mxu0 0
        %1944 = vmatprep.subr.bf16.mxu0 0
        %1945 = vmatpush1.bf16.msra.mxu0 0
        %1946 = vmatprep.subr.bf16.mxu0 0
        %1947 = vmatpush1.bf16.msra.mxu0 0
        %1948 = vmatprep.mubr.bf16.mxu0 0
        %1949 = vmatmul.mubr.bf16.gmra.mrb[0].mxu0 %v1869
        %v1950 = vpop.f32.mrb[0].mxu0
        %v1951 = vadd.f32 0.0, %v1950
        %v1952 = vpop.f32.mrb[0].mxu0
        %v1953 = vadd.f32 0.0, %v1952
        %v1954 = vpop.f32.mrb[0].mxu0
        %v1955 = vadd.f32 0.0, %v1954
        %v1956 = vpop.f32.mrb[0].mxu0
        %v1957 = vadd.f32 0.0, %v1956
        %1958 = vmatprep.mubr.bf16.mxu0 0
        %1959 = vmatmul.mubr.bf16.gmra.mrb[0].mxu0 %v1872
        %v1960 = vpop.f32.mrb[0].mxu0
        %v1961 = vadd.f32 0.0, %v1960
        %v1962 = vpop.f32.mrb[0].mxu0
        %v1963 = vadd.f32 0.0, %v1962
        %v1964 = vpop.f32.mrb[0].mxu0
        %v1965 = vadd.f32 0.0, %v1964
        %v1966 = vpop.f32.mrb[0].mxu0
        %v1967 = vadd.f32 0.0, %v1966
        %1968 = vmatprep.mubr.bf16.mxu0 0
        %1969 = vmatmul.mubr.bf16.gmra.mrb[0].mxu0 %v1875
        %v1970 = vpop.f32.mrb[0].mxu0
        %v1971 = vadd.f32 0.0, %v1970
        %v1972 = vpop.f32.mrb[0].mxu0
        %v1973 = vadd.f32 0.0, %v1972
        %v1974 = vpop.f32.mrb[0].mxu0
        %v1975 = vadd.f32 0.0, %v1974
        %v1976 = vpop.f32.mrb[0].mxu0
        %v1977 = vadd.f32 0.0, %v1976
        %1978 = vmatprep.mubr.bf16.mxu0 0
        %1979 = vmatmul.mubr.bf16.gmra.mrb[0].mxu0 %v1878
        %v1980 = vpop.f32.mrb[0].mxu0
        %v1981 = vadd.f32 0.0, %v1980
        %v1982 = vpop.f32.mrb[0].mxu0
        %v1983 = vadd.f32 0.0, %v1982
        %v1984 = vpop.f32.mrb[0].mxu0
        %v1985 = vadd.f32 0.0, %v1984
        %v1986 = vpop.f32.mrb[0].mxu0
        %v1987 = vadd.f32 0.0, %v1986
        %1988 = vmatprep.mubr.bf16.mxu0 0
        %1989 = vmatmul.mubr.bf16.gmra.mrb[0].mxu0 %v1881
        %v1990 = vpop.f32.mrb[0].mxu0
        %v1991 = vadd.f32 0.0, %v1990
        %v1992 = vpop.f32.mrb[0].mxu0
        %v1993 = vadd.f32 0.0, %v1992
        %v1994 = vpop.f32.mrb[0].mxu0
        %v1995 = vadd.f32 0.0, %v1994
        %v1996 = vpop.f32.mrb[0].mxu0
        %v1997 = vadd.f32 0.0, %v1996
        %1998 = vmatprep.mubr.bf16.mxu0 0
        %1999 = vmatmul.mubr.bf16.gmra.mrb[0].mxu0 %v1884
        %v2000 = vpop.f32.mrb[0].mxu0
        %v2001 = vadd.f32 0.0, %v2000
        %v2002 = vpop.f32.mrb[0].mxu0
        %v2003 = vadd.f32 0.0, %v2002
        %v2004 = vpop.f32.mrb[0].mxu0
        %v2005 = vadd.f32 0.0, %v2004
        %v2006 = vpop.f32.mrb[0].mxu0
        %v2007 = vadd.f32 0.0, %v2006
        %2008 = vmatprep.mubr.bf16.mxu0 0
        %2009 = vmatmul.mubr.bf16.gmra.mrb[0].mxu0 %v1887
        %v2010 = vpop.f32.mrb[0].mxu0
        %v2011 = vadd.f32 0.0, %v2010
        %v2012 = vpop.f32.mrb[0].mxu0
        %v2013 = vadd.f32 0.0, %v2012
        %v2014 = vpop.f32.mrb[0].mxu0
        %v2015 = vadd.f32 0.0, %v2014
        %v2016 = vpop.f32.mrb[0].mxu0
        %v2017 = vadd.f32 0.0, %v2016
        %2018 = vmatprep.mubr.bf16.mxu0 0
        %2019 = vmatmul.mubr.bf16.gmra.mrb[0].mxu0 %v1890
        %v2020 = vpop.f32.mrb[0].mxu0
        %v2021 = vadd.f32 0.0, %v2020
        %v2022 = vpop.f32.mrb[0].mxu0
        %v2023 = vadd.f32 0.0, %v2022
        %v2024 = vpop.f32.mrb[0].mxu0
        %v2025 = vadd.f32 0.0, %v2024
        %v2026 = vpop.f32.mrb[0].mxu0
        %v2027 = vadd.f32 0.0, %v2026
        %2028 = vmatprep.mubr.bf16.mxu0 0
        %2029 = vmatmul.mubr.bf16.gmra.mrb[0].mxu0 %v1893
        %v2030 = vpop.f32.mrb[0].mxu0
        %v2031 = vadd.f32 0.0, %v2030
        %v2032 = vpop.f32.mrb[0].mxu0
        %v2033 = vadd.f32 0.0, %v2032
        %v2034 = vpop.f32.mrb[0].mxu0
        %v2035 = vadd.f32 0.0, %v2034
        %v2036 = vpop.f32.mrb[0].mxu0
        %v2037 = vadd.f32 0.0, %v2036
        %2038 = vmatprep.mubr.bf16.mxu0 0
        %2039 = vmatmul.mubr.bf16.gmra.mrb[0].mxu0 %v1896
        %v2040 = vpop.f32.mrb[0].mxu0
        %v2041 = vadd.f32 0.0, %v2040
        %v2042 = vpop.f32.mrb[0].mxu0
        %v2043 = vadd.f32 0.0, %v2042
        %v2044 = vpop.f32.mrb[0].mxu0
        %v2045 = vadd.f32 0.0, %v2044
        %v2046 = vpop.f32.mrb[0].mxu0
        %v2047 = vadd.f32 0.0, %v2046
        %2048 = vmatprep.mubr.bf16.mxu0 0
        %2049 = vmatmul.mubr.bf16.gmra.mrb[0].mxu0 %v1899
        %v2050 = vpop.f32.mrb[0].mxu0
        %v2051 = vadd.f32 0.0, %v2050
        %v2052 = vpop.f32.mrb[0].mxu0
        %v2053 = vadd.f32 0.0, %v2052
        %v2054 = vpop.f32.mrb[0].mxu0
        %v2055 = vadd.f32 0.0, %v2054
        %v2056 = vpop.f32.mrb[0].mxu0
        %v2057 = vadd.f32 0.0, %v2056
        %2058 = vmatprep.mubr.bf16.mxu0 0
        %2059 = vmatmul.mubr.bf16.gmra.mrb[0].mxu0 %v1902
        %v2060 = vpop.f32.mrb[0].mxu0
        %v2061 = vadd.f32 0.0, %v2060
        %v2062 = vpop.f32.mrb[0].mxu0
        %v2063 = vadd.f32 0.0, %v2062
        %v2064 = vpop.f32.mrb[0].mxu0
        %v2065 = vadd.f32 0.0, %v2064
        %v2066 = vpop.f32.mrb[0].mxu0
        %v2067 = vadd.f32 0.0, %v2066
        %2068 = vmatprep.mubr.bf16.mxu0 0
        %2069 = vmatmul.mubr.bf16.gmra.mrb[0].mxu0 %v1905
        %v2070 = vpop.f32.mrb[0].mxu0
        %v2071 = vadd.f32 0.0, %v2070
        %v2072 = vpop.f32.mrb[0].mxu0
        %v2073 = vadd.f32 0.0, %v2072
        %v2074 = vpop.f32.mrb[0].mxu0
        %v2075 = vadd.f32 0.0, %v2074
        %v2076 = vpop.f32.mrb[0].mxu0
        %v2077 = vadd.f32 0.0, %v2076
        %2078 = vmatprep.mubr.bf16.mxu0 0
        %2079 = vmatmul.mubr.bf16.gmra.mrb[0].mxu0 %v1908
        %v2080 = vpop.f32.mrb[0].mxu0
        %v2081 = vadd.f32 0.0, %v2080
        %v2082 = vpop.f32.mrb[0].mxu0
        %v2083 = vadd.f32 0.0, %v2082
        %v2084 = vpop.f32.mrb[0].mxu0
        %v2085 = vadd.f32 0.0, %v2084
        %v2086 = vpop.f32.mrb[0].mxu0
        %v2087 = vadd.f32 0.0, %v2086
        %2088 = vmatprep.mubr.bf16.mxu0 0
        %2089 = vmatmul.mubr.bf16.gmra.mrb[0].mxu0 %v1911
        %v2090 = vpop.f32.mrb[0].mxu0
        %v2091 = vadd.f32 0.0, %v2090
        %v2092 = vpop.f32.mrb[0].mxu0
        %v2093 = vadd.f32 0.0, %v2092
        %v2094 = vpop.f32.mrb[0].mxu0
        %v2095 = vadd.f32 0.0, %v2094
        %v2096 = vpop.f32.mrb[0].mxu0
        %v2097 = vadd.f32 0.0, %v2096
        %2098 = vmatprep.mubr.bf16.mxu0 0
        %2099 = vmatmul.mubr.bf16.gmra.mrb[0].mxu0 %v1914
        %v2100 = vpop.f32.mrb[0].mxu0
        %v2101 = vadd.f32 0.0, %v2100
        %v2102 = vpop.f32.mrb[0].mxu0
        %v2103 = vadd.f32 0.0, %v2102
        %v2104 = vpop.f32.mrb[0].mxu0
        %v2105 = vadd.f32 0.0, %v2104
        %v2106 = vpop.f32.mrb[0].mxu0
        %v2107 = vadd.f32 0.0, %v2106
        %2108 = vdwg.mxu0
        %v2109 = vadd.f32 %v1667, %v1951
        %v2110 = vadd.f32 %v1668, %v1953
        %v2111 = vadd.f32 %v1669, %v1955
        %v2112 = vadd.f32 %v1670, %v1957
        %v2113 = vadd.f32 %v1671, %v1961
        %v2114 = vadd.f32 %v1672, %v1963
        %v2115 = vadd.f32 %v1673, %v1965
        %v2116 = vadd.f32 %v1674, %v1967
        %v2117 = vadd.f32 %v1675, %v1971
        %v2118 = vadd.f32 %v1676, %v1973
        %v2119 = vadd.f32 %v1677, %v1975
        %v2120 = vadd.f32 %v1678, %v1977
        %v2121 = vadd.f32 %v1679, %v1981
        %v2122 = vadd.f32 %v1680, %v1983
        %v2123 = vadd.f32 %v1681, %v1985
        %v2124 = vadd.f32 %v1682, %v1987
        %v2125 = vadd.f32 %v1683, %v1991
        %v2126 = vadd.f32 %v1684, %v1993
        %v2127 = vadd.f32 %v1685, %v1995
        %v2128 = vadd.f32 %v1686, %v1997
        %v2129 = vadd.f32 %v1687, %v2001
        %v2130 = vadd.f32 %v1688, %v2003
        %v2131 = vadd.f32 %v1689, %v2005
        %v2132 = vadd.f32 %v1690, %v2007
        %v2133 = vadd.f32 %v1691, %v2011
        %v2134 = vadd.f32 %v1692, %v2013
        %v2135 = vadd.f32 %v1693, %v2015
        %v2136 = vadd.f32 %v1694, %v2017
        %v2137 = vadd.f32 %v1695, %v2021
        %v2138 = vadd.f32 %v1696, %v2023
        %v2139 = vadd.f32 %v1697, %v2025
        %v2140 = vadd.f32 %v1698, %v2027
        %v2141 = vadd.f32 %v1699, %v2031
        %v2142 = vadd.f32 %v1700, %v2033
        %v2143 = vadd.f32 %v1701, %v2035
        %v2144 = vadd.f32 %v1702, %v2037
        %v2145 = vadd.f32 %v1703, %v2041
        %v2146 = vadd.f32 %v1704, %v2043
        %v2147 = vadd.f32 %v1705, %v2045
        %v2148 = vadd.f32 %v1706, %v2047
        %v2149 = vadd.f32 %v1707, %v2051
        %v2150 = vadd.f32 %v1708, %v2053
        %v2151 = vadd.f32 %v1709, %v2055
        %v2152 = vadd.f32 %v1710, %v2057
        %v2153 = vadd.f32 %v1711, %v2061
        %v2154 = vadd.f32 %v1712, %v2063
        %v2155 = vadd.f32 %v1713, %v2065
        %v2156 = vadd.f32 %v1714, %v2067
        %v2157 = vadd.f32 %v1715, %v2071
        %v2158 = vadd.f32 %v1716, %v2073
        %v2159 = vadd.f32 %v1717, %v2075
        %v2160 = vadd.f32 %v1718, %v2077
        %v2161 = vadd.f32 %v1719, %v2081
        %v2162 = vadd.f32 %v1720, %v2083
        %v2163 = vadd.f32 %v1721, %v2085
        %v2164 = vadd.f32 %v1722, %v2087
        %v2165 = vadd.f32 %v1723, %v2091
        %v2166 = vadd.f32 %v1724, %v2093
        %v2167 = vadd.f32 %v1725, %v2095
        %v2168 = vadd.f32 %v1726, %v2097
        %v2169 = vadd.f32 %v1727, %v2101
        %v2170 = vadd.f32 %v1728, %v2103
        %v2171 = vadd.f32 %v1729, %v2105
        %v2172 = vadd.f32 %v1730, %v2107
        %s2173 = scalar_lea.vmem %s1, 384
        %v2174 = vld [vmem:[%s2173] sm:$0xff]
        %v2175 = vld [vmem:[%s2173 + $0x8] sm:$0xff]
        %v2176 = vld [vmem:[%s2173 + $0x10] sm:$0xff]
        %v2177 = vld [vmem:[%s2173 + $0x18] sm:$0xff]
        %v2178 = vld [vmem:[%s2173 + $0x20] sm:$0xff]
        %v2179 = vld [vmem:[%s2173 + $0x28] sm:$0xff]
        %v2180 = vld [vmem:[%s2173 + $0x30] sm:$0xff]
        %v2181 = vld [vmem:[%s2173 + $0x38] sm:$0xff]
        %v2182 = vld [vmem:[%s2173 + $0x40] sm:$0xff]
        %v2183 = vld [vmem:[%s2173 + $0x48] sm:$0xff]
        %v2184 = vld [vmem:[%s2173 + $0x50] sm:$0xff]
        %v2185 = vld [vmem:[%s2173 + $0x58] sm:$0xff]
        %vm2186 = vcmask 1045504
        %v2187 = vrot.slane %v590, 2
        %v2188 = vrot.slane %v591, 2
        %v2189 = vsel %vm2186, %v2187, %v2188
        %v2190 = vrot.slane %v592, 2
        %v2191 = vsel %vm2186, %v2188, %v2190
        %v2192 = vrot.slane %v593, 2
        %v2193 = vsel %vm2186, %v2190, %v2192
        %v2194 = vrot.slane %v594, 2
        %v2195 = vsel %vm2186, %v2192, %v2194
        %v2196 = vrot.slane %v595, 2
        %v2197 = vsel %vm2186, %v2194, %v2196
        %v2198 = vrot.slane %v596, 2
        %v2199 = vsel %vm2186, %v2196, %v2198
        %v2200 = vrot.slane %v597, 2
        %v2201 = vsel %vm2186, %v2198, %v2200
        %v2202 = vrot.slane %v598, 2
        %v2203 = vsel %vm2186, %v2200, %v2202
        %v2204 = vrot.slane %v599, 2
        %v2205 = vsel %vm2186, %v2202, %v2204
        %v2206 = vrot.slane %v600, 2
        %v2207 = vsel %vm2186, %v2204, %v2206
        %v2208 = vrot.slane %v601, 2
        %v2209 = vsel %vm2186, %v2206, %v2208
        %v2210 = vrot.slane %v602, 2
        %v2211 = vsel %vm2186, %v2208, %v2210
        %v2212 = vrot.slane %v603, 2
        %v2213 = vsel %vm2186, %v2210, %v2212
        %v2214 = vrot.slane %v604, 2
        %v2215 = vsel %vm2186, %v2212, %v2214
        %v2216 = vrot.slane %v605, 2
        %v2217 = vsel %vm2186, %v2214, %v2216
        %v2230 = vunpack.c.l.b16 %v2174
        %v2231 = vunpack.c.h.b16 %v2174
        %v2232 = vunpack.c.l.b16 %v2175
        %v2233 = vunpack.c.h.b16 %v2175
        %v2234 = vunpack.c.l.b16 %v2176
        %v2235 = vunpack.c.h.b16 %v2176
        %v2236 = vunpack.c.l.b16 %v2177
        %v2237 = vunpack.c.h.b16 %v2177
        %v2238 = vunpack.c.l.b16 %v2178
        %v2239 = vunpack.c.h.b16 %v2178
        %v2240 = vunpack.c.l.b16 %v2179
        %v2241 = vunpack.c.h.b16 %v2179
        %v2242 = vunpack.c.l.b16 %v2180
        %v2243 = vunpack.c.h.b16 %v2180
        %v2244 = vunpack.c.l.b16 %v2181
        %v2245 = vunpack.c.h.b16 %v2181
        %v2246 = vunpack.c.l.b16 %v2182
        %v2247 = vunpack.c.h.b16 %v2182
        %v2248 = vunpack.c.l.b16 %v2183
        %v2249 = vunpack.c.h.b16 %v2183
        %v2250 = vunpack.c.l.b16 %v2184
        %v2251 = vunpack.c.h.b16 %v2184
        %v2252 = vunpack.c.l.b16 %v2185
        %v2253 = vunpack.c.h.b16 %v2185
        %v2254 = vpack.c.b16 %v2232, %v2230
        %v2255 = vpack.c.b16 %v2233, %v2231
        %v2256 = vpack.c.b16 %v2236, %v2234
        %v2257 = vpack.c.b16 %v2237, %v2235
        %v2258 = vpack.c.b16 %v2240, %v2238
        %v2259 = vpack.c.b16 %v2241, %v2239
        %v2260 = vpack.c.b16 %v2244, %v2242
        %v2261 = vpack.c.b16 %v2245, %v2243
        %v2262 = vpack.c.b16 %v2248, %v2246
        %v2263 = vpack.c.b16 %v2249, %v2247
        %v2264 = vpack.c.b16 %v2252, %v2250
        %v2265 = vpack.c.b16 %v2253, %v2251
        %v2279 = vsel %vm794, %v2189, 0
        %v2282 = vsel %vm794, %v2191, 0
        %v2285 = vsel %vm794, %v2193, 0
        %v2288 = vsel %vm794, %v2195, 0
        %v2291 = vsel %vm794, %v2197, 0
        %v2294 = vsel %vm794, %v2199, 0
        %v2297 = vsel %vm794, %v2201, 0
        %v2300 = vsel %vm794, %v2203, 0
        %v2303 = vsel %vm794, %v2205, 0
        %v2306 = vsel %vm794, %v2207, 0
        %v2309 = vsel %vm794, %v2209, 0
        %v2312 = vsel %vm794, %v2211, 0
        %v2315 = vsel %vm794, %v2213, 0
        %v2318 = vsel %vm794, %v2215, 0
        %v2321 = vsel %vm794, %v2217, 0
        %v2324 = vsel %vm794, %v2216, 0
        %2326 = vmatprep.subr.bf16.mxu0 %v2255
        %2327 = vmatpush1.bf16.msra.mxu0 %v2254
        %2328 = vmatprep.subr.bf16.mxu0 %v2257
        %2329 = vmatpush1.bf16.msra.mxu0 %v2256
        %2330 = vmatprep.subr.bf16.mxu0 %v2259
        %2331 = vmatpush1.bf16.msra.mxu0 %v2258
        %2332 = vmatprep.subr.bf16.mxu0 %v2261
        %2333 = vmatpush1.bf16.msra.mxu0 %v2260
        %2334 = vmatprep.subr.bf16.mxu0 %v2263
        %2335 = vmatpush1.bf16.msra.mxu0 %v2262
        %2336 = vmatprep.subr.bf16.mxu0 %v2265
        %2337 = vmatpush1.bf16.msra.mxu0 %v2264
        %2338 = vmatprep.subr.bf16.mxu0 0
        %2339 = vmatpush1.bf16.msra.mxu0 0
        %2340 = vmatprep.subr.bf16.mxu0 0
        %2341 = vmatpush1.bf16.msra.mxu0 0
        %2342 = vmatprep.subr.bf16.mxu0 0
        %2343 = vmatpush1.bf16.msra.mxu0 0
        %2344 = vmatprep.subr.bf16.mxu0 0
        %2345 = vmatpush1.bf16.msra.mxu0 0
        %2346 = vmatprep.subr.bf16.mxu0 0
        %2347 = vmatpush1.bf16.msra.mxu0 0
        %2348 = vmatprep.subr.bf16.mxu0 0
        %2349 = vmatpush1.bf16.msra.mxu0 0
        %2350 = vmatprep.subr.bf16.mxu0 0
        %2351 = vmatpush1.bf16.msra.mxu0 0
        %2352 = vmatprep.subr.bf16.mxu0 0
        %2353 = vmatpush1.bf16.msra.mxu0 0
        %2354 = vmatprep.subr.bf16.mxu0 0
        %2355 = vmatpush1.bf16.msra.mxu0 0
        %2356 = vmatprep.subr.bf16.mxu0 0
        %2357 = vmatpush1.bf16.msra.mxu0 0
        %2358 = vmatprep.mubr.bf16.mxu0 0
        %2359 = vmatmul.mubr.bf16.gmra.mrb[0].mxu0 %v2279
        %v2360 = vpop.f32.mrb[0].mxu0
        %v2361 = vadd.f32 0.0, %v2360
        %v2362 = vpop.f32.mrb[0].mxu0
        %v2363 = vadd.f32 0.0, %v2362
        %v2364 = vpop.f32.mrb[0].mxu0
        %v2365 = vadd.f32 0.0, %v2364
        %v2366 = vpop.f32.mrb[0].mxu0
        %v2367 = vadd.f32 0.0, %v2366
        %2368 = vmatprep.mubr.bf16.mxu0 0
        %2369 = vmatmul.mubr.bf16.gmra.mrb[0].mxu0 %v2282
        %v2370 = vpop.f32.mrb[0].mxu0
        %v2371 = vadd.f32 0.0, %v2370
        %v2372 = vpop.f32.mrb[0].mxu0
        %v2373 = vadd.f32 0.0, %v2372
        %v2374 = vpop.f32.mrb[0].mxu0
        %v2375 = vadd.f32 0.0, %v2374
        %v2376 = vpop.f32.mrb[0].mxu0
        %v2377 = vadd.f32 0.0, %v2376
        %2378 = vmatprep.mubr.bf16.mxu0 0
        %2379 = vmatmul.mubr.bf16.gmra.mrb[0].mxu0 %v2285
        %v2380 = vpop.f32.mrb[0].mxu0
        %v2381 = vadd.f32 0.0, %v2380
        %v2382 = vpop.f32.mrb[0].mxu0
        %v2383 = vadd.f32 0.0, %v2382
        %v2384 = vpop.f32.mrb[0].mxu0
        %v2385 = vadd.f32 0.0, %v2384
        %v2386 = vpop.f32.mrb[0].mxu0
        %v2387 = vadd.f32 0.0, %v2386
        %2388 = vmatprep.mubr.bf16.mxu0 0
        %2389 = vmatmul.mubr.bf16.gmra.mrb[0].mxu0 %v2288
        %v2390 = vpop.f32.mrb[0].mxu0
        %v2391 = vadd.f32 0.0, %v2390
        %v2392 = vpop.f32.mrb[0].mxu0
        %v2393 = vadd.f32 0.0, %v2392
        %v2394 = vpop.f32.mrb[0].mxu0
        %v2395 = vadd.f32 0.0, %v2394
        %v2396 = vpop.f32.mrb[0].mxu0
        %v2397 = vadd.f32 0.0, %v2396
        %2398 = vmatprep.mubr.bf16.mxu0 0
        %2399 = vmatmul.mubr.bf16.gmra.mrb[0].mxu0 %v2291
        %v2400 = vpop.f32.mrb[0].mxu0
        %v2401 = vadd.f32 0.0, %v2400
        %v2402 = vpop.f32.mrb[0].mxu0
        %v2403 = vadd.f32 0.0, %v2402
        %v2404 = vpop.f32.mrb[0].mxu0
        %v2405 = vadd.f32 0.0, %v2404
        %v2406 = vpop.f32.mrb[0].mxu0
        %v2407 = vadd.f32 0.0, %v2406
        %2408 = vmatprep.mubr.bf16.mxu0 0
        %2409 = vmatmul.mubr.bf16.gmra.mrb[0].mxu0 %v2294
        %v2410 = vpop.f32.mrb[0].mxu0
        %v2411 = vadd.f32 0.0, %v2410
        %v2412 = vpop.f32.mrb[0].mxu0
        %v2413 = vadd.f32 0.0, %v2412
        %v2414 = vpop.f32.mrb[0].mxu0
        %v2415 = vadd.f32 0.0, %v2414
        %v2416 = vpop.f32.mrb[0].mxu0
        %v2417 = vadd.f32 0.0, %v2416
        %2418 = vmatprep.mubr.bf16.mxu0 0
        %2419 = vmatmul.mubr.bf16.gmra.mrb[0].mxu0 %v2297
        %v2420 = vpop.f32.mrb[0].mxu0
        %v2421 = vadd.f32 0.0, %v2420
        %v2422 = vpop.f32.mrb[0].mxu0
        %v2423 = vadd.f32 0.0, %v2422
        %v2424 = vpop.f32.mrb[0].mxu0
        %v2425 = vadd.f32 0.0, %v2424
        %v2426 = vpop.f32.mrb[0].mxu0
        %v2427 = vadd.f32 0.0, %v2426
        %2428 = vmatprep.mubr.bf16.mxu0 0
        %2429 = vmatmul.mubr.bf16.gmra.mrb[0].mxu0 %v2300
        %v2430 = vpop.f32.mrb[0].mxu0
        %v2431 = vadd.f32 0.0, %v2430
        %v2432 = vpop.f32.mrb[0].mxu0
        %v2433 = vadd.f32 0.0, %v2432
        %v2434 = vpop.f32.mrb[0].mxu0
        %v2435 = vadd.f32 0.0, %v2434
        %v2436 = vpop.f32.mrb[0].mxu0
        %v2437 = vadd.f32 0.0, %v2436
        %2438 = vmatprep.mubr.bf16.mxu0 0
        %2439 = vmatmul.mubr.bf16.gmra.mrb[0].mxu0 %v2303
        %v2440 = vpop.f32.mrb[0].mxu0
        %v2441 = vadd.f32 0.0, %v2440
        %v2442 = vpop.f32.mrb[0].mxu0
        %v2443 = vadd.f32 0.0, %v2442
        %v2444 = vpop.f32.mrb[0].mxu0
        %v2445 = vadd.f32 0.0, %v2444
        %v2446 = vpop.f32.mrb[0].mxu0
        %v2447 = vadd.f32 0.0, %v2446
        %2448 = vmatprep.mubr.bf16.mxu0 0
        %2449 = vmatmul.mubr.bf16.gmra.mrb[0].mxu0 %v2306
        %v2450 = vpop.f32.mrb[0].mxu0
        %v2451 = vadd.f32 0.0, %v2450
        %v2452 = vpop.f32.mrb[0].mxu0
        %v2453 = vadd.f32 0.0, %v2452
        %v2454 = vpop.f32.mrb[0].mxu0
        %v2455 = vadd.f32 0.0, %v2454
        %v2456 = vpop.f32.mrb[0].mxu0
        %v2457 = vadd.f32 0.0, %v2456
        %2458 = vmatprep.mubr.bf16.mxu0 0
        %2459 = vmatmul.mubr.bf16.gmra.mrb[0].mxu0 %v2309
        %v2460 = vpop.f32.mrb[0].mxu0
        %v2461 = vadd.f32 0.0, %v2460
        %v2462 = vpop.f32.mrb[0].mxu0
        %v2463 = vadd.f32 0.0, %v2462
        %v2464 = vpop.f32.mrb[0].mxu0
        %v2465 = vadd.f32 0.0, %v2464
        %v2466 = vpop.f32.mrb[0].mxu0
        %v2467 = vadd.f32 0.0, %v2466
        %2468 = vmatprep.mubr.bf16.mxu0 0
        %2469 = vmatmul.mubr.bf16.gmra.mrb[0].mxu0 %v2312
        %v2470 = vpop.f32.mrb[0].mxu0
        %v2471 = vadd.f32 0.0, %v2470
        %v2472 = vpop.f32.mrb[0].mxu0
        %v2473 = vadd.f32 0.0, %v2472
        %v2474 = vpop.f32.mrb[0].mxu0
        %v2475 = vadd.f32 0.0, %v2474
        %v2476 = vpop.f32.mrb[0].mxu0
        %v2477 = vadd.f32 0.0, %v2476
        %2478 = vmatprep.mubr.bf16.mxu0 0
        %2479 = vmatmul.mubr.bf16.gmra.mrb[0].mxu0 %v2315
        %v2480 = vpop.f32.mrb[0].mxu0
        %v2481 = vadd.f32 0.0, %v2480
        %v2482 = vpop.f32.mrb[0].mxu0
        %v2483 = vadd.f32 0.0, %v2482
        %v2484 = vpop.f32.mrb[0].mxu0
        %v2485 = vadd.f32 0.0, %v2484
        %v2486 = vpop.f32.mrb[0].mxu0
        %v2487 = vadd.f32 0.0, %v2486
        %2488 = vmatprep.mubr.bf16.mxu0 0
        %2489 = vmatmul.mubr.bf16.gmra.mrb[0].mxu0 %v2318
        %v2490 = vpop.f32.mrb[0].mxu0
        %v2491 = vadd.f32 0.0, %v2490
        %v2492 = vpop.f32.mrb[0].mxu0
        %v2493 = vadd.f32 0.0, %v2492
        %v2494 = vpop.f32.mrb[0].mxu0
        %v2495 = vadd.f32 0.0, %v2494
        %v2496 = vpop.f32.mrb[0].mxu0
        %v2497 = vadd.f32 0.0, %v2496
        %2498 = vmatprep.mubr.bf16.mxu0 0
        %2499 = vmatmul.mubr.bf16.gmra.mrb[0].mxu0 %v2321
        %v2500 = vpop.f32.mrb[0].mxu0
        %v2501 = vadd.f32 0.0, %v2500
        %v2502 = vpop.f32.mrb[0].mxu0
        %v2503 = vadd.f32 0.0, %v2502
        %v2504 = vpop.f32.mrb[0].mxu0
        %v2505 = vadd.f32 0.0, %v2504
        %v2506 = vpop.f32.mrb[0].mxu0
        %v2507 = vadd.f32 0.0, %v2506
        %2508 = vmatprep.mubr.bf16.mxu0 0
        %2509 = vmatmul.mubr.bf16.gmra.mrb[0].mxu0 %v2324
        %v2510 = vpop.f32.mrb[0].mxu0
        %v2511 = vadd.f32 0.0, %v2510
        %v2512 = vpop.f32.mrb[0].mxu0
        %v2513 = vadd.f32 0.0, %v2512
        %v2514 = vpop.f32.mrb[0].mxu0
        %v2515 = vadd.f32 0.0, %v2514
        %v2516 = vpop.f32.mrb[0].mxu0
        %v2517 = vadd.f32 0.0, %v2516
        %2518 = vdwg.mxu0
        %v2519 = vadd.f32 %v2109, %v2361
        %v2520 = vadd.f32 %v2110, %v2363
        %v2521 = vadd.f32 %v2111, %v2365
        %v2522 = vadd.f32 %v2112, %v2367
        %v2523 = vadd.f32 %v2113, %v2371
        %v2524 = vadd.f32 %v2114, %v2373
        %v2525 = vadd.f32 %v2115, %v2375
        %v2526 = vadd.f32 %v2116, %v2377
        %v2527 = vadd.f32 %v2117, %v2381
        %v2528 = vadd.f32 %v2118, %v2383
        %v2529 = vadd.f32 %v2119, %v2385
        %v2530 = vadd.f32 %v2120, %v2387
        %v2531 = vadd.f32 %v2121, %v2391
        %v2532 = vadd.f32 %v2122, %v2393
        %v2533 = vadd.f32 %v2123, %v2395
        %v2534 = vadd.f32 %v2124, %v2397
        %v2535 = vadd.f32 %v2125, %v2401
        %v2536 = vadd.f32 %v2126, %v2403
        %v2537 = vadd.f32 %v2127, %v2405
        %v2538 = vadd.f32 %v2128, %v2407
        %v2539 = vadd.f32 %v2129, %v2411
        %v2540 = vadd.f32 %v2130, %v2413
        %v2541 = vadd.f32 %v2131, %v2415
        %v2542 = vadd.f32 %v2132, %v2417
        %v2543 = vadd.f32 %v2133, %v2421
        %v2544 = vadd.f32 %v2134, %v2423
        %v2545 = vadd.f32 %v2135, %v2425
        %v2546 = vadd.f32 %v2136, %v2427
        %v2547 = vadd.f32 %v2137, %v2431
        %v2548 = vadd.f32 %v2138, %v2433
        %v2549 = vadd.f32 %v2139, %v2435
        %v2550 = vadd.f32 %v2140, %v2437
        %v2551 = vadd.f32 %v2141, %v2441
        %v2552 = vadd.f32 %v2142, %v2443
        %v2553 = vadd.f32 %v2143, %v2445
        %v2554 = vadd.f32 %v2144, %v2447
        %v2555 = vadd.f32 %v2145, %v2451
        %v2556 = vadd.f32 %v2146, %v2453
        %v2557 = vadd.f32 %v2147, %v2455
        %v2558 = vadd.f32 %v2148, %v2457
        %v2559 = vadd.f32 %v2149, %v2461
        %v2560 = vadd.f32 %v2150, %v2463
        %v2561 = vadd.f32 %v2151, %v2465
        %v2562 = vadd.f32 %v2152, %v2467
        %v2563 = vadd.f32 %v2153, %v2471
        %v2564 = vadd.f32 %v2154, %v2473
        %v2565 = vadd.f32 %v2155, %v2475
        %v2566 = vadd.f32 %v2156, %v2477
        %v2567 = vadd.f32 %v2157, %v2481
        %v2568 = vadd.f32 %v2158, %v2483
        %v2569 = vadd.f32 %v2159, %v2485
        %v2570 = vadd.f32 %v2160, %v2487
        %v2571 = vadd.f32 %v2161, %v2491
        %v2572 = vadd.f32 %v2162, %v2493
        %v2573 = vadd.f32 %v2163, %v2495
        %v2574 = vadd.f32 %v2164, %v2497
        %v2575 = vadd.f32 %v2165, %v2501
        %v2576 = vadd.f32 %v2166, %v2503
        %v2577 = vadd.f32 %v2167, %v2505
        %v2578 = vadd.f32 %v2168, %v2507
        %v2579 = vadd.f32 %v2169, %v2511
        %v2580 = vadd.f32 %v2170, %v2513
        %v2581 = vadd.f32 %v2171, %v2515
        %v2582 = vadd.f32 %v2172, %v2517
        %v2583 = vld [vmem:[%s2] sm:$0x3]
        %v2585 = vlaneseq
        %v2586 = vshrl.u32 %v2585, 7
        %v2587 = vsub.s32 0, %v2586
        %v2588 = vrot.slane %v2583, %v2587
        %v2589 = vlaneseq
        %v2590 = vshrl.u32 %v2589, 7
        %v2591 = vsub.s32 1, %v2590
        %v2592 = vrot.slane %v2583, %v2591
        %v2595 = vadd.f32 %v2519, %v2588
        %v2596 = vadd.f32 %v2520, %v2592
        %v2597 = vadd.f32 %v2521, %v2588
        %v2598 = vadd.f32 %v2522, %v2592
        %v2599 = vadd.f32 %v2523, %v2588
        %v2600 = vadd.f32 %v2524, %v2592
        %v2601 = vadd.f32 %v2525, %v2588
        %v2602 = vadd.f32 %v2526, %v2592
        %v2603 = vadd.f32 %v2527, %v2588
        %v2604 = vadd.f32 %v2528, %v2592
        %v2605 = vadd.f32 %v2529, %v2588
        %v2606 = vadd.f32 %v2530, %v2592
        %v2607 = vadd.f32 %v2531, %v2588
        %v2608 = vadd.f32 %v2532, %v2592
        %v2609 = vadd.f32 %v2533, %v2588
        %v2610 = vadd.f32 %v2534, %v2592
        %v2611 = vadd.f32 %v2535, %v2588
        %v2612 = vadd.f32 %v2536, %v2592
        %v2613 = vadd.f32 %v2537, %v2588
        %v2614 = vadd.f32 %v2538, %v2592
        %v2615 = vadd.f32 %v2539, %v2588
        %v2616 = vadd.f32 %v2540, %v2592
        %v2617 = vadd.f32 %v2541, %v2588
        %v2618 = vadd.f32 %v2542, %v2592
        %v2619 = vadd.f32 %v2543, %v2588
        %v2620 = vadd.f32 %v2544, %v2592
        %v2621 = vadd.f32 %v2545, %v2588
        %v2622 = vadd.f32 %v2546, %v2592
        %v2623 = vadd.f32 %v2547, %v2588
        %v2624 = vadd.f32 %v2548, %v2592
        %v2625 = vadd.f32 %v2549, %v2588
        %v2626 = vadd.f32 %v2550, %v2592
        %v2627 = vadd.f32 %v2551, %v2588
        %v2628 = vadd.f32 %v2552, %v2592
        %v2629 = vadd.f32 %v2553, %v2588
        %v2630 = vadd.f32 %v2554, %v2592
        %v2631 = vadd.f32 %v2555, %v2588
        %v2632 = vadd.f32 %v2556, %v2592
        %v2633 = vadd.f32 %v2557, %v2588
        %v2634 = vadd.f32 %v2558, %v2592
        %v2635 = vadd.f32 %v2559, %v2588
        %v2636 = vadd.f32 %v2560, %v2592
        %v2637 = vadd.f32 %v2561, %v2588
        %v2638 = vadd.f32 %v2562, %v2592
        %v2639 = vadd.f32 %v2563, %v2588
        %v2640 = vadd.f32 %v2564, %v2592
        %v2641 = vadd.f32 %v2565, %v2588
        %v2642 = vadd.f32 %v2566, %v2592
        %v2643 = vadd.f32 %v2567, %v2588
        %v2644 = vadd.f32 %v2568, %v2592
        %v2645 = vadd.f32 %v2569, %v2588
        %v2646 = vadd.f32 %v2570, %v2592
        %v2647 = vadd.f32 %v2571, %v2588
        %v2648 = vadd.f32 %v2572, %v2592
        %v2649 = vadd.f32 %v2573, %v2588
        %v2650 = vadd.f32 %v2574, %v2592
        %v2651 = vadd.f32 %v2575, %v2588
        %v2652 = vadd.f32 %v2576, %v2592
        %v2653 = vadd.f32 %v2577, %v2588
        %v2654 = vadd.f32 %v2578, %v2592
        %v2655 = vadd.f32 %v2579, %v2588
        %v2656 = vadd.f32 %v2580, %v2592
        %v2657 = vadd.f32 %v2581, %v2588
        %v2658 = vadd.f32 %v2582, %v2592
        %v2659 = vmax.f32 %v2595, 0.0
        %v2660 = vmax.f32 %v2596, 0.0
        %v2661 = vmax.f32 %v2597, 0.0
        %v2662 = vmax.f32 %v2598, 0.0
        %v2663 = vmax.f32 %v2599, 0.0
        %v2664 = vmax.f32 %v2600, 0.0
        %v2665 = vmax.f32 %v2601, 0.0
        %v2666 = vmax.f32 %v2602, 0.0
        %v2667 = vmax.f32 %v2603, 0.0
        %v2668 = vmax.f32 %v2604, 0.0
        %v2669 = vmax.f32 %v2605, 0.0
        %v2670 = vmax.f32 %v2606, 0.0
        %v2671 = vmax.f32 %v2607, 0.0
        %v2672 = vmax.f32 %v2608, 0.0
        %v2673 = vmax.f32 %v2609, 0.0
        %v2674 = vmax.f32 %v2610, 0.0
        %v2675 = vmax.f32 %v2611, 0.0
        %v2676 = vmax.f32 %v2612, 0.0
        %v2677 = vmax.f32 %v2613, 0.0
        %v2678 = vmax.f32 %v2614, 0.0
        %v2679 = vmax.f32 %v2615, 0.0
        %v2680 = vmax.f32 %v2616, 0.0
        %v2681 = vmax.f32 %v2617, 0.0
        %v2682 = vmax.f32 %v2618, 0.0
        %v2683 = vmax.f32 %v2619, 0.0
        %v2684 = vmax.f32 %v2620, 0.0
        %v2685 = vmax.f32 %v2621, 0.0
        %v2686 = vmax.f32 %v2622, 0.0
        %v2687 = vmax.f32 %v2623, 0.0
        %v2688 = vmax.f32 %v2624, 0.0
        %v2689 = vmax.f32 %v2625, 0.0
        %v2690 = vmax.f32 %v2626, 0.0
        %v2691 = vmax.f32 %v2627, 0.0
        %v2692 = vmax.f32 %v2628, 0.0
        %v2693 = vmax.f32 %v2629, 0.0
        %v2694 = vmax.f32 %v2630, 0.0
        %v2695 = vmax.f32 %v2631, 0.0
        %v2696 = vmax.f32 %v2632, 0.0
        %v2697 = vmax.f32 %v2633, 0.0
        %v2698 = vmax.f32 %v2634, 0.0
        %v2699 = vmax.f32 %v2635, 0.0
        %v2700 = vmax.f32 %v2636, 0.0
        %v2701 = vmax.f32 %v2637, 0.0
        %v2702 = vmax.f32 %v2638, 0.0
        %v2703 = vmax.f32 %v2639, 0.0
        %v2704 = vmax.f32 %v2640, 0.0
        %v2705 = vmax.f32 %v2641, 0.0
        %v2706 = vmax.f32 %v2642, 0.0
        %v2707 = vmax.f32 %v2643, 0.0
        %v2708 = vmax.f32 %v2644, 0.0
        %v2709 = vmax.f32 %v2645, 0.0
        %v2710 = vmax.f32 %v2646, 0.0
        %v2711 = vmax.f32 %v2647, 0.0
        %v2712 = vmax.f32 %v2648, 0.0
        %v2713 = vmax.f32 %v2649, 0.0
        %v2714 = vmax.f32 %v2650, 0.0
        %v2715 = vmax.f32 %v2651, 0.0
        %v2716 = vmax.f32 %v2652, 0.0
        %v2717 = vmax.f32 %v2653, 0.0
        %v2718 = vmax.f32 %v2654, 0.0
        %v2719 = vmax.f32 %v2655, 0.0
        %v2720 = vmax.f32 %v2656, 0.0
        %v2721 = vmax.f32 %v2657, 0.0
        %v2722 = vmax.f32 %v2658, 0.0
        %v2723 = vpack.c.bf16 %v2661, %v2659
        %v2724 = vpack.c.bf16 %v2662, %v2660
        %v2725 = vpack.c.bf16 %v2665, %v2663
        %v2726 = vpack.c.bf16 %v2666, %v2664
        %v2727 = vpack.c.bf16 %v2669, %v2667
        %v2728 = vpack.c.bf16 %v2670, %v2668
        %v2729 = vpack.c.bf16 %v2673, %v2671
        %v2730 = vpack.c.bf16 %v2674, %v2672
        %v2731 = vpack.c.bf16 %v2677, %v2675
        %v2732 = vpack.c.bf16 %v2678, %v2676
        %v2733 = vpack.c.bf16 %v2681, %v2679
        %v2734 = vpack.c.bf16 %v2682, %v2680
        %v2735 = vpack.c.bf16 %v2685, %v2683
        %v2736 = vpack.c.bf16 %v2686, %v2684
        %v2737 = vpack.c.bf16 %v2689, %v2687
        %v2738 = vpack.c.bf16 %v2690, %v2688
        %v2739 = vpack.c.bf16 %v2693, %v2691
        %v2740 = vpack.c.bf16 %v2694, %v2692
        %v2741 = vpack.c.bf16 %v2697, %v2695
        %v2742 = vpack.c.bf16 %v2698, %v2696
        %v2743 = vpack.c.bf16 %v2701, %v2699
        %v2744 = vpack.c.bf16 %v2702, %v2700
        %v2745 = vpack.c.bf16 %v2705, %v2703
        %v2746 = vpack.c.bf16 %v2706, %v2704
        %v2747 = vpack.c.bf16 %v2709, %v2707
        %v2748 = vpack.c.bf16 %v2710, %v2708
        %v2749 = vpack.c.bf16 %v2713, %v2711
        %v2750 = vpack.c.bf16 %v2714, %v2712
        %v2751 = vpack.c.bf16 %v2717, %v2715
        %v2752 = vpack.c.bf16 %v2718, %v2716
        %v2753 = vpack.c.bf16 %v2721, %v2719
        %v2754 = vpack.c.bf16 %v2722, %v2720
        %v2755 = vld [vmem:[%s3] sm:$0xff]
        %v2756 = vld [vmem:[%s3 + $0x8] sm:$0xff]
        %v2757 = vld [vmem:[%s3 + $0x10] sm:$0xff]
        %v2758 = vld [vmem:[%s3 + $0x18] sm:$0xff]
        %v2759 = vld [vmem:[%s3 + $0x20] sm:$0xff]
        %v2760 = vld [vmem:[%s3 + $0x28] sm:$0xff]
        %v2761 = vld [vmem:[%s3 + $0x30] sm:$0xff]
        %v2762 = vld [vmem:[%s3 + $0x38] sm:$0xff]
        %v2763 = vld [vmem:[%s3 + $0x40] sm:$0xff]
        %v2764 = vld [vmem:[%s3 + $0x48] sm:$0xff]
        %v2765 = vld [vmem:[%s3 + $0x50] sm:$0xff]
        %v2766 = vld [vmem:[%s3 + $0x58] sm:$0xff]
        %v2767 = vld [vmem:[%s3 + $0x60] sm:$0xff]
        %v2768 = vld [vmem:[%s3 + $0x68] sm:$0xff]
        %v2769 = vld [vmem:[%s3 + $0x70] sm:$0xff]
        %v2770 = vld [vmem:[%s3 + $0x78] sm:$0xff]
        %v2771 = vld [vmem:[%s3 + $0x80] sm:$0xff]
        %v2772 = vld [vmem:[%s3 + $0x88] sm:$0xff]
        %v2773 = vld [vmem:[%s3 + $0x90] sm:$0xff]
        %v2774 = vld [vmem:[%s3 + $0x98] sm:$0xff]
        %v2775 = vld [vmem:[%s3 + $0xa0] sm:$0xff]
        %v2776 = vld [vmem:[%s3 + $0xa8] sm:$0xff]
        %v2777 = vld [vmem:[%s3 + $0xb0] sm:$0xff]
        %v2778 = vld [vmem:[%s3 + $0xb8] sm:$0xff]
        %v2779 = vld [vmem:[%s3 + $0xc0] sm:$0xff]
        %v2780 = vld [vmem:[%s3 + $0xc8] sm:$0xff]
        %v2781 = vld [vmem:[%s3 + $0xd0] sm:$0xff]
        %v2782 = vld [vmem:[%s3 + $0xd8] sm:$0xff]
        %s2783 = scalar_lea.vmem %s3, 224
        %v2784 = vld [vmem:[%s2783] sm:$0xff]
        %v2785 = vld [vmem:[%s2783 + $0x8] sm:$0xff]
        %v2786 = vld [vmem:[%s2783 + $0x10] sm:$0xff]
        %v2787 = vld [vmem:[%s2783 + $0x18] sm:$0xff]
        %v2788 = vld [vmem:[%s2783 + $0x20] sm:$0xff]
        %v2789 = vld [vmem:[%s2783 + $0x28] sm:$0xff]
        %v2790 = vld [vmem:[%s2783 + $0x30] sm:$0xff]
        %v2791 = vld [vmem:[%s2783 + $0x38] sm:$0xff]
        %v2792 = vld [vmem:[%s2783 + $0x40] sm:$0xff]
        %v2793 = vld [vmem:[%s2783 + $0x48] sm:$0xff]
        %v2794 = vld [vmem:[%s2783 + $0x50] sm:$0xff]
        %v2795 = vld [vmem:[%s2783 + $0x58] sm:$0xff]
        %v2796 = vld [vmem:[%s2783 + $0x60] sm:$0xff]
        %v2797 = vld [vmem:[%s2783 + $0x68] sm:$0xff]
        %v2798 = vld [vmem:[%s2783 + $0x70] sm:$0xff]
        %v2799 = vld [vmem:[%s2783 + $0x78] sm:$0xff]
        %v2800 = vld [vmem:[%s2783 + $0x80] sm:$0xff]
        %v2801 = vld [vmem:[%s2783 + $0x88] sm:$0xff]
        %v2802 = vld [vmem:[%s2783 + $0x90] sm:$0xff]
        %v2803 = vld [vmem:[%s2783 + $0x98] sm:$0xff]
        %v2804 = vld [vmem:[%s2783 + $0xa0] sm:$0xff]
        %v2805 = vld [vmem:[%s2783 + $0xa8] sm:$0xff]
        %v2806 = vld [vmem:[%s2783 + $0xb0] sm:$0xff]
        %v2807 = vld [vmem:[%s2783 + $0xb8] sm:$0xff]
        %v2808 = vld [vmem:[%s2783 + $0xc0] sm:$0xff]
        %v2809 = vld [vmem:[%s2783 + $0xc8] sm:$0xff]
        %v2810 = vld [vmem:[%s2783 + $0xd0] sm:$0xff]
        %v2811 = vld [vmem:[%s2783 + $0xd8] sm:$0xff]
        %v2813 = vshrl.u32 %v2723, 16
        %v2815 = vshll.u32 %v2723, 16
        %v2817 = vrot.slane %v2815, 1
        %v2818 = vor.u32 %v2813, %v2817
        %v2820 = vshll.u32 %v2725, 16
        %v2822 = vrot.slane %v2820, 1
        %v2823 = vsel %vm606, %v2818, %v2822
        %v2825 = vshrl.u32 %v2724, 16
        %v2827 = vshll.u32 %v2724, 16
        %v2829 = vrot.slane %v2827, 1
        %v2830 = vor.u32 %v2825, %v2829
        %v2832 = vshll.u32 %v2726, 16
        %v2834 = vrot.slane %v2832, 1
        %v2835 = vsel %vm606, %v2830, %v2834
        %v2836 = vshrl.u32 %v2725, 16
        %v2838 = vor.u32 %v2836, %v2822
        %v2840 = vshll.u32 %v2727, 16
        %v2842 = vrot.slane %v2840, 1
        %v2843 = vsel %vm606, %v2838, %v2842
        %v2844 = vshrl.u32 %v2726, 16
        %v2846 = vor.u32 %v2844, %v2834
        %v2848 = vshll.u32 %v2728, 16
        %v2850 = vrot.slane %v2848, 1
        %v2851 = vsel %vm606, %v2846, %v2850
        %v2852 = vshrl.u32 %v2727, 16
        %v2854 = vor.u32 %v2852, %v2842
        %v2856 = vshll.u32 %v2729, 16
        %v2858 = vrot.slane %v2856, 1
        %v2859 = vsel %vm606, %v2854, %v2858
        %v2860 = vshrl.u32 %v2728, 16
        %v2862 = vor.u32 %v2860, %v2850
        %v2864 = vshll.u32 %v2730, 16
        %v2866 = vrot.slane %v2864, 1
        %v2867 = vsel %vm606, %v2862, %v2866
        %v2868 = vshrl.u32 %v2729, 16
        %v2870 = vor.u32 %v2868, %v2858
        %v2872 = vshll.u32 %v2731, 16
        %v2874 = vrot.slane %v2872, 1
        %v2875 = vsel %vm606, %v2870, %v2874
        %v2876 = vshrl.u32 %v2730, 16
        %v2878 = vor.u32 %v2876, %v2866
        %v2880 = vshll.u32 %v2732, 16
        %v2882 = vrot.slane %v2880, 1
        %v2883 = vsel %vm606, %v2878, %v2882
        %v2884 = vshrl.u32 %v2731, 16
        %v2886 = vor.u32 %v2884, %v2874
        %v2888 = vshll.u32 %v2733, 16
        %v2890 = vrot.slane %v2888, 1
        %v2891 = vsel %vm606, %v2886, %v2890
        %v2892 = vshrl.u32 %v2732, 16
        %v2894 = vor.u32 %v2892, %v2882
        %v2896 = vshll.u32 %v2734, 16
        %v2898 = vrot.slane %v2896, 1
        %v2899 = vsel %vm606, %v2894, %v2898
        %v2900 = vshrl.u32 %v2733, 16
        %v2902 = vor.u32 %v2900, %v2890
        %v2904 = vshll.u32 %v2735, 16
        %v2906 = vrot.slane %v2904, 1
        %v2907 = vsel %vm606, %v2902, %v2906
        %v2908 = vshrl.u32 %v2734, 16
        %v2910 = vor.u32 %v2908, %v2898
        %v2912 = vshll.u32 %v2736, 16
        %v2914 = vrot.slane %v2912, 1
        %v2915 = vsel %vm606, %v2910, %v2914
        %v2916 = vshrl.u32 %v2735, 16
        %v2918 = vor.u32 %v2916, %v2906
        %v2920 = vshll.u32 %v2737, 16
        %v2922 = vrot.slane %v2920, 1
        %v2923 = vsel %vm606, %v2918, %v2922
        %v2924 = vshrl.u32 %v2736, 16
        %v2926 = vor.u32 %v2924, %v2914
        %v2928 = vshll.u32 %v2738, 16
        %v2930 = vrot.slane %v2928, 1
        %v2931 = vsel %vm606, %v2926, %v2930
        %v2932 = vshrl.u32 %v2737, 16
        %v2934 = vor.u32 %v2932, %v2922
        %v2936 = vshll.u32 %v2739, 16
        %v2938 = vrot.slane %v2936, 1
        %v2939 = vsel %vm606, %v2934, %v2938
        %v2940 = vshrl.u32 %v2738, 16
        %v2942 = vor.u32 %v2940, %v2930
        %v2944 = vshll.u32 %v2740, 16
        %v2946 = vrot.slane %v2944, 1
        %v2947 = vsel %vm606, %v2942, %v2946
        %v2948 = vshrl.u32 %v2739, 16
        %v2950 = vor.u32 %v2948, %v2938
        %v2952 = vshll.u32 %v2741, 16
        %v2954 = vrot.slane %v2952, 1
        %v2955 = vsel %vm606, %v2950, %v2954
        %v2956 = vshrl.u32 %v2740, 16
        %v2958 = vor.u32 %v2956, %v2946
        %v2960 = vshll.u32 %v2742, 16
        %v2962 = vrot.slane %v2960, 1
        %v2963 = vsel %vm606, %v2958, %v2962
        %v2964 = vshrl.u32 %v2741, 16
        %v2966 = vor.u32 %v2964, %v2954
        %v2968 = vshll.u32 %v2743, 16
        %v2970 = vrot.slane %v2968, 1
        %v2971 = vsel %vm606, %v2966, %v2970
        %v2972 = vshrl.u32 %v2742, 16
        %v2974 = vor.u32 %v2972, %v2962
        %v2976 = vshll.u32 %v2744, 16
        %v2978 = vrot.slane %v2976, 1
        %v2979 = vsel %vm606, %v2974, %v2978
        %v2980 = vshrl.u32 %v2743, 16
        %v2982 = vor.u32 %v2980, %v2970
        %v2984 = vshll.u32 %v2745, 16
        %v2986 = vrot.slane %v2984, 1
        %v2987 = vsel %vm606, %v2982, %v2986
        %v2988 = vshrl.u32 %v2744, 16
        %v2990 = vor.u32 %v2988, %v2978
        %v2992 = vshll.u32 %v2746, 16
        %v2994 = vrot.slane %v2992, 1
        %v2995 = vsel %vm606, %v2990, %v2994
        %v2996 = vshrl.u32 %v2745, 16
        %v2998 = vor.u32 %v2996, %v2986
        %v3000 = vshll.u32 %v2747, 16
        %v3002 = vrot.slane %v3000, 1
        %v3003 = vsel %vm606, %v2998, %v3002
        %v3004 = vshrl.u32 %v2746, 16
        %v3006 = vor.u32 %v3004, %v2994
        %v3008 = vshll.u32 %v2748, 16
        %v3010 = vrot.slane %v3008, 1
        %v3011 = vsel %vm606, %v3006, %v3010
        %v3012 = vshrl.u32 %v2747, 16
        %v3014 = vor.u32 %v3012, %v3002
        %v3016 = vshll.u32 %v2749, 16
        %v3018 = vrot.slane %v3016, 1
        %v3019 = vsel %vm606, %v3014, %v3018
        %v3020 = vshrl.u32 %v2748, 16
        %v3022 = vor.u32 %v3020, %v3010
        %v3024 = vshll.u32 %v2750, 16
        %v3026 = vrot.slane %v3024, 1
        %v3027 = vsel %vm606, %v3022, %v3026
        %v3028 = vshrl.u32 %v2749, 16
        %v3030 = vor.u32 %v3028, %v3018
        %v3032 = vshll.u32 %v2751, 16
        %v3034 = vrot.slane %v3032, 1
        %v3035 = vsel %vm606, %v3030, %v3034
        %v3036 = vshrl.u32 %v2750, 16
        %v3038 = vor.u32 %v3036, %v3026
        %v3040 = vshll.u32 %v2752, 16
        %v3042 = vrot.slane %v3040, 1
        %v3043 = vsel %vm606, %v3038, %v3042
        %v3044 = vshrl.u32 %v2751, 16
        %v3046 = vor.u32 %v3044, %v3034
        %v3048 = vshll.u32 %v2753, 16
        %v3050 = vrot.slane %v3048, 1
        %v3051 = vsel %vm606, %v3046, %v3050
        %v3052 = vshrl.u32 %v2752, 16
        %v3054 = vor.u32 %v3052, %v3042
        %v3056 = vshll.u32 %v2754, 16
        %v3058 = vrot.slane %v3056, 1
        %v3059 = vsel %vm606, %v3054, %v3058
        %v3060 = vshrl.u32 %v2753, 16
        %v3062 = vor.u32 %v3060, %v3050
        %v3063 = vshrl.u32 %v2754, 16
        %v3065 = vor.u32 %v3063, %v3058
        %v3110 = vunpack.c.l.b16 %v2784
        %v3111 = vunpack.c.h.b16 %v2784
        %v3112 = vunpack.c.l.b16 %v2785
        %v3113 = vunpack.c.h.b16 %v2785
        %v3114 = vunpack.c.l.b16 %v2786
        %v3115 = vunpack.c.h.b16 %v2786
        %v3116 = vunpack.c.l.b16 %v2787
        %v3117 = vunpack.c.h.b16 %v2787
        %v3118 = vunpack.c.l.b16 %v2788
        %v3119 = vunpack.c.h.b16 %v2788
        %v3120 = vunpack.c.l.b16 %v2789
        %v3121 = vunpack.c.h.b16 %v2789
        %v3122 = vunpack.c.l.b16 %v2790
        %v3123 = vunpack.c.h.b16 %v2790
        %v3124 = vunpack.c.l.b16 %v2791
        %v3125 = vunpack.c.h.b16 %v2791
        %v3126 = vunpack.c.l.b16 %v2792
        %v3127 = vunpack.c.h.b16 %v2792
        %v3128 = vunpack.c.l.b16 %v2793
        %v3129 = vunpack.c.h.b16 %v2793
        %v3130 = vunpack.c.l.b16 %v2794
        %v3131 = vunpack.c.h.b16 %v2794
        %v3132 = vunpack.c.l.b16 %v2795
        %v3133 = vunpack.c.h.b16 %v2795
        %v3134 = vunpack.c.l.b16 %v2796
        %v3135 = vunpack.c.h.b16 %v2796
        %v3136 = vunpack.c.l.b16 %v2797
        %v3137 = vunpack.c.h.b16 %v2797
        %v3138 = vunpack.c.l.b16 %v2798
        %v3139 = vunpack.c.h.b16 %v2798
        %v3140 = vunpack.c.l.b16 %v2799
        %v3141 = vunpack.c.h.b16 %v2799
        %v3142 = vunpack.c.l.b16 %v2800
        %v3143 = vunpack.c.h.b16 %v2800
        %v3144 = vunpack.c.l.b16 %v2801
        %v3145 = vunpack.c.h.b16 %v2801
        %v3146 = vunpack.c.l.b16 %v2802
        %v3147 = vunpack.c.h.b16 %v2802
        %v3148 = vunpack.c.l.b16 %v2803
        %v3149 = vunpack.c.h.b16 %v2803
        %v3150 = vunpack.c.l.b16 %v2804
        %v3151 = vunpack.c.h.b16 %v2804
        %v3152 = vunpack.c.l.b16 %v2805
        %v3153 = vunpack.c.h.b16 %v2805
        %v3154 = vunpack.c.l.b16 %v2806
        %v3155 = vunpack.c.h.b16 %v2806
        %v3156 = vunpack.c.l.b16 %v2807
        %v3157 = vunpack.c.h.b16 %v2807
        %v3158 = vunpack.c.l.b16 %v2808
        %v3159 = vunpack.c.h.b16 %v2808
        %v3160 = vunpack.c.l.b16 %v2809
        %v3161 = vunpack.c.h.b16 %v2809
        %v3162 = vunpack.c.l.b16 %v2810
        %v3163 = vunpack.c.h.b16 %v2810
        %v3164 = vunpack.c.l.b16 %v2811
        %v3165 = vunpack.c.h.b16 %v2811
        %v3166 = vpack.c.b16 %v3112, %v3110
        %v3167 = vpack.c.b16 %v3113, %v3111
        %v3168 = vpack.c.b16 %v3116, %v3114
        %v3169 = vpack.c.b16 %v3117, %v3115
        %v3170 = vpack.c.b16 %v3120, %v3118
        %v3171 = vpack.c.b16 %v3121, %v3119
        %v3172 = vpack.c.b16 %v3124, %v3122
        %v3173 = vpack.c.b16 %v3125, %v3123
        %v3174 = vpack.c.b16 %v3128, %v3126
        %v3175 = vpack.c.b16 %v3129, %v3127
        %v3176 = vpack.c.b16 %v3132, %v3130
        %v3177 = vpack.c.b16 %v3133, %v3131
        %v3178 = vpack.c.b16 %v3136, %v3134
        %v3179 = vpack.c.b16 %v3137, %v3135
        %v3180 = vpack.c.b16 %v3140, %v3138
        %v3181 = vpack.c.b16 %v3141, %v3139
        %v3182 = vpack.c.b16 %v3144, %v3142
        %v3183 = vpack.c.b16 %v3145, %v3143
        %v3184 = vpack.c.b16 %v3148, %v3146
        %v3185 = vpack.c.b16 %v3149, %v3147
        %v3186 = vpack.c.b16 %v3152, %v3150
        %v3187 = vpack.c.b16 %v3153, %v3151
        %v3188 = vpack.c.b16 %v3156, %v3154
        %v3189 = vpack.c.b16 %v3157, %v3155
        %v3190 = vpack.c.b16 %v3160, %v3158
        %v3191 = vpack.c.b16 %v3161, %v3159
        %v3192 = vpack.c.b16 %v3164, %v3162
        %v3193 = vpack.c.b16 %v3165, %v3163
        %v3223 = vsel %vm794, %v2835, 0
        %v3226 = vsel %vm794, %v2851, 0
        %v3229 = vsel %vm794, %v2867, 0
        %v3232 = vsel %vm794, %v2883, 0
        %v3235 = vsel %vm794, %v2899, 0
        %v3238 = vsel %vm794, %v2915, 0
        %v3241 = vsel %vm794, %v2931, 0
        %v3244 = vsel %vm794, %v2947, 0
        %v3247 = vsel %vm794, %v2963, 0
        %v3250 = vsel %vm794, %v2979, 0
        %v3253 = vsel %vm794, %v2995, 0
        %v3256 = vsel %vm794, %v3011, 0
        %v3259 = vsel %vm794, %v3027, 0
        %v3262 = vsel %vm794, %v3043, 0
        %v3265 = vsel %vm794, %v3059, 0
        %v3268 = vsel %vm794, %v3065, 0
        %3270 = vmatprep.subr.bf16.mxu0 %v3167
        %3271 = vmatpush1.bf16.msra.mxu0 %v3166
        %3272 = vmatprep.subr.bf16.mxu0 %v3169
        %3273 = vmatpush1.bf16.msra.mxu0 %v3168
        %3274 = vmatprep.subr.bf16.mxu0 %v3171
        %3275 = vmatpush1.bf16.msra.mxu0 %v3170
        %3276 = vmatprep.subr.bf16.mxu0 %v3173
        %3277 = vmatpush1.bf16.msra.mxu0 %v3172
        %3278 = vmatprep.subr.bf16.mxu0 %v3175
        %3279 = vmatpush1.bf16.msra.mxu0 %v3174
        %3280 = vmatprep.subr.bf16.mxu0 %v3177
        %3281 = vmatpush1.bf16.msra.mxu0 %v3176
        %3282 = vmatprep.subr.bf16.mxu0 %v3179
        %3283 = vmatpush1.bf16.msra.mxu0 %v3178
        %3284 = vmatprep.subr.bf16.mxu0 %v3181
        %3285 = vmatpush1.bf16.msra.mxu0 %v3180
        %3286 = vmatprep.subr.bf16.mxu0 %v3183
        %3287 = vmatpush1.bf16.msra.mxu0 %v3182
        %3288 = vmatprep.subr.bf16.mxu0 %v3185
        %3289 = vmatpush1.bf16.msra.mxu0 %v3184
        %3290 = vmatprep.subr.bf16.mxu0 %v3187
        %3291 = vmatpush1.bf16.msra.mxu0 %v3186
        %3292 = vmatprep.subr.bf16.mxu0 %v3189
        %3293 = vmatpush1.bf16.msra.mxu0 %v3188
        %3294 = vmatprep.subr.bf16.mxu0 %v3191
        %3295 = vmatpush1.bf16.msra.mxu0 %v3190
        %3296 = vmatprep.subr.bf16.mxu0 %v3193
        %3297 = vmatpush1.bf16.msra.mxu0 %v3192
        %3298 = vmatprep.subr.bf16.mxu0 0
        %3299 = vmatpush1.bf16.msra.mxu0 0
        %3300 = vmatprep.subr.bf16.mxu0 0
        %3301 = vmatpush1.bf16.msra.mxu0 0
        %3302 = vmatprep.mubr.bf16.mxu0 %v3223
        %3303 = vmatmul.mubr.bf16.gmra.mrb[0].mxu0 %v2823
        %v3304 = vpop.f32.mrb[0].mxu0
        %v3305 = vadd.f32 0.0, %v3304
        %v3306 = vpop.f32.mrb[0].mxu0
        %v3307 = vadd.f32 0.0, %v3306
        %v3308 = vpop.f32.mrb[0].mxu0
        %v3309 = vadd.f32 0.0, %v3308
        %v3310 = vpop.f32.mrb[0].mxu0
        %v3311 = vadd.f32 0.0, %v3310
        %3312 = vmatprep.mubr.bf16.mxu0 %v3226
        %3313 = vmatmul.mubr.bf16.gmra.mrb[0].mxu0 %v2843
        %v3314 = vpop.f32.mrb[0].mxu0
        %v3315 = vadd.f32 0.0, %v3314
        %v3316 = vpop.f32.mrb[0].mxu0
        %v3317 = vadd.f32 0.0, %v3316
        %v3318 = vpop.f32.mrb[0].mxu0
        %v3319 = vadd.f32 0.0, %v3318
        %v3320 = vpop.f32.mrb[0].mxu0
        %v3321 = vadd.f32 0.0, %v3320
        %3322 = vmatprep.mubr.bf16.mxu0 %v3229
        %3323 = vmatmul.mubr.bf16.gmra.mrb[0].mxu0 %v2859
        %v3324 = vpop.f32.mrb[0].mxu0
        %v3325 = vadd.f32 0.0, %v3324
        %v3326 = vpop.f32.mrb[0].mxu0
        %v3327 = vadd.f32 0.0, %v3326
        %v3328 = vpop.f32.mrb[0].mxu0
        %v3329 = vadd.f32 0.0, %v3328
        %v3330 = vpop.f32.mrb[0].mxu0
        %v3331 = vadd.f32 0.0, %v3330
        %3332 = vmatprep.mubr.bf16.mxu0 %v3232
        %3333 = vmatmul.mubr.bf16.gmra.mrb[0].mxu0 %v2875
        %v3334 = vpop.f32.mrb[0].mxu0
        %v3335 = vadd.f32 0.0, %v3334
        %v3336 = vpop.f32.mrb[0].mxu0
        %v3337 = vadd.f32 0.0, %v3336
        %v3338 = vpop.f32.mrb[0].mxu0
        %v3339 = vadd.f32 0.0, %v3338
        %v3340 = vpop.f32.mrb[0].mxu0
        %v3341 = vadd.f32 0.0, %v3340
        %3342 = vmatprep.mubr.bf16.mxu0 %v3235
        %3343 = vmatmul.mubr.bf16.gmra.mrb[0].mxu0 %v2891
        %v3344 = vpop.f32.mrb[0].mxu0
        %v3345 = vadd.f32 0.0, %v3344
        %v3346 = vpop.f32.mrb[0].mxu0
        %v3347 = vadd.f32 0.0, %v3346
        %v3348 = vpop.f32.mrb[0].mxu0
        %v3349 = vadd.f32 0.0, %v3348
        %v3350 = vpop.f32.mrb[0].mxu0
        %v3351 = vadd.f32 0.0, %v3350
        %3352 = vmatprep.mubr.bf16.mxu0 %v3238
        %3353 = vmatmul.mubr.bf16.gmra.mrb[0].mxu0 %v2907
        %v3354 = vpop.f32.mrb[0].mxu0
        %v3355 = vadd.f32 0.0, %v3354
        %v3356 = vpop.f32.mrb[0].mxu0
        %v3357 = vadd.f32 0.0, %v3356
        %v3358 = vpop.f32.mrb[0].mxu0
        %v3359 = vadd.f32 0.0, %v3358
        %v3360 = vpop.f32.mrb[0].mxu0
        %v3361 = vadd.f32 0.0, %v3360
        %3362 = vmatprep.mubr.bf16.mxu0 %v3241
        %3363 = vmatmul.mubr.bf16.gmra.mrb[0].mxu0 %v2923
        %v3364 = vpop.f32.mrb[0].mxu0
        %v3365 = vadd.f32 0.0, %v3364
        %v3366 = vpop.f32.mrb[0].mxu0
        %v3367 = vadd.f32 0.0, %v3366
        %v3368 = vpop.f32.mrb[0].mxu0
        %v3369 = vadd.f32 0.0, %v3368
        %v3370 = vpop.f32.mrb[0].mxu0
        %v3371 = vadd.f32 0.0, %v3370
        %3372 = vmatprep.mubr.bf16.mxu0 %v3244
        %3373 = vmatmul.mubr.bf16.gmra.mrb[0].mxu0 %v2939
        %v3374 = vpop.f32.mrb[0].mxu0
        %v3375 = vadd.f32 0.0, %v3374
        %v3376 = vpop.f32.mrb[0].mxu0
        %v3377 = vadd.f32 0.0, %v3376
        %v3378 = vpop.f32.mrb[0].mxu0
        %v3379 = vadd.f32 0.0, %v3378
        %v3380 = vpop.f32.mrb[0].mxu0
        %v3381 = vadd.f32 0.0, %v3380
        %3382 = vmatprep.mubr.bf16.mxu0 %v3247
        %3383 = vmatmul.mubr.bf16.gmra.mrb[0].mxu0 %v2955
        %v3384 = vpop.f32.mrb[0].mxu0
        %v3385 = vadd.f32 0.0, %v3384
        %v3386 = vpop.f32.mrb[0].mxu0
        %v3387 = vadd.f32 0.0, %v3386
        %v3388 = vpop.f32.mrb[0].mxu0
        %v3389 = vadd.f32 0.0, %v3388
        %v3390 = vpop.f32.mrb[0].mxu0
        %v3391 = vadd.f32 0.0, %v3390
        %3392 = vmatprep.mubr.bf16.mxu0 %v3250
        %3393 = vmatmul.mubr.bf16.gmra.mrb[0].mxu0 %v2971
        %v3394 = vpop.f32.mrb[0].mxu0
        %v3395 = vadd.f32 0.0, %v3394
        %v3396 = vpop.f32.mrb[0].mxu0
        %v3397 = vadd.f32 0.0, %v3396
        %v3398 = vpop.f32.mrb[0].mxu0
        %v3399 = vadd.f32 0.0, %v3398
        %v3400 = vpop.f32.mrb[0].mxu0
        %v3401 = vadd.f32 0.0, %v3400
        %3402 = vmatprep.mubr.bf16.mxu0 %v3253
        %3403 = vmatmul.mubr.bf16.gmra.mrb[0].mxu0 %v2987
        %v3404 = vpop.f32.mrb[0].mxu0
        %v3405 = vadd.f32 0.0, %v3404
        %v3406 = vpop.f32.mrb[0].mxu0
        %v3407 = vadd.f32 0.0, %v3406
        %v3408 = vpop.f32.mrb[0].mxu0
        %v3409 = vadd.f32 0.0, %v3408
        %v3410 = vpop.f32.mrb[0].mxu0
        %v3411 = vadd.f32 0.0, %v3410
        %3412 = vmatprep.mubr.bf16.mxu0 %v3256
        %3413 = vmatmul.mubr.bf16.gmra.mrb[0].mxu0 %v3003
        %v3414 = vpop.f32.mrb[0].mxu0
        %v3415 = vadd.f32 0.0, %v3414
        %v3416 = vpop.f32.mrb[0].mxu0
        %v3417 = vadd.f32 0.0, %v3416
        %v3418 = vpop.f32.mrb[0].mxu0
        %v3419 = vadd.f32 0.0, %v3418
        %v3420 = vpop.f32.mrb[0].mxu0
        %v3421 = vadd.f32 0.0, %v3420
        %3422 = vmatprep.mubr.bf16.mxu0 %v3259
        %3423 = vmatmul.mubr.bf16.gmra.mrb[0].mxu0 %v3019
        %v3424 = vpop.f32.mrb[0].mxu0
        %v3425 = vadd.f32 0.0, %v3424
        %v3426 = vpop.f32.mrb[0].mxu0
        %v3427 = vadd.f32 0.0, %v3426
        %v3428 = vpop.f32.mrb[0].mxu0
        %v3429 = vadd.f32 0.0, %v3428
        %v3430 = vpop.f32.mrb[0].mxu0
        %v3431 = vadd.f32 0.0, %v3430
        %3432 = vmatprep.mubr.bf16.mxu0 %v3262
        %3433 = vmatmul.mubr.bf16.gmra.mrb[0].mxu0 %v3035
        %v3434 = vpop.f32.mrb[0].mxu0
        %v3435 = vadd.f32 0.0, %v3434
        %v3436 = vpop.f32.mrb[0].mxu0
        %v3437 = vadd.f32 0.0, %v3436
        %v3438 = vpop.f32.mrb[0].mxu0
        %v3439 = vadd.f32 0.0, %v3438
        %v3440 = vpop.f32.mrb[0].mxu0
        %v3441 = vadd.f32 0.0, %v3440
        %3442 = vmatprep.mubr.bf16.mxu0 %v3265
        %3443 = vmatmul.mubr.bf16.gmra.mrb[0].mxu0 %v3051
        %v3444 = vpop.f32.mrb[0].mxu0
        %v3445 = vadd.f32 0.0, %v3444
        %v3446 = vpop.f32.mrb[0].mxu0
        %v3447 = vadd.f32 0.0, %v3446
        %v3448 = vpop.f32.mrb[0].mxu0
        %v3449 = vadd.f32 0.0, %v3448
        %v3450 = vpop.f32.mrb[0].mxu0
        %v3451 = vadd.f32 0.0, %v3450
        %3452 = vmatprep.mubr.bf16.mxu0 %v3268
        %3453 = vmatmul.mubr.bf16.gmra.mrb[0].mxu0 %v3062
        %v3454 = vpop.f32.mrb[0].mxu0
        %v3455 = vadd.f32 0.0, %v3454
        %v3456 = vpop.f32.mrb[0].mxu0
        %v3457 = vadd.f32 0.0, %v3456
        %v3458 = vpop.f32.mrb[0].mxu0
        %v3459 = vpop.f32.mrb[0].mxu0
        %3460 = vdwg.mxu0
        %v3489 = vunpack.c.l.b16 %v2755
        %v3490 = vunpack.c.h.b16 %v2755
        %v3491 = vunpack.c.l.b16 %v2756
        %v3492 = vunpack.c.h.b16 %v2756
        %v3493 = vunpack.c.l.b16 %v2757
        %v3494 = vunpack.c.h.b16 %v2757
        %v3495 = vunpack.c.l.b16 %v2758
        %v3496 = vunpack.c.h.b16 %v2758
        %v3497 = vunpack.c.l.b16 %v2759
        %v3498 = vunpack.c.h.b16 %v2759
        %v3499 = vunpack.c.l.b16 %v2760
        %v3500 = vunpack.c.h.b16 %v2760
        %v3501 = vunpack.c.l.b16 %v2761
        %v3502 = vunpack.c.h.b16 %v2761
        %v3503 = vunpack.c.l.b16 %v2762
        %v3504 = vunpack.c.h.b16 %v2762
        %v3505 = vunpack.c.l.b16 %v2763
        %v3506 = vunpack.c.h.b16 %v2763
        %v3507 = vunpack.c.l.b16 %v2764
        %v3508 = vunpack.c.h.b16 %v2764
        %v3509 = vunpack.c.l.b16 %v2765
        %v3510 = vunpack.c.h.b16 %v2765
        %v3511 = vunpack.c.l.b16 %v2766
        %v3512 = vunpack.c.h.b16 %v2766
        %v3513 = vunpack.c.l.b16 %v2767
        %v3514 = vunpack.c.h.b16 %v2767
        %v3515 = vunpack.c.l.b16 %v2768
        %v3516 = vunpack.c.h.b16 %v2768
        %v3517 = vunpack.c.l.b16 %v2769
        %v3518 = vunpack.c.h.b16 %v2769
        %v3519 = vunpack.c.l.b16 %v2770
        %v3520 = vunpack.c.h.b16 %v2770
        %v3521 = vunpack.c.l.b16 %v2771
        %v3522 = vunpack.c.h.b16 %v2771
        %v3523 = vunpack.c.l.b16 %v2772
        %v3524 = vunpack.c.h.b16 %v2772
        %v3525 = vunpack.c.l.b16 %v2773
        %v3526 = vunpack.c.h.b16 %v2773
        %v3527 = vunpack.c.l.b16 %v2774
        %v3528 = vunpack.c.h.b16 %v2774
        %v3529 = vunpack.c.l.b16 %v2775
        %v3530 = vunpack.c.h.b16 %v2775
        %v3531 = vunpack.c.l.b16 %v2776
        %v3532 = vunpack.c.h.b16 %v2776
        %v3533 = vunpack.c.l.b16 %v2777
        %v3534 = vunpack.c.h.b16 %v2777
        %v3535 = vunpack.c.l.b16 %v2778
        %v3536 = vunpack.c.h.b16 %v2778
        %v3537 = vunpack.c.l.b16 %v2779
        %v3538 = vunpack.c.h.b16 %v2779
        %v3539 = vunpack.c.l.b16 %v2780
        %v3540 = vunpack.c.h.b16 %v2780
        %v3541 = vunpack.c.l.b16 %v2781
        %v3542 = vunpack.c.h.b16 %v2781
        %v3543 = vunpack.c.l.b16 %v2782
        %v3544 = vunpack.c.h.b16 %v2782
        %v3545 = vpack.c.b16 %v3491, %v3489
        %v3546 = vpack.c.b16 %v3492, %v3490
        %v3547 = vpack.c.b16 %v3495, %v3493
        %v3548 = vpack.c.b16 %v3496, %v3494
        %v3549 = vpack.c.b16 %v3499, %v3497
        %v3550 = vpack.c.b16 %v3500, %v3498
        %v3551 = vpack.c.b16 %v3503, %v3501
        %v3552 = vpack.c.b16 %v3504, %v3502
        %v3553 = vpack.c.b16 %v3507, %v3505
        %v3554 = vpack.c.b16 %v3508, %v3506
        %v3555 = vpack.c.b16 %v3511, %v3509
        %v3556 = vpack.c.b16 %v3512, %v3510
        %v3557 = vpack.c.b16 %v3515, %v3513
        %v3558 = vpack.c.b16 %v3516, %v3514
        %v3559 = vpack.c.b16 %v3519, %v3517
        %v3560 = vpack.c.b16 %v3520, %v3518
        %v3561 = vpack.c.b16 %v3523, %v3521
        %v3562 = vpack.c.b16 %v3524, %v3522
        %v3563 = vpack.c.b16 %v3527, %v3525
        %v3564 = vpack.c.b16 %v3528, %v3526
        %v3565 = vpack.c.b16 %v3531, %v3529
        %v3566 = vpack.c.b16 %v3532, %v3530
        %v3567 = vpack.c.b16 %v3535, %v3533
        %v3568 = vpack.c.b16 %v3536, %v3534
        %v3569 = vpack.c.b16 %v3539, %v3537
        %v3570 = vpack.c.b16 %v3540, %v3538
        %v3571 = vpack.c.b16 %v3543, %v3541
        %v3572 = vpack.c.b16 %v3544, %v3542
        %v3601 = vsel %vm794, %v2724, 0
        %v3603 = vsel %vm794, %v2726, 0
        %v3605 = vsel %vm794, %v2728, 0
        %v3607 = vsel %vm794, %v2730, 0
        %v3609 = vsel %vm794, %v2732, 0
        %v3611 = vsel %vm794, %v2734, 0
        %v3613 = vsel %vm794, %v2736, 0
        %v3615 = vsel %vm794, %v2738, 0
        %v3617 = vsel %vm794, %v2740, 0
        %v3619 = vsel %vm794, %v2742, 0
        %v3621 = vsel %vm794, %v2744, 0
        %v3623 = vsel %vm794, %v2746, 0
        %v3625 = vsel %vm794, %v2748, 0
        %v3627 = vsel %vm794, %v2750, 0
        %v3629 = vsel %vm794, %v2752, 0
        %v3631 = vsel %vm794, %v2754, 0
        %3633 = vmatprep.subr.bf16.mxu0 %v3546
        %3634 = vmatpush1.bf16.msra.mxu0 %v3545
        %3635 = vmatprep.subr.bf16.mxu0 %v3548
        %3636 = vmatpush1.bf16.msra.mxu0 %v3547
        %3637 = vmatprep.subr.bf16.mxu0 %v3550
        %3638 = vmatpush1.bf16.msra.mxu0 %v3549
        %3639 = vmatprep.subr.bf16.mxu0 %v3552
        %3640 = vmatpush1.bf16.msra.mxu0 %v3551
        %3641 = vmatprep.subr.bf16.mxu0 %v3554
        %3642 = vmatpush1.bf16.msra.mxu0 %v3553
        %3643 = vmatprep.subr.bf16.mxu0 %v3556
        %3644 = vmatpush1.bf16.msra.mxu0 %v3555
        %3645 = vmatprep.subr.bf16.mxu0 %v3558
        %3646 = vmatpush1.bf16.msra.mxu0 %v3557
        %3647 = vmatprep.subr.bf16.mxu0 %v3560
        %3648 = vmatpush1.bf16.msra.mxu0 %v3559
        %3649 = vmatprep.subr.bf16.mxu0 %v3562
        %3650 = vmatpush1.bf16.msra.mxu0 %v3561
        %3651 = vmatprep.subr.bf16.mxu0 %v3564
        %3652 = vmatpush1.bf16.msra.mxu0 %v3563
        %3653 = vmatprep.subr.bf16.mxu0 %v3566
        %3654 = vmatpush1.bf16.msra.mxu0 %v3565
        %3655 = vmatprep.subr.bf16.mxu0 %v3568
        %3656 = vmatpush1.bf16.msra.mxu0 %v3567
        %3657 = vmatprep.subr.bf16.mxu0 %v3570
        %3658 = vmatpush1.bf16.msra.mxu0 %v3569
        %3659 = vmatprep.subr.bf16.mxu0 %v3572
        %3660 = vmatpush1.bf16.msra.mxu0 %v3571
        %3661 = vmatprep.subr.bf16.mxu0 0
        %3662 = vmatpush1.bf16.msra.mxu0 0
        %3663 = vmatprep.subr.bf16.mxu0 0
        %3664 = vmatpush1.bf16.msra.mxu0 0
        %3665 = vmatprep.mubr.bf16.mxu0 %v3601
        %3666 = vmatmul.mubr.bf16.gmra.mrb[0].mxu0 %v2723
        %v3667 = vpop.f32.mrb[0].mxu0
        %v3668 = vadd.f32 %v3305, %v3667
        %v3669 = vpop.f32.mrb[0].mxu0
        %v3670 = vadd.f32 %v3307, %v3669
        %v3671 = vpop.f32.mrb[0].mxu0
        %v3672 = vadd.f32 %v3309, %v3671
        %v3673 = vpop.f32.mrb[0].mxu0
        %v3674 = vadd.f32 %v3311, %v3673
        %3675 = vmatprep.mubr.bf16.mxu0 %v3603
        %3676 = vmatmul.mubr.bf16.gmra.mrb[0].mxu0 %v2725
        %v3677 = vpop.f32.mrb[0].mxu0
        %v3678 = vadd.f32 %v3315, %v3677
        %v3679 = vpop.f32.mrb[0].mxu0
        %v3680 = vadd.f32 %v3317, %v3679
        %v3681 = vpop.f32.mrb[0].mxu0
        %v3682 = vadd.f32 %v3319, %v3681
        %v3683 = vpop.f32.mrb[0].mxu0
        %v3684 = vadd.f32 %v3321, %v3683
        %3685 = vmatprep.mubr.bf16.mxu0 %v3605
        %3686 = vmatmul.mubr.bf16.gmra.mrb[0].mxu0 %v2727
        %v3687 = vpop.f32.mrb[0].mxu0
        %v3688 = vadd.f32 %v3325, %v3687
        %v3689 = vpop.f32.mrb[0].mxu0
        %v3690 = vadd.f32 %v3327, %v3689
        %v3691 = vpop.f32.mrb[0].mxu0
        %v3692 = vadd.f32 %v3329, %v3691
        %v3693 = vpop.f32.mrb[0].mxu0
        %v3694 = vadd.f32 %v3331, %v3693
        %3695 = vmatprep.mubr.bf16.mxu0 %v3607
        %3696 = vmatmul.mubr.bf16.gmra.mrb[0].mxu0 %v2729
        %v3697 = vpop.f32.mrb[0].mxu0
        %v3698 = vadd.f32 %v3335, %v3697
        %v3699 = vpop.f32.mrb[0].mxu0
        %v3700 = vadd.f32 %v3337, %v3699
        %v3701 = vpop.f32.mrb[0].mxu0
        %v3702 = vadd.f32 %v3339, %v3701
        %v3703 = vpop.f32.mrb[0].mxu0
        %v3704 = vadd.f32 %v3341, %v3703
        %3705 = vmatprep.mubr.bf16.mxu0 %v3609
        %3706 = vmatmul.mubr.bf16.gmra.mrb[0].mxu0 %v2731
        %v3707 = vpop.f32.mrb[0].mxu0
        %v3708 = vadd.f32 %v3345, %v3707
        %v3709 = vpop.f32.mrb[0].mxu0
        %v3710 = vadd.f32 %v3347, %v3709
        %v3711 = vpop.f32.mrb[0].mxu0
        %v3712 = vadd.f32 %v3349, %v3711
        %v3713 = vpop.f32.mrb[0].mxu0
        %v3714 = vadd.f32 %v3351, %v3713
        %3715 = vmatprep.mubr.bf16.mxu0 %v3611
        %3716 = vmatmul.mubr.bf16.gmra.mrb[0].mxu0 %v2733
        %v3717 = vpop.f32.mrb[0].mxu0
        %v3718 = vadd.f32 %v3355, %v3717
        %v3719 = vpop.f32.mrb[0].mxu0
        %v3720 = vadd.f32 %v3357, %v3719
        %v3721 = vpop.f32.mrb[0].mxu0
        %v3722 = vadd.f32 %v3359, %v3721
        %v3723 = vpop.f32.mrb[0].mxu0
        %v3724 = vadd.f32 %v3361, %v3723
        %3725 = vmatprep.mubr.bf16.mxu0 %v3613
        %3726 = vmatmul.mubr.bf16.gmra.mrb[0].mxu0 %v2735
        %v3727 = vpop.f32.mrb[0].mxu0
        %v3728 = vadd.f32 %v3365, %v3727
        %v3729 = vpop.f32.mrb[0].mxu0
        %v3730 = vadd.f32 %v3367, %v3729
        %v3731 = vpop.f32.mrb[0].mxu0
        %v3732 = vadd.f32 %v3369, %v3731
        %v3733 = vpop.f32.mrb[0].mxu0
        %v3734 = vadd.f32 %v3371, %v3733
        %3735 = vmatprep.mubr.bf16.mxu0 %v3615
        %3736 = vmatmul.mubr.bf16.gmra.mrb[0].mxu0 %v2737
        %v3737 = vpop.f32.mrb[0].mxu0
        %v3738 = vadd.f32 %v3375, %v3737
        %v3739 = vpop.f32.mrb[0].mxu0
        %v3740 = vadd.f32 %v3377, %v3739
        %v3741 = vpop.f32.mrb[0].mxu0
        %v3742 = vadd.f32 %v3379, %v3741
        %v3743 = vpop.f32.mrb[0].mxu0
        %v3744 = vadd.f32 %v3381, %v3743
        %3745 = vmatprep.mubr.bf16.mxu0 %v3617
        %3746 = vmatmul.mubr.bf16.gmra.mrb[0].mxu0 %v2739
        %v3747 = vpop.f32.mrb[0].mxu0
        %v3748 = vadd.f32 %v3385, %v3747
        %v3749 = vpop.f32.mrb[0].mxu0
        %v3750 = vadd.f32 %v3387, %v3749
        %v3751 = vpop.f32.mrb[0].mxu0
        %v3752 = vadd.f32 %v3389, %v3751
        %v3753 = vpop.f32.mrb[0].mxu0
        %v3754 = vadd.f32 %v3391, %v3753
        %3755 = vmatprep.mubr.bf16.mxu0 %v3619
        %3756 = vmatmul.mubr.bf16.gmra.mrb[0].mxu0 %v2741
        %v3757 = vpop.f32.mrb[0].mxu0
        %v3758 = vadd.f32 %v3395, %v3757
        %v3759 = vpop.f32.mrb[0].mxu0
        %v3760 = vadd.f32 %v3397, %v3759
        %v3761 = vpop.f32.mrb[0].mxu0
        %v3762 = vadd.f32 %v3399, %v3761
        %v3763 = vpop.f32.mrb[0].mxu0
        %v3764 = vadd.f32 %v3401, %v3763
        %3765 = vmatprep.mubr.bf16.mxu0 %v3621
        %3766 = vmatmul.mubr.bf16.gmra.mrb[0].mxu0 %v2743
        %v3767 = vpop.f32.mrb[0].mxu0
        %v3768 = vadd.f32 %v3405, %v3767
        %v3769 = vpop.f32.mrb[0].mxu0
        %v3770 = vadd.f32 %v3407, %v3769
        %v3771 = vpop.f32.mrb[0].mxu0
        %v3772 = vadd.f32 %v3409, %v3771
        %v3773 = vpop.f32.mrb[0].mxu0
        %v3774 = vadd.f32 %v3411, %v3773
        %3775 = vmatprep.mubr.bf16.mxu0 %v3623
        %3776 = vmatmul.mubr.bf16.gmra.mrb[0].mxu0 %v2745
        %v3777 = vpop.f32.mrb[0].mxu0
        %v3778 = vadd.f32 %v3415, %v3777
        %v3779 = vpop.f32.mrb[0].mxu0
        %v3780 = vadd.f32 %v3417, %v3779
        %v3781 = vpop.f32.mrb[0].mxu0
        %v3782 = vadd.f32 %v3419, %v3781
        %v3783 = vpop.f32.mrb[0].mxu0
        %v3784 = vadd.f32 %v3421, %v3783
        %3785 = vmatprep.mubr.bf16.mxu0 %v3625
        %3786 = vmatmul.mubr.bf16.gmra.mrb[0].mxu0 %v2747
        %v3787 = vpop.f32.mrb[0].mxu0
        %v3788 = vadd.f32 %v3425, %v3787
        %v3789 = vpop.f32.mrb[0].mxu0
        %v3790 = vadd.f32 %v3427, %v3789
        %v3791 = vpop.f32.mrb[0].mxu0
        %v3792 = vadd.f32 %v3429, %v3791
        %v3793 = vpop.f32.mrb[0].mxu0
        %v3794 = vadd.f32 %v3431, %v3793
        %3795 = vmatprep.mubr.bf16.mxu0 %v3627
        %3796 = vmatmul.mubr.bf16.gmra.mrb[0].mxu0 %v2749
        %v3797 = vpop.f32.mrb[0].mxu0
        %v3798 = vadd.f32 %v3435, %v3797
        %v3799 = vpop.f32.mrb[0].mxu0
        %v3800 = vadd.f32 %v3437, %v3799
        %v3801 = vpop.f32.mrb[0].mxu0
        %v3802 = vadd.f32 %v3439, %v3801
        %v3803 = vpop.f32.mrb[0].mxu0
        %v3804 = vadd.f32 %v3441, %v3803
        %3805 = vmatprep.mubr.bf16.mxu0 %v3629
        %3806 = vmatmul.mubr.bf16.gmra.mrb[0].mxu0 %v2751
        %v3807 = vpop.f32.mrb[0].mxu0
        %v3808 = vadd.f32 %v3445, %v3807
        %v3809 = vpop.f32.mrb[0].mxu0
        %v3810 = vadd.f32 %v3447, %v3809
        %v3811 = vpop.f32.mrb[0].mxu0
        %v3812 = vadd.f32 %v3449, %v3811
        %v3813 = vpop.f32.mrb[0].mxu0
        %v3814 = vadd.f32 %v3451, %v3813
        %3815 = vmatprep.mubr.bf16.mxu0 %v3631
        %3816 = vmatmul.mubr.bf16.gmra.mrb[0].mxu0 %v2753
        %v3817 = vpop.f32.mrb[0].mxu0
        %v3818 = vadd.f32 %v3455, %v3817
        %v3819 = vpop.f32.mrb[0].mxu0
        %v3820 = vadd.f32 %v3457, %v3819
        %v3821 = vpop.f32.mrb[0].mxu0
        %v3822 = vpop.f32.mrb[0].mxu0
        %3823 = vdwg.mxu0
        %s3824 = scalar_lea.vmem %s3, 448
        %v3825 = vld [vmem:[%s3824] sm:$0xff]
        %v3826 = vld [vmem:[%s3824 + $0x8] sm:$0xff]
        %v3827 = vld [vmem:[%s3824 + $0x10] sm:$0xff]
        %v3828 = vld [vmem:[%s3824 + $0x18] sm:$0xff]
        %v3829 = vld [vmem:[%s3824 + $0x20] sm:$0xff]
        %v3830 = vld [vmem:[%s3824 + $0x28] sm:$0xff]
        %v3831 = vld [vmem:[%s3824 + $0x30] sm:$0xff]
        %v3832 = vld [vmem:[%s3824 + $0x38] sm:$0xff]
        %v3833 = vld [vmem:[%s3824 + $0x40] sm:$0xff]
        %v3834 = vld [vmem:[%s3824 + $0x48] sm:$0xff]
        %v3835 = vld [vmem:[%s3824 + $0x50] sm:$0xff]
        %v3836 = vld [vmem:[%s3824 + $0x58] sm:$0xff]
        %v3837 = vld [vmem:[%s3824 + $0x60] sm:$0xff]
        %v3838 = vld [vmem:[%s3824 + $0x68] sm:$0xff]
        %v3839 = vld [vmem:[%s3824 + $0x70] sm:$0xff]
        %v3840 = vld [vmem:[%s3824 + $0x78] sm:$0xff]
        %v3841 = vld [vmem:[%s3824 + $0x80] sm:$0xff]
        %v3842 = vld [vmem:[%s3824 + $0x88] sm:$0xff]
        %v3843 = vld [vmem:[%s3824 + $0x90] sm:$0xff]
        %v3844 = vld [vmem:[%s3824 + $0x98] sm:$0xff]
        %v3845 = vld [vmem:[%s3824 + $0xa0] sm:$0xff]
        %v3846 = vld [vmem:[%s3824 + $0xa8] sm:$0xff]
        %v3847 = vld [vmem:[%s3824 + $0xb0] sm:$0xff]
        %v3848 = vld [vmem:[%s3824 + $0xb8] sm:$0xff]
        %v3849 = vld [vmem:[%s3824 + $0xc0] sm:$0xff]
        %v3850 = vld [vmem:[%s3824 + $0xc8] sm:$0xff]
        %v3851 = vld [vmem:[%s3824 + $0xd0] sm:$0xff]
        %v3852 = vld [vmem:[%s3824 + $0xd8] sm:$0xff]
        %v3885 = vrot.slane %v2723, 1
        %v3886 = vrot.slane %v2725, 1
        %v3887 = vsel %vm1334, %v3885, %v3886
        %v3888 = vrot.slane %v2724, 1
        %v3889 = vrot.slane %v2726, 1
        %v3890 = vsel %vm1334, %v3888, %v3889
        %v3891 = vrot.slane %v2727, 1
        %v3892 = vsel %vm1334, %v3886, %v3891
        %v3893 = vrot.slane %v2728, 1
        %v3894 = vsel %vm1334, %v3889, %v3893
        %v3895 = vrot.slane %v2729, 1
        %v3896 = vsel %vm1334, %v3891, %v3895
        %v3897 = vrot.slane %v2730, 1
        %v3898 = vsel %vm1334, %v3893, %v3897
        %v3899 = vrot.slane %v2731, 1
        %v3900 = vsel %vm1334, %v3895, %v3899
        %v3901 = vrot.slane %v2732, 1
        %v3902 = vsel %vm1334, %v3897, %v3901
        %v3903 = vrot.slane %v2733, 1
        %v3904 = vsel %vm1334, %v3899, %v3903
        %v3905 = vrot.slane %v2734, 1
        %v3906 = vsel %vm1334, %v3901, %v3905
        %v3907 = vrot.slane %v2735, 1
        %v3908 = vsel %vm1334, %v3903, %v3907
        %v3909 = vrot.slane %v2736, 1
        %v3910 = vsel %vm1334, %v3905, %v3909
        %v3911 = vrot.slane %v2737, 1
        %v3912 = vsel %vm1334, %v3907, %v3911
        %v3913 = vrot.slane %v2738, 1
        %v3914 = vsel %vm1334, %v3909, %v3913
        %v3915 = vrot.slane %v2739, 1
        %v3916 = vsel %vm1334, %v3911, %v3915
        %v3917 = vrot.slane %v2740, 1
        %v3918 = vsel %vm1334, %v3913, %v3917
        %v3919 = vrot.slane %v2741, 1
        %v3920 = vsel %vm1334, %v3915, %v3919
        %v3921 = vrot.slane %v2742, 1
        %v3922 = vsel %vm1334, %v3917, %v3921
        %v3923 = vrot.slane %v2743, 1
        %v3924 = vsel %vm1334, %v3919, %v3923
        %v3925 = vrot.slane %v2744, 1
        %v3926 = vsel %vm1334, %v3921, %v3925
        %v3927 = vrot.slane %v2745, 1
        %v3928 = vsel %vm1334, %v3923, %v3927
        %v3929 = vrot.slane %v2746, 1
        %v3930 = vsel %vm1334, %v3925, %v3929
        %v3931 = vrot.slane %v2747, 1
        %v3932 = vsel %vm1334, %v3927, %v3931
        %v3933 = vrot.slane %v2748, 1
        %v3934 = vsel %vm1334, %v3929, %v3933
        %v3935 = vrot.slane %v2749, 1
        %v3936 = vsel %vm1334, %v3931, %v3935
        %v3937 = vrot.slane %v2750, 1
        %v3938 = vsel %vm1334, %v3933, %v3937
        %v3939 = vrot.slane %v2751, 1
        %v3940 = vsel %vm1334, %v3935, %v3939
        %v3941 = vrot.slane %v2752, 1
        %v3942 = vsel %vm1334, %v3937, %v3941
        %v3943 = vrot.slane %v2753, 1
        %v3944 = vsel %vm1334, %v3939, %v3943
        %v3945 = vrot.slane %v2754, 1
        %v3946 = vsel %vm1334, %v3941, %v3945
        %v3991 = vunpack.c.l.b16 %v3825
        %v3992 = vunpack.c.h.b16 %v3825
        %v3993 = vunpack.c.l.b16 %v3826
        %v3994 = vunpack.c.h.b16 %v3826
        %v3995 = vunpack.c.l.b16 %v3827
        %v3996 = vunpack.c.h.b16 %v3827
        %v3997 = vunpack.c.l.b16 %v3828
        %v3998 = vunpack.c.h.b16 %v3828
        %v3999 = vunpack.c.l.b16 %v3829
        %v4000 = vunpack.c.h.b16 %v3829
        %v4001 = vunpack.c.l.b16 %v3830
        %v4002 = vunpack.c.h.b16 %v3830
        %v4003 = vunpack.c.l.b16 %v3831
        %v4004 = vunpack.c.h.b16 %v3831
        %v4005 = vunpack.c.l.b16 %v3832
        %v4006 = vunpack.c.h.b16 %v3832
        %v4007 = vunpack.c.l.b16 %v3833
        %v4008 = vunpack.c.h.b16 %v3833
        %v4009 = vunpack.c.l.b16 %v3834
        %v4010 = vunpack.c.h.b16 %v3834
        %v4011 = vunpack.c.l.b16 %v3835
        %v4012 = vunpack.c.h.b16 %v3835
        %v4013 = vunpack.c.l.b16 %v3836
        %v4014 = vunpack.c.h.b16 %v3836
        %v4015 = vunpack.c.l.b16 %v3837
        %v4016 = vunpack.c.h.b16 %v3837
        %v4017 = vunpack.c.l.b16 %v3838
        %v4018 = vunpack.c.h.b16 %v3838
        %v4019 = vunpack.c.l.b16 %v3839
        %v4020 = vunpack.c.h.b16 %v3839
        %v4021 = vunpack.c.l.b16 %v3840
        %v4022 = vunpack.c.h.b16 %v3840
        %v4023 = vunpack.c.l.b16 %v3841
        %v4024 = vunpack.c.h.b16 %v3841
        %v4025 = vunpack.c.l.b16 %v3842
        %v4026 = vunpack.c.h.b16 %v3842
        %v4027 = vunpack.c.l.b16 %v3843
        %v4028 = vunpack.c.h.b16 %v3843
        %v4029 = vunpack.c.l.b16 %v3844
        %v4030 = vunpack.c.h.b16 %v3844
        %v4031 = vunpack.c.l.b16 %v3845
        %v4032 = vunpack.c.h.b16 %v3845
        %v4033 = vunpack.c.l.b16 %v3846
        %v4034 = vunpack.c.h.b16 %v3846
        %v4035 = vunpack.c.l.b16 %v3847
        %v4036 = vunpack.c.h.b16 %v3847
        %v4037 = vunpack.c.l.b16 %v3848
        %v4038 = vunpack.c.h.b16 %v3848
        %v4039 = vunpack.c.l.b16 %v3849
        %v4040 = vunpack.c.h.b16 %v3849
        %v4041 = vunpack.c.l.b16 %v3850
        %v4042 = vunpack.c.h.b16 %v3850
        %v4043 = vunpack.c.l.b16 %v3851
        %v4044 = vunpack.c.h.b16 %v3851
        %v4045 = vunpack.c.l.b16 %v3852
        %v4046 = vunpack.c.h.b16 %v3852
        %v4047 = vpack.c.b16 %v3993, %v3991
        %v4048 = vpack.c.b16 %v3994, %v3992
        %v4049 = vpack.c.b16 %v3997, %v3995
        %v4050 = vpack.c.b16 %v3998, %v3996
        %v4051 = vpack.c.b16 %v4001, %v3999
        %v4052 = vpack.c.b16 %v4002, %v4000
        %v4053 = vpack.c.b16 %v4005, %v4003
        %v4054 = vpack.c.b16 %v4006, %v4004
        %v4055 = vpack.c.b16 %v4009, %v4007
        %v4056 = vpack.c.b16 %v4010, %v4008
        %v4057 = vpack.c.b16 %v4013, %v4011
        %v4058 = vpack.c.b16 %v4014, %v4012
        %v4059 = vpack.c.b16 %v4017, %v4015
        %v4060 = vpack.c.b16 %v4018, %v4016
        %v4061 = vpack.c.b16 %v4021, %v4019
        %v4062 = vpack.c.b16 %v4022, %v4020
        %v4063 = vpack.c.b16 %v4025, %v4023
        %v4064 = vpack.c.b16 %v4026, %v4024
        %v4065 = vpack.c.b16 %v4029, %v4027
        %v4066 = vpack.c.b16 %v4030, %v4028
        %v4067 = vpack.c.b16 %v4033, %v4031
        %v4068 = vpack.c.b16 %v4034, %v4032
        %v4069 = vpack.c.b16 %v4037, %v4035
        %v4070 = vpack.c.b16 %v4038, %v4036
        %v4071 = vpack.c.b16 %v4041, %v4039
        %v4072 = vpack.c.b16 %v4042, %v4040
        %v4073 = vpack.c.b16 %v4045, %v4043
        %v4074 = vpack.c.b16 %v4046, %v4044
        %v4104 = vsel %vm794, %v3890, 0
        %v4107 = vsel %vm794, %v3894, 0
        %v4110 = vsel %vm794, %v3898, 0
        %v4113 = vsel %vm794, %v3902, 0
        %v4116 = vsel %vm794, %v3906, 0
        %v4119 = vsel %vm794, %v3910, 0
        %v4122 = vsel %vm794, %v3914, 0
        %v4125 = vsel %vm794, %v3918, 0
        %v4128 = vsel %vm794, %v3922, 0
        %v4131 = vsel %vm794, %v3926, 0
        %v4134 = vsel %vm794, %v3930, 0
        %v4137 = vsel %vm794, %v3934, 0
        %v4140 = vsel %vm794, %v3938, 0
        %v4143 = vsel %vm794, %v3942, 0
        %v4146 = vsel %vm794, %v3946, 0
        %v4149 = vsel %vm794, %v3945, 0
        %4151 = vmatprep.subr.bf16.mxu0 %v4048
        %4152 = vmatpush1.bf16.msra.mxu0 %v4047
        %4153 = vmatprep.subr.bf16.mxu0 %v4050
        %4154 = vmatpush1.bf16.msra.mxu0 %v4049
        %4155 = vmatprep.subr.bf16.mxu0 %v4052
        %4156 = vmatpush1.bf16.msra.mxu0 %v4051
        %4157 = vmatprep.subr.bf16.mxu0 %v4054
        %4158 = vmatpush1.bf16.msra.mxu0 %v4053
        %4159 = vmatprep.subr.bf16.mxu0 %v4056
        %4160 = vmatpush1.bf16.msra.mxu0 %v4055
        %4161 = vmatprep.subr.bf16.mxu0 %v4058
        %4162 = vmatpush1.bf16.msra.mxu0 %v4057
        %4163 = vmatprep.subr.bf16.mxu0 %v4060
        %4164 = vmatpush1.bf16.msra.mxu0 %v4059
        %4165 = vmatprep.subr.bf16.mxu0 %v4062
        %4166 = vmatpush1.bf16.msra.mxu0 %v4061
        %4167 = vmatprep.subr.bf16.mxu0 %v4064
        %4168 = vmatpush1.bf16.msra.mxu0 %v4063
        %4169 = vmatprep.subr.bf16.mxu0 %v4066
        %4170 = vmatpush1.bf16.msra.mxu0 %v4065
        %4171 = vmatprep.subr.bf16.mxu0 %v4068
        %4172 = vmatpush1.bf16.msra.mxu0 %v4067
        %4173 = vmatprep.subr.bf16.mxu0 %v4070
        %4174 = vmatpush1.bf16.msra.mxu0 %v4069
        %4175 = vmatprep.subr.bf16.mxu0 %v4072
        %4176 = vmatpush1.bf16.msra.mxu0 %v4071
        %4177 = vmatprep.subr.bf16.mxu0 %v4074
        %4178 = vmatpush1.bf16.msra.mxu0 %v4073
        %4179 = vmatprep.subr.bf16.mxu0 0
        %4180 = vmatpush1.bf16.msra.mxu0 0
        %4181 = vmatprep.subr.bf16.mxu0 0
        %4182 = vmatpush1.bf16.msra.mxu0 0
        %4183 = vmatprep.mubr.bf16.mxu0 %v4104
        %4184 = vmatmul.mubr.bf16.gmra.mrb[0].mxu0 %v3887
        %v4185 = vpop.f32.mrb[0].mxu0
        %v4186 = vadd.f32 0.0, %v4185
        %v4187 = vpop.f32.mrb[0].mxu0
        %v4188 = vadd.f32 0.0, %v4187
        %v4189 = vpop.f32.mrb[0].mxu0
        %v4190 = vadd.f32 0.0, %v4189
        %v4191 = vpop.f32.mrb[0].mxu0
        %v4192 = vadd.f32 0.0, %v4191
        %4193 = vmatprep.mubr.bf16.mxu0 %v4107
        %4194 = vmatmul.mubr.bf16.gmra.mrb[0].mxu0 %v3892
        %v4195 = vpop.f32.mrb[0].mxu0
        %v4196 = vadd.f32 0.0, %v4195
        %v4197 = vpop.f32.mrb[0].mxu0
        %v4198 = vadd.f32 0.0, %v4197
        %v4199 = vpop.f32.mrb[0].mxu0
        %v4200 = vadd.f32 0.0, %v4199
        %v4201 = vpop.f32.mrb[0].mxu0
        %v4202 = vadd.f32 0.0, %v4201
        %4203 = vmatprep.mubr.bf16.mxu0 %v4110
        %4204 = vmatmul.mubr.bf16.gmra.mrb[0].mxu0 %v3896
        %v4205 = vpop.f32.mrb[0].mxu0
        %v4206 = vadd.f32 0.0, %v4205
        %v4207 = vpop.f32.mrb[0].mxu0
        %v4208 = vadd.f32 0.0, %v4207
        %v4209 = vpop.f32.mrb[0].mxu0
        %v4210 = vadd.f32 0.0, %v4209
        %v4211 = vpop.f32.mrb[0].mxu0
        %v4212 = vadd.f32 0.0, %v4211
        %4213 = vmatprep.mubr.bf16.mxu0 %v4113
        %4214 = vmatmul.mubr.bf16.gmra.mrb[0].mxu0 %v3900
        %v4215 = vpop.f32.mrb[0].mxu0
        %v4216 = vadd.f32 0.0, %v4215
        %v4217 = vpop.f32.mrb[0].mxu0
        %v4218 = vadd.f32 0.0, %v4217
        %v4219 = vpop.f32.mrb[0].mxu0
        %v4220 = vadd.f32 0.0, %v4219
        %v4221 = vpop.f32.mrb[0].mxu0
        %v4222 = vadd.f32 0.0, %v4221
        %4223 = vmatprep.mubr.bf16.mxu0 %v4116
        %4224 = vmatmul.mubr.bf16.gmra.mrb[0].mxu0 %v3904
        %v4225 = vpop.f32.mrb[0].mxu0
        %v4226 = vadd.f32 0.0, %v4225
        %v4227 = vpop.f32.mrb[0].mxu0
        %v4228 = vadd.f32 0.0, %v4227
        %v4229 = vpop.f32.mrb[0].mxu0
        %v4230 = vadd.f32 0.0, %v4229
        %v4231 = vpop.f32.mrb[0].mxu0
        %v4232 = vadd.f32 0.0, %v4231
        %4233 = vmatprep.mubr.bf16.mxu0 %v4119
        %4234 = vmatmul.mubr.bf16.gmra.mrb[0].mxu0 %v3908
        %v4235 = vpop.f32.mrb[0].mxu0
        %v4236 = vadd.f32 0.0, %v4235
        %v4237 = vpop.f32.mrb[0].mxu0
        %v4238 = vadd.f32 0.0, %v4237
        %v4239 = vpop.f32.mrb[0].mxu0
        %v4240 = vadd.f32 0.0, %v4239
        %v4241 = vpop.f32.mrb[0].mxu0
        %v4242 = vadd.f32 0.0, %v4241
        %4243 = vmatprep.mubr.bf16.mxu0 %v4122
        %4244 = vmatmul.mubr.bf16.gmra.mrb[0].mxu0 %v3912
        %v4245 = vpop.f32.mrb[0].mxu0
        %v4246 = vadd.f32 0.0, %v4245
        %v4247 = vpop.f32.mrb[0].mxu0
        %v4248 = vadd.f32 0.0, %v4247
        %v4249 = vpop.f32.mrb[0].mxu0
        %v4250 = vadd.f32 0.0, %v4249
        %v4251 = vpop.f32.mrb[0].mxu0
        %v4252 = vadd.f32 0.0, %v4251
        %4253 = vmatprep.mubr.bf16.mxu0 %v4125
        %4254 = vmatmul.mubr.bf16.gmra.mrb[0].mxu0 %v3916
        %v4255 = vpop.f32.mrb[0].mxu0
        %v4256 = vadd.f32 0.0, %v4255
        %v4257 = vpop.f32.mrb[0].mxu0
        %v4258 = vadd.f32 0.0, %v4257
        %v4259 = vpop.f32.mrb[0].mxu0
        %v4260 = vadd.f32 0.0, %v4259
        %v4261 = vpop.f32.mrb[0].mxu0
        %v4262 = vadd.f32 0.0, %v4261
        %4263 = vmatprep.mubr.bf16.mxu0 %v4128
        %4264 = vmatmul.mubr.bf16.gmra.mrb[0].mxu0 %v3920
        %v4265 = vpop.f32.mrb[0].mxu0
        %v4266 = vadd.f32 0.0, %v4265
        %v4267 = vpop.f32.mrb[0].mxu0
        %v4268 = vadd.f32 0.0, %v4267
        %v4269 = vpop.f32.mrb[0].mxu0
        %v4270 = vadd.f32 0.0, %v4269
        %v4271 = vpop.f32.mrb[0].mxu0
        %v4272 = vadd.f32 0.0, %v4271
        %4273 = vmatprep.mubr.bf16.mxu0 %v4131
        %4274 = vmatmul.mubr.bf16.gmra.mrb[0].mxu0 %v3924
        %v4275 = vpop.f32.mrb[0].mxu0
        %v4276 = vadd.f32 0.0, %v4275
        %v4277 = vpop.f32.mrb[0].mxu0
        %v4278 = vadd.f32 0.0, %v4277
        %v4279 = vpop.f32.mrb[0].mxu0
        %v4280 = vadd.f32 0.0, %v4279
        %v4281 = vpop.f32.mrb[0].mxu0
        %v4282 = vadd.f32 0.0, %v4281
        %4283 = vmatprep.mubr.bf16.mxu0 %v4134
        %4284 = vmatmul.mubr.bf16.gmra.mrb[0].mxu0 %v3928
        %v4285 = vpop.f32.mrb[0].mxu0
        %v4286 = vadd.f32 0.0, %v4285
        %v4287 = vpop.f32.mrb[0].mxu0
        %v4288 = vadd.f32 0.0, %v4287
        %v4289 = vpop.f32.mrb[0].mxu0
        %v4290 = vadd.f32 0.0, %v4289
        %v4291 = vpop.f32.mrb[0].mxu0
        %v4292 = vadd.f32 0.0, %v4291
        %4293 = vmatprep.mubr.bf16.mxu0 %v4137
        %4294 = vmatmul.mubr.bf16.gmra.mrb[0].mxu0 %v3932
        %v4295 = vpop.f32.mrb[0].mxu0
        %v4296 = vadd.f32 0.0, %v4295
        %v4297 = vpop.f32.mrb[0].mxu0
        %v4298 = vadd.f32 0.0, %v4297
        %v4299 = vpop.f32.mrb[0].mxu0
        %v4300 = vadd.f32 0.0, %v4299
        %v4301 = vpop.f32.mrb[0].mxu0
        %v4302 = vadd.f32 0.0, %v4301
        %4303 = vmatprep.mubr.bf16.mxu0 %v4140
        %4304 = vmatmul.mubr.bf16.gmra.mrb[0].mxu0 %v3936
        %v4305 = vpop.f32.mrb[0].mxu0
        %v4306 = vadd.f32 0.0, %v4305
        %v4307 = vpop.f32.mrb[0].mxu0
        %v4308 = vadd.f32 0.0, %v4307
        %v4309 = vpop.f32.mrb[0].mxu0
        %v4310 = vadd.f32 0.0, %v4309
        %v4311 = vpop.f32.mrb[0].mxu0
        %v4312 = vadd.f32 0.0, %v4311
        %4313 = vmatprep.mubr.bf16.mxu0 %v4143
        %4314 = vmatmul.mubr.bf16.gmra.mrb[0].mxu0 %v3940
        %v4315 = vpop.f32.mrb[0].mxu0
        %v4316 = vadd.f32 0.0, %v4315
        %v4317 = vpop.f32.mrb[0].mxu0
        %v4318 = vadd.f32 0.0, %v4317
        %v4319 = vpop.f32.mrb[0].mxu0
        %v4320 = vadd.f32 0.0, %v4319
        %v4321 = vpop.f32.mrb[0].mxu0
        %v4322 = vadd.f32 0.0, %v4321
        %4323 = vmatprep.mubr.bf16.mxu0 %v4146
        %4324 = vmatmul.mubr.bf16.gmra.mrb[0].mxu0 %v3944
        %v4325 = vpop.f32.mrb[0].mxu0
        %v4326 = vadd.f32 0.0, %v4325
        %v4327 = vpop.f32.mrb[0].mxu0
        %v4328 = vadd.f32 0.0, %v4327
        %v4329 = vpop.f32.mrb[0].mxu0
        %v4330 = vadd.f32 0.0, %v4329
        %v4331 = vpop.f32.mrb[0].mxu0
        %v4332 = vadd.f32 0.0, %v4331
        %4333 = vmatprep.mubr.bf16.mxu0 %v4149
        %4334 = vmatmul.mubr.bf16.gmra.mrb[0].mxu0 %v3943
        %v4335 = vpop.f32.mrb[0].mxu0
        %v4336 = vadd.f32 0.0, %v4335
        %v4337 = vpop.f32.mrb[0].mxu0
        %v4338 = vadd.f32 0.0, %v4337
        %v4339 = vpop.f32.mrb[0].mxu0
        %v4340 = vpop.f32.mrb[0].mxu0
        %4341 = vdwg.mxu0
        %v4342 = vadd.f32 %v3668, %v4186
        %v4343 = vadd.f32 %v3670, %v4188
        %v4344 = vadd.f32 %v3672, %v4190
        %v4345 = vadd.f32 %v3674, %v4192
        %v4346 = vadd.f32 %v3678, %v4196
        %v4347 = vadd.f32 %v3680, %v4198
        %v4348 = vadd.f32 %v3682, %v4200
        %v4349 = vadd.f32 %v3684, %v4202
        %v4350 = vadd.f32 %v3688, %v4206
        %v4351 = vadd.f32 %v3690, %v4208
        %v4352 = vadd.f32 %v3692, %v4210
        %v4353 = vadd.f32 %v3694, %v4212
        %v4354 = vadd.f32 %v3698, %v4216
        %v4355 = vadd.f32 %v3700, %v4218
        %v4356 = vadd.f32 %v3702, %v4220
        %v4357 = vadd.f32 %v3704, %v4222
        %v4358 = vadd.f32 %v3708, %v4226
        %v4359 = vadd.f32 %v3710, %v4228
        %v4360 = vadd.f32 %v3712, %v4230
        %v4361 = vadd.f32 %v3714, %v4232
        %v4362 = vadd.f32 %v3718, %v4236
        %v4363 = vadd.f32 %v3720, %v4238
        %v4364 = vadd.f32 %v3722, %v4240
        %v4365 = vadd.f32 %v3724, %v4242
        %v4366 = vadd.f32 %v3728, %v4246
        %v4367 = vadd.f32 %v3730, %v4248
        %v4368 = vadd.f32 %v3732, %v4250
        %v4369 = vadd.f32 %v3734, %v4252
        %v4370 = vadd.f32 %v3738, %v4256
        %v4371 = vadd.f32 %v3740, %v4258
        %v4372 = vadd.f32 %v3742, %v4260
        %v4373 = vadd.f32 %v3744, %v4262
        %v4374 = vadd.f32 %v3748, %v4266
        %v4375 = vadd.f32 %v3750, %v4268
        %v4376 = vadd.f32 %v3752, %v4270
        %v4377 = vadd.f32 %v3754, %v4272
        %v4378 = vadd.f32 %v3758, %v4276
        %v4379 = vadd.f32 %v3760, %v4278
        %v4380 = vadd.f32 %v3762, %v4280
        %v4381 = vadd.f32 %v3764, %v4282
        %v4382 = vadd.f32 %v3768, %v4286
        %v4383 = vadd.f32 %v3770, %v4288
        %v4384 = vadd.f32 %v3772, %v4290
        %v4385 = vadd.f32 %v3774, %v4292
        %v4386 = vadd.f32 %v3778, %v4296
        %v4387 = vadd.f32 %v3780, %v4298
        %v4388 = vadd.f32 %v3782, %v4300
        %v4389 = vadd.f32 %v3784, %v4302
        %v4390 = vadd.f32 %v3788, %v4306
        %v4391 = vadd.f32 %v3790, %v4308
        %v4392 = vadd.f32 %v3792, %v4310
        %v4393 = vadd.f32 %v3794, %v4312
        %v4394 = vadd.f32 %v3798, %v4316
        %v4395 = vadd.f32 %v3800, %v4318
        %v4396 = vadd.f32 %v3802, %v4320
        %v4397 = vadd.f32 %v3804, %v4322
        %v4398 = vadd.f32 %v3808, %v4326
        %v4399 = vadd.f32 %v3810, %v4328
        %v4400 = vadd.f32 %v3812, %v4330
        %v4401 = vadd.f32 %v3814, %v4332
        %v4402 = vadd.f32 %v3818, %v4336
        %v4403 = vadd.f32 %v3820, %v4338
        %s4404 = scalar_lea.vmem %s3, 672
        %v4405 = vld [vmem:[%s4404] sm:$0xff]
        %v4406 = vld [vmem:[%s4404 + $0x8] sm:$0xff]
        %v4407 = vld [vmem:[%s4404 + $0x10] sm:$0xff]
        %v4408 = vld [vmem:[%s4404 + $0x18] sm:$0xff]
        %v4409 = vld [vmem:[%s4404 + $0x20] sm:$0xff]
        %v4410 = vld [vmem:[%s4404 + $0x28] sm:$0xff]
        %v4411 = vld [vmem:[%s4404 + $0x30] sm:$0xff]
        %v4412 = vld [vmem:[%s4404 + $0x38] sm:$0xff]
        %v4413 = vld [vmem:[%s4404 + $0x40] sm:$0xff]
        %v4414 = vld [vmem:[%s4404 + $0x48] sm:$0xff]
        %v4415 = vld [vmem:[%s4404 + $0x50] sm:$0xff]
        %v4416 = vld [vmem:[%s4404 + $0x58] sm:$0xff]
        %v4417 = vld [vmem:[%s4404 + $0x60] sm:$0xff]
        %v4418 = vld [vmem:[%s4404 + $0x68] sm:$0xff]
        %v4419 = vld [vmem:[%s4404 + $0x70] sm:$0xff]
        %v4420 = vld [vmem:[%s4404 + $0x78] sm:$0xff]
        %v4421 = vld [vmem:[%s4404 + $0x80] sm:$0xff]
        %v4422 = vld [vmem:[%s4404 + $0x88] sm:$0xff]
        %v4423 = vld [vmem:[%s4404 + $0x90] sm:$0xff]
        %v4424 = vld [vmem:[%s4404 + $0x98] sm:$0xff]
        %v4425 = vld [vmem:[%s4404 + $0xa0] sm:$0xff]
        %v4426 = vld [vmem:[%s4404 + $0xa8] sm:$0xff]
        %v4427 = vld [vmem:[%s4404 + $0xb0] sm:$0xff]
        %v4428 = vld [vmem:[%s4404 + $0xb8] sm:$0xff]
        %v4429 = vld [vmem:[%s4404 + $0xc0] sm:$0xff]
        %v4430 = vld [vmem:[%s4404 + $0xc8] sm:$0xff]
        %v4431 = vld [vmem:[%s4404 + $0xd0] sm:$0xff]
        %v4432 = vld [vmem:[%s4404 + $0xd8] sm:$0xff]
        %v4433 = vrot.slane %v2813, 1
        %v4434 = vrot.slane %v2815, 2
        %v4435 = vor.u32 %v4433, %v4434
        %v4436 = vrot.slane %v2836, 1
        %v4437 = vrot.slane %v2820, 2
        %v4438 = vor.u32 %v4436, %v4437
        %v4439 = vsel %vm1744, %v4435, %v4438
        %v4440 = vrot.slane %v2825, 1
        %v4441 = vrot.slane %v2827, 2
        %v4442 = vor.u32 %v4440, %v4441
        %v4443 = vrot.slane %v2844, 1
        %v4444 = vrot.slane %v2832, 2
        %v4445 = vor.u32 %v4443, %v4444
        %v4446 = vsel %vm1744, %v4442, %v4445
        %v4447 = vrot.slane %v2852, 1
        %v4448 = vrot.slane %v2840, 2
        %v4449 = vor.u32 %v4447, %v4448
        %v4450 = vsel %vm1744, %v4438, %v4449
        %v4451 = vrot.slane %v2860, 1
        %v4452 = vrot.slane %v2848, 2
        %v4453 = vor.u32 %v4451, %v4452
        %v4454 = vsel %vm1744, %v4445, %v4453
        %v4455 = vrot.slane %v2868, 1
        %v4456 = vrot.slane %v2856, 2
        %v4457 = vor.u32 %v4455, %v4456
        %v4458 = vsel %vm1744, %v4449, %v4457
        %v4459 = vrot.slane %v2876, 1
        %v4460 = vrot.slane %v2864, 2
        %v4461 = vor.u32 %v4459, %v4460
        %v4462 = vsel %vm1744, %v4453, %v4461
        %v4463 = vrot.slane %v2884, 1
        %v4464 = vrot.slane %v2872, 2
        %v4465 = vor.u32 %v4463, %v4464
        %v4466 = vsel %vm1744, %v4457, %v4465
        %v4467 = vrot.slane %v2892, 1
        %v4468 = vrot.slane %v2880, 2
        %v4469 = vor.u32 %v4467, %v4468
        %v4470 = vsel %vm1744, %v4461, %v4469
        %v4471 = vrot.slane %v2900, 1
        %v4472 = vrot.slane %v2888, 2
        %v4473 = vor.u32 %v4471, %v4472
        %v4474 = vsel %vm1744, %v4465, %v4473
        %v4475 = vrot.slane %v2908, 1
        %v4476 = vrot.slane %v2896, 2
        %v4477 = vor.u32 %v4475, %v4476
        %v4478 = vsel %vm1744, %v4469, %v4477
        %v4479 = vrot.slane %v2916, 1
        %v4480 = vrot.slane %v2904, 2
        %v4481 = vor.u32 %v4479, %v4480
        %v4482 = vsel %vm1744, %v4473, %v4481
        %v4483 = vrot.slane %v2924, 1
        %v4484 = vrot.slane %v2912, 2
        %v4485 = vor.u32 %v4483, %v4484
        %v4486 = vsel %vm1744, %v4477, %v4485
        %v4487 = vrot.slane %v2932, 1
        %v4488 = vrot.slane %v2920, 2
        %v4489 = vor.u32 %v4487, %v4488
        %v4490 = vsel %vm1744, %v4481, %v4489
        %v4491 = vrot.slane %v2940, 1
        %v4492 = vrot.slane %v2928, 2
        %v4493 = vor.u32 %v4491, %v4492
        %v4494 = vsel %vm1744, %v4485, %v4493
        %v4495 = vrot.slane %v2948, 1
        %v4496 = vrot.slane %v2936, 2
        %v4497 = vor.u32 %v4495, %v4496
        %v4498 = vsel %vm1744, %v4489, %v4497
        %v4499 = vrot.slane %v2956, 1
        %v4500 = vrot.slane %v2944, 2
        %v4501 = vor.u32 %v4499, %v4500
        %v4502 = vsel %vm1744, %v4493, %v4501
        %v4503 = vrot.slane %v2964, 1
        %v4504 = vrot.slane %v2952, 2
        %v4505 = vor.u32 %v4503, %v4504
        %v4506 = vsel %vm1744, %v4497, %v4505
        %v4507 = vrot.slane %v2972, 1
        %v4508 = vrot.slane %v2960, 2
        %v4509 = vor.u32 %v4507, %v4508
        %v4510 = vsel %vm1744, %v4501, %v4509
        %v4511 = vrot.slane %v2980, 1
        %v4512 = vrot.slane %v2968, 2
        %v4513 = vor.u32 %v4511, %v4512
        %v4514 = vsel %vm1744, %v4505, %v4513
        %v4515 = vrot.slane %v2988, 1
        %v4516 = vrot.slane %v2976, 2
        %v4517 = vor.u32 %v4515, %v4516
        %v4518 = vsel %vm1744, %v4509, %v4517
        %v4519 = vrot.slane %v2996, 1
        %v4520 = vrot.slane %v2984, 2
        %v4521 = vor.u32 %v4519, %v4520
        %v4522 = vsel %vm1744, %v4513, %v4521
        %v4523 = vrot.slane %v3004, 1
        %v4524 = vrot.slane %v2992, 2
        %v4525 = vor.u32 %v4523, %v4524
        %v4526 = vsel %vm1744, %v4517, %v4525
        %v4527 = vrot.slane %v3012, 1
        %v4528 = vrot.slane %v3000, 2
        %v4529 = vor.u32 %v4527, %v4528
        %v4530 = vsel %vm1744, %v4521, %v4529
        %v4531 = vrot.slane %v3020, 1
        %v4532 = vrot.slane %v3008, 2
        %v4533 = vor.u32 %v4531, %v4532
        %v4534 = vsel %vm1744, %v4525, %v4533
        %v4535 = vrot.slane %v3028, 1
        %v4536 = vrot.slane %v3016, 2
        %v4537 = vor.u32 %v4535, %v4536
        %v4538 = vsel %vm1744, %v4529, %v4537
        %v4539 = vrot.slane %v3036, 1
        %v4540 = vrot.slane %v3024, 2
        %v4541 = vor.u32 %v4539, %v4540
        %v4542 = vsel %vm1744, %v4533, %v4541
        %v4543 = vrot.slane %v3044, 1
        %v4544 = vrot.slane %v3032, 2
        %v4545 = vor.u32 %v4543, %v4544
        %v4546 = vsel %vm1744, %v4537, %v4545
        %v4547 = vrot.slane %v3052, 1
        %v4548 = vrot.slane %v3040, 2
        %v4549 = vor.u32 %v4547, %v4548
        %v4550 = vsel %vm1744, %v4541, %v4549
        %v4551 = vrot.slane %v3060, 1
        %v4552 = vrot.slane %v3048, 2
        %v4553 = vor.u32 %v4551, %v4552
        %v4554 = vsel %vm1744, %v4545, %v4553
        %v4555 = vrot.slane %v3063, 1
        %v4556 = vrot.slane %v3056, 2
        %v4557 = vor.u32 %v4555, %v4556
        %v4558 = vsel %vm1744, %v4549, %v4557
        %v4603 = vunpack.c.l.b16 %v4405
        %v4604 = vunpack.c.h.b16 %v4405
        %v4605 = vunpack.c.l.b16 %v4406
        %v4606 = vunpack.c.h.b16 %v4406
        %v4607 = vunpack.c.l.b16 %v4407
        %v4608 = vunpack.c.h.b16 %v4407
        %v4609 = vunpack.c.l.b16 %v4408
        %v4610 = vunpack.c.h.b16 %v4408
        %v4611 = vunpack.c.l.b16 %v4409
        %v4612 = vunpack.c.h.b16 %v4409
        %v4613 = vunpack.c.l.b16 %v4410
        %v4614 = vunpack.c.h.b16 %v4410
        %v4615 = vunpack.c.l.b16 %v4411
        %v4616 = vunpack.c.h.b16 %v4411
        %v4617 = vunpack.c.l.b16 %v4412
        %v4618 = vunpack.c.h.b16 %v4412
        %v4619 = vunpack.c.l.b16 %v4413
        %v4620 = vunpack.c.h.b16 %v4413
        %v4621 = vunpack.c.l.b16 %v4414
        %v4622 = vunpack.c.h.b16 %v4414
        %v4623 = vunpack.c.l.b16 %v4415
        %v4624 = vunpack.c.h.b16 %v4415
        %v4625 = vunpack.c.l.b16 %v4416
        %v4626 = vunpack.c.h.b16 %v4416
        %v4627 = vunpack.c.l.b16 %v4417
        %v4628 = vunpack.c.h.b16 %v4417
        %v4629 = vunpack.c.l.b16 %v4418
        %v4630 = vunpack.c.h.b16 %v4418
        %v4631 = vunpack.c.l.b16 %v4419
        %v4632 = vunpack.c.h.b16 %v4419
        %v4633 = vunpack.c.l.b16 %v4420
        %v4634 = vunpack.c.h.b16 %v4420
        %v4635 = vunpack.c.l.b16 %v4421
        %v4636 = vunpack.c.h.b16 %v4421
        %v4637 = vunpack.c.l.b16 %v4422
        %v4638 = vunpack.c.h.b16 %v4422
        %v4639 = vunpack.c.l.b16 %v4423
        %v4640 = vunpack.c.h.b16 %v4423
        %v4641 = vunpack.c.l.b16 %v4424
        %v4642 = vunpack.c.h.b16 %v4424
        %v4643 = vunpack.c.l.b16 %v4425
        %v4644 = vunpack.c.h.b16 %v4425
        %v4645 = vunpack.c.l.b16 %v4426
        %v4646 = vunpack.c.h.b16 %v4426
        %v4647 = vunpack.c.l.b16 %v4427
        %v4648 = vunpack.c.h.b16 %v4427
        %v4649 = vunpack.c.l.b16 %v4428
        %v4650 = vunpack.c.h.b16 %v4428
        %v4651 = vunpack.c.l.b16 %v4429
        %v4652 = vunpack.c.h.b16 %v4429
        %v4653 = vunpack.c.l.b16 %v4430
        %v4654 = vunpack.c.h.b16 %v4430
        %v4655 = vunpack.c.l.b16 %v4431
        %v4656 = vunpack.c.h.b16 %v4431
        %v4657 = vunpack.c.l.b16 %v4432
        %v4658 = vunpack.c.h.b16 %v4432
        %v4659 = vpack.c.b16 %v4605, %v4603
        %v4660 = vpack.c.b16 %v4606, %v4604
        %v4661 = vpack.c.b16 %v4609, %v4607
        %v4662 = vpack.c.b16 %v4610, %v4608
        %v4663 = vpack.c.b16 %v4613, %v4611
        %v4664 = vpack.c.b16 %v4614, %v4612
        %v4665 = vpack.c.b16 %v4617, %v4615
        %v4666 = vpack.c.b16 %v4618, %v4616
        %v4667 = vpack.c.b16 %v4621, %v4619
        %v4668 = vpack.c.b16 %v4622, %v4620
        %v4669 = vpack.c.b16 %v4625, %v4623
        %v4670 = vpack.c.b16 %v4626, %v4624
        %v4671 = vpack.c.b16 %v4629, %v4627
        %v4672 = vpack.c.b16 %v4630, %v4628
        %v4673 = vpack.c.b16 %v4633, %v4631
        %v4674 = vpack.c.b16 %v4634, %v4632
        %v4675 = vpack.c.b16 %v4637, %v4635
        %v4676 = vpack.c.b16 %v4638, %v4636
        %v4677 = vpack.c.b16 %v4641, %v4639
        %v4678 = vpack.c.b16 %v4642, %v4640
        %v4679 = vpack.c.b16 %v4645, %v4643
        %v4680 = vpack.c.b16 %v4646, %v4644
        %v4681 = vpack.c.b16 %v4649, %v4647
        %v4682 = vpack.c.b16 %v4650, %v4648
        %v4683 = vpack.c.b16 %v4653, %v4651
        %v4684 = vpack.c.b16 %v4654, %v4652
        %v4685 = vpack.c.b16 %v4657, %v4655
        %v4686 = vpack.c.b16 %v4658, %v4656
        %v4716 = vsel %vm794, %v4446, 0
        %v4719 = vsel %vm794, %v4454, 0
        %v4722 = vsel %vm794, %v4462, 0
        %v4725 = vsel %vm794, %v4470, 0
        %v4728 = vsel %vm794, %v4478, 0
        %v4731 = vsel %vm794, %v4486, 0
        %v4734 = vsel %vm794, %v4494, 0
        %v4737 = vsel %vm794, %v4502, 0
        %v4740 = vsel %vm794, %v4510, 0
        %v4743 = vsel %vm794, %v4518, 0
        %v4746 = vsel %vm794, %v4526, 0
        %v4749 = vsel %vm794, %v4534, 0
        %v4752 = vsel %vm794, %v4542, 0
        %v4755 = vsel %vm794, %v4550, 0
        %v4758 = vsel %vm794, %v4558, 0
        %v4761 = vsel %vm794, %v4557, 0
        %4763 = vmatprep.subr.bf16.mxu0 %v4660
        %4764 = vmatpush1.bf16.msra.mxu0 %v4659
        %4765 = vmatprep.subr.bf16.mxu0 %v4662
        %4766 = vmatpush1.bf16.msra.mxu0 %v4661
        %4767 = vmatprep.subr.bf16.mxu0 %v4664
        %4768 = vmatpush1.bf16.msra.mxu0 %v4663
        %4769 = vmatprep.subr.bf16.mxu0 %v4666
        %4770 = vmatpush1.bf16.msra.mxu0 %v4665
        %4771 = vmatprep.subr.bf16.mxu0 %v4668
        %4772 = vmatpush1.bf16.msra.mxu0 %v4667
        %4773 = vmatprep.subr.bf16.mxu0 %v4670
        %4774 = vmatpush1.bf16.msra.mxu0 %v4669
        %4775 = vmatprep.subr.bf16.mxu0 %v4672
        %4776 = vmatpush1.bf16.msra.mxu0 %v4671
        %4777 = vmatprep.subr.bf16.mxu0 %v4674
        %4778 = vmatpush1.bf16.msra.mxu0 %v4673
        %4779 = vmatprep.subr.bf16.mxu0 %v4676
        %4780 = vmatpush1.bf16.msra.mxu0 %v4675
        %4781 = vmatprep.subr.bf16.mxu0 %v4678
        %4782 = vmatpush1.bf16.msra.mxu0 %v4677
        %4783 = vmatprep.subr.bf16.mxu0 %v4680
        %4784 = vmatpush1.bf16.msra.mxu0 %v4679
        %4785 = vmatprep.subr.bf16.mxu0 %v4682
        %4786 = vmatpush1.bf16.msra.mxu0 %v4681
        %4787 = vmatprep.subr.bf16.mxu0 %v4684
        %4788 = vmatpush1.bf16.msra.mxu0 %v4683
        %4789 = vmatprep.subr.bf16.mxu0 %v4686
        %4790 = vmatpush1.bf16.msra.mxu0 %v4685
        %4791 = vmatprep.subr.bf16.mxu0 0
        %4792 = vmatpush1.bf16.msra.mxu0 0
        %4793 = vmatprep.subr.bf16.mxu0 0
        %4794 = vmatpush1.bf16.msra.mxu0 0
        %4795 = vmatprep.mubr.bf16.mxu0 %v4716
        %4796 = vmatmul.mubr.bf16.gmra.mrb[0].mxu0 %v4439
        %v4797 = vpop.f32.mrb[0].mxu0
        %v4798 = vadd.f32 0.0, %v4797
        %v4799 = vpop.f32.mrb[0].mxu0
        %v4800 = vadd.f32 0.0, %v4799
        %v4801 = vpop.f32.mrb[0].mxu0
        %v4802 = vadd.f32 0.0, %v4801
        %v4803 = vpop.f32.mrb[0].mxu0
        %v4804 = vadd.f32 0.0, %v4803
        %4805 = vmatprep.mubr.bf16.mxu0 %v4719
        %4806 = vmatmul.mubr.bf16.gmra.mrb[0].mxu0 %v4450
        %v4807 = vpop.f32.mrb[0].mxu0
        %v4808 = vadd.f32 0.0, %v4807
        %v4809 = vpop.f32.mrb[0].mxu0
        %v4810 = vadd.f32 0.0, %v4809
        %v4811 = vpop.f32.mrb[0].mxu0
        %v4812 = vadd.f32 0.0, %v4811
        %v4813 = vpop.f32.mrb[0].mxu0
        %v4814 = vadd.f32 0.0, %v4813
        %4815 = vmatprep.mubr.bf16.mxu0 %v4722
        %4816 = vmatmul.mubr.bf16.gmra.mrb[0].mxu0 %v4458
        %v4817 = vpop.f32.mrb[0].mxu0
        %v4818 = vadd.f32 0.0, %v4817
        %v4819 = vpop.f32.mrb[0].mxu0
        %v4820 = vadd.f32 0.0, %v4819
        %v4821 = vpop.f32.mrb[0].mxu0
        %v4822 = vadd.f32 0.0, %v4821
        %v4823 = vpop.f32.mrb[0].mxu0
        %v4824 = vadd.f32 0.0, %v4823
        %4825 = vmatprep.mubr.bf16.mxu0 %v4725
        %4826 = vmatmul.mubr.bf16.gmra.mrb[0].mxu0 %v4466
        %v4827 = vpop.f32.mrb[0].mxu0
        %v4828 = vadd.f32 0.0, %v4827
        %v4829 = vpop.f32.mrb[0].mxu0
        %v4830 = vadd.f32 0.0, %v4829
        %v4831 = vpop.f32.mrb[0].mxu0
        %v4832 = vadd.f32 0.0, %v4831
        %v4833 = vpop.f32.mrb[0].mxu0
        %v4834 = vadd.f32 0.0, %v4833
        %4835 = vmatprep.mubr.bf16.mxu0 %v4728
        %4836 = vmatmul.mubr.bf16.gmra.mrb[0].mxu0 %v4474
        %v4837 = vpop.f32.mrb[0].mxu0
        %v4838 = vadd.f32 0.0, %v4837
        %v4839 = vpop.f32.mrb[0].mxu0
        %v4840 = vadd.f32 0.0, %v4839
        %v4841 = vpop.f32.mrb[0].mxu0
        %v4842 = vadd.f32 0.0, %v4841
        %v4843 = vpop.f32.mrb[0].mxu0
        %v4844 = vadd.f32 0.0, %v4843
        %4845 = vmatprep.mubr.bf16.mxu0 %v4731
        %4846 = vmatmul.mubr.bf16.gmra.mrb[0].mxu0 %v4482
        %v4847 = vpop.f32.mrb[0].mxu0
        %v4848 = vadd.f32 0.0, %v4847
        %v4849 = vpop.f32.mrb[0].mxu0
        %v4850 = vadd.f32 0.0, %v4849
        %v4851 = vpop.f32.mrb[0].mxu0
        %v4852 = vadd.f32 0.0, %v4851
        %v4853 = vpop.f32.mrb[0].mxu0
        %v4854 = vadd.f32 0.0, %v4853
        %4855 = vmatprep.mubr.bf16.mxu0 %v4734
        %4856 = vmatmul.mubr.bf16.gmra.mrb[0].mxu0 %v4490
        %v4857 = vpop.f32.mrb[0].mxu0
        %v4858 = vadd.f32 0.0, %v4857
        %v4859 = vpop.f32.mrb[0].mxu0
        %v4860 = vadd.f32 0.0, %v4859
        %v4861 = vpop.f32.mrb[0].mxu0
        %v4862 = vadd.f32 0.0, %v4861
        %v4863 = vpop.f32.mrb[0].mxu0
        %v4864 = vadd.f32 0.0, %v4863
        %4865 = vmatprep.mubr.bf16.mxu0 %v4737
        %4866 = vmatmul.mubr.bf16.gmra.mrb[0].mxu0 %v4498
        %v4867 = vpop.f32.mrb[0].mxu0
        %v4868 = vadd.f32 0.0, %v4867
        %v4869 = vpop.f32.mrb[0].mxu0
        %v4870 = vadd.f32 0.0, %v4869
        %v4871 = vpop.f32.mrb[0].mxu0
        %v4872 = vadd.f32 0.0, %v4871
        %v4873 = vpop.f32.mrb[0].mxu0
        %v4874 = vadd.f32 0.0, %v4873
        %4875 = vmatprep.mubr.bf16.mxu0 %v4740
        %4876 = vmatmul.mubr.bf16.gmra.mrb[0].mxu0 %v4506
        %v4877 = vpop.f32.mrb[0].mxu0
        %v4878 = vadd.f32 0.0, %v4877
        %v4879 = vpop.f32.mrb[0].mxu0
        %v4880 = vadd.f32 0.0, %v4879
        %v4881 = vpop.f32.mrb[0].mxu0
        %v4882 = vadd.f32 0.0, %v4881
        %v4883 = vpop.f32.mrb[0].mxu0
        %v4884 = vadd.f32 0.0, %v4883
        %4885 = vmatprep.mubr.bf16.mxu0 %v4743
        %4886 = vmatmul.mubr.bf16.gmra.mrb[0].mxu0 %v4514
        %v4887 = vpop.f32.mrb[0].mxu0
        %v4888 = vadd.f32 0.0, %v4887
        %v4889 = vpop.f32.mrb[0].mxu0
        %v4890 = vadd.f32 0.0, %v4889
        %v4891 = vpop.f32.mrb[0].mxu0
        %v4892 = vadd.f32 0.0, %v4891
        %v4893 = vpop.f32.mrb[0].mxu0
        %v4894 = vadd.f32 0.0, %v4893
        %4895 = vmatprep.mubr.bf16.mxu0 %v4746
        %4896 = vmatmul.mubr.bf16.gmra.mrb[0].mxu0 %v4522
        %v4897 = vpop.f32.mrb[0].mxu0
        %v4898 = vadd.f32 0.0, %v4897
        %v4899 = vpop.f32.mrb[0].mxu0
        %v4900 = vadd.f32 0.0, %v4899
        %v4901 = vpop.f32.mrb[0].mxu0
        %v4902 = vadd.f32 0.0, %v4901
        %v4903 = vpop.f32.mrb[0].mxu0
        %v4904 = vadd.f32 0.0, %v4903
        %4905 = vmatprep.mubr.bf16.mxu0 %v4749
        %4906 = vmatmul.mubr.bf16.gmra.mrb[0].mxu0 %v4530
        %v4907 = vpop.f32.mrb[0].mxu0
        %v4908 = vadd.f32 0.0, %v4907
        %v4909 = vpop.f32.mrb[0].mxu0
        %v4910 = vadd.f32 0.0, %v4909
        %v4911 = vpop.f32.mrb[0].mxu0
        %v4912 = vadd.f32 0.0, %v4911
        %v4913 = vpop.f32.mrb[0].mxu0
        %v4914 = vadd.f32 0.0, %v4913
        %4915 = vmatprep.mubr.bf16.mxu0 %v4752
        %4916 = vmatmul.mubr.bf16.gmra.mrb[0].mxu0 %v4538
        %v4917 = vpop.f32.mrb[0].mxu0
        %v4918 = vadd.f32 0.0, %v4917
        %v4919 = vpop.f32.mrb[0].mxu0
        %v4920 = vadd.f32 0.0, %v4919
        %v4921 = vpop.f32.mrb[0].mxu0
        %v4922 = vadd.f32 0.0, %v4921
        %v4923 = vpop.f32.mrb[0].mxu0
        %v4924 = vadd.f32 0.0, %v4923
        %4925 = vmatprep.mubr.bf16.mxu0 %v4755
        %4926 = vmatmul.mubr.bf16.gmra.mrb[0].mxu0 %v4546
        %v4927 = vpop.f32.mrb[0].mxu0
        %v4928 = vadd.f32 0.0, %v4927
        %v4929 = vpop.f32.mrb[0].mxu0
        %v4930 = vadd.f32 0.0, %v4929
        %v4931 = vpop.f32.mrb[0].mxu0
        %v4932 = vadd.f32 0.0, %v4931
        %v4933 = vpop.f32.mrb[0].mxu0
        %v4934 = vadd.f32 0.0, %v4933
        %4935 = vmatprep.mubr.bf16.mxu0 %v4758
        %4936 = vmatmul.mubr.bf16.gmra.mrb[0].mxu0 %v4554
        %v4937 = vpop.f32.mrb[0].mxu0
        %v4938 = vadd.f32 0.0, %v4937
        %v4939 = vpop.f32.mrb[0].mxu0
        %v4940 = vadd.f32 0.0, %v4939
        %v4941 = vpop.f32.mrb[0].mxu0
        %v4942 = vadd.f32 0.0, %v4941
        %v4943 = vpop.f32.mrb[0].mxu0
        %v4944 = vadd.f32 0.0, %v4943
        %4945 = vmatprep.mubr.bf16.mxu0 %v4761
        %4946 = vmatmul.mubr.bf16.gmra.mrb[0].mxu0 %v4553
        %v4947 = vpop.f32.mrb[0].mxu0
        %v4948 = vadd.f32 0.0, %v4947
        %v4949 = vpop.f32.mrb[0].mxu0
        %v4950 = vadd.f32 0.0, %v4949
        %v4951 = vpop.f32.mrb[0].mxu0
        %v4952 = vpop.f32.mrb[0].mxu0
        %4953 = vdwg.mxu0
        %v4954 = vadd.f32 %v4342, %v4798
        %v4955 = vadd.f32 %v4343, %v4800
        %v4956 = vadd.f32 %v4344, %v4802
        %v4957 = vadd.f32 %v4345, %v4804
        %v4958 = vadd.f32 %v4346, %v4808
        %v4959 = vadd.f32 %v4347, %v4810
        %v4960 = vadd.f32 %v4348, %v4812
        %v4961 = vadd.f32 %v4349, %v4814
        %v4962 = vadd.f32 %v4350, %v4818
        %v4963 = vadd.f32 %v4351, %v4820
        %v4964 = vadd.f32 %v4352, %v4822
        %v4965 = vadd.f32 %v4353, %v4824
        %v4966 = vadd.f32 %v4354, %v4828
        %v4967 = vadd.f32 %v4355, %v4830
        %v4968 = vadd.f32 %v4356, %v4832
        %v4969 = vadd.f32 %v4357, %v4834
        %v4970 = vadd.f32 %v4358, %v4838
        %v4971 = vadd.f32 %v4359, %v4840
        %v4972 = vadd.f32 %v4360, %v4842
        %v4973 = vadd.f32 %v4361, %v4844
        %v4974 = vadd.f32 %v4362, %v4848
        %v4975 = vadd.f32 %v4363, %v4850
        %v4976 = vadd.f32 %v4364, %v4852
        %v4977 = vadd.f32 %v4365, %v4854
        %v4978 = vadd.f32 %v4366, %v4858
        %v4979 = vadd.f32 %v4367, %v4860
        %v4980 = vadd.f32 %v4368, %v4862
        %v4981 = vadd.f32 %v4369, %v4864
        %v4982 = vadd.f32 %v4370, %v4868
        %v4983 = vadd.f32 %v4371, %v4870
        %v4984 = vadd.f32 %v4372, %v4872
        %v4985 = vadd.f32 %v4373, %v4874
        %v4986 = vadd.f32 %v4374, %v4878
        %v4987 = vadd.f32 %v4375, %v4880
        %v4988 = vadd.f32 %v4376, %v4882
        %v4989 = vadd.f32 %v4377, %v4884
        %v4990 = vadd.f32 %v4378, %v4888
        %v4991 = vadd.f32 %v4379, %v4890
        %v4992 = vadd.f32 %v4380, %v4892
        %v4993 = vadd.f32 %v4381, %v4894
        %v4994 = vadd.f32 %v4382, %v4898
        %v4995 = vadd.f32 %v4383, %v4900
        %v4996 = vadd.f32 %v4384, %v4902
        %v4997 = vadd.f32 %v4385, %v4904
        %v4998 = vadd.f32 %v4386, %v4908
        %v4999 = vadd.f32 %v4387, %v4910
        %v5000 = vadd.f32 %v4388, %v4912
        %v5001 = vadd.f32 %v4389, %v4914
        %v5002 = vadd.f32 %v4390, %v4918
        %v5003 = vadd.f32 %v4391, %v4920
        %v5004 = vadd.f32 %v4392, %v4922
        %v5005 = vadd.f32 %v4393, %v4924
        %v5006 = vadd.f32 %v4394, %v4928
        %v5007 = vadd.f32 %v4395, %v4930
        %v5008 = vadd.f32 %v4396, %v4932
        %v5009 = vadd.f32 %v4397, %v4934
        %v5010 = vadd.f32 %v4398, %v4938
        %v5011 = vadd.f32 %v4399, %v4940
        %v5012 = vadd.f32 %v4400, %v4942
        %v5013 = vadd.f32 %v4401, %v4944
        %v5014 = vadd.f32 %v4402, %v4948
        %v5015 = vadd.f32 %v4403, %v4950
        %s5016 = scalar_lea.vmem %s3, 896
        %v5017 = vld [vmem:[%s5016] sm:$0xff]
        %v5018 = vld [vmem:[%s5016 + $0x8] sm:$0xff]
        %v5019 = vld [vmem:[%s5016 + $0x10] sm:$0xff]
        %v5020 = vld [vmem:[%s5016 + $0x18] sm:$0xff]
        %v5021 = vld [vmem:[%s5016 + $0x20] sm:$0xff]
        %v5022 = vld [vmem:[%s5016 + $0x28] sm:$0xff]
        %v5023 = vld [vmem:[%s5016 + $0x30] sm:$0xff]
        %v5024 = vld [vmem:[%s5016 + $0x38] sm:$0xff]
        %v5025 = vld [vmem:[%s5016 + $0x40] sm:$0xff]
        %v5026 = vld [vmem:[%s5016 + $0x48] sm:$0xff]
        %v5027 = vld [vmem:[%s5016 + $0x50] sm:$0xff]
        %v5028 = vld [vmem:[%s5016 + $0x58] sm:$0xff]
        %v5029 = vld [vmem:[%s5016 + $0x60] sm:$0xff]
        %v5030 = vld [vmem:[%s5016 + $0x68] sm:$0xff]
        %v5031 = vld [vmem:[%s5016 + $0x70] sm:$0xff]
        %v5032 = vld [vmem:[%s5016 + $0x78] sm:$0xff]
        %v5033 = vld [vmem:[%s5016 + $0x80] sm:$0xff]
        %v5034 = vld [vmem:[%s5016 + $0x88] sm:$0xff]
        %v5035 = vld [vmem:[%s5016 + $0x90] sm:$0xff]
        %v5036 = vld [vmem:[%s5016 + $0x98] sm:$0xff]
        %v5037 = vld [vmem:[%s5016 + $0xa0] sm:$0xff]
        %v5038 = vld [vmem:[%s5016 + $0xa8] sm:$0xff]
        %v5039 = vld [vmem:[%s5016 + $0xb0] sm:$0xff]
        %v5040 = vld [vmem:[%s5016 + $0xb8] sm:$0xff]
        %v5041 = vld [vmem:[%s5016 + $0xc0] sm:$0xff]
        %v5042 = vld [vmem:[%s5016 + $0xc8] sm:$0xff]
        %v5043 = vld [vmem:[%s5016 + $0xd0] sm:$0xff]
        %v5044 = vld [vmem:[%s5016 + $0xd8] sm:$0xff]
        %v5045 = vrot.slane %v2723, 2
        %v5046 = vrot.slane %v2725, 2
        %v5047 = vsel %vm2186, %v5045, %v5046
        %v5048 = vrot.slane %v2724, 2
        %v5049 = vrot.slane %v2726, 2
        %v5050 = vsel %vm2186, %v5048, %v5049
        %v5051 = vrot.slane %v2727, 2
        %v5052 = vsel %vm2186, %v5046, %v5051
        %v5053 = vrot.slane %v2728, 2
        %v5054 = vsel %vm2186, %v5049, %v5053
        %v5055 = vrot.slane %v2729, 2
        %v5056 = vsel %vm2186, %v5051, %v5055
        %v5057 = vrot.slane %v2730, 2
        %v5058 = vsel %vm2186, %v5053, %v5057
        %v5059 = vrot.slane %v2731, 2
        %v5060 = vsel %vm2186, %v5055, %v5059
        %v5061 = vrot.slane %v2732, 2
        %v5062 = vsel %vm2186, %v5057, %v5061
        %v5063 = vrot.slane %v2733, 2
        %v5064 = vsel %vm2186, %v5059, %v5063
        %v5065 = vrot.slane %v2734, 2
        %v5066 = vsel %vm2186, %v5061, %v5065
        %v5067 = vrot.slane %v2735, 2
        %v5068 = vsel %vm2186, %v5063, %v5067
        %v5069 = vrot.slane %v2736, 2
        %v5070 = vsel %vm2186, %v5065, %v5069
        %v5071 = vrot.slane %v2737, 2
        %v5072 = vsel %vm2186, %v5067, %v5071
        %v5073 = vrot.slane %v2738, 2
        %v5074 = vsel %vm2186, %v5069, %v5073
        %v5075 = vrot.slane %v2739, 2
        %v5076 = vsel %vm2186, %v5071, %v5075
        %v5077 = vrot.slane %v2740, 2
        %v5078 = vsel %vm2186, %v5073, %v5077
        %v5079 = vrot.slane %v2741, 2
        %v5080 = vsel %vm2186, %v5075, %v5079
        %v5081 = vrot.slane %v2742, 2
        %v5082 = vsel %vm2186, %v5077, %v5081
        %v5083 = vrot.slane %v2743, 2
        %v5084 = vsel %vm2186, %v5079, %v5083
        %v5085 = vrot.slane %v2744, 2
        %v5086 = vsel %vm2186, %v5081, %v5085
        %v5087 = vrot.slane %v2745, 2
        %v5088 = vsel %vm2186, %v5083, %v5087
        %v5089 = vrot.slane %v2746, 2
        %v5090 = vsel %vm2186, %v5085, %v5089
        %v5091 = vrot.slane %v2747, 2
        %v5092 = vsel %vm2186, %v5087, %v5091
        %v5093 = vrot.slane %v2748, 2
        %v5094 = vsel %vm2186, %v5089, %v5093
        %v5095 = vrot.slane %v2749, 2
        %v5096 = vsel %vm2186, %v5091, %v5095
        %v5097 = vrot.slane %v2750, 2
        %v5098 = vsel %vm2186, %v5093, %v5097
        %v5099 = vrot.slane %v2751, 2
        %v5100 = vsel %vm2186, %v5095, %v5099
        %v5101 = vrot.slane %v2752, 2
        %v5102 = vsel %vm2186, %v5097, %v5101
        %v5103 = vrot.slane %v2753, 2
        %v5104 = vsel %vm2186, %v5099, %v5103
        %v5105 = vrot.slane %v2754, 2
        %v5106 = vsel %vm2186, %v5101, %v5105
        %v5151 = vunpack.c.l.b16 %v5017
        %v5152 = vunpack.c.h.b16 %v5017
        %v5153 = vunpack.c.l.b16 %v5018
        %v5154 = vunpack.c.h.b16 %v5018
        %v5155 = vunpack.c.l.b16 %v5019
        %v5156 = vunpack.c.h.b16 %v5019
        %v5157 = vunpack.c.l.b16 %v5020
        %v5158 = vunpack.c.h.b16 %v5020
        %v5159 = vunpack.c.l.b16 %v5021
        %v5160 = vunpack.c.h.b16 %v5021
        %v5161 = vunpack.c.l.b16 %v5022
        %v5162 = vunpack.c.h.b16 %v5022
        %v5163 = vunpack.c.l.b16 %v5023
        %v5164 = vunpack.c.h.b16 %v5023
        %v5165 = vunpack.c.l.b16 %v5024
        %v5166 = vunpack.c.h.b16 %v5024
        %v5167 = vunpack.c.l.b16 %v5025
        %v5168 = vunpack.c.h.b16 %v5025
        %v5169 = vunpack.c.l.b16 %v5026
        %v5170 = vunpack.c.h.b16 %v5026
        %v5171 = vunpack.c.l.b16 %v5027
        %v5172 = vunpack.c.h.b16 %v5027
        %v5173 = vunpack.c.l.b16 %v5028
        %v5174 = vunpack.c.h.b16 %v5028
        %v5175 = vunpack.c.l.b16 %v5029
        %v5176 = vunpack.c.h.b16 %v5029
        %v5177 = vunpack.c.l.b16 %v5030
        %v5178 = vunpack.c.h.b16 %v5030
        %v5179 = vunpack.c.l.b16 %v5031
        %v5180 = vunpack.c.h.b16 %v5031
        %v5181 = vunpack.c.l.b16 %v5032
        %v5182 = vunpack.c.h.b16 %v5032
        %v5183 = vunpack.c.l.b16 %v5033
        %v5184 = vunpack.c.h.b16 %v5033
        %v5185 = vunpack.c.l.b16 %v5034
        %v5186 = vunpack.c.h.b16 %v5034
        %v5187 = vunpack.c.l.b16 %v5035
        %v5188 = vunpack.c.h.b16 %v5035
        %v5189 = vunpack.c.l.b16 %v5036
        %v5190 = vunpack.c.h.b16 %v5036
        %v5191 = vunpack.c.l.b16 %v5037
        %v5192 = vunpack.c.h.b16 %v5037
        %v5193 = vunpack.c.l.b16 %v5038
        %v5194 = vunpack.c.h.b16 %v5038
        %v5195 = vunpack.c.l.b16 %v5039
        %v5196 = vunpack.c.h.b16 %v5039
        %v5197 = vunpack.c.l.b16 %v5040
        %v5198 = vunpack.c.h.b16 %v5040
        %v5199 = vunpack.c.l.b16 %v5041
        %v5200 = vunpack.c.h.b16 %v5041
        %v5201 = vunpack.c.l.b16 %v5042
        %v5202 = vunpack.c.h.b16 %v5042
        %v5203 = vunpack.c.l.b16 %v5043
        %v5204 = vunpack.c.h.b16 %v5043
        %v5205 = vunpack.c.l.b16 %v5044
        %v5206 = vunpack.c.h.b16 %v5044
        %v5207 = vpack.c.b16 %v5153, %v5151
        %v5208 = vpack.c.b16 %v5154, %v5152
        %v5209 = vpack.c.b16 %v5157, %v5155
        %v5210 = vpack.c.b16 %v5158, %v5156
        %v5211 = vpack.c.b16 %v5161, %v5159
        %v5212 = vpack.c.b16 %v5162, %v5160
        %v5213 = vpack.c.b16 %v5165, %v5163
        %v5214 = vpack.c.b16 %v5166, %v5164
        %v5215 = vpack.c.b16 %v5169, %v5167
        %v5216 = vpack.c.b16 %v5170, %v5168
        %v5217 = vpack.c.b16 %v5173, %v5171
        %v5218 = vpack.c.b16 %v5174, %v5172
        %v5219 = vpack.c.b16 %v5177, %v5175
        %v5220 = vpack.c.b16 %v5178, %v5176
        %v5221 = vpack.c.b16 %v5181, %v5179
        %v5222 = vpack.c.b16 %v5182, %v5180
        %v5223 = vpack.c.b16 %v5185, %v5183
        %v5224 = vpack.c.b16 %v5186, %v5184
        %v5225 = vpack.c.b16 %v5189, %v5187
        %v5226 = vpack.c.b16 %v5190, %v5188
        %v5227 = vpack.c.b16 %v5193, %v5191
        %v5228 = vpack.c.b16 %v5194, %v5192
        %v5229 = vpack.c.b16 %v5197, %v5195
        %v5230 = vpack.c.b16 %v5198, %v5196
        %v5231 = vpack.c.b16 %v5201, %v5199
        %v5232 = vpack.c.b16 %v5202, %v5200
        %v5233 = vpack.c.b16 %v5205, %v5203
        %v5234 = vpack.c.b16 %v5206, %v5204
        %v5264 = vsel %vm794, %v5050, 0
        %v5267 = vsel %vm794, %v5054, 0
        %v5270 = vsel %vm794, %v5058, 0
        %v5273 = vsel %vm794, %v5062, 0
        %v5276 = vsel %vm794, %v5066, 0
        %v5279 = vsel %vm794, %v5070, 0
        %v5282 = vsel %vm794, %v5074, 0
        %v5285 = vsel %vm794, %v5078, 0
        %v5288 = vsel %vm794, %v5082, 0
        %v5291 = vsel %vm794, %v5086, 0
        %v5294 = vsel %vm794, %v5090, 0
        %v5297 = vsel %vm794, %v5094, 0
        %v5300 = vsel %vm794, %v5098, 0
        %v5303 = vsel %vm794, %v5102, 0
        %v5306 = vsel %vm794, %v5106, 0
        %v5309 = vsel %vm794, %v5105, 0
        %5311 = vmatprep.subr.bf16.mxu0 %v5208
        %5312 = vmatpush1.bf16.msra.mxu0 %v5207
        %5313 = vmatprep.subr.bf16.mxu0 %v5210
        %5314 = vmatpush1.bf16.msra.mxu0 %v5209
        %5315 = vmatprep.subr.bf16.mxu0 %v5212
        %5316 = vmatpush1.bf16.msra.mxu0 %v5211
        %5317 = vmatprep.subr.bf16.mxu0 %v5214
        %5318 = vmatpush1.bf16.msra.mxu0 %v5213
        %5319 = vmatprep.subr.bf16.mxu0 %v5216
        %5320 = vmatpush1.bf16.msra.mxu0 %v5215
        %5321 = vmatprep.subr.bf16.mxu0 %v5218
        %5322 = vmatpush1.bf16.msra.mxu0 %v5217
        %5323 = vmatprep.subr.bf16.mxu0 %v5220
        %5324 = vmatpush1.bf16.msra.mxu0 %v5219
        %5325 = vmatprep.subr.bf16.mxu0 %v5222
        %5326 = vmatpush1.bf16.msra.mxu0 %v5221
        %5327 = vmatprep.subr.bf16.mxu0 %v5224
        %5328 = vmatpush1.bf16.msra.mxu0 %v5223
        %5329 = vmatprep.subr.bf16.mxu0 %v5226
        %5330 = vmatpush1.bf16.msra.mxu0 %v5225
        %5331 = vmatprep.subr.bf16.mxu0 %v5228
        %5332 = vmatpush1.bf16.msra.mxu0 %v5227
        %5333 = vmatprep.subr.bf16.mxu0 %v5230
        %5334 = vmatpush1.bf16.msra.mxu0 %v5229
        %5335 = vmatprep.subr.bf16.mxu0 %v5232
        %5336 = vmatpush1.bf16.msra.mxu0 %v5231
        %5337 = vmatprep.subr.bf16.mxu0 %v5234
        %5338 = vmatpush1.bf16.msra.mxu0 %v5233
        %5339 = vmatprep.subr.bf16.mxu0 0
        %5340 = vmatpush1.bf16.msra.mxu0 0
        %5341 = vmatprep.subr.bf16.mxu0 0
        %5342 = vmatpush1.bf16.msra.mxu0 0
        %5343 = vmatprep.mubr.bf16.mxu0 %v5264
        %5344 = vmatmul.mubr.bf16.gmra.mrb[0].mxu0 %v5047
        %v5345 = vpop.f32.mrb[0].mxu0
        %v5346 = vadd.f32 0.0, %v5345
        %v5347 = vpop.f32.mrb[0].mxu0
        %v5348 = vadd.f32 0.0, %v5347
        %v5349 = vpop.f32.mrb[0].mxu0
        %v5350 = vadd.f32 0.0, %v5349
        %v5351 = vpop.f32.mrb[0].mxu0
        %v5352 = vadd.f32 0.0, %v5351
        %5353 = vmatprep.mubr.bf16.mxu0 %v5267
        %5354 = vmatmul.mubr.bf16.gmra.mrb[0].mxu0 %v5052
        %v5355 = vpop.f32.mrb[0].mxu0
        %v5356 = vadd.f32 0.0, %v5355
        %v5357 = vpop.f32.mrb[0].mxu0
        %v5358 = vadd.f32 0.0, %v5357
        %v5359 = vpop.f32.mrb[0].mxu0
        %v5360 = vadd.f32 0.0, %v5359
        %v5361 = vpop.f32.mrb[0].mxu0
        %v5362 = vadd.f32 0.0, %v5361
        %5363 = vmatprep.mubr.bf16.mxu0 %v5270
        %5364 = vmatmul.mubr.bf16.gmra.mrb[0].mxu0 %v5056
        %v5365 = vpop.f32.mrb[0].mxu0
        %v5366 = vadd.f32 0.0, %v5365
        %v5367 = vpop.f32.mrb[0].mxu0
        %v5368 = vadd.f32 0.0, %v5367
        %v5369 = vpop.f32.mrb[0].mxu0
        %v5370 = vadd.f32 0.0, %v5369
        %v5371 = vpop.f32.mrb[0].mxu0
        %v5372 = vadd.f32 0.0, %v5371
        %5373 = vmatprep.mubr.bf16.mxu0 %v5273
        %5374 = vmatmul.mubr.bf16.gmra.mrb[0].mxu0 %v5060
        %v5375 = vpop.f32.mrb[0].mxu0
        %v5376 = vadd.f32 0.0, %v5375
        %v5377 = vpop.f32.mrb[0].mxu0
        %v5378 = vadd.f32 0.0, %v5377
        %v5379 = vpop.f32.mrb[0].mxu0
        %v5380 = vadd.f32 0.0, %v5379
        %v5381 = vpop.f32.mrb[0].mxu0
        %v5382 = vadd.f32 0.0, %v5381
        %5383 = vmatprep.mubr.bf16.mxu0 %v5276
        %5384 = vmatmul.mubr.bf16.gmra.mrb[0].mxu0 %v5064
        %v5385 = vpop.f32.mrb[0].mxu0
        %v5386 = vadd.f32 0.0, %v5385
        %v5387 = vpop.f32.mrb[0].mxu0
        %v5388 = vadd.f32 0.0, %v5387
        %v5389 = vpop.f32.mrb[0].mxu0
        %v5390 = vadd.f32 0.0, %v5389
        %v5391 = vpop.f32.mrb[0].mxu0
        %v5392 = vadd.f32 0.0, %v5391
        %5393 = vmatprep.mubr.bf16.mxu0 %v5279
        %5394 = vmatmul.mubr.bf16.gmra.mrb[0].mxu0 %v5068
        %v5395 = vpop.f32.mrb[0].mxu0
        %v5396 = vadd.f32 0.0, %v5395
        %v5397 = vpop.f32.mrb[0].mxu0
        %v5398 = vadd.f32 0.0, %v5397
        %v5399 = vpop.f32.mrb[0].mxu0
        %v5400 = vadd.f32 0.0, %v5399
        %v5401 = vpop.f32.mrb[0].mxu0
        %v5402 = vadd.f32 0.0, %v5401
        %5403 = vmatprep.mubr.bf16.mxu0 %v5282
        %5404 = vmatmul.mubr.bf16.gmra.mrb[0].mxu0 %v5072
        %v5405 = vpop.f32.mrb[0].mxu0
        %v5406 = vadd.f32 0.0, %v5405
        %v5407 = vpop.f32.mrb[0].mxu0
        %v5408 = vadd.f32 0.0, %v5407
        %v5409 = vpop.f32.mrb[0].mxu0
        %v5410 = vadd.f32 0.0, %v5409
        %v5411 = vpop.f32.mrb[0].mxu0
        %v5412 = vadd.f32 0.0, %v5411
        %5413 = vmatprep.mubr.bf16.mxu0 %v5285
        %5414 = vmatmul.mubr.bf16.gmra.mrb[0].mxu0 %v5076
        %v5415 = vpop.f32.mrb[0].mxu0
        %v5416 = vadd.f32 0.0, %v5415
        %v5417 = vpop.f32.mrb[0].mxu0
        %v5418 = vadd.f32 0.0, %v5417
        %v5419 = vpop.f32.mrb[0].mxu0
        %v5420 = vadd.f32 0.0, %v5419
        %v5421 = vpop.f32.mrb[0].mxu0
        %v5422 = vadd.f32 0.0, %v5421
        %5423 = vmatprep.mubr.bf16.mxu0 %v5288
        %5424 = vmatmul.mubr.bf16.gmra.mrb[0].mxu0 %v5080
        %v5425 = vpop.f32.mrb[0].mxu0
        %v5426 = vadd.f32 0.0, %v5425
        %v5427 = vpop.f32.mrb[0].mxu0
        %v5428 = vadd.f32 0.0, %v5427
        %v5429 = vpop.f32.mrb[0].mxu0
        %v5430 = vadd.f32 0.0, %v5429
        %v5431 = vpop.f32.mrb[0].mxu0
        %v5432 = vadd.f32 0.0, %v5431
        %5433 = vmatprep.mubr.bf16.mxu0 %v5291
        %5434 = vmatmul.mubr.bf16.gmra.mrb[0].mxu0 %v5084
        %v5435 = vpop.f32.mrb[0].mxu0
        %v5436 = vadd.f32 0.0, %v5435
        %v5437 = vpop.f32.mrb[0].mxu0
        %v5438 = vadd.f32 0.0, %v5437
        %v5439 = vpop.f32.mrb[0].mxu0
        %v5440 = vadd.f32 0.0, %v5439
        %v5441 = vpop.f32.mrb[0].mxu0
        %v5442 = vadd.f32 0.0, %v5441
        %5443 = vmatprep.mubr.bf16.mxu0 %v5294
        %5444 = vmatmul.mubr.bf16.gmra.mrb[0].mxu0 %v5088
        %v5445 = vpop.f32.mrb[0].mxu0
        %v5446 = vadd.f32 0.0, %v5445
        %v5447 = vpop.f32.mrb[0].mxu0
        %v5448 = vadd.f32 0.0, %v5447
        %v5449 = vpop.f32.mrb[0].mxu0
        %v5450 = vadd.f32 0.0, %v5449
        %v5451 = vpop.f32.mrb[0].mxu0
        %v5452 = vadd.f32 0.0, %v5451
        %5453 = vmatprep.mubr.bf16.mxu0 %v5297
        %5454 = vmatmul.mubr.bf16.gmra.mrb[0].mxu0 %v5092
        %v5455 = vpop.f32.mrb[0].mxu0
        %v5456 = vadd.f32 0.0, %v5455
        %v5457 = vpop.f32.mrb[0].mxu0
        %v5458 = vadd.f32 0.0, %v5457
        %v5459 = vpop.f32.mrb[0].mxu0
        %v5460 = vadd.f32 0.0, %v5459
        %v5461 = vpop.f32.mrb[0].mxu0
        %v5462 = vadd.f32 0.0, %v5461
        %5463 = vmatprep.mubr.bf16.mxu0 %v5300
        %5464 = vmatmul.mubr.bf16.gmra.mrb[0].mxu0 %v5096
        %v5465 = vpop.f32.mrb[0].mxu0
        %v5466 = vadd.f32 0.0, %v5465
        %v5467 = vpop.f32.mrb[0].mxu0
        %v5468 = vadd.f32 0.0, %v5467
        %v5469 = vpop.f32.mrb[0].mxu0
        %v5470 = vadd.f32 0.0, %v5469
        %v5471 = vpop.f32.mrb[0].mxu0
        %v5472 = vadd.f32 0.0, %v5471
        %5473 = vmatprep.mubr.bf16.mxu0 %v5303
        %5474 = vmatmul.mubr.bf16.gmra.mrb[0].mxu0 %v5100
        %v5475 = vpop.f32.mrb[0].mxu0
        %v5476 = vadd.f32 0.0, %v5475
        %v5477 = vpop.f32.mrb[0].mxu0
        %v5478 = vadd.f32 0.0, %v5477
        %v5479 = vpop.f32.mrb[0].mxu0
        %v5480 = vadd.f32 0.0, %v5479
        %v5481 = vpop.f32.mrb[0].mxu0
        %v5482 = vadd.f32 0.0, %v5481
        %5483 = vmatprep.mubr.bf16.mxu0 %v5306
        %5484 = vmatmul.mubr.bf16.gmra.mrb[0].mxu0 %v5104
        %v5485 = vpop.f32.mrb[0].mxu0
        %v5486 = vadd.f32 0.0, %v5485
        %v5487 = vpop.f32.mrb[0].mxu0
        %v5488 = vadd.f32 0.0, %v5487
        %v5489 = vpop.f32.mrb[0].mxu0
        %v5490 = vadd.f32 0.0, %v5489
        %v5491 = vpop.f32.mrb[0].mxu0
        %v5492 = vadd.f32 0.0, %v5491
        %5493 = vmatprep.mubr.bf16.mxu0 %v5309
        %5494 = vmatmul.mubr.bf16.gmra.mrb[0].mxu0 %v5103
        %v5495 = vpop.f32.mrb[0].mxu0
        %v5496 = vadd.f32 0.0, %v5495
        %v5497 = vpop.f32.mrb[0].mxu0
        %v5498 = vadd.f32 0.0, %v5497
        %v5499 = vpop.f32.mrb[0].mxu0
        %v5500 = vpop.f32.mrb[0].mxu0
        %5501 = vdwg.mxu0
        %v5502 = vadd.f32 %v4954, %v5346
        %v5503 = vadd.f32 %v4955, %v5348
        %v5504 = vadd.f32 %v4956, %v5350
        %v5505 = vadd.f32 %v4957, %v5352
        %v5506 = vadd.f32 %v4958, %v5356
        %v5507 = vadd.f32 %v4959, %v5358
        %v5508 = vadd.f32 %v4960, %v5360
        %v5509 = vadd.f32 %v4961, %v5362
        %v5510 = vadd.f32 %v4962, %v5366
        %v5511 = vadd.f32 %v4963, %v5368
        %v5512 = vadd.f32 %v4964, %v5370
        %v5513 = vadd.f32 %v4965, %v5372
        %v5514 = vadd.f32 %v4966, %v5376
        %v5515 = vadd.f32 %v4967, %v5378
        %v5516 = vadd.f32 %v4968, %v5380
        %v5517 = vadd.f32 %v4969, %v5382
        %v5518 = vadd.f32 %v4970, %v5386
        %v5519 = vadd.f32 %v4971, %v5388
        %v5520 = vadd.f32 %v4972, %v5390
        %v5521 = vadd.f32 %v4973, %v5392
        %v5522 = vadd.f32 %v4974, %v5396
        %v5523 = vadd.f32 %v4975, %v5398
        %v5524 = vadd.f32 %v4976, %v5400
        %v5525 = vadd.f32 %v4977, %v5402
        %v5526 = vadd.f32 %v4978, %v5406
        %v5527 = vadd.f32 %v4979, %v5408
        %v5528 = vadd.f32 %v4980, %v5410
        %v5529 = vadd.f32 %v4981, %v5412
        %v5530 = vadd.f32 %v4982, %v5416
        %v5531 = vadd.f32 %v4983, %v5418
        %v5532 = vadd.f32 %v4984, %v5420
        %v5533 = vadd.f32 %v4985, %v5422
        %v5534 = vadd.f32 %v4986, %v5426
        %v5535 = vadd.f32 %v4987, %v5428
        %v5536 = vadd.f32 %v4988, %v5430
        %v5537 = vadd.f32 %v4989, %v5432
        %v5538 = vadd.f32 %v4990, %v5436
        %v5539 = vadd.f32 %v4991, %v5438
        %v5540 = vadd.f32 %v4992, %v5440
        %v5541 = vadd.f32 %v4993, %v5442
        %v5542 = vadd.f32 %v4994, %v5446
        %v5543 = vadd.f32 %v4995, %v5448
        %v5544 = vadd.f32 %v4996, %v5450
        %v5545 = vadd.f32 %v4997, %v5452
        %v5546 = vadd.f32 %v4998, %v5456
        %v5547 = vadd.f32 %v4999, %v5458
        %v5548 = vadd.f32 %v5000, %v5460
        %v5549 = vadd.f32 %v5001, %v5462
        %v5550 = vadd.f32 %v5002, %v5466
        %v5551 = vadd.f32 %v5003, %v5468
        %v5552 = vadd.f32 %v5004, %v5470
        %v5553 = vadd.f32 %v5005, %v5472
        %v5554 = vadd.f32 %v5006, %v5476
        %v5555 = vadd.f32 %v5007, %v5478
        %v5556 = vadd.f32 %v5008, %v5480
        %v5557 = vadd.f32 %v5009, %v5482
        %v5558 = vadd.f32 %v5010, %v5486
        %v5559 = vadd.f32 %v5011, %v5488
        %v5560 = vadd.f32 %v5012, %v5490
        %v5561 = vadd.f32 %v5013, %v5492
        %v5562 = vadd.f32 %v5014, %v5496
        %v5563 = vadd.f32 %v5015, %v5498
        %v5564 = vld [vmem:[%s4] sm:$0x3]
        %v5566 = vlaneseq
        %v5567 = vshrl.u32 %v5566, 7
        %v5568 = vsub.s32 0, %v5567
        %v5569 = vrot.slane %v5564, %v5568
        %v5570 = vlaneseq
        %v5571 = vshrl.u32 %v5570, 7
        %v5572 = vsub.s32 1, %v5571
        %v5573 = vrot.slane %v5564, %v5572
        %v5576 = vadd.f32 %v5502, %v5569
        %v5577 = vadd.f32 %v5503, %v5573
        %v5578 = vadd.f32 %v5504, %v5569
        %v5579 = vadd.f32 %v5505, %v5573
        %v5580 = vadd.f32 %v5506, %v5569
        %v5581 = vadd.f32 %v5507, %v5573
        %v5582 = vadd.f32 %v5508, %v5569
        %v5583 = vadd.f32 %v5509, %v5573
        %v5584 = vadd.f32 %v5510, %v5569
        %v5585 = vadd.f32 %v5511, %v5573
        %v5586 = vadd.f32 %v5512, %v5569
        %v5587 = vadd.f32 %v5513, %v5573
        %v5588 = vadd.f32 %v5514, %v5569
        %v5589 = vadd.f32 %v5515, %v5573
        %v5590 = vadd.f32 %v5516, %v5569
        %v5591 = vadd.f32 %v5517, %v5573
        %v5592 = vadd.f32 %v5518, %v5569
        %v5593 = vadd.f32 %v5519, %v5573
        %v5594 = vadd.f32 %v5520, %v5569
        %v5595 = vadd.f32 %v5521, %v5573
        %v5596 = vadd.f32 %v5522, %v5569
        %v5597 = vadd.f32 %v5523, %v5573
        %v5598 = vadd.f32 %v5524, %v5569
        %v5599 = vadd.f32 %v5525, %v5573
        %v5600 = vadd.f32 %v5526, %v5569
        %v5601 = vadd.f32 %v5527, %v5573
        %v5602 = vadd.f32 %v5528, %v5569
        %v5603 = vadd.f32 %v5529, %v5573
        %v5604 = vadd.f32 %v5530, %v5569
        %v5605 = vadd.f32 %v5531, %v5573
        %v5606 = vadd.f32 %v5532, %v5569
        %v5607 = vadd.f32 %v5533, %v5573
        %v5608 = vadd.f32 %v5534, %v5569
        %v5609 = vadd.f32 %v5535, %v5573
        %v5610 = vadd.f32 %v5536, %v5569
        %v5611 = vadd.f32 %v5537, %v5573
        %v5612 = vadd.f32 %v5538, %v5569
        %v5613 = vadd.f32 %v5539, %v5573
        %v5614 = vadd.f32 %v5540, %v5569
        %v5615 = vadd.f32 %v5541, %v5573
        %v5616 = vadd.f32 %v5542, %v5569
        %v5617 = vadd.f32 %v5543, %v5573
        %v5618 = vadd.f32 %v5544, %v5569
        %v5619 = vadd.f32 %v5545, %v5573
        %v5620 = vadd.f32 %v5546, %v5569
        %v5621 = vadd.f32 %v5547, %v5573
        %v5622 = vadd.f32 %v5548, %v5569
        %v5623 = vadd.f32 %v5549, %v5573
        %v5624 = vadd.f32 %v5550, %v5569
        %v5625 = vadd.f32 %v5551, %v5573
        %v5626 = vadd.f32 %v5552, %v5569
        %v5627 = vadd.f32 %v5553, %v5573
        %v5628 = vadd.f32 %v5554, %v5569
        %v5629 = vadd.f32 %v5555, %v5573
        %v5630 = vadd.f32 %v5556, %v5569
        %v5631 = vadd.f32 %v5557, %v5573
        %v5632 = vadd.f32 %v5558, %v5569
        %v5633 = vadd.f32 %v5559, %v5573
        %v5634 = vadd.f32 %v5560, %v5569
        %v5635 = vadd.f32 %v5561, %v5573
        %v5636 = vadd.f32 %v5562, %v5569
        %v5637 = vadd.f32 %v5563, %v5573
        %v5638 = vmax.f32 %v5576, 0.0
        %v5639 = vmax.f32 %v5577, 0.0
        %v5640 = vmax.f32 %v5578, 0.0
        %v5641 = vmax.f32 %v5579, 0.0
        %v5642 = vmax.f32 %v5580, 0.0
        %v5643 = vmax.f32 %v5581, 0.0
        %v5644 = vmax.f32 %v5582, 0.0
        %v5645 = vmax.f32 %v5583, 0.0
        %v5646 = vmax.f32 %v5584, 0.0
        %v5647 = vmax.f32 %v5585, 0.0
        %v5648 = vmax.f32 %v5586, 0.0
        %v5649 = vmax.f32 %v5587, 0.0
        %v5650 = vmax.f32 %v5588, 0.0
        %v5651 = vmax.f32 %v5589, 0.0
        %v5652 = vmax.f32 %v5590, 0.0
        %v5653 = vmax.f32 %v5591, 0.0
        %v5654 = vmax.f32 %v5592, 0.0
        %v5655 = vmax.f32 %v5593, 0.0
        %v5656 = vmax.f32 %v5594, 0.0
        %v5657 = vmax.f32 %v5595, 0.0
        %v5658 = vmax.f32 %v5596, 0.0
        %v5659 = vmax.f32 %v5597, 0.0
        %v5660 = vmax.f32 %v5598, 0.0
        %v5661 = vmax.f32 %v5599, 0.0
        %v5662 = vmax.f32 %v5600, 0.0
        %v5663 = vmax.f32 %v5601, 0.0
        %v5664 = vmax.f32 %v5602, 0.0
        %v5665 = vmax.f32 %v5603, 0.0
        %v5666 = vmax.f32 %v5604, 0.0
        %v5667 = vmax.f32 %v5605, 0.0
        %v5668 = vmax.f32 %v5606, 0.0
        %v5669 = vmax.f32 %v5607, 0.0
        %v5670 = vmax.f32 %v5608, 0.0
        %v5671 = vmax.f32 %v5609, 0.0
        %v5672 = vmax.f32 %v5610, 0.0
        %v5673 = vmax.f32 %v5611, 0.0
        %v5674 = vmax.f32 %v5612, 0.0
        %v5675 = vmax.f32 %v5613, 0.0
        %v5676 = vmax.f32 %v5614, 0.0
        %v5677 = vmax.f32 %v5615, 0.0
        %v5678 = vmax.f32 %v5616, 0.0
        %v5679 = vmax.f32 %v5617, 0.0
        %v5680 = vmax.f32 %v5618, 0.0
        %v5681 = vmax.f32 %v5619, 0.0
        %v5682 = vmax.f32 %v5620, 0.0
        %v5683 = vmax.f32 %v5621, 0.0
        %v5684 = vmax.f32 %v5622, 0.0
        %v5685 = vmax.f32 %v5623, 0.0
        %v5686 = vmax.f32 %v5624, 0.0
        %v5687 = vmax.f32 %v5625, 0.0
        %v5688 = vmax.f32 %v5626, 0.0
        %v5689 = vmax.f32 %v5627, 0.0
        %v5690 = vmax.f32 %v5628, 0.0
        %v5691 = vmax.f32 %v5629, 0.0
        %v5692 = vmax.f32 %v5630, 0.0
        %v5693 = vmax.f32 %v5631, 0.0
        %v5694 = vmax.f32 %v5632, 0.0
        %v5695 = vmax.f32 %v5633, 0.0
        %v5696 = vmax.f32 %v5634, 0.0
        %v5697 = vmax.f32 %v5635, 0.0
        %v5698 = vmax.f32 %v5636, 0.0
        %v5699 = vmax.f32 %v5637, 0.0
        %v5700 = vpack.c.bf16 %v5640, %v5638
        %v5701 = vpack.c.bf16 %v5641, %v5639
        %v5702 = vpack.c.bf16 %v5644, %v5642
        %v5703 = vpack.c.bf16 %v5645, %v5643
        %v5704 = vpack.c.bf16 %v5648, %v5646
        %v5705 = vpack.c.bf16 %v5649, %v5647
        %v5706 = vpack.c.bf16 %v5652, %v5650
        %v5707 = vpack.c.bf16 %v5653, %v5651
        %v5708 = vpack.c.bf16 %v5656, %v5654
        %v5709 = vpack.c.bf16 %v5657, %v5655
        %v5710 = vpack.c.bf16 %v5660, %v5658
        %v5711 = vpack.c.bf16 %v5661, %v5659
        %v5712 = vpack.c.bf16 %v5664, %v5662
        %v5713 = vpack.c.bf16 %v5665, %v5663
        %v5714 = vpack.c.bf16 %v5668, %v5666
        %v5715 = vpack.c.bf16 %v5669, %v5667
        %v5716 = vpack.c.bf16 %v5672, %v5670
        %v5717 = vpack.c.bf16 %v5673, %v5671
        %v5718 = vpack.c.bf16 %v5676, %v5674
        %v5719 = vpack.c.bf16 %v5677, %v5675
        %v5720 = vpack.c.bf16 %v5680, %v5678
        %v5721 = vpack.c.bf16 %v5681, %v5679
        %v5722 = vpack.c.bf16 %v5684, %v5682
        %v5723 = vpack.c.bf16 %v5685, %v5683
        %v5724 = vpack.c.bf16 %v5688, %v5686
        %v5725 = vpack.c.bf16 %v5689, %v5687
        %v5726 = vpack.c.bf16 %v5692, %v5690
        %v5727 = vpack.c.bf16 %v5693, %v5691
        %v5728 = vpack.c.bf16 %v5696, %v5694
        %v5729 = vpack.c.bf16 %v5697, %v5695
        %v5730 = vpack.c.bf16 %v5698, %v5698
        %v5731 = vpack.c.bf16 %v5699, %v5699
        %v5733 = vshrl.u32 %v5700, 16
        %v5735 = vshll.u32 %v5700, 16
        %v5737 = vrot.slane %v5735, 1
        %v5738 = vor.u32 %v5733, %v5737
        %v5740 = vshll.u32 %v5702, 16
        %v5742 = vrot.slane %v5740, 1
        %v5743 = vsel %vm606, %v5738, %v5742
        %v5745 = vshrl.u32 %v5701, 16
        %v5747 = vshll.u32 %v5701, 16
        %v5749 = vrot.slane %v5747, 1
        %v5750 = vor.u32 %v5745, %v5749
        %v5752 = vshll.u32 %v5703, 16
        %v5754 = vrot.slane %v5752, 1
        %v5755 = vsel %vm606, %v5750, %v5754
        %v5756 = vshrl.u32 %v5702, 16
        %v5758 = vor.u32 %v5756, %v5742
        %v5760 = vshll.u32 %v5704, 16
        %v5762 = vrot.slane %v5760, 1
        %v5763 = vsel %vm606, %v5758, %v5762
        %v5764 = vshrl.u32 %v5703, 16
        %v5766 = vor.u32 %v5764, %v5754
        %v5768 = vshll.u32 %v5705, 16
        %v5770 = vrot.slane %v5768, 1
        %v5771 = vsel %vm606, %v5766, %v5770
        %v5772 = vshrl.u32 %v5704, 16
        %v5774 = vor.u32 %v5772, %v5762
        %v5776 = vshll.u32 %v5706, 16
        %v5778 = vrot.slane %v5776, 1
        %v5779 = vsel %vm606, %v5774, %v5778
        %v5780 = vshrl.u32 %v5705, 16
        %v5782 = vor.u32 %v5780, %v5770
        %v5784 = vshll.u32 %v5707, 16
        %v5786 = vrot.slane %v5784, 1
        %v5787 = vsel %vm606, %v5782, %v5786
        %v5788 = vshrl.u32 %v5706, 16
        %v5790 = vor.u32 %v5788, %v5778
        %v5792 = vshll.u32 %v5708, 16
        %v5794 = vrot.slane %v5792, 1
        %v5795 = vsel %vm606, %v5790, %v5794
        %v5796 = vshrl.u32 %v5707, 16
        %v5798 = vor.u32 %v5796, %v5786
        %v5800 = vshll.u32 %v5709, 16
        %v5802 = vrot.slane %v5800, 1
        %v5803 = vsel %vm606, %v5798, %v5802
        %v5804 = vshrl.u32 %v5708, 16
        %v5806 = vor.u32 %v5804, %v5794
        %v5808 = vshll.u32 %v5710, 16
        %v5810 = vrot.slane %v5808, 1
        %v5811 = vsel %vm606, %v5806, %v5810
        %v5812 = vshrl.u32 %v5709, 16
        %v5814 = vor.u32 %v5812, %v5802
        %v5816 = vshll.u32 %v5711, 16
        %v5818 = vrot.slane %v5816, 1
        %v5819 = vsel %vm606, %v5814, %v5818
        %v5820 = vshrl.u32 %v5710, 16
        %v5822 = vor.u32 %v5820, %v5810
        %v5824 = vshll.u32 %v5712, 16
        %v5826 = vrot.slane %v5824, 1
        %v5827 = vsel %vm606, %v5822, %v5826
        %v5828 = vshrl.u32 %v5711, 16
        %v5830 = vor.u32 %v5828, %v5818
        %v5832 = vshll.u32 %v5713, 16
        %v5834 = vrot.slane %v5832, 1
        %v5835 = vsel %vm606, %v5830, %v5834
        %v5836 = vshrl.u32 %v5712, 16
        %v5838 = vor.u32 %v5836, %v5826
        %v5840 = vshll.u32 %v5714, 16
        %v5842 = vrot.slane %v5840, 1
        %v5843 = vsel %vm606, %v5838, %v5842
        %v5844 = vshrl.u32 %v5713, 16
        %v5846 = vor.u32 %v5844, %v5834
        %v5848 = vshll.u32 %v5715, 16
        %v5850 = vrot.slane %v5848, 1
        %v5851 = vsel %vm606, %v5846, %v5850
        %v5852 = vshrl.u32 %v5714, 16
        %v5854 = vor.u32 %v5852, %v5842
        %v5856 = vshll.u32 %v5716, 16
        %v5858 = vrot.slane %v5856, 1
        %v5859 = vsel %vm606, %v5854, %v5858
        %v5860 = vshrl.u32 %v5715, 16
        %v5862 = vor.u32 %v5860, %v5850
        %v5864 = vshll.u32 %v5717, 16
        %v5866 = vrot.slane %v5864, 1
        %v5867 = vsel %vm606, %v5862, %v5866
        %v5868 = vshrl.u32 %v5716, 16
        %v5870 = vor.u32 %v5868, %v5858
        %v5872 = vshll.u32 %v5718, 16
        %v5874 = vrot.slane %v5872, 1
        %v5875 = vsel %vm606, %v5870, %v5874
        %v5876 = vshrl.u32 %v5717, 16
        %v5878 = vor.u32 %v5876, %v5866
        %v5880 = vshll.u32 %v5719, 16
        %v5882 = vrot.slane %v5880, 1
        %v5883 = vsel %vm606, %v5878, %v5882
        %v5884 = vshrl.u32 %v5718, 16
        %v5886 = vor.u32 %v5884, %v5874
        %v5888 = vshll.u32 %v5720, 16
        %v5890 = vrot.slane %v5888, 1
        %v5891 = vsel %vm606, %v5886, %v5890
        %v5892 = vshrl.u32 %v5719, 16
        %v5894 = vor.u32 %v5892, %v5882
        %v5896 = vshll.u32 %v5721, 16
        %v5898 = vrot.slane %v5896, 1
        %v5899 = vsel %vm606, %v5894, %v5898
        %v5900 = vshrl.u32 %v5720, 16
        %v5902 = vor.u32 %v5900, %v5890
        %v5904 = vshll.u32 %v5722, 16
        %v5906 = vrot.slane %v5904, 1
        %v5907 = vsel %vm606, %v5902, %v5906
        %v5908 = vshrl.u32 %v5721, 16
        %v5910 = vor.u32 %v5908, %v5898
        %v5912 = vshll.u32 %v5723, 16
        %v5914 = vrot.slane %v5912, 1
        %v5915 = vsel %vm606, %v5910, %v5914
        %v5916 = vshrl.u32 %v5722, 16
        %v5918 = vor.u32 %v5916, %v5906
        %v5920 = vshll.u32 %v5724, 16
        %v5922 = vrot.slane %v5920, 1
        %v5923 = vsel %vm606, %v5918, %v5922
        %v5924 = vshrl.u32 %v5723, 16
        %v5926 = vor.u32 %v5924, %v5914
        %v5928 = vshll.u32 %v5725, 16
        %v5930 = vrot.slane %v5928, 1
        %v5931 = vsel %vm606, %v5926, %v5930
        %v5932 = vshrl.u32 %v5724, 16
        %v5934 = vor.u32 %v5932, %v5922
        %v5936 = vshll.u32 %v5726, 16
        %v5938 = vrot.slane %v5936, 1
        %v5939 = vsel %vm606, %v5934, %v5938
        %v5940 = vshrl.u32 %v5725, 16
        %v5942 = vor.u32 %v5940, %v5930
        %v5944 = vshll.u32 %v5727, 16
        %v5946 = vrot.slane %v5944, 1
        %v5947 = vsel %vm606, %v5942, %v5946
        %v5948 = vshrl.u32 %v5726, 16
        %v5950 = vor.u32 %v5948, %v5938
        %v5952 = vshll.u32 %v5728, 16
        %v5954 = vrot.slane %v5952, 1
        %v5955 = vsel %vm606, %v5950, %v5954
        %v5956 = vshrl.u32 %v5727, 16
        %v5958 = vor.u32 %v5956, %v5946
        %v5960 = vshll.u32 %v5729, 16
        %v5962 = vrot.slane %v5960, 1
        %v5963 = vsel %vm606, %v5958, %v5962
        %v5964 = vshrl.u32 %v5728, 16
        %v5966 = vor.u32 %v5964, %v5954
        %v5968 = vshll.u32 %v5730, 16
        %v5970 = vrot.slane %v5968, 1
        %v5971 = vsel %vm606, %v5966, %v5970
        %v5972 = vshrl.u32 %v5729, 16
        %v5974 = vor.u32 %v5972, %v5962
        %v5976 = vshll.u32 %v5731, 16
        %v5978 = vrot.slane %v5976, 1
        %v5979 = vsel %vm606, %v5974, %v5978
        %v5980 = vshrl.u32 %v5730, 16
        %v5982 = vor.u32 %v5980, %v5970
        %v5983 = vshrl.u32 %v5731, 16
        %v5985 = vor.u32 %v5983, %v5978
        %v6018 = vmax.bf16 %v5700, %v5743
        %v6019 = vmax.bf16 %v5701, %v5755
        %v6020 = vmax.bf16 %v5702, %v5763
        %v6021 = vmax.bf16 %v5703, %v5771
        %v6022 = vmax.bf16 %v5704, %v5779
        %v6023 = vmax.bf16 %v5705, %v5787
        %v6024 = vmax.bf16 %v5706, %v5795
        %v6025 = vmax.bf16 %v5707, %v5803
        %v6026 = vmax.bf16 %v5708, %v5811
        %v6027 = vmax.bf16 %v5709, %v5819
        %v6028 = vmax.bf16 %v5710, %v5827
        %v6029 = vmax.bf16 %v5711, %v5835
        %v6030 = vmax.bf16 %v5712, %v5843
        %v6031 = vmax.bf16 %v5713, %v5851
        %v6032 = vmax.bf16 %v5714, %v5859
        %v6033 = vmax.bf16 %v5715, %v5867
        %v6034 = vmax.bf16 %v5716, %v5875
        %v6035 = vmax.bf16 %v5717, %v5883
        %v6036 = vmax.bf16 %v5718, %v5891
        %v6037 = vmax.bf16 %v5719, %v5899
        %v6038 = vmax.bf16 %v5720, %v5907
        %v6039 = vmax.bf16 %v5721, %v5915
        %v6040 = vmax.bf16 %v5722, %v5923
        %v6041 = vmax.bf16 %v5723, %v5931
        %v6042 = vmax.bf16 %v5724, %v5939
        %v6043 = vmax.bf16 %v5725, %v5947
        %v6044 = vmax.bf16 %v5726, %v5955
        %v6045 = vmax.bf16 %v5727, %v5963
        %v6046 = vmax.bf16 %v5728, %v5971
        %v6047 = vmax.bf16 %v5729, %v5979
        %v6048 = vmax.bf16 %v5730, %v5982
        %v6049 = vmax.bf16 %v5731, %v5985
        %v6050 = vld [vmem:[%s5] sm:$0xf]
        %v6051 = vld [vmem:[%s5 + $0x4] sm:$0xf]
        %v6052 = vld [vmem:[%s5 + $0x8] sm:$0xf]
        %v6053 = vld [vmem:[%s5 + $0xc] sm:$0xf]
        %v6054 = vld [vmem:[%s5 + $0x10] sm:$0xf]
        %v6055 = vld [vmem:[%s5 + $0x14] sm:$0xf]
        %v6056 = vld [vmem:[%s5 + $0x18] sm:$0xf]
        %v6057 = vld [vmem:[%s5 + $0x1c] sm:$0xf]
        %v6058 = vld [vmem:[%s5 + $0x20] sm:$0xf]
        %v6059 = vld [vmem:[%s5 + $0x24] sm:$0xf]
        %v6060 = vld [vmem:[%s5 + $0x28] sm:$0xf]
        %v6061 = vld [vmem:[%s5 + $0x2c] sm:$0xf]
        %v6062 = vld [vmem:[%s5 + $0x30] sm:$0xf]
        %v6063 = vld [vmem:[%s5 + $0x34] sm:$0xf]
        %v6064 = vld [vmem:[%s5 + $0x38] sm:$0xf]
        %v6065 = vld [vmem:[%s5 + $0x3c] sm:$0xf]
        %v6066 = vld [vmem:[%s5 + $0x40] sm:$0xf]
        %v6067 = vld [vmem:[%s5 + $0x44] sm:$0xf]
        %v6068 = vld [vmem:[%s5 + $0x48] sm:$0xf]
        %v6069 = vld [vmem:[%s5 + $0x4c] sm:$0xf]
        %v6070 = vld [vmem:[%s5 + $0x50] sm:$0xf]
        %v6071 = vld [vmem:[%s5 + $0x54] sm:$0xf]
        %v6072 = vld [vmem:[%s5 + $0x58] sm:$0xf]
        %v6073 = vld [vmem:[%s5 + $0x5c] sm:$0xf]
        %v6098 = vunpack.c.l.b16 %v6050
        %v6099 = vunpack.c.l.b16 %v6051
        %v6100 = vunpack.c.l.b16 %v6052
        %v6101 = vunpack.c.l.b16 %v6053
        %v6102 = vunpack.c.l.b16 %v6054
        %v6103 = vunpack.c.l.b16 %v6055
        %v6104 = vunpack.c.l.b16 %v6056
        %v6105 = vunpack.c.l.b16 %v6057
        %v6106 = vunpack.c.l.b16 %v6058
        %v6107 = vunpack.c.l.b16 %v6059
        %v6108 = vunpack.c.l.b16 %v6060
        %v6109 = vunpack.c.l.b16 %v6061
        %v6110 = vunpack.c.l.b16 %v6062
        %v6111 = vunpack.c.l.b16 %v6063
        %v6112 = vunpack.c.l.b16 %v6064
        %v6113 = vunpack.c.l.b16 %v6065
        %v6114 = vunpack.c.l.b16 %v6066
        %v6115 = vunpack.c.l.b16 %v6067
        %v6116 = vunpack.c.l.b16 %v6068
        %v6117 = vunpack.c.l.b16 %v6069
        %v6118 = vunpack.c.l.b16 %v6070
        %v6119 = vunpack.c.l.b16 %v6071
        %v6120 = vunpack.c.l.b16 %v6072
        %v6121 = vunpack.c.l.b16 %v6073
        %v6122 = vpack.c.b16 %v6099, %v6098
        %v6123 = vpack.c.b16 %v6101, %v6100
        %v6124 = vpack.c.b16 %v6103, %v6102
        %v6125 = vpack.c.b16 %v6105, %v6104
        %v6126 = vpack.c.b16 %v6107, %v6106
        %v6127 = vpack.c.b16 %v6109, %v6108
        %v6128 = vpack.c.b16 %v6111, %v6110
        %v6129 = vpack.c.b16 %v6113, %v6112
        %v6130 = vpack.c.b16 %v6115, %v6114
        %v6131 = vpack.c.b16 %v6117, %v6116
        %v6132 = vpack.c.b16 %v6119, %v6118
        %v6133 = vpack.c.b16 %v6121, %v6120
        %vm6146 = vcmask 523264
        %v6148 = vsel %vm6146, %v6019, 0
        %v6151 = vsel %vm6146, %v6021, 0
        %v6154 = vsel %vm6146, %v6023, 0
        %v6157 = vsel %vm6146, %v6025, 0
        %v6160 = vsel %vm6146, %v6027, 0
        %v6163 = vsel %vm6146, %v6029, 0
        %v6166 = vsel %vm6146, %v6031, 0
        %v6169 = vsel %vm6146, %v6033, 0
        %v6172 = vsel %vm6146, %v6035, 0
        %v6175 = vsel %vm6146, %v6037, 0
        %v6178 = vsel %vm6146, %v6039, 0
        %v6181 = vsel %vm6146, %v6041, 0
        %v6184 = vsel %vm6146, %v6043, 0
        %v6187 = vsel %vm6146, %v6045, 0
        %v6190 = vsel %vm6146, %v6047, 0
        %v6193 = vsel %vm6146, %v6049, 0
        %6195 = vmatprep.subr.bf16.mxu0 0
        %6196 = vmatpush1.bf16.msra.mxu0 %v6122
        %6197 = vmatprep.subr.bf16.mxu0 0
        %6198 = vmatpush1.bf16.msra.mxu0 %v6123
        %6199 = vmatprep.subr.bf16.mxu0 0
        %6200 = vmatpush1.bf16.msra.mxu0 %v6124
        %6201 = vmatprep.subr.bf16.mxu0 0
        %6202 = vmatpush1.bf16.msra.mxu0 %v6125
        %6203 = vmatprep.subr.bf16.mxu0 0
        %6204 = vmatpush1.bf16.msra.mxu0 %v6126
        %6205 = vmatprep.subr.bf16.mxu0 0
        %6206 = vmatpush1.bf16.msra.mxu0 %v6127
        %6207 = vmatprep.subr.bf16.mxu0 0
        %6208 = vmatpush1.bf16.msra.mxu0 %v6128
        %6209 = vmatprep.subr.bf16.mxu0 0
        %6210 = vmatpush1.bf16.msra.mxu0 %v6129
        %6211 = vmatprep.subr.bf16.mxu0 0
        %6212 = vmatpush1.bf16.msra.mxu0 %v6130
        %6213 = vmatprep.subr.bf16.mxu0 0
        %6214 = vmatpush1.bf16.msra.mxu0 %v6131
        %6215 = vmatprep.subr.bf16.mxu0 0
        %6216 = vmatpush1.bf16.msra.mxu0 %v6132
        %6217 = vmatprep.subr.bf16.mxu0 0
        %6218 = vmatpush1.bf16.msra.mxu0 %v6133
        %6219 = vmatprep.subr.bf16.mxu0 0
        %6220 = vmatpush1.bf16.msra.mxu0 0
        %6221 = vmatprep.subr.bf16.mxu0 0
        %6222 = vmatpush1.bf16.msra.mxu0 0
        %6223 = vmatprep.subr.bf16.mxu0 0
        %6224 = vmatpush1.bf16.msra.mxu0 0
        %6225 = vmatprep.subr.bf16.mxu0 0
        %6226 = vmatpush1.bf16.msra.mxu0 0
        %6227 = vmatprep.mubr.bf16.mxu0 %v6148
        %6228 = vmatmul.mubr.bf16.gmra.mrb[0].mxu0 %v6018
        %v6229 = vpop.f32.mrb[0].mxu0
        %v6230 = vadd.f32 0.0, %v6229
        %v6231 = vpop.f32.mrb[0].mxu0
        %v6232 = vpop.f32.mrb[0].mxu0
        %v6233 = vadd.f32 0.0, %v6232
        %v6234 = vpop.f32.mrb[0].mxu0
        %6235 = vmatprep.mubr.bf16.mxu0 %v6151
        %6236 = vmatmul.mubr.bf16.gmra.mrb[0].mxu0 %v6020
        %v6237 = vpop.f32.mrb[0].mxu0
        %v6238 = vadd.f32 0.0, %v6237
        %v6239 = vpop.f32.mrb[0].mxu0
        %v6240 = vpop.f32.mrb[0].mxu0
        %v6241 = vadd.f32 0.0, %v6240
        %v6242 = vpop.f32.mrb[0].mxu0
        %6243 = vmatprep.mubr.bf16.mxu0 %v6154
        %6244 = vmatmul.mubr.bf16.gmra.mrb[0].mxu0 %v6022
        %v6245 = vpop.f32.mrb[0].mxu0
        %v6246 = vadd.f32 0.0, %v6245
        %v6247 = vpop.f32.mrb[0].mxu0
        %v6248 = vpop.f32.mrb[0].mxu0
        %v6249 = vadd.f32 0.0, %v6248
        %v6250 = vpop.f32.mrb[0].mxu0
        %6251 = vmatprep.mubr.bf16.mxu0 %v6157
        %6252 = vmatmul.mubr.bf16.gmra.mrb[0].mxu0 %v6024
        %v6253 = vpop.f32.mrb[0].mxu0
        %v6254 = vadd.f32 0.0, %v6253
        %v6255 = vpop.f32.mrb[0].mxu0
        %v6256 = vpop.f32.mrb[0].mxu0
        %v6257 = vadd.f32 0.0, %v6256
        %v6258 = vpop.f32.mrb[0].mxu0
        %6259 = vmatprep.mubr.bf16.mxu0 %v6160
        %6260 = vmatmul.mubr.bf16.gmra.mrb[0].mxu0 %v6026
        %v6261 = vpop.f32.mrb[0].mxu0
        %v6262 = vadd.f32 0.0, %v6261
        %v6263 = vpop.f32.mrb[0].mxu0
        %v6264 = vpop.f32.mrb[0].mxu0
        %v6265 = vadd.f32 0.0, %v6264
        %v6266 = vpop.f32.mrb[0].mxu0
        %6267 = vmatprep.mubr.bf16.mxu0 %v6163
        %6268 = vmatmul.mubr.bf16.gmra.mrb[0].mxu0 %v6028
        %v6269 = vpop.f32.mrb[0].mxu0
        %v6270 = vadd.f32 0.0, %v6269
        %v6271 = vpop.f32.mrb[0].mxu0
        %v6272 = vpop.f32.mrb[0].mxu0
        %v6273 = vadd.f32 0.0, %v6272
        %v6274 = vpop.f32.mrb[0].mxu0
        %6275 = vmatprep.mubr.bf16.mxu0 %v6166
        %6276 = vmatmul.mubr.bf16.gmra.mrb[0].mxu0 %v6030
        %v6277 = vpop.f32.mrb[0].mxu0
        %v6278 = vadd.f32 0.0, %v6277
        %v6279 = vpop.f32.mrb[0].mxu0
        %v6280 = vpop.f32.mrb[0].mxu0
        %v6281 = vadd.f32 0.0, %v6280
        %v6282 = vpop.f32.mrb[0].mxu0
        %6283 = vmatprep.mubr.bf16.mxu0 %v6169
        %6284 = vmatmul.mubr.bf16.gmra.mrb[0].mxu0 %v6032
        %v6285 = vpop.f32.mrb[0].mxu0
        %v6286 = vadd.f32 0.0, %v6285
        %v6287 = vpop.f32.mrb[0].mxu0
        %v6288 = vpop.f32.mrb[0].mxu0
        %v6289 = vadd.f32 0.0, %v6288
        %v6290 = vpop.f32.mrb[0].mxu0
        %6291 = vmatprep.mubr.bf16.mxu0 %v6172
        %6292 = vmatmul.mubr.bf16.gmra.mrb[0].mxu0 %v6034
        %v6293 = vpop.f32.mrb[0].mxu0
        %v6294 = vadd.f32 0.0, %v6293
        %v6295 = vpop.f32.mrb[0].mxu0
        %v6296 = vpop.f32.mrb[0].mxu0
        %v6297 = vadd.f32 0.0, %v6296
        %v6298 = vpop.f32.mrb[0].mxu0
        %6299 = vmatprep.mubr.bf16.mxu0 %v6175
        %6300 = vmatmul.mubr.bf16.gmra.mrb[0].mxu0 %v6036
        %v6301 = vpop.f32.mrb[0].mxu0
        %v6302 = vadd.f32 0.0, %v6301
        %v6303 = vpop.f32.mrb[0].mxu0
        %v6304 = vpop.f32.mrb[0].mxu0
        %v6305 = vadd.f32 0.0, %v6304
        %v6306 = vpop.f32.mrb[0].mxu0
        %6307 = vmatprep.mubr.bf16.mxu0 %v6178
        %6308 = vmatmul.mubr.bf16.gmra.mrb[0].mxu0 %v6038
        %v6309 = vpop.f32.mrb[0].mxu0
        %v6310 = vadd.f32 0.0, %v6309
        %v6311 = vpop.f32.mrb[0].mxu0
        %v6312 = vpop.f32.mrb[0].mxu0
        %v6313 = vadd.f32 0.0, %v6312
        %v6314 = vpop.f32.mrb[0].mxu0
        %6315 = vmatprep.mubr.bf16.mxu0 %v6181
        %6316 = vmatmul.mubr.bf16.gmra.mrb[0].mxu0 %v6040
        %v6317 = vpop.f32.mrb[0].mxu0
        %v6318 = vadd.f32 0.0, %v6317
        %v6319 = vpop.f32.mrb[0].mxu0
        %v6320 = vpop.f32.mrb[0].mxu0
        %v6321 = vadd.f32 0.0, %v6320
        %v6322 = vpop.f32.mrb[0].mxu0
        %6323 = vmatprep.mubr.bf16.mxu0 %v6184
        %6324 = vmatmul.mubr.bf16.gmra.mrb[0].mxu0 %v6042
        %v6325 = vpop.f32.mrb[0].mxu0
        %v6326 = vadd.f32 0.0, %v6325
        %v6327 = vpop.f32.mrb[0].mxu0
        %v6328 = vpop.f32.mrb[0].mxu0
        %v6329 = vadd.f32 0.0, %v6328
        %v6330 = vpop.f32.mrb[0].mxu0
        %6331 = vmatprep.mubr.bf16.mxu0 %v6187
        %6332 = vmatmul.mubr.bf16.gmra.mrb[0].mxu0 %v6044
        %v6333 = vpop.f32.mrb[0].mxu0
        %v6334 = vadd.f32 0.0, %v6333
        %v6335 = vpop.f32.mrb[0].mxu0
        %v6336 = vpop.f32.mrb[0].mxu0
        %v6337 = vadd.f32 0.0, %v6336
        %v6338 = vpop.f32.mrb[0].mxu0
        %6339 = vmatprep.mubr.bf16.mxu0 %v6190
        %6340 = vmatmul.mubr.bf16.gmra.mrb[0].mxu0 %v6046
        %v6341 = vpop.f32.mrb[0].mxu0
        %v6342 = vadd.f32 0.0, %v6341
        %v6343 = vpop.f32.mrb[0].mxu0
        %v6344 = vpop.f32.mrb[0].mxu0
        %v6345 = vadd.f32 0.0, %v6344
        %v6346 = vpop.f32.mrb[0].mxu0
        %6347 = vmatprep.mubr.bf16.mxu0 %v6193
        %6348 = vmatmul.mubr.bf16.gmra.mrb[0].mxu0 %v6048
        %v6349 = vpop.f32.mrb[0].mxu0
        %v6350 = vadd.f32 0.0, %v6349
        %v6351 = vpop.f32.mrb[0].mxu0
        %v6352 = vpop.f32.mrb[0].mxu0
        %v6353 = vpop.f32.mrb[0].mxu0
        %6354 = vdwg.mxu0
        %s6355 = scalar_lea.vmem %s5, 96
        %v6356 = vld [vmem:[%s6355] sm:$0xf]
        %v6357 = vld [vmem:[%s6355 + $0x4] sm:$0xf]
        %v6358 = vld [vmem:[%s6355 + $0x8] sm:$0xf]
        %v6359 = vld [vmem:[%s6355 + $0xc] sm:$0xf]
        %v6360 = vld [vmem:[%s6355 + $0x10] sm:$0xf]
        %v6361 = vld [vmem:[%s6355 + $0x14] sm:$0xf]
        %v6362 = vld [vmem:[%s6355 + $0x18] sm:$0xf]
        %v6363 = vld [vmem:[%s6355 + $0x1c] sm:$0xf]
        %v6364 = vld [vmem:[%s6355 + $0x20] sm:$0xf]
        %v6365 = vld [vmem:[%s6355 + $0x24] sm:$0xf]
        %v6366 = vld [vmem:[%s6355 + $0x28] sm:$0xf]
        %v6367 = vld [vmem:[%s6355 + $0x2c] sm:$0xf]
        %v6368 = vld [vmem:[%s6355 + $0x30] sm:$0xf]
        %v6369 = vld [vmem:[%s6355 + $0x34] sm:$0xf]
        %v6370 = vld [vmem:[%s6355 + $0x38] sm:$0xf]
        %v6371 = vld [vmem:[%s6355 + $0x3c] sm:$0xf]
        %v6372 = vld [vmem:[%s6355 + $0x40] sm:$0xf]
        %v6373 = vld [vmem:[%s6355 + $0x44] sm:$0xf]
        %v6374 = vld [vmem:[%s6355 + $0x48] sm:$0xf]
        %v6375 = vld [vmem:[%s6355 + $0x4c] sm:$0xf]
        %v6376 = vld [vmem:[%s6355 + $0x50] sm:$0xf]
        %v6377 = vld [vmem:[%s6355 + $0x54] sm:$0xf]
        %v6378 = vld [vmem:[%s6355 + $0x58] sm:$0xf]
        %v6379 = vld [vmem:[%s6355 + $0x5c] sm:$0xf]
        %v6404 = vunpack.c.l.b16 %v6356
        %v6405 = vunpack.c.l.b16 %v6357
        %v6406 = vunpack.c.l.b16 %v6358
        %v6407 = vunpack.c.l.b16 %v6359
        %v6408 = vunpack.c.l.b16 %v6360
        %v6409 = vunpack.c.l.b16 %v6361
        %v6410 = vunpack.c.l.b16 %v6362
        %v6411 = vunpack.c.l.b16 %v6363
        %v6412 = vunpack.c.l.b16 %v6364
        %v6413 = vunpack.c.l.b16 %v6365
        %v6414 = vunpack.c.l.b16 %v6366
        %v6415 = vunpack.c.l.b16 %v6367
        %v6416 = vunpack.c.l.b16 %v6368
        %v6417 = vunpack.c.l.b16 %v6369
        %v6418 = vunpack.c.l.b16 %v6370
        %v6419 = vunpack.c.l.b16 %v6371
        %v6420 = vunpack.c.l.b16 %v6372
        %v6421 = vunpack.c.l.b16 %v6373
        %v6422 = vunpack.c.l.b16 %v6374
        %v6423 = vunpack.c.l.b16 %v6375
        %v6424 = vunpack.c.l.b16 %v6376
        %v6425 = vunpack.c.l.b16 %v6377
        %v6426 = vunpack.c.l.b16 %v6378
        %v6427 = vunpack.c.l.b16 %v6379
        %v6428 = vpack.c.b16 %v6405, %v6404
        %v6429 = vpack.c.b16 %v6407, %v6406
        %v6430 = vpack.c.b16 %v6409, %v6408
        %v6431 = vpack.c.b16 %v6411, %v6410
        %v6432 = vpack.c.b16 %v6413, %v6412
        %v6433 = vpack.c.b16 %v6415, %v6414
        %v6434 = vpack.c.b16 %v6417, %v6416
        %v6435 = vpack.c.b16 %v6419, %v6418
        %v6436 = vpack.c.b16 %v6421, %v6420
        %v6437 = vpack.c.b16 %v6423, %v6422
        %v6438 = vpack.c.b16 %v6425, %v6424
        %v6439 = vpack.c.b16 %v6427, %v6426
        %6452 = vmatprep.subr.bf16.mxu0 0
        %6453 = vmatpush1.bf16.msra.mxu0 %v6428
        %6454 = vmatprep.subr.bf16.mxu0 0
        %6455 = vmatpush1.bf16.msra.mxu0 %v6429
        %6456 = vmatprep.subr.bf16.mxu0 0
        %6457 = vmatpush1.bf16.msra.mxu0 %v6430
        %6458 = vmatprep.subr.bf16.mxu0 0
        %6459 = vmatpush1.bf16.msra.mxu0 %v6431
        %6460 = vmatprep.subr.bf16.mxu0 0
        %6461 = vmatpush1.bf16.msra.mxu0 %v6432
        %6462 = vmatprep.subr.bf16.mxu0 0
        %6463 = vmatpush1.bf16.msra.mxu0 %v6433
        %6464 = vmatprep.subr.bf16.mxu0 0
        %6465 = vmatpush1.bf16.msra.mxu0 %v6434
        %6466 = vmatprep.subr.bf16.mxu0 0
        %6467 = vmatpush1.bf16.msra.mxu0 %v6435
        %6468 = vmatprep.subr.bf16.mxu0 0
        %6469 = vmatpush1.bf16.msra.mxu0 %v6436
        %6470 = vmatprep.subr.bf16.mxu0 0
        %6471 = vmatpush1.bf16.msra.mxu0 %v6437
        %6472 = vmatprep.subr.bf16.mxu0 0
        %6473 = vmatpush1.bf16.msra.mxu0 %v6438
        %6474 = vmatprep.subr.bf16.mxu0 0
        %6475 = vmatpush1.bf16.msra.mxu0 %v6439
        %6476 = vmatprep.subr.bf16.mxu0 0
        %6477 = vmatpush1.bf16.msra.mxu0 0
        %6478 = vmatprep.subr.bf16.mxu0 0
        %6479 = vmatpush1.bf16.msra.mxu0 0
        %6480 = vmatprep.subr.bf16.mxu0 0
        %6481 = vmatpush1.bf16.msra.mxu0 0
        %6482 = vmatprep.subr.bf16.mxu0 0
        %6483 = vmatpush1.bf16.msra.mxu0 0
        %6484 = vmatprep.mubr.bf16.mxu0 %v6148
        %6485 = vmatmul.mubr.bf16.gmra.mrb[0].mxu0 %v6018
        %v6486 = vpop.f32.mrb[0].mxu0
        %v6487 = vadd.f32 0.0, %v6486
        %v6488 = vpop.f32.mrb[0].mxu0
        %v6489 = vpop.f32.mrb[0].mxu0
        %v6490 = vadd.f32 0.0, %v6489
        %v6491 = vpop.f32.mrb[0].mxu0
        %6492 = vmatprep.mubr.bf16.mxu0 %v6151
        %6493 = vmatmul.mubr.bf16.gmra.mrb[0].mxu0 %v6020
        %v6494 = vpop.f32.mrb[0].mxu0
        %v6495 = vadd.f32 0.0, %v6494
        %v6496 = vpop.f32.mrb[0].mxu0
        %v6497 = vpop.f32.mrb[0].mxu0
        %v6498 = vadd.f32 0.0, %v6497
        %v6499 = vpop.f32.mrb[0].mxu0
        %6500 = vmatprep.mubr.bf16.mxu0 %v6154
        %6501 = vmatmul.mubr.bf16.gmra.mrb[0].mxu0 %v6022
        %v6502 = vpop.f32.mrb[0].mxu0
        %v6503 = vadd.f32 0.0, %v6502
        %v6504 = vpop.f32.mrb[0].mxu0
        %v6505 = vpop.f32.mrb[0].mxu0
        %v6506 = vadd.f32 0.0, %v6505
        %v6507 = vpop.f32.mrb[0].mxu0
        %6508 = vmatprep.mubr.bf16.mxu0 %v6157
        %6509 = vmatmul.mubr.bf16.gmra.mrb[0].mxu0 %v6024
        %v6510 = vpop.f32.mrb[0].mxu0
        %v6511 = vadd.f32 0.0, %v6510
        %v6512 = vpop.f32.mrb[0].mxu0
        %v6513 = vpop.f32.mrb[0].mxu0
        %v6514 = vadd.f32 0.0, %v6513
        %v6515 = vpop.f32.mrb[0].mxu0
        %6516 = vmatprep.mubr.bf16.mxu0 %v6160
        %6517 = vmatmul.mubr.bf16.gmra.mrb[0].mxu0 %v6026
        %v6518 = vpop.f32.mrb[0].mxu0
        %v6519 = vadd.f32 0.0, %v6518
        %v6520 = vpop.f32.mrb[0].mxu0
        %v6521 = vpop.f32.mrb[0].mxu0
        %v6522 = vadd.f32 0.0, %v6521
        %v6523 = vpop.f32.mrb[0].mxu0
        %6524 = vmatprep.mubr.bf16.mxu0 %v6163
        %6525 = vmatmul.mubr.bf16.gmra.mrb[0].mxu0 %v6028
        %v6526 = vpop.f32.mrb[0].mxu0
        %v6527 = vadd.f32 0.0, %v6526
        %v6528 = vpop.f32.mrb[0].mxu0
        %v6529 = vpop.f32.mrb[0].mxu0
        %v6530 = vadd.f32 0.0, %v6529
        %v6531 = vpop.f32.mrb[0].mxu0
        %6532 = vmatprep.mubr.bf16.mxu0 %v6166
        %6533 = vmatmul.mubr.bf16.gmra.mrb[0].mxu0 %v6030
        %v6534 = vpop.f32.mrb[0].mxu0
        %v6535 = vadd.f32 0.0, %v6534
        %v6536 = vpop.f32.mrb[0].mxu0
        %v6537 = vpop.f32.mrb[0].mxu0
        %v6538 = vadd.f32 0.0, %v6537
        %v6539 = vpop.f32.mrb[0].mxu0
        %6540 = vmatprep.mubr.bf16.mxu0 %v6169
        %6541 = vmatmul.mubr.bf16.gmra.mrb[0].mxu0 %v6032
        %v6542 = vpop.f32.mrb[0].mxu0
        %v6543 = vadd.f32 0.0, %v6542
        %v6544 = vpop.f32.mrb[0].mxu0
        %v6545 = vpop.f32.mrb[0].mxu0
        %v6546 = vadd.f32 0.0, %v6545
        %v6547 = vpop.f32.mrb[0].mxu0
        %6548 = vmatprep.mubr.bf16.mxu0 %v6172
        %6549 = vmatmul.mubr.bf16.gmra.mrb[0].mxu0 %v6034
        %v6550 = vpop.f32.mrb[0].mxu0
        %v6551 = vadd.f32 0.0, %v6550
        %v6552 = vpop.f32.mrb[0].mxu0
        %v6553 = vpop.f32.mrb[0].mxu0
        %v6554 = vadd.f32 0.0, %v6553
        %v6555 = vpop.f32.mrb[0].mxu0
        %6556 = vmatprep.mubr.bf16.mxu0 %v6175
        %6557 = vmatmul.mubr.bf16.gmra.mrb[0].mxu0 %v6036
        %v6558 = vpop.f32.mrb[0].mxu0
        %v6559 = vadd.f32 0.0, %v6558
        %v6560 = vpop.f32.mrb[0].mxu0
        %v6561 = vpop.f32.mrb[0].mxu0
        %v6562 = vadd.f32 0.0, %v6561
        %v6563 = vpop.f32.mrb[0].mxu0
        %6564 = vmatprep.mubr.bf16.mxu0 %v6178
        %6565 = vmatmul.mubr.bf16.gmra.mrb[0].mxu0 %v6038
        %v6566 = vpop.f32.mrb[0].mxu0
        %v6567 = vadd.f32 0.0, %v6566
        %v6568 = vpop.f32.mrb[0].mxu0
        %v6569 = vpop.f32.mrb[0].mxu0
        %v6570 = vadd.f32 0.0, %v6569
        %v6571 = vpop.f32.mrb[0].mxu0
        %6572 = vmatprep.mubr.bf16.mxu0 %v6181
        %6573 = vmatmul.mubr.bf16.gmra.mrb[0].mxu0 %v6040
        %v6574 = vpop.f32.mrb[0].mxu0
        %v6575 = vadd.f32 0.0, %v6574
        %v6576 = vpop.f32.mrb[0].mxu0
        %v6577 = vpop.f32.mrb[0].mxu0
        %v6578 = vadd.f32 0.0, %v6577
        %v6579 = vpop.f32.mrb[0].mxu0
        %6580 = vmatprep.mubr.bf16.mxu0 %v6184
        %6581 = vmatmul.mubr.bf16.gmra.mrb[0].mxu0 %v6042
        %v6582 = vpop.f32.mrb[0].mxu0
        %v6583 = vadd.f32 0.0, %v6582
        %v6584 = vpop.f32.mrb[0].mxu0
        %v6585 = vpop.f32.mrb[0].mxu0
        %v6586 = vadd.f32 0.0, %v6585
        %v6587 = vpop.f32.mrb[0].mxu0
        %6588 = vmatprep.mubr.bf16.mxu0 %v6187
        %6589 = vmatmul.mubr.bf16.gmra.mrb[0].mxu0 %v6044
        %v6590 = vpop.f32.mrb[0].mxu0
        %v6591 = vadd.f32 0.0, %v6590
        %v6592 = vpop.f32.mrb[0].mxu0
        %v6593 = vpop.f32.mrb[0].mxu0
        %v6594 = vadd.f32 0.0, %v6593
        %v6595 = vpop.f32.mrb[0].mxu0
        %6596 = vmatprep.mubr.bf16.mxu0 %v6190
        %6597 = vmatmul.mubr.bf16.gmra.mrb[0].mxu0 %v6046
        %v6598 = vpop.f32.mrb[0].mxu0
        %v6599 = vadd.f32 0.0, %v6598
        %v6600 = vpop.f32.mrb[0].mxu0
        %v6601 = vpop.f32.mrb[0].mxu0
        %v6602 = vadd.f32 0.0, %v6601
        %v6603 = vpop.f32.mrb[0].mxu0
        %6604 = vmatprep.mubr.bf16.mxu0 %v6193
        %6605 = vmatmul.mubr.bf16.gmra.mrb[0].mxu0 %v6048
        %v6606 = vpop.f32.mrb[0].mxu0
        %v6607 = vadd.f32 0.0, %v6606
        %v6608 = vpop.f32.mrb[0].mxu0
        %v6609 = vpop.f32.mrb[0].mxu0
        %v6610 = vpop.f32.mrb[0].mxu0
        %6611 = vdwg.mxu0
        %v6612 = vmax.f32 %v6230, %v6487
        %v6613 = vmax.f32 %v6233, %v6490
        %v6614 = vmax.f32 %v6238, %v6495
        %v6615 = vmax.f32 %v6241, %v6498
        %v6616 = vmax.f32 %v6246, %v6503
        %v6617 = vmax.f32 %v6249, %v6506
        %v6618 = vmax.f32 %v6254, %v6511
        %v6619 = vmax.f32 %v6257, %v6514
        %v6620 = vmax.f32 %v6262, %v6519
        %v6621 = vmax.f32 %v6265, %v6522
        %v6622 = vmax.f32 %v6270, %v6527
        %v6623 = vmax.f32 %v6273, %v6530
        %v6624 = vmax.f32 %v6278, %v6535
        %v6625 = vmax.f32 %v6281, %v6538
        %v6626 = vmax.f32 %v6286, %v6543
        %v6627 = vmax.f32 %v6289, %v6546
        %v6628 = vmax.f32 %v6294, %v6551
        %v6629 = vmax.f32 %v6297, %v6554
        %v6630 = vmax.f32 %v6302, %v6559
        %v6631 = vmax.f32 %v6305, %v6562
        %v6632 = vmax.f32 %v6310, %v6567
        %v6633 = vmax.f32 %v6313, %v6570
        %v6634 = vmax.f32 %v6318, %v6575
        %v6635 = vmax.f32 %v6321, %v6578
        %v6636 = vmax.f32 %v6326, %v6583
        %v6637 = vmax.f32 %v6329, %v6586
        %v6638 = vmax.f32 %v6334, %v6591
        %v6639 = vmax.f32 %v6337, %v6594
        %v6640 = vmax.f32 %v6342, %v6599
        %v6641 = vmax.f32 %v6345, %v6602
        %v6642 = vmax.f32 %v6350, %v6607
        %v6643 = vpack.c.bf16 %v6613, %v6612
        %v6644 = vpack.c.bf16 %v6615, %v6614
        %v6645 = vpack.c.bf16 %v6617, %v6616
        %v6646 = vpack.c.bf16 %v6619, %v6618
        %v6647 = vpack.c.bf16 %v6621, %v6620
        %v6648 = vpack.c.bf16 %v6623, %v6622
        %v6649 = vpack.c.bf16 %v6625, %v6624
        %v6650 = vpack.c.bf16 %v6627, %v6626
        %v6651 = vpack.c.bf16 %v6629, %v6628
        %v6652 = vpack.c.bf16 %v6631, %v6630
        %v6653 = vpack.c.bf16 %v6633, %v6632
        %v6654 = vpack.c.bf16 %v6635, %v6634
        %v6655 = vpack.c.bf16 %v6637, %v6636
        %v6656 = vpack.c.bf16 %v6639, %v6638
        %v6657 = vpack.c.bf16 %v6641, %v6640
        %v6658 = vpack.c.bf16 %v6642, %v6642
        %v6659 = vld [vmem:[%s6] sm:$0xf]
        %v6660 = vld [vmem:[%s6 + $0x4] sm:$0xf]
        %v6661 = vld [vmem:[%s6 + $0x8] sm:$0xf]
        %v6662 = vld [vmem:[%s6 + $0xc] sm:$0xf]
        %v6663 = vld [vmem:[%s6 + $0x10] sm:$0xf]
        %v6664 = vld [vmem:[%s6 + $0x14] sm:$0xf]
        %v6665 = vld [vmem:[%s6 + $0x18] sm:$0xf]
        %v6666 = vld [vmem:[%s6 + $0x1c] sm:$0xf]
        %v6667 = vld [vmem:[%s6 + $0x20] sm:$0xf]
        %v6668 = vld [vmem:[%s6 + $0x24] sm:$0xf]
        %v6669 = vld [vmem:[%s6 + $0x28] sm:$0xf]
        %v6670 = vld [vmem:[%s6 + $0x2c] sm:$0xf]
        %s6671 = scalar_lea.vmem %s6, 48
        %v6672 = vld [vmem:[%s6671] sm:$0xf]
        %v6673 = vld [vmem:[%s6671 + $0x4] sm:$0xf]
        %v6674 = vld [vmem:[%s6671 + $0x8] sm:$0xf]
        %v6675 = vld [vmem:[%s6671 + $0xc] sm:$0xf]
        %v6676 = vld [vmem:[%s6671 + $0x10] sm:$0xf]
        %v6677 = vld [vmem:[%s6671 + $0x14] sm:$0xf]
        %v6678 = vld [vmem:[%s6671 + $0x18] sm:$0xf]
        %v6679 = vld [vmem:[%s6671 + $0x1c] sm:$0xf]
        %v6680 = vld [vmem:[%s6671 + $0x20] sm:$0xf]
        %v6681 = vld [vmem:[%s6671 + $0x24] sm:$0xf]
        %v6682 = vld [vmem:[%s6671 + $0x28] sm:$0xf]
        %v6683 = vld [vmem:[%s6671 + $0x2c] sm:$0xf]
        %v6700 = vrot.slane %v6643, 1
        %v6701 = vrot.slane %v6644, 1
        %v6702 = vsel %vm1334, %v6700, %v6701
        %v6703 = vrot.slane %v6645, 1
        %v6704 = vsel %vm1334, %v6701, %v6703
        %v6705 = vrot.slane %v6646, 1
        %v6706 = vsel %vm1334, %v6703, %v6705
        %v6707 = vrot.slane %v6647, 1
        %v6708 = vsel %vm1334, %v6705, %v6707
        %v6709 = vrot.slane %v6648, 1
        %v6710 = vsel %vm1334, %v6707, %v6709
        %v6711 = vrot.slane %v6649, 1
        %v6712 = vsel %vm1334, %v6709, %v6711
        %v6713 = vrot.slane %v6650, 1
        %v6714 = vsel %vm1334, %v6711, %v6713
        %v6715 = vrot.slane %v6651, 1
        %v6716 = vsel %vm1334, %v6713, %v6715
        %v6717 = vrot.slane %v6652, 1
        %v6718 = vsel %vm1334, %v6715, %v6717
        %v6719 = vrot.slane %v6653, 1
        %v6720 = vsel %vm1334, %v6717, %v6719
        %v6721 = vrot.slane %v6654, 1
        %v6722 = vsel %vm1334, %v6719, %v6721
        %v6723 = vrot.slane %v6655, 1
        %v6724 = vsel %vm1334, %v6721, %v6723
        %v6725 = vrot.slane %v6656, 1
        %v6726 = vsel %vm1334, %v6723, %v6725
        %v6727 = vrot.slane %v6657, 1
        %v6728 = vsel %vm1334, %v6725, %v6727
        %v6729 = vrot.slane %v6658, 1
        %v6730 = vsel %vm1334, %v6727, %v6729
        %v6743 = vunpack.c.l.b16 %v6672
        %v6744 = vunpack.c.l.b16 %v6673
        %v6745 = vunpack.c.l.b16 %v6674
        %v6746 = vunpack.c.l.b16 %v6675
        %v6747 = vunpack.c.l.b16 %v6676
        %v6748 = vunpack.c.l.b16 %v6677
        %v6749 = vunpack.c.l.b16 %v6678
        %v6750 = vunpack.c.l.b16 %v6679
        %v6751 = vunpack.c.l.b16 %v6680
        %v6752 = vunpack.c.l.b16 %v6681
        %v6753 = vunpack.c.l.b16 %v6682
        %v6754 = vunpack.c.l.b16 %v6683
        %v6755 = vpack.c.b16 %v6744, %v6743
        %v6756 = vpack.c.b16 %v6746, %v6745
        %v6757 = vpack.c.b16 %v6748, %v6747
        %v6758 = vpack.c.b16 %v6750, %v6749
        %v6759 = vpack.c.b16 %v6752, %v6751
        %v6760 = vpack.c.b16 %v6754, %v6753
        %v6768 = vsel %vm794, %v6702, 0
        %v6771 = vsel %vm794, %v6704, 0
        %v6774 = vsel %vm794, %v6706, 0
        %v6777 = vsel %vm794, %v6708, 0
        %v6780 = vsel %vm794, %v6710, 0
        %v6783 = vsel %vm794, %v6712, 0
        %v6786 = vsel %vm794, %v6714, 0
        %v6789 = vsel %vm794, %v6716, 0
        %v6792 = vsel %vm794, %v6718, 0
        %v6795 = vsel %vm794, %v6720, 0
        %v6798 = vsel %vm794, %v6722, 0
        %v6801 = vsel %vm794, %v6724, 0
        %v6804 = vsel %vm794, %v6726, 0
        %v6807 = vsel %vm794, %v6728, 0
        %v6810 = vsel %vm794, %v6730, 0
        %6812 = vmatprep.subr.bf16.mxu0 0
        %6813 = vmatpush1.bf16.msra.mxu0 %v6755
        %6814 = vmatprep.subr.bf16.mxu0 0
        %6815 = vmatpush1.bf16.msra.mxu0 %v6756
        %6816 = vmatprep.subr.bf16.mxu0 0
        %6817 = vmatpush1.bf16.msra.mxu0 %v6757
        %6818 = vmatprep.subr.bf16.mxu0 0
        %6819 = vmatpush1.bf16.msra.mxu0 %v6758
        %6820 = vmatprep.subr.bf16.mxu0 0
        %6821 = vmatpush1.bf16.msra.mxu0 %v6759
        %6822 = vmatprep.subr.bf16.mxu0 0
        %6823 = vmatpush1.bf16.msra.mxu0 %v6760
        %6824 = vmatprep.subr.bf16.mxu0 0
        %6825 = vmatpush1.bf16.msra.mxu0 0
        %6826 = vmatprep.subr.bf16.mxu0 0
        %6827 = vmatpush1.bf16.msra.mxu0 0
        %6828 = vmatprep.subr.bf16.mxu0 0
        %6829 = vmatpush1.bf16.msra.mxu0 0
        %6830 = vmatprep.subr.bf16.mxu0 0
        %6831 = vmatpush1.bf16.msra.mxu0 0
        %6832 = vmatprep.subr.bf16.mxu0 0
        %6833 = vmatpush1.bf16.msra.mxu0 0
        %6834 = vmatprep.subr.bf16.mxu0 0
        %6835 = vmatpush1.bf16.msra.mxu0 0
        %6836 = vmatprep.subr.bf16.mxu0 0
        %6837 = vmatpush1.bf16.msra.mxu0 0
        %6838 = vmatprep.subr.bf16.mxu0 0
        %6839 = vmatpush1.bf16.msra.mxu0 0
        %6840 = vmatprep.subr.bf16.mxu0 0
        %6841 = vmatpush1.bf16.msra.mxu0 0
        %6842 = vmatprep.subr.bf16.mxu0 0
        %6843 = vmatpush1.bf16.msra.mxu0 0
        %6844 = vmatprep.mubr.bf16.mxu0 0
        %6845 = vmatmul.mubr.bf16.gmra.mrb[0].mxu0 %v6768
        %v6846 = vpop.f32.mrb[0].mxu0
        %v6847 = vadd.f32 0.0, %v6846
        %v6848 = vpop.f32.mrb[0].mxu0
        %v6849 = vpop.f32.mrb[0].mxu0
        %v6850 = vadd.f32 0.0, %v6849
        %v6851 = vpop.f32.mrb[0].mxu0
        %6852 = vmatprep.mubr.bf16.mxu0 0
        %6853 = vmatmul.mubr.bf16.gmra.mrb[0].mxu0 %v6771
        %v6854 = vpop.f32.mrb[0].mxu0
        %v6855 = vadd.f32 0.0, %v6854
        %v6856 = vpop.f32.mrb[0].mxu0
        %v6857 = vpop.f32.mrb[0].mxu0
        %v6858 = vadd.f32 0.0, %v6857
        %v6859 = vpop.f32.mrb[0].mxu0
        %6860 = vmatprep.mubr.bf16.mxu0 0
        %6861 = vmatmul.mubr.bf16.gmra.mrb[0].mxu0 %v6774
        %v6862 = vpop.f32.mrb[0].mxu0
        %v6863 = vadd.f32 0.0, %v6862
        %v6864 = vpop.f32.mrb[0].mxu0
        %v6865 = vpop.f32.mrb[0].mxu0
        %v6866 = vadd.f32 0.0, %v6865
        %v6867 = vpop.f32.mrb[0].mxu0
        %6868 = vmatprep.mubr.bf16.mxu0 0
        %6869 = vmatmul.mubr.bf16.gmra.mrb[0].mxu0 %v6777
        %v6870 = vpop.f32.mrb[0].mxu0
        %v6871 = vadd.f32 0.0, %v6870
        %v6872 = vpop.f32.mrb[0].mxu0
        %v6873 = vpop.f32.mrb[0].mxu0
        %v6874 = vadd.f32 0.0, %v6873
        %v6875 = vpop.f32.mrb[0].mxu0
        %6876 = vmatprep.mubr.bf16.mxu0 0
        %6877 = vmatmul.mubr.bf16.gmra.mrb[0].mxu0 %v6780
        %v6878 = vpop.f32.mrb[0].mxu0
        %v6879 = vadd.f32 0.0, %v6878
        %v6880 = vpop.f32.mrb[0].mxu0
        %v6881 = vpop.f32.mrb[0].mxu0
        %v6882 = vadd.f32 0.0, %v6881
        %v6883 = vpop.f32.mrb[0].mxu0
        %6884 = vmatprep.mubr.bf16.mxu0 0
        %6885 = vmatmul.mubr.bf16.gmra.mrb[0].mxu0 %v6783
        %v6886 = vpop.f32.mrb[0].mxu0
        %v6887 = vadd.f32 0.0, %v6886
        %v6888 = vpop.f32.mrb[0].mxu0
        %v6889 = vpop.f32.mrb[0].mxu0
        %v6890 = vadd.f32 0.0, %v6889
        %v6891 = vpop.f32.mrb[0].mxu0
        %6892 = vmatprep.mubr.bf16.mxu0 0
        %6893 = vmatmul.mubr.bf16.gmra.mrb[0].mxu0 %v6786
        %v6894 = vpop.f32.mrb[0].mxu0
        %v6895 = vadd.f32 0.0, %v6894
        %v6896 = vpop.f32.mrb[0].mxu0
        %v6897 = vpop.f32.mrb[0].mxu0
        %v6898 = vadd.f32 0.0, %v6897
        %v6899 = vpop.f32.mrb[0].mxu0
        %6900 = vmatprep.mubr.bf16.mxu0 0
        %6901 = vmatmul.mubr.bf16.gmra.mrb[0].mxu0 %v6789
        %v6902 = vpop.f32.mrb[0].mxu0
        %v6903 = vadd.f32 0.0, %v6902
        %v6904 = vpop.f32.mrb[0].mxu0
        %v6905 = vpop.f32.mrb[0].mxu0
        %v6906 = vadd.f32 0.0, %v6905
        %v6907 = vpop.f32.mrb[0].mxu0
        %6908 = vmatprep.mubr.bf16.mxu0 0
        %6909 = vmatmul.mubr.bf16.gmra.mrb[0].mxu0 %v6792
        %v6910 = vpop.f32.mrb[0].mxu0
        %v6911 = vadd.f32 0.0, %v6910
        %v6912 = vpop.f32.mrb[0].mxu0
        %v6913 = vpop.f32.mrb[0].mxu0
        %v6914 = vadd.f32 0.0, %v6913
        %v6915 = vpop.f32.mrb[0].mxu0
        %6916 = vmatprep.mubr.bf16.mxu0 0
        %6917 = vmatmul.mubr.bf16.gmra.mrb[0].mxu0 %v6795
        %v6918 = vpop.f32.mrb[0].mxu0
        %v6919 = vadd.f32 0.0, %v6918
        %v6920 = vpop.f32.mrb[0].mxu0
        %v6921 = vpop.f32.mrb[0].mxu0
        %v6922 = vadd.f32 0.0, %v6921
        %v6923 = vpop.f32.mrb[0].mxu0
        %6924 = vmatprep.mubr.bf16.mxu0 0
        %6925 = vmatmul.mubr.bf16.gmra.mrb[0].mxu0 %v6798
        %v6926 = vpop.f32.mrb[0].mxu0
        %v6927 = vadd.f32 0.0, %v6926
        %v6928 = vpop.f32.mrb[0].mxu0
        %v6929 = vpop.f32.mrb[0].mxu0
        %v6930 = vadd.f32 0.0, %v6929
        %v6931 = vpop.f32.mrb[0].mxu0
        %6932 = vmatprep.mubr.bf16.mxu0 0
        %6933 = vmatmul.mubr.bf16.gmra.mrb[0].mxu0 %v6801
        %v6934 = vpop.f32.mrb[0].mxu0
        %v6935 = vadd.f32 0.0, %v6934
        %v6936 = vpop.f32.mrb[0].mxu0
        %v6937 = vpop.f32.mrb[0].mxu0
        %v6938 = vadd.f32 0.0, %v6937
        %v6939 = vpop.f32.mrb[0].mxu0
        %6940 = vmatprep.mubr.bf16.mxu0 0
        %6941 = vmatmul.mubr.bf16.gmra.mrb[0].mxu0 %v6804
        %v6942 = vpop.f32.mrb[0].mxu0
        %v6943 = vadd.f32 0.0, %v6942
        %v6944 = vpop.f32.mrb[0].mxu0
        %v6945 = vpop.f32.mrb[0].mxu0
        %v6946 = vadd.f32 0.0, %v6945
        %v6947 = vpop.f32.mrb[0].mxu0
        %6948 = vmatprep.mubr.bf16.mxu0 0
        %6949 = vmatmul.mubr.bf16.gmra.mrb[0].mxu0 %v6807
        %v6950 = vpop.f32.mrb[0].mxu0
        %v6951 = vadd.f32 0.0, %v6950
        %v6952 = vpop.f32.mrb[0].mxu0
        %v6953 = vpop.f32.mrb[0].mxu0
        %v6954 = vadd.f32 0.0, %v6953
        %v6955 = vpop.f32.mrb[0].mxu0
        %6956 = vmatprep.mubr.bf16.mxu0 0
        %6957 = vmatmul.mubr.bf16.gmra.mrb[0].mxu0 %v6810
        %v6958 = vpop.f32.mrb[0].mxu0
        %v6959 = vadd.f32 0.0, %v6958
        %v6960 = vpop.f32.mrb[0].mxu0
        %v6961 = vpop.f32.mrb[0].mxu0
        %v6962 = vadd.f32 0.0, %v6961
        %v6963 = vpop.f32.mrb[0].mxu0
        %6964 = vdwg.mxu0
        %v6977 = vunpack.c.l.b16 %v6659
        %v6978 = vunpack.c.l.b16 %v6660
        %v6979 = vunpack.c.l.b16 %v6661
        %v6980 = vunpack.c.l.b16 %v6662
        %v6981 = vunpack.c.l.b16 %v6663
        %v6982 = vunpack.c.l.b16 %v6664
        %v6983 = vunpack.c.l.b16 %v6665
        %v6984 = vunpack.c.l.b16 %v6666
        %v6985 = vunpack.c.l.b16 %v6667
        %v6986 = vunpack.c.l.b16 %v6668
        %v6987 = vunpack.c.l.b16 %v6669
        %v6988 = vunpack.c.l.b16 %v6670
        %v6989 = vpack.c.b16 %v6978, %v6977
        %v6990 = vpack.c.b16 %v6980, %v6979
        %v6991 = vpack.c.b16 %v6982, %v6981
        %v6992 = vpack.c.b16 %v6984, %v6983
        %v6993 = vpack.c.b16 %v6986, %v6985
        %v6994 = vpack.c.b16 %v6988, %v6987
        %v7002 = vsel %vm794, %v6643, 0
        %v7005 = vsel %vm794, %v6644, 0
        %v7008 = vsel %vm794, %v6645, 0
        %v7011 = vsel %vm794, %v6646, 0
        %v7014 = vsel %vm794, %v6647, 0
        %v7017 = vsel %vm794, %v6648, 0
        %v7020 = vsel %vm794, %v6649, 0
        %v7023 = vsel %vm794, %v6650, 0
        %v7026 = vsel %vm794, %v6651, 0
        %v7029 = vsel %vm794, %v6652, 0
        %v7032 = vsel %vm794, %v6653, 0
        %v7035 = vsel %vm794, %v6654, 0
        %v7038 = vsel %vm794, %v6655, 0
        %v7041 = vsel %vm794, %v6656, 0
        %v7044 = vsel %vm794, %v6657, 0
        %7046 = vmatprep.subr.bf16.mxu0 0
        %7047 = vmatpush1.bf16.msra.mxu0 %v6989
        %7048 = vmatprep.subr.bf16.mxu0 0
        %7049 = vmatpush1.bf16.msra.mxu0 %v6990
        %7050 = vmatprep.subr.bf16.mxu0 0
        %7051 = vmatpush1.bf16.msra.mxu0 %v6991
        %7052 = vmatprep.subr.bf16.mxu0 0
        %7053 = vmatpush1.bf16.msra.mxu0 %v6992
        %7054 = vmatprep.subr.bf16.mxu0 0
        %7055 = vmatpush1.bf16.msra.mxu0 %v6993
        %7056 = vmatprep.subr.bf16.mxu0 0
        %7057 = vmatpush1.bf16.msra.mxu0 %v6994
        %7058 = vmatprep.subr.bf16.mxu0 0
        %7059 = vmatpush1.bf16.msra.mxu0 0
        %7060 = vmatprep.subr.bf16.mxu0 0
        %7061 = vmatpush1.bf16.msra.mxu0 0
        %7062 = vmatprep.subr.bf16.mxu0 0
        %7063 = vmatpush1.bf16.msra.mxu0 0
        %7064 = vmatprep.subr.bf16.mxu0 0
        %7065 = vmatpush1.bf16.msra.mxu0 0
        %7066 = vmatprep.subr.bf16.mxu0 0
        %7067 = vmatpush1.bf16.msra.mxu0 0
        %7068 = vmatprep.subr.bf16.mxu0 0
        %7069 = vmatpush1.bf16.msra.mxu0 0
        %7070 = vmatprep.subr.bf16.mxu0 0
        %7071 = vmatpush1.bf16.msra.mxu0 0
        %7072 = vmatprep.subr.bf16.mxu0 0
        %7073 = vmatpush1.bf16.msra.mxu0 0
        %7074 = vmatprep.subr.bf16.mxu0 0
        %7075 = vmatpush1.bf16.msra.mxu0 0
        %7076 = vmatprep.subr.bf16.mxu0 0
        %7077 = vmatpush1.bf16.msra.mxu0 0
        %7078 = vmatprep.mubr.bf16.mxu0 0
        %7079 = vmatmul.mubr.bf16.gmra.mrb[0].mxu0 %v7002
        %v7080 = vpop.f32.mrb[0].mxu0
        %v7081 = vadd.f32 %v6847, %v7080
        %v7082 = vpop.f32.mrb[0].mxu0
        %v7083 = vpop.f32.mrb[0].mxu0
        %v7084 = vadd.f32 %v6850, %v7083
        %v7085 = vpop.f32.mrb[0].mxu0
        %7086 = vmatprep.mubr.bf16.mxu0 0
        %7087 = vmatmul.mubr.bf16.gmra.mrb[0].mxu0 %v7005
        %v7088 = vpop.f32.mrb[0].mxu0
        %v7089 = vadd.f32 %v6855, %v7088
        %v7090 = vpop.f32.mrb[0].mxu0
        %v7091 = vpop.f32.mrb[0].mxu0
        %v7092 = vadd.f32 %v6858, %v7091
        %v7093 = vpop.f32.mrb[0].mxu0
        %7094 = vmatprep.mubr.bf16.mxu0 0
        %7095 = vmatmul.mubr.bf16.gmra.mrb[0].mxu0 %v7008
        %v7096 = vpop.f32.mrb[0].mxu0
        %v7097 = vadd.f32 %v6863, %v7096
        %v7098 = vpop.f32.mrb[0].mxu0
        %v7099 = vpop.f32.mrb[0].mxu0
        %v7100 = vadd.f32 %v6866, %v7099
        %v7101 = vpop.f32.mrb[0].mxu0
        %7102 = vmatprep.mubr.bf16.mxu0 0
        %7103 = vmatmul.mubr.bf16.gmra.mrb[0].mxu0 %v7011
        %v7104 = vpop.f32.mrb[0].mxu0
        %v7105 = vadd.f32 %v6871, %v7104
        %v7106 = vpop.f32.mrb[0].mxu0
        %v7107 = vpop.f32.mrb[0].mxu0
        %v7108 = vadd.f32 %v6874, %v7107
        %v7109 = vpop.f32.mrb[0].mxu0
        %7110 = vmatprep.mubr.bf16.mxu0 0
        %7111 = vmatmul.mubr.bf16.gmra.mrb[0].mxu0 %v7014
        %v7112 = vpop.f32.mrb[0].mxu0
        %v7113 = vadd.f32 %v6879, %v7112
        %v7114 = vpop.f32.mrb[0].mxu0
        %v7115 = vpop.f32.mrb[0].mxu0
        %v7116 = vadd.f32 %v6882, %v7115
        %v7117 = vpop.f32.mrb[0].mxu0
        %7118 = vmatprep.mubr.bf16.mxu0 0
        %7119 = vmatmul.mubr.bf16.gmra.mrb[0].mxu0 %v7017
        %v7120 = vpop.f32.mrb[0].mxu0
        %v7121 = vadd.f32 %v6887, %v7120
        %v7122 = vpop.f32.mrb[0].mxu0
        %v7123 = vpop.f32.mrb[0].mxu0
        %v7124 = vadd.f32 %v6890, %v7123
        %v7125 = vpop.f32.mrb[0].mxu0
        %7126 = vmatprep.mubr.bf16.mxu0 0
        %7127 = vmatmul.mubr.bf16.gmra.mrb[0].mxu0 %v7020
        %v7128 = vpop.f32.mrb[0].mxu0
        %v7129 = vadd.f32 %v6895, %v7128
        %v7130 = vpop.f32.mrb[0].mxu0
        %v7131 = vpop.f32.mrb[0].mxu0
        %v7132 = vadd.f32 %v6898, %v7131
        %v7133 = vpop.f32.mrb[0].mxu0
        %7134 = vmatprep.mubr.bf16.mxu0 0
        %7135 = vmatmul.mubr.bf16.gmra.mrb[0].mxu0 %v7023
        %v7136 = vpop.f32.mrb[0].mxu0
        %v7137 = vadd.f32 %v6903, %v7136
        %v7138 = vpop.f32.mrb[0].mxu0
        %v7139 = vpop.f32.mrb[0].mxu0
        %v7140 = vadd.f32 %v6906, %v7139
        %v7141 = vpop.f32.mrb[0].mxu0
        %7142 = vmatprep.mubr.bf16.mxu0 0
        %7143 = vmatmul.mubr.bf16.gmra.mrb[0].mxu0 %v7026
        %v7144 = vpop.f32.mrb[0].mxu0
        %v7145 = vadd.f32 %v6911, %v7144
        %v7146 = vpop.f32.mrb[0].mxu0
        %v7147 = vpop.f32.mrb[0].mxu0
        %v7148 = vadd.f32 %v6914, %v7147
        %v7149 = vpop.f32.mrb[0].mxu0
        %7150 = vmatprep.mubr.bf16.mxu0 0
        %7151 = vmatmul.mubr.bf16.gmra.mrb[0].mxu0 %v7029
        %v7152 = vpop.f32.mrb[0].mxu0
        %v7153 = vadd.f32 %v6919, %v7152
        %v7154 = vpop.f32.mrb[0].mxu0
        %v7155 = vpop.f32.mrb[0].mxu0
        %v7156 = vadd.f32 %v6922, %v7155
        %v7157 = vpop.f32.mrb[0].mxu0
        %7158 = vmatprep.mubr.bf16.mxu0 0
        %7159 = vmatmul.mubr.bf16.gmra.mrb[0].mxu0 %v7032
        %v7160 = vpop.f32.mrb[0].mxu0
        %v7161 = vadd.f32 %v6927, %v7160
        %v7162 = vpop.f32.mrb[0].mxu0
        %v7163 = vpop.f32.mrb[0].mxu0
        %v7164 = vadd.f32 %v6930, %v7163
        %v7165 = vpop.f32.mrb[0].mxu0
        %7166 = vmatprep.mubr.bf16.mxu0 0
        %7167 = vmatmul.mubr.bf16.gmra.mrb[0].mxu0 %v7035
        %v7168 = vpop.f32.mrb[0].mxu0
        %v7169 = vadd.f32 %v6935, %v7168
        %v7170 = vpop.f32.mrb[0].mxu0
        %v7171 = vpop.f32.mrb[0].mxu0
        %v7172 = vadd.f32 %v6938, %v7171
        %v7173 = vpop.f32.mrb[0].mxu0
        %7174 = vmatprep.mubr.bf16.mxu0 0
        %7175 = vmatmul.mubr.bf16.gmra.mrb[0].mxu0 %v7038
        %v7176 = vpop.f32.mrb[0].mxu0
        %v7177 = vadd.f32 %v6943, %v7176
        %v7178 = vpop.f32.mrb[0].mxu0
        %v7179 = vpop.f32.mrb[0].mxu0
        %v7180 = vadd.f32 %v6946, %v7179
        %v7181 = vpop.f32.mrb[0].mxu0
        %7182 = vmatprep.mubr.bf16.mxu0 0
        %7183 = vmatmul.mubr.bf16.gmra.mrb[0].mxu0 %v7041
        %v7184 = vpop.f32.mrb[0].mxu0
        %v7185 = vadd.f32 %v6951, %v7184
        %v7186 = vpop.f32.mrb[0].mxu0
        %v7187 = vpop.f32.mrb[0].mxu0
        %v7188 = vadd.f32 %v6954, %v7187
        %v7189 = vpop.f32.mrb[0].mxu0
        %7190 = vmatprep.mubr.bf16.mxu0 0
        %7191 = vmatmul.mubr.bf16.gmra.mrb[0].mxu0 %v7044
        %v7192 = vpop.f32.mrb[0].mxu0
        %v7193 = vadd.f32 %v6959, %v7192
        %v7194 = vpop.f32.mrb[0].mxu0
        %v7195 = vpop.f32.mrb[0].mxu0
        %v7196 = vadd.f32 %v6962, %v7195
        %v7197 = vpop.f32.mrb[0].mxu0
        %7198 = vdwg.mxu0
        %s7199 = scalar_lea.vmem %s6, 96
        %v7200 = vld [vmem:[%s7199] sm:$0xf]
        %v7201 = vld [vmem:[%s7199 + $0x4] sm:$0xf]
        %v7202 = vld [vmem:[%s7199 + $0x8] sm:$0xf]
        %v7203 = vld [vmem:[%s7199 + $0xc] sm:$0xf]
        %v7204 = vld [vmem:[%s7199 + $0x10] sm:$0xf]
        %v7205 = vld [vmem:[%s7199 + $0x14] sm:$0xf]
        %v7206 = vld [vmem:[%s7199 + $0x18] sm:$0xf]
        %v7207 = vld [vmem:[%s7199 + $0x1c] sm:$0xf]
        %v7208 = vld [vmem:[%s7199 + $0x20] sm:$0xf]
        %v7209 = vld [vmem:[%s7199 + $0x24] sm:$0xf]
        %v7210 = vld [vmem:[%s7199 + $0x28] sm:$0xf]
        %v7211 = vld [vmem:[%s7199 + $0x2c] sm:$0xf]
        %v7212 = vrot.slane %v6643, 2
        %v7213 = vrot.slane %v6644, 2
        %v7214 = vsel %vm2186, %v7212, %v7213
        %v7215 = vrot.slane %v6645, 2
        %v7216 = vsel %vm2186, %v7213, %v7215
        %v7217 = vrot.slane %v6646, 2
        %v7218 = vsel %vm2186, %v7215, %v7217
        %v7219 = vrot.slane %v6647, 2
        %v7220 = vsel %vm2186, %v7217, %v7219
        %v7221 = vrot.slane %v6648, 2
        %v7222 = vsel %vm2186, %v7219, %v7221
        %v7223 = vrot.slane %v6649, 2
        %v7224 = vsel %vm2186, %v7221, %v7223
        %v7225 = vrot.slane %v6650, 2
        %v7226 = vsel %vm2186, %v7223, %v7225
        %v7227 = vrot.slane %v6651, 2
        %v7228 = vsel %vm2186, %v7225, %v7227
        %v7229 = vrot.slane %v6652, 2
        %v7230 = vsel %vm2186, %v7227, %v7229
        %v7231 = vrot.slane %v6653, 2
        %v7232 = vsel %vm2186, %v7229, %v7231
        %v7233 = vrot.slane %v6654, 2
        %v7234 = vsel %vm2186, %v7231, %v7233
        %v7235 = vrot.slane %v6655, 2
        %v7236 = vsel %vm2186, %v7233, %v7235
        %v7237 = vrot.slane %v6656, 2
        %v7238 = vsel %vm2186, %v7235, %v7237
        %v7239 = vrot.slane %v6657, 2
        %v7240 = vsel %vm2186, %v7237, %v7239
        %v7241 = vrot.slane %v6658, 2
        %v7242 = vsel %vm2186, %v7239, %v7241
        %v7255 = vunpack.c.l.b16 %v7200
        %v7256 = vunpack.c.l.b16 %v7201
        %v7257 = vunpack.c.l.b16 %v7202
        %v7258 = vunpack.c.l.b16 %v7203
        %v7259 = vunpack.c.l.b16 %v7204
        %v7260 = vunpack.c.l.b16 %v7205
        %v7261 = vunpack.c.l.b16 %v7206
        %v7262 = vunpack.c.l.b16 %v7207
        %v7263 = vunpack.c.l.b16 %v7208
        %v7264 = vunpack.c.l.b16 %v7209
        %v7265 = vunpack.c.l.b16 %v7210
        %v7266 = vunpack.c.l.b16 %v7211
        %v7267 = vpack.c.b16 %v7256, %v7255
        %v7268 = vpack.c.b16 %v7258, %v7257
        %v7269 = vpack.c.b16 %v7260, %v7259
        %v7270 = vpack.c.b16 %v7262, %v7261
        %v7271 = vpack.c.b16 %v7264, %v7263
        %v7272 = vpack.c.b16 %v7266, %v7265
        %v7280 = vsel %vm794, %v7214, 0
        %v7283 = vsel %vm794, %v7216, 0
        %v7286 = vsel %vm794, %v7218, 0
        %v7289 = vsel %vm794, %v7220, 0
        %v7292 = vsel %vm794, %v7222, 0
        %v7295 = vsel %vm794, %v7224, 0
        %v7298 = vsel %vm794, %v7226, 0
        %v7301 = vsel %vm794, %v7228, 0
        %v7304 = vsel %vm794, %v7230, 0
        %v7307 = vsel %vm794, %v7232, 0
        %v7310 = vsel %vm794, %v7234, 0
        %v7313 = vsel %vm794, %v7236, 0
        %v7316 = vsel %vm794, %v7238, 0
        %v7319 = vsel %vm794, %v7240, 0
        %v7322 = vsel %vm794, %v7242, 0
        %7324 = vmatprep.subr.bf16.mxu0 0
        %7325 = vmatpush1.bf16.msra.mxu0 %v7267
        %7326 = vmatprep.subr.bf16.mxu0 0
        %7327 = vmatpush1.bf16.msra.mxu0 %v7268
        %7328 = vmatprep.subr.bf16.mxu0 0
        %7329 = vmatpush1.bf16.msra.mxu0 %v7269
        %7330 = vmatprep.subr.bf16.mxu0 0
        %7331 = vmatpush1.bf16.msra.mxu0 %v7270
        %7332 = vmatprep.subr.bf16.mxu0 0
        %7333 = vmatpush1.bf16.msra.mxu0 %v7271
        %7334 = vmatprep.subr.bf16.mxu0 0
        %7335 = vmatpush1.bf16.msra.mxu0 %v7272
        %7336 = vmatprep.subr.bf16.mxu0 0
        %7337 = vmatpush1.bf16.msra.mxu0 0
        %7338 = vmatprep.subr.bf16.mxu0 0
        %7339 = vmatpush1.bf16.msra.mxu0 0
        %7340 = vmatprep.subr.bf16.mxu0 0
        %7341 = vmatpush1.bf16.msra.mxu0 0
        %7342 = vmatprep.subr.bf16.mxu0 0
        %7343 = vmatpush1.bf16.msra.mxu0 0
        %7344 = vmatprep.subr.bf16.mxu0 0
        %7345 = vmatpush1.bf16.msra.mxu0 0
        %7346 = vmatprep.subr.bf16.mxu0 0
        %7347 = vmatpush1.bf16.msra.mxu0 0
        %7348 = vmatprep.subr.bf16.mxu0 0
        %7349 = vmatpush1.bf16.msra.mxu0 0
        %7350 = vmatprep.subr.bf16.mxu0 0
        %7351 = vmatpush1.bf16.msra.mxu0 0
        %7352 = vmatprep.subr.bf16.mxu0 0
        %7353 = vmatpush1.bf16.msra.mxu0 0
        %7354 = vmatprep.subr.bf16.mxu0 0
        %7355 = vmatpush1.bf16.msra.mxu0 0
        %7356 = vmatprep.mubr.bf16.mxu0 0
        %7357 = vmatmul.mubr.bf16.gmra.mrb[0].mxu0 %v7280
        %v7358 = vpop.f32.mrb[0].mxu0
        %v7359 = vadd.f32 0.0, %v7358
        %v7360 = vpop.f32.mrb[0].mxu0
        %v7361 = vpop.f32.mrb[0].mxu0
        %v7362 = vadd.f32 0.0, %v7361
        %v7363 = vpop.f32.mrb[0].mxu0
        %7364 = vmatprep.mubr.bf16.mxu0 0
        %7365 = vmatmul.mubr.bf16.gmra.mrb[0].mxu0 %v7283
        %v7366 = vpop.f32.mrb[0].mxu0
        %v7367 = vadd.f32 0.0, %v7366
        %v7368 = vpop.f32.mrb[0].mxu0
        %v7369 = vpop.f32.mrb[0].mxu0
        %v7370 = vadd.f32 0.0, %v7369
        %v7371 = vpop.f32.mrb[0].mxu0
        %7372 = vmatprep.mubr.bf16.mxu0 0
        %7373 = vmatmul.mubr.bf16.gmra.mrb[0].mxu0 %v7286
        %v7374 = vpop.f32.mrb[0].mxu0
        %v7375 = vadd.f32 0.0, %v7374
        %v7376 = vpop.f32.mrb[0].mxu0
        %v7377 = vpop.f32.mrb[0].mxu0
        %v7378 = vadd.f32 0.0, %v7377
        %v7379 = vpop.f32.mrb[0].mxu0
        %7380 = vmatprep.mubr.bf16.mxu0 0
        %7381 = vmatmul.mubr.bf16.gmra.mrb[0].mxu0 %v7289
        %v7382 = vpop.f32.mrb[0].mxu0
        %v7383 = vadd.f32 0.0, %v7382
        %v7384 = vpop.f32.mrb[0].mxu0
        %v7385 = vpop.f32.mrb[0].mxu0
        %v7386 = vadd.f32 0.0, %v7385
        %v7387 = vpop.f32.mrb[0].mxu0
        %7388 = vmatprep.mubr.bf16.mxu0 0
        %7389 = vmatmul.mubr.bf16.gmra.mrb[0].mxu0 %v7292
        %v7390 = vpop.f32.mrb[0].mxu0
        %v7391 = vadd.f32 0.0, %v7390
        %v7392 = vpop.f32.mrb[0].mxu0
        %v7393 = vpop.f32.mrb[0].mxu0
        %v7394 = vadd.f32 0.0, %v7393
        %v7395 = vpop.f32.mrb[0].mxu0
        %7396 = vmatprep.mubr.bf16.mxu0 0
        %7397 = vmatmul.mubr.bf16.gmra.mrb[0].mxu0 %v7295
        %v7398 = vpop.f32.mrb[0].mxu0
        %v7399 = vadd.f32 0.0, %v7398
        %v7400 = vpop.f32.mrb[0].mxu0
        %v7401 = vpop.f32.mrb[0].mxu0
        %v7402 = vadd.f32 0.0, %v7401
        %v7403 = vpop.f32.mrb[0].mxu0
        %7404 = vmatprep.mubr.bf16.mxu0 0
        %7405 = vmatmul.mubr.bf16.gmra.mrb[0].mxu0 %v7298
        %v7406 = vpop.f32.mrb[0].mxu0
        %v7407 = vadd.f32 0.0, %v7406
        %v7408 = vpop.f32.mrb[0].mxu0
        %v7409 = vpop.f32.mrb[0].mxu0
        %v7410 = vadd.f32 0.0, %v7409
        %v7411 = vpop.f32.mrb[0].mxu0
        %7412 = vmatprep.mubr.bf16.mxu0 0
        %7413 = vmatmul.mubr.bf16.gmra.mrb[0].mxu0 %v7301
        %v7414 = vpop.f32.mrb[0].mxu0
        %v7415 = vadd.f32 0.0, %v7414
        %v7416 = vpop.f32.mrb[0].mxu0
        %v7417 = vpop.f32.mrb[0].mxu0
        %v7418 = vadd.f32 0.0, %v7417
        %v7419 = vpop.f32.mrb[0].mxu0
        %7420 = vmatprep.mubr.bf16.mxu0 0
        %7421 = vmatmul.mubr.bf16.gmra.mrb[0].mxu0 %v7304
        %v7422 = vpop.f32.mrb[0].mxu0
        %v7423 = vadd.f32 0.0, %v7422
        %v7424 = vpop.f32.mrb[0].mxu0
        %v7425 = vpop.f32.mrb[0].mxu0
        %v7426 = vadd.f32 0.0, %v7425
        %v7427 = vpop.f32.mrb[0].mxu0
        %7428 = vmatprep.mubr.bf16.mxu0 0
        %7429 = vmatmul.mubr.bf16.gmra.mrb[0].mxu0 %v7307
        %v7430 = vpop.f32.mrb[0].mxu0
        %v7431 = vadd.f32 0.0, %v7430
        %v7432 = vpop.f32.mrb[0].mxu0
        %v7433 = vpop.f32.mrb[0].mxu0
        %v7434 = vadd.f32 0.0, %v7433
        %v7435 = vpop.f32.mrb[0].mxu0
        %7436 = vmatprep.mubr.bf16.mxu0 0
        %7437 = vmatmul.mubr.bf16.gmra.mrb[0].mxu0 %v7310
        %v7438 = vpop.f32.mrb[0].mxu0
        %v7439 = vadd.f32 0.0, %v7438
        %v7440 = vpop.f32.mrb[0].mxu0
        %v7441 = vpop.f32.mrb[0].mxu0
        %v7442 = vadd.f32 0.0, %v7441
        %v7443 = vpop.f32.mrb[0].mxu0
        %7444 = vmatprep.mubr.bf16.mxu0 0
        %7445 = vmatmul.mubr.bf16.gmra.mrb[0].mxu0 %v7313
        %v7446 = vpop.f32.mrb[0].mxu0
        %v7447 = vadd.f32 0.0, %v7446
        %v7448 = vpop.f32.mrb[0].mxu0
        %v7449 = vpop.f32.mrb[0].mxu0
        %v7450 = vadd.f32 0.0, %v7449
        %v7451 = vpop.f32.mrb[0].mxu0
        %7452 = vmatprep.mubr.bf16.mxu0 0
        %7453 = vmatmul.mubr.bf16.gmra.mrb[0].mxu0 %v7316
        %v7454 = vpop.f32.mrb[0].mxu0
        %v7455 = vadd.f32 0.0, %v7454
        %v7456 = vpop.f32.mrb[0].mxu0
        %v7457 = vpop.f32.mrb[0].mxu0
        %v7458 = vadd.f32 0.0, %v7457
        %v7459 = vpop.f32.mrb[0].mxu0
        %7460 = vmatprep.mubr.bf16.mxu0 0
        %7461 = vmatmul.mubr.bf16.gmra.mrb[0].mxu0 %v7319
        %v7462 = vpop.f32.mrb[0].mxu0
        %v7463 = vadd.f32 0.0, %v7462
        %v7464 = vpop.f32.mrb[0].mxu0
        %v7465 = vpop.f32.mrb[0].mxu0
        %v7466 = vadd.f32 0.0, %v7465
        %v7467 = vpop.f32.mrb[0].mxu0
        %7468 = vmatprep.mubr.bf16.mxu0 0
        %7469 = vmatmul.mubr.bf16.gmra.mrb[0].mxu0 %v7322
        %v7470 = vpop.f32.mrb[0].mxu0
        %v7471 = vadd.f32 0.0, %v7470
        %v7472 = vpop.f32.mrb[0].mxu0
        %v7473 = vpop.f32.mrb[0].mxu0
        %v7474 = vadd.f32 0.0, %v7473
        %v7475 = vpop.f32.mrb[0].mxu0
        %7476 = vdwg.mxu0
        %v7477 = vadd.f32 %v7081, %v7359
        %v7478 = vadd.f32 %v7084, %v7362
        %v7479 = vadd.f32 %v7089, %v7367
        %v7480 = vadd.f32 %v7092, %v7370
        %v7481 = vadd.f32 %v7097, %v7375
        %v7482 = vadd.f32 %v7100, %v7378
        %v7483 = vadd.f32 %v7105, %v7383
        %v7484 = vadd.f32 %v7108, %v7386
        %v7485 = vadd.f32 %v7113, %v7391
        %v7486 = vadd.f32 %v7116, %v7394
        %v7487 = vadd.f32 %v7121, %v7399
        %v7488 = vadd.f32 %v7124, %v7402
        %v7489 = vadd.f32 %v7129, %v7407
        %v7490 = vadd.f32 %v7132, %v7410
        %v7491 = vadd.f32 %v7137, %v7415
        %v7492 = vadd.f32 %v7140, %v7418
        %v7493 = vadd.f32 %v7145, %v7423
        %v7494 = vadd.f32 %v7148, %v7426
        %v7495 = vadd.f32 %v7153, %v7431
        %v7496 = vadd.f32 %v7156, %v7434
        %v7497 = vadd.f32 %v7161, %v7439
        %v7498 = vadd.f32 %v7164, %v7442
        %v7499 = vadd.f32 %v7169, %v7447
        %v7500 = vadd.f32 %v7172, %v7450
        %v7501 = vadd.f32 %v7177, %v7455
        %v7502 = vadd.f32 %v7180, %v7458
        %v7503 = vadd.f32 %v7185, %v7463
        %v7504 = vadd.f32 %v7188, %v7466
        %v7505 = vadd.f32 %v7193, %v7471
        %v7506 = vadd.f32 %v7196, %v7474
        %s7507 = scalar_lea.vmem %s6, 144
        %v7508 = vld [vmem:[%s7507] sm:$0xf]
        %v7509 = vld [vmem:[%s7507 + $0x4] sm:$0xf]
        %v7510 = vld [vmem:[%s7507 + $0x8] sm:$0xf]
        %v7511 = vld [vmem:[%s7507 + $0xc] sm:$0xf]
        %v7512 = vld [vmem:[%s7507 + $0x10] sm:$0xf]
        %v7513 = vld [vmem:[%s7507 + $0x14] sm:$0xf]
        %v7514 = vld [vmem:[%s7507 + $0x18] sm:$0xf]
        %v7515 = vld [vmem:[%s7507 + $0x1c] sm:$0xf]
        %v7516 = vld [vmem:[%s7507 + $0x20] sm:$0xf]
        %v7517 = vld [vmem:[%s7507 + $0x24] sm:$0xf]
        %v7518 = vld [vmem:[%s7507 + $0x28] sm:$0xf]
        %v7519 = vld [vmem:[%s7507 + $0x2c] sm:$0xf]
        %vm7520 = vcmask 1044480
        %v7521 = vrot.slane %v6643, 3
        %v7522 = vrot.slane %v6644, 3
        %v7523 = vsel %vm7520, %v7521, %v7522
        %v7524 = vrot.slane %v6645, 3
        %v7525 = vsel %vm7520, %v7522, %v7524
        %v7526 = vrot.slane %v6646, 3
        %v7527 = vsel %vm7520, %v7524, %v7526
        %v7528 = vrot.slane %v6647, 3
        %v7529 = vsel %vm7520, %v7526, %v7528
        %v7530 = vrot.slane %v6648, 3
        %v7531 = vsel %vm7520, %v7528, %v7530
        %v7532 = vrot.slane %v6649, 3
        %v7533 = vsel %vm7520, %v7530, %v7532
        %v7534 = vrot.slane %v6650, 3
        %v7535 = vsel %vm7520, %v7532, %v7534
        %v7536 = vrot.slane %v6651, 3
        %v7537 = vsel %vm7520, %v7534, %v7536
        %v7538 = vrot.slane %v6652, 3
        %v7539 = vsel %vm7520, %v7536, %v7538
        %v7540 = vrot.slane %v6653, 3
        %v7541 = vsel %vm7520, %v7538, %v7540
        %v7542 = vrot.slane %v6654, 3
        %v7543 = vsel %vm7520, %v7540, %v7542
        %v7544 = vrot.slane %v6655, 3
        %v7545 = vsel %vm7520, %v7542, %v7544
        %v7546 = vrot.slane %v6656, 3
        %v7547 = vsel %vm7520, %v7544, %v7546
        %v7548 = vrot.slane %v6657, 3
        %v7549 = vsel %vm7520, %v7546, %v7548
        %v7550 = vrot.slane %v6658, 3
        %v7551 = vsel %vm7520, %v7548, %v7550
        %v7564 = vunpack.c.l.b16 %v7508
        %v7565 = vunpack.c.l.b16 %v7509
        %v7566 = vunpack.c.l.b16 %v7510
        %v7567 = vunpack.c.l.b16 %v7511
        %v7568 = vunpack.c.l.b16 %v7512
        %v7569 = vunpack.c.l.b16 %v7513
        %v7570 = vunpack.c.l.b16 %v7514
        %v7571 = vunpack.c.l.b16 %v7515
        %v7572 = vunpack.c.l.b16 %v7516
        %v7573 = vunpack.c.l.b16 %v7517
        %v7574 = vunpack.c.l.b16 %v7518
        %v7575 = vunpack.c.l.b16 %v7519
        %v7576 = vpack.c.b16 %v7565, %v7564
        %v7577 = vpack.c.b16 %v7567, %v7566
        %v7578 = vpack.c.b16 %v7569, %v7568
        %v7579 = vpack.c.b16 %v7571, %v7570
        %v7580 = vpack.c.b16 %v7573, %v7572
        %v7581 = vpack.c.b16 %v7575, %v7574
        %v7589 = vsel %vm794, %v7523, 0
        %v7592 = vsel %vm794, %v7525, 0
        %v7595 = vsel %vm794, %v7527, 0
        %v7598 = vsel %vm794, %v7529, 0
        %v7601 = vsel %vm794, %v7531, 0
        %v7604 = vsel %vm794, %v7533, 0
        %v7607 = vsel %vm794, %v7535, 0
        %v7610 = vsel %vm794, %v7537, 0
        %v7613 = vsel %vm794, %v7539, 0
        %v7616 = vsel %vm794, %v7541, 0
        %v7619 = vsel %vm794, %v7543, 0
        %v7622 = vsel %vm794, %v7545, 0
        %v7625 = vsel %vm794, %v7547, 0
        %v7628 = vsel %vm794, %v7549, 0
        %v7631 = vsel %vm794, %v7551, 0
        %7633 = vmatprep.subr.bf16.mxu0 0
        %7634 = vmatpush1.bf16.msra.mxu0 %v7576
        %7635 = vmatprep.subr.bf16.mxu0 0
        %7636 = vmatpush1.bf16.msra.mxu0 %v7577
        %7637 = vmatprep.subr.bf16.mxu0 0
        %7638 = vmatpush1.bf16.msra.mxu0 %v7578
        %7639 = vmatprep.subr.bf16.mxu0 0
        %7640 = vmatpush1.bf16.msra.mxu0 %v7579
        %7641 = vmatprep.subr.bf16.mxu0 0
        %7642 = vmatpush1.bf16.msra.mxu0 %v7580
        %7643 = vmatprep.subr.bf16.mxu0 0
        %7644 = vmatpush1.bf16.msra.mxu0 %v7581
        %7645 = vmatprep.subr.bf16.mxu0 0
        %7646 = vmatpush1.bf16.msra.mxu0 0
        %7647 = vmatprep.subr.bf16.mxu0 0
        %7648 = vmatpush1.bf16.msra.mxu0 0
        %7649 = vmatprep.subr.bf16.mxu0 0
        %7650 = vmatpush1.bf16.msra.mxu0 0
        %7651 = vmatprep.subr.bf16.mxu0 0
        %7652 = vmatpush1.bf16.msra.mxu0 0
        %7653 = vmatprep.subr.bf16.mxu0 0
        %7654 = vmatpush1.bf16.msra.mxu0 0
        %7655 = vmatprep.subr.bf16.mxu0 0
        %7656 = vmatpush1.bf16.msra.mxu0 0
        %7657 = vmatprep.subr.bf16.mxu0 0
        %7658 = vmatpush1.bf16.msra.mxu0 0
        %7659 = vmatprep.subr.bf16.mxu0 0
        %7660 = vmatpush1.bf16.msra.mxu0 0
        %7661 = vmatprep.subr.bf16.mxu0 0
        %7662 = vmatpush1.bf16.msra.mxu0 0
        %7663 = vmatprep.subr.bf16.mxu0 0
        %7664 = vmatpush1.bf16.msra.mxu0 0
        %7665 = vmatprep.mubr.bf16.mxu0 0
        %7666 = vmatmul.mubr.bf16.gmra.mrb[0].mxu0 %v7589
        %v7667 = vpop.f32.mrb[0].mxu0
        %v7668 = vadd.f32 0.0, %v7667
        %v7669 = vpop.f32.mrb[0].mxu0
        %v7670 = vpop.f32.mrb[0].mxu0
        %v7671 = vadd.f32 0.0, %v7670
        %v7672 = vpop.f32.mrb[0].mxu0
        %7673 = vmatprep.mubr.bf16.mxu0 0
        %7674 = vmatmul.mubr.bf16.gmra.mrb[0].mxu0 %v7592
        %v7675 = vpop.f32.mrb[0].mxu0
        %v7676 = vadd.f32 0.0, %v7675
        %v7677 = vpop.f32.mrb[0].mxu0
        %v7678 = vpop.f32.mrb[0].mxu0
        %v7679 = vadd.f32 0.0, %v7678
        %v7680 = vpop.f32.mrb[0].mxu0
        %7681 = vmatprep.mubr.bf16.mxu0 0
        %7682 = vmatmul.mubr.bf16.gmra.mrb[0].mxu0 %v7595
        %v7683 = vpop.f32.mrb[0].mxu0
        %v7684 = vadd.f32 0.0, %v7683
        %v7685 = vpop.f32.mrb[0].mxu0
        %v7686 = vpop.f32.mrb[0].mxu0
        %v7687 = vadd.f32 0.0, %v7686
        %v7688 = vpop.f32.mrb[0].mxu0
        %7689 = vmatprep.mubr.bf16.mxu0 0
        %7690 = vmatmul.mubr.bf16.gmra.mrb[0].mxu0 %v7598
        %v7691 = vpop.f32.mrb[0].mxu0
        %v7692 = vadd.f32 0.0, %v7691
        %v7693 = vpop.f32.mrb[0].mxu0
        %v7694 = vpop.f32.mrb[0].mxu0
        %v7695 = vadd.f32 0.0, %v7694
        %v7696 = vpop.f32.mrb[0].mxu0
        %7697 = vmatprep.mubr.bf16.mxu0 0
        %7698 = vmatmul.mubr.bf16.gmra.mrb[0].mxu0 %v7601
        %v7699 = vpop.f32.mrb[0].mxu0
        %v7700 = vadd.f32 0.0, %v7699
        %v7701 = vpop.f32.mrb[0].mxu0
        %v7702 = vpop.f32.mrb[0].mxu0
        %v7703 = vadd.f32 0.0, %v7702
        %v7704 = vpop.f32.mrb[0].mxu0
        %7705 = vmatprep.mubr.bf16.mxu0 0
        %7706 = vmatmul.mubr.bf16.gmra.mrb[0].mxu0 %v7604
        %v7707 = vpop.f32.mrb[0].mxu0
        %v7708 = vadd.f32 0.0, %v7707
        %v7709 = vpop.f32.mrb[0].mxu0
        %v7710 = vpop.f32.mrb[0].mxu0
        %v7711 = vadd.f32 0.0, %v7710
        %v7712 = vpop.f32.mrb[0].mxu0
        %7713 = vmatprep.mubr.bf16.mxu0 0
        %7714 = vmatmul.mubr.bf16.gmra.mrb[0].mxu0 %v7607
        %v7715 = vpop.f32.mrb[0].mxu0
        %v7716 = vadd.f32 0.0, %v7715
        %v7717 = vpop.f32.mrb[0].mxu0
        %v7718 = vpop.f32.mrb[0].mxu0
        %v7719 = vadd.f32 0.0, %v7718
        %v7720 = vpop.f32.mrb[0].mxu0
        %7721 = vmatprep.mubr.bf16.mxu0 0
        %7722 = vmatmul.mubr.bf16.gmra.mrb[0].mxu0 %v7610
        %v7723 = vpop.f32.mrb[0].mxu0
        %v7724 = vadd.f32 0.0, %v7723
        %v7725 = vpop.f32.mrb[0].mxu0
        %v7726 = vpop.f32.mrb[0].mxu0
        %v7727 = vadd.f32 0.0, %v7726
        %v7728 = vpop.f32.mrb[0].mxu0
        %7729 = vmatprep.mubr.bf16.mxu0 0
        %7730 = vmatmul.mubr.bf16.gmra.mrb[0].mxu0 %v7613
        %v7731 = vpop.f32.mrb[0].mxu0
        %v7732 = vadd.f32 0.0, %v7731
        %v7733 = vpop.f32.mrb[0].mxu0
        %v7734 = vpop.f32.mrb[0].mxu0
        %v7735 = vadd.f32 0.0, %v7734
        %v7736 = vpop.f32.mrb[0].mxu0
        %7737 = vmatprep.mubr.bf16.mxu0 0
        %7738 = vmatmul.mubr.bf16.gmra.mrb[0].mxu0 %v7616
        %v7739 = vpop.f32.mrb[0].mxu0
        %v7740 = vadd.f32 0.0, %v7739
        %v7741 = vpop.f32.mrb[0].mxu0
        %v7742 = vpop.f32.mrb[0].mxu0
        %v7743 = vadd.f32 0.0, %v7742
        %v7744 = vpop.f32.mrb[0].mxu0
        %7745 = vmatprep.mubr.bf16.mxu0 0
        %7746 = vmatmul.mubr.bf16.gmra.mrb[0].mxu0 %v7619
        %v7747 = vpop.f32.mrb[0].mxu0
        %v7748 = vadd.f32 0.0, %v7747
        %v7749 = vpop.f32.mrb[0].mxu0
        %v7750 = vpop.f32.mrb[0].mxu0
        %v7751 = vadd.f32 0.0, %v7750
        %v7752 = vpop.f32.mrb[0].mxu0
        %7753 = vmatprep.mubr.bf16.mxu0 0
        %7754 = vmatmul.mubr.bf16.gmra.mrb[0].mxu0 %v7622
        %v7755 = vpop.f32.mrb[0].mxu0
        %v7756 = vadd.f32 0.0, %v7755
        %v7757 = vpop.f32.mrb[0].mxu0
        %v7758 = vpop.f32.mrb[0].mxu0
        %v7759 = vadd.f32 0.0, %v7758
        %v7760 = vpop.f32.mrb[0].mxu0
        %7761 = vmatprep.mubr.bf16.mxu0 0
        %7762 = vmatmul.mubr.bf16.gmra.mrb[0].mxu0 %v7625
        %v7763 = vpop.f32.mrb[0].mxu0
        %v7764 = vadd.f32 0.0, %v7763
        %v7765 = vpop.f32.mrb[0].mxu0
        %v7766 = vpop.f32.mrb[0].mxu0
        %v7767 = vadd.f32 0.0, %v7766
        %v7768 = vpop.f32.mrb[0].mxu0
        %7769 = vmatprep.mubr.bf16.mxu0 0
        %7770 = vmatmul.mubr.bf16.gmra.mrb[0].mxu0 %v7628
        %v7771 = vpop.f32.mrb[0].mxu0
        %v7772 = vadd.f32 0.0, %v7771
        %v7773 = vpop.f32.mrb[0].mxu0
        %v7774 = vpop.f32.mrb[0].mxu0
        %v7775 = vadd.f32 0.0, %v7774
        %v7776 = vpop.f32.mrb[0].mxu0
        %7777 = vmatprep.mubr.bf16.mxu0 0
        %7778 = vmatmul.mubr.bf16.gmra.mrb[0].mxu0 %v7631
        %v7779 = vpop.f32.mrb[0].mxu0
        %v7780 = vadd.f32 0.0, %v7779
        %v7781 = vpop.f32.mrb[0].mxu0
        %v7782 = vpop.f32.mrb[0].mxu0
        %v7783 = vadd.f32 0.0, %v7782
        %v7784 = vpop.f32.mrb[0].mxu0
        %7785 = vdwg.mxu0
        %v7786 = vadd.f32 %v7477, %v7668
        %v7787 = vadd.f32 %v7478, %v7671
        %v7788 = vadd.f32 %v7479, %v7676
        %v7789 = vadd.f32 %v7480, %v7679
        %v7790 = vadd.f32 %v7481, %v7684
        %v7791 = vadd.f32 %v7482, %v7687
        %v7792 = vadd.f32 %v7483, %v7692
        %v7793 = vadd.f32 %v7484, %v7695
        %v7794 = vadd.f32 %v7485, %v7700
        %v7795 = vadd.f32 %v7486, %v7703
        %v7796 = vadd.f32 %v7487, %v7708
        %v7797 = vadd.f32 %v7488, %v7711
        %v7798 = vadd.f32 %v7489, %v7716
        %v7799 = vadd.f32 %v7490, %v7719
        %v7800 = vadd.f32 %v7491, %v7724
        %v7801 = vadd.f32 %v7492, %v7727
        %v7802 = vadd.f32 %v7493, %v7732
        %v7803 = vadd.f32 %v7494, %v7735
        %v7804 = vadd.f32 %v7495, %v7740
        %v7805 = vadd.f32 %v7496, %v7743
        %v7806 = vadd.f32 %v7497, %v7748
        %v7807 = vadd.f32 %v7498, %v7751
        %v7808 = vadd.f32 %v7499, %v7756
        %v7809 = vadd.f32 %v7500, %v7759
        %v7810 = vadd.f32 %v7501, %v7764
        %v7811 = vadd.f32 %v7502, %v7767
        %v7812 = vadd.f32 %v7503, %v7772
        %v7813 = vadd.f32 %v7504, %v7775
        %v7814 = vadd.f32 %v7505, %v7780
        %v7815 = vadd.f32 %v7506, %v7783
        %s7816 = scalar_lea.vmem %s6, 192
        %v7817 = vld [vmem:[%s7816] sm:$0xf]
        %v7818 = vld [vmem:[%s7816 + $0x4] sm:$0xf]
        %v7819 = vld [vmem:[%s7816 + $0x8] sm:$0xf]
        %v7820 = vld [vmem:[%s7816 + $0xc] sm:$0xf]
        %v7821 = vld [vmem:[%s7816 + $0x10] sm:$0xf]
        %v7822 = vld [vmem:[%s7816 + $0x14] sm:$0xf]
        %v7823 = vld [vmem:[%s7816 + $0x18] sm:$0xf]
        %v7824 = vld [vmem:[%s7816 + $0x1c] sm:$0xf]
        %v7825 = vld [vmem:[%s7816 + $0x20] sm:$0xf]
        %v7826 = vld [vmem:[%s7816 + $0x24] sm:$0xf]
        %v7827 = vld [vmem:[%s7816 + $0x28] sm:$0xf]
        %v7828 = vld [vmem:[%s7816 + $0x2c] sm:$0xf]
        %vm7829 = vcmask 1043456
        %v7830 = vrot.slane %v6643, 4
        %v7831 = vrot.slane %v6644, 4
        %v7832 = vsel %vm7829, %v7830, %v7831
        %v7833 = vrot.slane %v6645, 4
        %v7834 = vsel %vm7829, %v7831, %v7833
        %v7835 = vrot.slane %v6646, 4
        %v7836 = vsel %vm7829, %v7833, %v7835
        %v7837 = vrot.slane %v6647, 4
        %v7838 = vsel %vm7829, %v7835, %v7837
        %v7839 = vrot.slane %v6648, 4
        %v7840 = vsel %vm7829, %v7837, %v7839
        %v7841 = vrot.slane %v6649, 4
        %v7842 = vsel %vm7829, %v7839, %v7841
        %v7843 = vrot.slane %v6650, 4
        %v7844 = vsel %vm7829, %v7841, %v7843
        %v7845 = vrot.slane %v6651, 4
        %v7846 = vsel %vm7829, %v7843, %v7845
        %v7847 = vrot.slane %v6652, 4
        %v7848 = vsel %vm7829, %v7845, %v7847
        %v7849 = vrot.slane %v6653, 4
        %v7850 = vsel %vm7829, %v7847, %v7849
        %v7851 = vrot.slane %v6654, 4
        %v7852 = vsel %vm7829, %v7849, %v7851
        %v7853 = vrot.slane %v6655, 4
        %v7854 = vsel %vm7829, %v7851, %v7853
        %v7855 = vrot.slane %v6656, 4
        %v7856 = vsel %vm7829, %v7853, %v7855
        %v7857 = vrot.slane %v6657, 4
        %v7858 = vsel %vm7829, %v7855, %v7857
        %v7859 = vrot.slane %v6658, 4
        %v7860 = vsel %vm7829, %v7857, %v7859
        %v7873 = vunpack.c.l.b16 %v7817
        %v7874 = vunpack.c.l.b16 %v7818
        %v7875 = vunpack.c.l.b16 %v7819
        %v7876 = vunpack.c.l.b16 %v7820
        %v7877 = vunpack.c.l.b16 %v7821
        %v7878 = vunpack.c.l.b16 %v7822
        %v7879 = vunpack.c.l.b16 %v7823
        %v7880 = vunpack.c.l.b16 %v7824
        %v7881 = vunpack.c.l.b16 %v7825
        %v7882 = vunpack.c.l.b16 %v7826
        %v7883 = vunpack.c.l.b16 %v7827
        %v7884 = vunpack.c.l.b16 %v7828
        %v7885 = vpack.c.b16 %v7874, %v7873
        %v7886 = vpack.c.b16 %v7876, %v7875
        %v7887 = vpack.c.b16 %v7878, %v7877
        %v7888 = vpack.c.b16 %v7880, %v7879
        %v7889 = vpack.c.b16 %v7882, %v7881
        %v7890 = vpack.c.b16 %v7884, %v7883
        %v7898 = vsel %vm794, %v7832, 0
        %v7901 = vsel %vm794, %v7834, 0
        %v7904 = vsel %vm794, %v7836, 0
        %v7907 = vsel %vm794, %v7838, 0
        %v7910 = vsel %vm794, %v7840, 0
        %v7913 = vsel %vm794, %v7842, 0
        %v7916 = vsel %vm794, %v7844, 0
        %v7919 = vsel %vm794, %v7846, 0
        %v7922 = vsel %vm794, %v7848, 0
        %v7925 = vsel %vm794, %v7850, 0
        %v7928 = vsel %vm794, %v7852, 0
        %v7931 = vsel %vm794, %v7854, 0
        %v7934 = vsel %vm794, %v7856, 0
        %v7937 = vsel %vm794, %v7858, 0
        %v7940 = vsel %vm794, %v7860, 0
        %7942 = vmatprep.subr.bf16.mxu0 0
        %7943 = vmatpush1.bf16.msra.mxu0 %v7885
        %7944 = vmatprep.subr.bf16.mxu0 0
        %7945 = vmatpush1.bf16.msra.mxu0 %v7886
        %7946 = vmatprep.subr.bf16.mxu0 0
        %7947 = vmatpush1.bf16.msra.mxu0 %v7887
        %7948 = vmatprep.subr.bf16.mxu0 0
        %7949 = vmatpush1.bf16.msra.mxu0 %v7888
        %7950 = vmatprep.subr.bf16.mxu0 0
        %7951 = vmatpush1.bf16.msra.mxu0 %v7889
        %7952 = vmatprep.subr.bf16.mxu0 0
        %7953 = vmatpush1.bf16.msra.mxu0 %v7890
        %7954 = vmatprep.subr.bf16.mxu0 0
        %7955 = vmatpush1.bf16.msra.mxu0 0
        %7956 = vmatprep.subr.bf16.mxu0 0
        %7957 = vmatpush1.bf16.msra.mxu0 0
        %7958 = vmatprep.subr.bf16.mxu0 0
        %7959 = vmatpush1.bf16.msra.mxu0 0
        %7960 = vmatprep.subr.bf16.mxu0 0
        %7961 = vmatpush1.bf16.msra.mxu0 0
        %7962 = vmatprep.subr.bf16.mxu0 0
        %7963 = vmatpush1.bf16.msra.mxu0 0
        %7964 = vmatprep.subr.bf16.mxu0 0
        %7965 = vmatpush1.bf16.msra.mxu0 0
        %7966 = vmatprep.subr.bf16.mxu0 0
        %7967 = vmatpush1.bf16.msra.mxu0 0
        %7968 = vmatprep.subr.bf16.mxu0 0
        %7969 = vmatpush1.bf16.msra.mxu0 0
        %7970 = vmatprep.subr.bf16.mxu0 0
        %7971 = vmatpush1.bf16.msra.mxu0 0
        %7972 = vmatprep.subr.bf16.mxu0 0
        %7973 = vmatpush1.bf16.msra.mxu0 0
        %7974 = vmatprep.mubr.bf16.mxu0 0
        %7975 = vmatmul.mubr.bf16.gmra.mrb[0].mxu0 %v7898
        %v7976 = vpop.f32.mrb[0].mxu0
        %v7977 = vadd.f32 0.0, %v7976
        %v7978 = vpop.f32.mrb[0].mxu0
        %v7979 = vpop.f32.mrb[0].mxu0
        %v7980 = vadd.f32 0.0, %v7979
        %v7981 = vpop.f32.mrb[0].mxu0
        %7982 = vmatprep.mubr.bf16.mxu0 0
        %7983 = vmatmul.mubr.bf16.gmra.mrb[0].mxu0 %v7901
        %v7984 = vpop.f32.mrb[0].mxu0
        %v7985 = vadd.f32 0.0, %v7984
        %v7986 = vpop.f32.mrb[0].mxu0
        %v7987 = vpop.f32.mrb[0].mxu0
        %v7988 = vadd.f32 0.0, %v7987
        %v7989 = vpop.f32.mrb[0].mxu0
        %7990 = vmatprep.mubr.bf16.mxu0 0
        %7991 = vmatmul.mubr.bf16.gmra.mrb[0].mxu0 %v7904
        %v7992 = vpop.f32.mrb[0].mxu0
        %v7993 = vadd.f32 0.0, %v7992
        %v7994 = vpop.f32.mrb[0].mxu0
        %v7995 = vpop.f32.mrb[0].mxu0
        %v7996 = vadd.f32 0.0, %v7995
        %v7997 = vpop.f32.mrb[0].mxu0
        %7998 = vmatprep.mubr.bf16.mxu0 0
        %7999 = vmatmul.mubr.bf16.gmra.mrb[0].mxu0 %v7907
        %v8000 = vpop.f32.mrb[0].mxu0
        %v8001 = vadd.f32 0.0, %v8000
        %v8002 = vpop.f32.mrb[0].mxu0
        %v8003 = vpop.f32.mrb[0].mxu0
        %v8004 = vadd.f32 0.0, %v8003
        %v8005 = vpop.f32.mrb[0].mxu0
        %8006 = vmatprep.mubr.bf16.mxu0 0
        %8007 = vmatmul.mubr.bf16.gmra.mrb[0].mxu0 %v7910
        %v8008 = vpop.f32.mrb[0].mxu0
        %v8009 = vadd.f32 0.0, %v8008
        %v8010 = vpop.f32.mrb[0].mxu0
        %v8011 = vpop.f32.mrb[0].mxu0
        %v8012 = vadd.f32 0.0, %v8011
        %v8013 = vpop.f32.mrb[0].mxu0
        %8014 = vmatprep.mubr.bf16.mxu0 0
        %8015 = vmatmul.mubr.bf16.gmra.mrb[0].mxu0 %v7913
        %v8016 = vpop.f32.mrb[0].mxu0
        %v8017 = vadd.f32 0.0, %v8016
        %v8018 = vpop.f32.mrb[0].mxu0
        %v8019 = vpop.f32.mrb[0].mxu0
        %v8020 = vadd.f32 0.0, %v8019
        %v8021 = vpop.f32.mrb[0].mxu0
        %8022 = vmatprep.mubr.bf16.mxu0 0
        %8023 = vmatmul.mubr.bf16.gmra.mrb[0].mxu0 %v7916
        %v8024 = vpop.f32.mrb[0].mxu0
        %v8025 = vadd.f32 0.0, %v8024
        %v8026 = vpop.f32.mrb[0].mxu0
        %v8027 = vpop.f32.mrb[0].mxu0
        %v8028 = vadd.f32 0.0, %v8027
        %v8029 = vpop.f32.mrb[0].mxu0
        %8030 = vmatprep.mubr.bf16.mxu0 0
        %8031 = vmatmul.mubr.bf16.gmra.mrb[0].mxu0 %v7919
        %v8032 = vpop.f32.mrb[0].mxu0
        %v8033 = vadd.f32 0.0, %v8032
        %v8034 = vpop.f32.mrb[0].mxu0
        %v8035 = vpop.f32.mrb[0].mxu0
        %v8036 = vadd.f32 0.0, %v8035
        %v8037 = vpop.f32.mrb[0].mxu0
        %8038 = vmatprep.mubr.bf16.mxu0 0
        %8039 = vmatmul.mubr.bf16.gmra.mrb[0].mxu0 %v7922
        %v8040 = vpop.f32.mrb[0].mxu0
        %v8041 = vadd.f32 0.0, %v8040
        %v8042 = vpop.f32.mrb[0].mxu0
        %v8043 = vpop.f32.mrb[0].mxu0
        %v8044 = vadd.f32 0.0, %v8043
        %v8045 = vpop.f32.mrb[0].mxu0
        %8046 = vmatprep.mubr.bf16.mxu0 0
        %8047 = vmatmul.mubr.bf16.gmra.mrb[0].mxu0 %v7925
        %v8048 = vpop.f32.mrb[0].mxu0
        %v8049 = vadd.f32 0.0, %v8048
        %v8050 = vpop.f32.mrb[0].mxu0
        %v8051 = vpop.f32.mrb[0].mxu0
        %v8052 = vadd.f32 0.0, %v8051
        %v8053 = vpop.f32.mrb[0].mxu0
        %8054 = vmatprep.mubr.bf16.mxu0 0
        %8055 = vmatmul.mubr.bf16.gmra.mrb[0].mxu0 %v7928
        %v8056 = vpop.f32.mrb[0].mxu0
        %v8057 = vadd.f32 0.0, %v8056
        %v8058 = vpop.f32.mrb[0].mxu0
        %v8059 = vpop.f32.mrb[0].mxu0
        %v8060 = vadd.f32 0.0, %v8059
        %v8061 = vpop.f32.mrb[0].mxu0
        %8062 = vmatprep.mubr.bf16.mxu0 0
        %8063 = vmatmul.mubr.bf16.gmra.mrb[0].mxu0 %v7931
        %v8064 = vpop.f32.mrb[0].mxu0
        %v8065 = vadd.f32 0.0, %v8064
        %v8066 = vpop.f32.mrb[0].mxu0
        %v8067 = vpop.f32.mrb[0].mxu0
        %v8068 = vadd.f32 0.0, %v8067
        %v8069 = vpop.f32.mrb[0].mxu0
        %8070 = vmatprep.mubr.bf16.mxu0 0
        %8071 = vmatmul.mubr.bf16.gmra.mrb[0].mxu0 %v7934
        %v8072 = vpop.f32.mrb[0].mxu0
        %v8073 = vadd.f32 0.0, %v8072
        %v8074 = vpop.f32.mrb[0].mxu0
        %v8075 = vpop.f32.mrb[0].mxu0
        %v8076 = vadd.f32 0.0, %v8075
        %v8077 = vpop.f32.mrb[0].mxu0
        %8078 = vmatprep.mubr.bf16.mxu0 0
        %8079 = vmatmul.mubr.bf16.gmra.mrb[0].mxu0 %v7937
        %v8080 = vpop.f32.mrb[0].mxu0
        %v8081 = vadd.f32 0.0, %v8080
        %v8082 = vpop.f32.mrb[0].mxu0
        %v8083 = vpop.f32.mrb[0].mxu0
        %v8084 = vadd.f32 0.0, %v8083
        %v8085 = vpop.f32.mrb[0].mxu0
        %8086 = vmatprep.mubr.bf16.mxu0 0
        %8087 = vmatmul.mubr.bf16.gmra.mrb[0].mxu0 %v7940
        %v8088 = vpop.f32.mrb[0].mxu0
        %v8089 = vadd.f32 0.0, %v8088
        %v8090 = vpop.f32.mrb[0].mxu0
        %v8091 = vpop.f32.mrb[0].mxu0
        %v8092 = vadd.f32 0.0, %v8091
        %v8093 = vpop.f32.mrb[0].mxu0
        %8094 = vdwg.mxu0
        %v8095 = vadd.f32 %v7786, %v7977
        %v8096 = vadd.f32 %v7787, %v7980
        %v8097 = vadd.f32 %v7788, %v7985
        %v8098 = vadd.f32 %v7789, %v7988
        %v8099 = vadd.f32 %v7790, %v7993
        %v8100 = vadd.f32 %v7791, %v7996
        %v8101 = vadd.f32 %v7792, %v8001
        %v8102 = vadd.f32 %v7793, %v8004
        %v8103 = vadd.f32 %v7794, %v8009
        %v8104 = vadd.f32 %v7795, %v8012
        %v8105 = vadd.f32 %v7796, %v8017
        %v8106 = vadd.f32 %v7797, %v8020
        %v8107 = vadd.f32 %v7798, %v8025
        %v8108 = vadd.f32 %v7799, %v8028
        %v8109 = vadd.f32 %v7800, %v8033
        %v8110 = vadd.f32 %v7801, %v8036
        %v8111 = vadd.f32 %v7802, %v8041
        %v8112 = vadd.f32 %v7803, %v8044
        %v8113 = vadd.f32 %v7804, %v8049
        %v8114 = vadd.f32 %v7805, %v8052
        %v8115 = vadd.f32 %v7806, %v8057
        %v8116 = vadd.f32 %v7807, %v8060
        %v8117 = vadd.f32 %v7808, %v8065
        %v8118 = vadd.f32 %v7809, %v8068
        %v8119 = vadd.f32 %v7810, %v8073
        %v8120 = vadd.f32 %v7811, %v8076
        %v8121 = vadd.f32 %v7812, %v8081
        %v8122 = vadd.f32 %v7813, %v8084
        %v8123 = vadd.f32 %v7814, %v8089
        %v8124 = vadd.f32 %v7815, %v8092
        %v8125 = vld [vmem:[%s7] sm:$0x1]
        %v8127 = vlaneseq
        %v8128 = vshrl.u32 %v8127, 7
        %v8129 = vsub.s32 0, %v8128
        %v8130 = vrot.slane %v8125, %v8129
        %v8132 = vadd.f32 %v8095, %v8130
        %v8133 = vadd.f32 %v8096, %v8130
        %v8134 = vadd.f32 %v8097, %v8130
        %v8135 = vadd.f32 %v8098, %v8130
        %v8136 = vadd.f32 %v8099, %v8130
        %v8137 = vadd.f32 %v8100, %v8130
        %v8138 = vadd.f32 %v8101, %v8130
        %v8139 = vadd.f32 %v8102, %v8130
        %v8140 = vadd.f32 %v8103, %v8130
        %v8141 = vadd.f32 %v8104, %v8130
        %v8142 = vadd.f32 %v8105, %v8130
        %v8143 = vadd.f32 %v8106, %v8130
        %v8144 = vadd.f32 %v8107, %v8130
        %v8145 = vadd.f32 %v8108, %v8130
        %v8146 = vadd.f32 %v8109, %v8130
        %v8147 = vadd.f32 %v8110, %v8130
        %v8148 = vadd.f32 %v8111, %v8130
        %v8149 = vadd.f32 %v8112, %v8130
        %v8150 = vadd.f32 %v8113, %v8130
        %v8151 = vadd.f32 %v8114, %v8130
        %v8152 = vadd.f32 %v8115, %v8130
        %v8153 = vadd.f32 %v8116, %v8130
        %v8154 = vadd.f32 %v8117, %v8130
        %v8155 = vadd.f32 %v8118, %v8130
        %v8156 = vadd.f32 %v8119, %v8130
        %v8157 = vadd.f32 %v8120, %v8130
        %v8158 = vadd.f32 %v8121, %v8130
        %v8159 = vadd.f32 %v8122, %v8130
        %v8160 = vadd.f32 %v8123, %v8130
        %v8161 = vadd.f32 %v8124, %v8130
        %v8162 = vmax.f32 %v8132, 0.0
        %v8163 = vmax.f32 %v8133, 0.0
        %v8164 = vmax.f32 %v8134, 0.0
        %v8165 = vmax.f32 %v8135, 0.0
        %v8166 = vmax.f32 %v8136, 0.0
        %v8167 = vmax.f32 %v8137, 0.0
        %v8168 = vmax.f32 %v8138, 0.0
        %v8169 = vmax.f32 %v8139, 0.0
        %v8170 = vmax.f32 %v8140, 0.0
        %v8171 = vmax.f32 %v8141, 0.0
        %v8172 = vmax.f32 %v8142, 0.0
        %v8173 = vmax.f32 %v8143, 0.0
        %v8174 = vmax.f32 %v8144, 0.0
        %v8175 = vmax.f32 %v8145, 0.0
        %v8176 = vmax.f32 %v8146, 0.0
        %v8177 = vmax.f32 %v8147, 0.0
        %v8178 = vmax.f32 %v8148, 0.0
        %v8179 = vmax.f32 %v8149, 0.0
        %v8180 = vmax.f32 %v8150, 0.0
        %v8181 = vmax.f32 %v8151, 0.0
        %v8182 = vmax.f32 %v8152, 0.0
        %v8183 = vmax.f32 %v8153, 0.0
        %v8184 = vmax.f32 %v8154, 0.0
        %v8185 = vmax.f32 %v8155, 0.0
        %v8186 = vmax.f32 %v8156, 0.0
        %v8187 = vmax.f32 %v8157, 0.0
        %v8188 = vmax.f32 %v8158, 0.0
        %v8189 = vmax.f32 %v8159, 0.0
        %v8190 = vmax.f32 %v8160, 0.0
        %v8191 = vmax.f32 %v8161, 0.0
        %v8192 = vpack.c.bf16 %v8163, %v8162
        %v8193 = vpack.c.bf16 %v8165, %v8164
        %v8194 = vpack.c.bf16 %v8167, %v8166
        %v8195 = vpack.c.bf16 %v8169, %v8168
        %v8196 = vpack.c.bf16 %v8171, %v8170
        %v8197 = vpack.c.bf16 %v8173, %v8172
        %v8198 = vpack.c.bf16 %v8175, %v8174
        %v8199 = vpack.c.bf16 %v8177, %v8176
        %v8200 = vpack.c.bf16 %v8179, %v8178
        %v8201 = vpack.c.bf16 %v8181, %v8180
        %v8202 = vpack.c.bf16 %v8183, %v8182
        %v8203 = vpack.c.bf16 %v8185, %v8184
        %v8204 = vpack.c.bf16 %v8187, %v8186
        %v8205 = vpack.c.bf16 %v8189, %v8188
        %v8206 = vpack.c.bf16 %v8191, %v8190
        %v8207 = vld [vmem:[%s8] sm:$0xf]
        %v8208 = vld [vmem:[%s8 + $0x4] sm:$0xf]
        %v8209 = vld [vmem:[%s8 + $0x8] sm:$0xf]
        %v8210 = vld [vmem:[%s8 + $0xc] sm:$0xf]
        %v8211 = vld [vmem:[%s8 + $0x10] sm:$0xf]
        %v8212 = vld [vmem:[%s8 + $0x14] sm:$0xf]
        %v8213 = vld [vmem:[%s8 + $0x18] sm:$0xf]
        %v8214 = vld [vmem:[%s8 + $0x1c] sm:$0xf]
        %v8215 = vld [vmem:[%s8 + $0x20] sm:$0xf]
        %v8216 = vld [vmem:[%s8 + $0x24] sm:$0xf]
        %v8217 = vld [vmem:[%s8 + $0x28] sm:$0xf]
        %v8218 = vld [vmem:[%s8 + $0x2c] sm:$0xf]
        %v8219 = vld [vmem:[%s8 + $0x30] sm:$0xf]
        %v8220 = vld [vmem:[%s8 + $0x34] sm:$0xf]
        %v8221 = vld [vmem:[%s8 + $0x38] sm:$0xf]
        %v8222 = vld [vmem:[%s8 + $0x3c] sm:$0xf]
        %s8223 = scalar_lea.vmem %s8, 64
        %v8224 = vld [vmem:[%s8223] sm:$0xf]
        %v8225 = vld [vmem:[%s8223 + $0x4] sm:$0xf]
        %v8226 = vld [vmem:[%s8223 + $0x8] sm:$0xf]
        %v8227 = vld [vmem:[%s8223 + $0xc] sm:$0xf]
        %v8228 = vld [vmem:[%s8223 + $0x10] sm:$0xf]
        %v8229 = vld [vmem:[%s8223 + $0x14] sm:$0xf]
        %v8230 = vld [vmem:[%s8223 + $0x18] sm:$0xf]
        %v8231 = vld [vmem:[%s8223 + $0x1c] sm:$0xf]
        %v8232 = vld [vmem:[%s8223 + $0x20] sm:$0xf]
        %v8233 = vld [vmem:[%s8223 + $0x24] sm:$0xf]
        %v8234 = vld [vmem:[%s8223 + $0x28] sm:$0xf]
        %v8235 = vld [vmem:[%s8223 + $0x2c] sm:$0xf]
        %v8236 = vld [vmem:[%s8223 + $0x30] sm:$0xf]
        %v8237 = vld [vmem:[%s8223 + $0x34] sm:$0xf]
        %v8238 = vld [vmem:[%s8223 + $0x38] sm:$0xf]
        %v8239 = vld [vmem:[%s8223 + $0x3c] sm:$0xf]
        %v8255 = vrot.slane %v8192, 1
        %v8256 = vrot.slane %v8193, 1
        %v8257 = vsel %vm1334, %v8255, %v8256
        %v8258 = vrot.slane %v8194, 1
        %v8259 = vsel %vm1334, %v8256, %v8258
        %v8260 = vrot.slane %v8195, 1
        %v8261 = vsel %vm1334, %v8258, %v8260
        %v8262 = vrot.slane %v8196, 1
        %v8263 = vsel %vm1334, %v8260, %v8262
        %v8264 = vrot.slane %v8197, 1
        %v8265 = vsel %vm1334, %v8262, %v8264
        %v8266 = vrot.slane %v8198, 1
        %v8267 = vsel %vm1334, %v8264, %v8266
        %v8268 = vrot.slane %v8199, 1
        %v8269 = vsel %vm1334, %v8266, %v8268
        %v8270 = vrot.slane %v8200, 1
        %v8271 = vsel %vm1334, %v8268, %v8270
        %v8272 = vrot.slane %v8201, 1
        %v8273 = vsel %vm1334, %v8270, %v8272
        %v8274 = vrot.slane %v8202, 1
        %v8275 = vsel %vm1334, %v8272, %v8274
        %v8276 = vrot.slane %v8203, 1
        %v8277 = vsel %vm1334, %v8274, %v8276
        %v8278 = vrot.slane %v8204, 1
        %v8279 = vsel %vm1334, %v8276, %v8278
        %v8280 = vrot.slane %v8205, 1
        %v8281 = vsel %vm1334, %v8278, %v8280
        %v8282 = vrot.slane %v8206, 1
        %v8283 = vsel %vm1334, %v8280, %v8282
        %v8315 = vunpack.c.l.b16 %v8224
        %v8316 = vunpack.c.l.b16 %v8225
        %v8317 = vunpack.c.l.b16 %v8226
        %v8318 = vunpack.c.l.b16 %v8227
        %v8319 = vunpack.c.l.b16 %v8228
        %v8320 = vunpack.c.l.b16 %v8229
        %v8321 = vunpack.c.l.b16 %v8230
        %v8322 = vunpack.c.l.b16 %v8231
        %v8323 = vunpack.c.l.b16 %v8232
        %v8324 = vunpack.c.l.b16 %v8233
        %v8325 = vunpack.c.l.b16 %v8234
        %v8326 = vunpack.c.l.b16 %v8235
        %v8327 = vunpack.c.l.b16 %v8236
        %v8328 = vunpack.c.l.b16 %v8237
        %v8329 = vunpack.c.l.b16 %v8238
        %v8330 = vunpack.c.l.b16 %v8239
        %v8331 = vpack.c.b16 %v8316, %v8315
        %v8332 = vpack.c.b16 %v8318, %v8317
        %v8333 = vpack.c.b16 %v8320, %v8319
        %v8334 = vpack.c.b16 %v8322, %v8321
        %v8335 = vpack.c.b16 %v8324, %v8323
        %v8336 = vpack.c.b16 %v8326, %v8325
        %v8337 = vpack.c.b16 %v8328, %v8327
        %v8338 = vpack.c.b16 %v8330, %v8329
        %8347 = vmatprep.subr.bf16.mxu0 0
        %8348 = vmatpush1.bf16.msra.mxu0 %v8331
        %8349 = vmatprep.subr.bf16.mxu0 0
        %8350 = vmatpush1.bf16.msra.mxu0 %v8332
        %8351 = vmatprep.subr.bf16.mxu0 0
        %8352 = vmatpush1.bf16.msra.mxu0 %v8333
        %8353 = vmatprep.subr.bf16.mxu0 0
        %8354 = vmatpush1.bf16.msra.mxu0 %v8334
        %8355 = vmatprep.subr.bf16.mxu0 0
        %8356 = vmatpush1.bf16.msra.mxu0 %v8335
        %8357 = vmatprep.subr.bf16.mxu0 0
        %8358 = vmatpush1.bf16.msra.mxu0 %v8336
        %8359 = vmatprep.subr.bf16.mxu0 0
        %8360 = vmatpush1.bf16.msra.mxu0 %v8337
        %8361 = vmatprep.subr.bf16.mxu0 0
        %8362 = vmatpush1.bf16.msra.mxu0 %v8338
        %8363 = vmatprep.subr.bf16.mxu0 0
        %8364 = vmatpush1.bf16.msra.mxu0 0
        %8365 = vmatprep.subr.bf16.mxu0 0
        %8366 = vmatpush1.bf16.msra.mxu0 0
        %8367 = vmatprep.subr.bf16.mxu0 0
        %8368 = vmatpush1.bf16.msra.mxu0 0
        %8369 = vmatprep.subr.bf16.mxu0 0
        %8370 = vmatpush1.bf16.msra.mxu0 0
        %8371 = vmatprep.subr.bf16.mxu0 0
        %8372 = vmatpush1.bf16.msra.mxu0 0
        %8373 = vmatprep.subr.bf16.mxu0 0
        %8374 = vmatpush1.bf16.msra.mxu0 0
        %8375 = vmatprep.subr.bf16.mxu0 0
        %8376 = vmatpush1.bf16.msra.mxu0 0
        %8377 = vmatprep.subr.bf16.mxu0 0
        %8378 = vmatpush1.bf16.msra.mxu0 0
        %8379 = vmatprep.mubr.bf16.mxu0 0
        %8380 = vmatmul.mubr.bf16.gmra.mrb[0].mxu0 %v8257
        %v8381 = vpop.f32.mrb[0].mxu0
        %v8382 = vadd.f32 0.0, %v8381
        %v8383 = vpop.f32.mrb[0].mxu0
        %v8384 = vpop.f32.mrb[0].mxu0
        %v8385 = vadd.f32 0.0, %v8384
        %v8386 = vpop.f32.mrb[0].mxu0
        %8387 = vmatprep.mubr.bf16.mxu0 0
        %8388 = vmatmul.mubr.bf16.gmra.mrb[0].mxu0 %v8259
        %v8389 = vpop.f32.mrb[0].mxu0
        %v8390 = vadd.f32 0.0, %v8389
        %v8391 = vpop.f32.mrb[0].mxu0
        %v8392 = vpop.f32.mrb[0].mxu0
        %v8393 = vadd.f32 0.0, %v8392
        %v8394 = vpop.f32.mrb[0].mxu0
        %8395 = vmatprep.mubr.bf16.mxu0 0
        %8396 = vmatmul.mubr.bf16.gmra.mrb[0].mxu0 %v8261
        %v8397 = vpop.f32.mrb[0].mxu0
        %v8398 = vadd.f32 0.0, %v8397
        %v8399 = vpop.f32.mrb[0].mxu0
        %v8400 = vpop.f32.mrb[0].mxu0
        %v8401 = vadd.f32 0.0, %v8400
        %v8402 = vpop.f32.mrb[0].mxu0
        %8403 = vmatprep.mubr.bf16.mxu0 0
        %8404 = vmatmul.mubr.bf16.gmra.mrb[0].mxu0 %v8263
        %v8405 = vpop.f32.mrb[0].mxu0
        %v8406 = vadd.f32 0.0, %v8405
        %v8407 = vpop.f32.mrb[0].mxu0
        %v8408 = vpop.f32.mrb[0].mxu0
        %v8409 = vadd.f32 0.0, %v8408
        %v8410 = vpop.f32.mrb[0].mxu0
        %8411 = vmatprep.mubr.bf16.mxu0 0
        %8412 = vmatmul.mubr.bf16.gmra.mrb[0].mxu0 %v8265
        %v8413 = vpop.f32.mrb[0].mxu0
        %v8414 = vadd.f32 0.0, %v8413
        %v8415 = vpop.f32.mrb[0].mxu0
        %v8416 = vpop.f32.mrb[0].mxu0
        %v8417 = vadd.f32 0.0, %v8416
        %v8418 = vpop.f32.mrb[0].mxu0
        %8419 = vmatprep.mubr.bf16.mxu0 0
        %8420 = vmatmul.mubr.bf16.gmra.mrb[0].mxu0 %v8267
        %v8421 = vpop.f32.mrb[0].mxu0
        %v8422 = vadd.f32 0.0, %v8421
        %v8423 = vpop.f32.mrb[0].mxu0
        %v8424 = vpop.f32.mrb[0].mxu0
        %v8425 = vadd.f32 0.0, %v8424
        %v8426 = vpop.f32.mrb[0].mxu0
        %8427 = vmatprep.mubr.bf16.mxu0 0
        %8428 = vmatmul.mubr.bf16.gmra.mrb[0].mxu0 %v8269
        %v8429 = vpop.f32.mrb[0].mxu0
        %v8430 = vadd.f32 0.0, %v8429
        %v8431 = vpop.f32.mrb[0].mxu0
        %v8432 = vpop.f32.mrb[0].mxu0
        %v8433 = vadd.f32 0.0, %v8432
        %v8434 = vpop.f32.mrb[0].mxu0
        %8435 = vmatprep.mubr.bf16.mxu0 0
        %8436 = vmatmul.mubr.bf16.gmra.mrb[0].mxu0 %v8271
        %v8437 = vpop.f32.mrb[0].mxu0
        %v8438 = vadd.f32 0.0, %v8437
        %v8439 = vpop.f32.mrb[0].mxu0
        %v8440 = vpop.f32.mrb[0].mxu0
        %v8441 = vadd.f32 0.0, %v8440
        %v8442 = vpop.f32.mrb[0].mxu0
        %8443 = vmatprep.mubr.bf16.mxu0 0
        %8444 = vmatmul.mubr.bf16.gmra.mrb[0].mxu0 %v8273
        %v8445 = vpop.f32.mrb[0].mxu0
        %v8446 = vadd.f32 0.0, %v8445
        %v8447 = vpop.f32.mrb[0].mxu0
        %v8448 = vpop.f32.mrb[0].mxu0
        %v8449 = vadd.f32 0.0, %v8448
        %v8450 = vpop.f32.mrb[0].mxu0
        %8451 = vmatprep.mubr.bf16.mxu0 0
        %8452 = vmatmul.mubr.bf16.gmra.mrb[0].mxu0 %v8275
        %v8453 = vpop.f32.mrb[0].mxu0
        %v8454 = vadd.f32 0.0, %v8453
        %v8455 = vpop.f32.mrb[0].mxu0
        %v8456 = vpop.f32.mrb[0].mxu0
        %v8457 = vadd.f32 0.0, %v8456
        %v8458 = vpop.f32.mrb[0].mxu0
        %8459 = vmatprep.mubr.bf16.mxu0 0
        %8460 = vmatmul.mubr.bf16.gmra.mrb[0].mxu0 %v8277
        %v8461 = vpop.f32.mrb[0].mxu0
        %v8462 = vadd.f32 0.0, %v8461
        %v8463 = vpop.f32.mrb[0].mxu0
        %v8464 = vpop.f32.mrb[0].mxu0
        %v8465 = vadd.f32 0.0, %v8464
        %v8466 = vpop.f32.mrb[0].mxu0
        %8467 = vmatprep.mubr.bf16.mxu0 0
        %8468 = vmatmul.mubr.bf16.gmra.mrb[0].mxu0 %v8279
        %v8469 = vpop.f32.mrb[0].mxu0
        %v8470 = vadd.f32 0.0, %v8469
        %v8471 = vpop.f32.mrb[0].mxu0
        %v8472 = vpop.f32.mrb[0].mxu0
        %v8473 = vadd.f32 0.0, %v8472
        %v8474 = vpop.f32.mrb[0].mxu0
        %8475 = vmatprep.mubr.bf16.mxu0 0
        %8476 = vmatmul.mubr.bf16.gmra.mrb[0].mxu0 %v8281
        %v8477 = vpop.f32.mrb[0].mxu0
        %v8478 = vadd.f32 0.0, %v8477
        %v8479 = vpop.f32.mrb[0].mxu0
        %v8480 = vpop.f32.mrb[0].mxu0
        %v8481 = vadd.f32 0.0, %v8480
        %v8482 = vpop.f32.mrb[0].mxu0
        %8483 = vmatprep.mubr.bf16.mxu0 0
        %8484 = vmatmul.mubr.bf16.gmra.mrb[0].mxu0 %v8283
        %v8485 = vpop.f32.mrb[0].mxu0
        %v8486 = vadd.f32 0.0, %v8485
        %v8487 = vpop.f32.mrb[0].mxu0
        %v8488 = vpop.f32.mrb[0].mxu0
        %v8489 = vadd.f32 0.0, %v8488
        %v8490 = vpop.f32.mrb[0].mxu0
        %8491 = vmatprep.mubr.bf16.mxu0 0
        %8492 = vmatmul.mubr.bf16.gmra.mrb[0].mxu0 %v8282
        %v8493 = vpop.f32.mrb[0].mxu0
        %v8494 = vadd.f32 0.0, %v8493
        %v8495 = vpop.f32.mrb[0].mxu0
        %v8496 = vpop.f32.mrb[0].mxu0
        %v8497 = vpop.f32.mrb[0].mxu0
        %8498 = vdwg.mxu0
        %v8515 = vunpack.c.l.b16 %v8207
        %v8516 = vunpack.c.l.b16 %v8208
        %v8517 = vunpack.c.l.b16 %v8209
        %v8518 = vunpack.c.l.b16 %v8210
        %v8519 = vunpack.c.l.b16 %v8211
        %v8520 = vunpack.c.l.b16 %v8212
        %v8521 = vunpack.c.l.b16 %v8213
        %v8522 = vunpack.c.l.b16 %v8214
        %v8523 = vunpack.c.l.b16 %v8215
        %v8524 = vunpack.c.l.b16 %v8216
        %v8525 = vunpack.c.l.b16 %v8217
        %v8526 = vunpack.c.l.b16 %v8218
        %v8527 = vunpack.c.l.b16 %v8219
        %v8528 = vunpack.c.l.b16 %v8220
        %v8529 = vunpack.c.l.b16 %v8221
        %v8530 = vunpack.c.l.b16 %v8222
        %v8531 = vpack.c.b16 %v8516, %v8515
        %v8532 = vpack.c.b16 %v8518, %v8517
        %v8533 = vpack.c.b16 %v8520, %v8519
        %v8534 = vpack.c.b16 %v8522, %v8521
        %v8535 = vpack.c.b16 %v8524, %v8523
        %v8536 = vpack.c.b16 %v8526, %v8525
        %v8537 = vpack.c.b16 %v8528, %v8527
        %v8538 = vpack.c.b16 %v8530, %v8529
        %8547 = vmatprep.subr.bf16.mxu0 0
        %8548 = vmatpush1.bf16.msra.mxu0 %v8531
        %8549 = vmatprep.subr.bf16.mxu0 0
        %8550 = vmatpush1.bf16.msra.mxu0 %v8532
        %8551 = vmatprep.subr.bf16.mxu0 0
        %8552 = vmatpush1.bf16.msra.mxu0 %v8533
        %8553 = vmatprep.subr.bf16.mxu0 0
        %8554 = vmatpush1.bf16.msra.mxu0 %v8534
        %8555 = vmatprep.subr.bf16.mxu0 0
        %8556 = vmatpush1.bf16.msra.mxu0 %v8535
        %8557 = vmatprep.subr.bf16.mxu0 0
        %8558 = vmatpush1.bf16.msra.mxu0 %v8536
        %8559 = vmatprep.subr.bf16.mxu0 0
        %8560 = vmatpush1.bf16.msra.mxu0 %v8537
        %8561 = vmatprep.subr.bf16.mxu0 0
        %8562 = vmatpush1.bf16.msra.mxu0 %v8538
        %8563 = vmatprep.subr.bf16.mxu0 0
        %8564 = vmatpush1.bf16.msra.mxu0 0
        %8565 = vmatprep.subr.bf16.mxu0 0
        %8566 = vmatpush1.bf16.msra.mxu0 0
        %8567 = vmatprep.subr.bf16.mxu0 0
        %8568 = vmatpush1.bf16.msra.mxu0 0
        %8569 = vmatprep.subr.bf16.mxu0 0
        %8570 = vmatpush1.bf16.msra.mxu0 0
        %8571 = vmatprep.subr.bf16.mxu0 0
        %8572 = vmatpush1.bf16.msra.mxu0 0
        %8573 = vmatprep.subr.bf16.mxu0 0
        %8574 = vmatpush1.bf16.msra.mxu0 0
        %8575 = vmatprep.subr.bf16.mxu0 0
        %8576 = vmatpush1.bf16.msra.mxu0 0
        %8577 = vmatprep.subr.bf16.mxu0 0
        %8578 = vmatpush1.bf16.msra.mxu0 0
        %8579 = vmatprep.mubr.bf16.mxu0 0
        %8580 = vmatmul.mubr.bf16.gmra.mrb[0].mxu0 %v8192
        %v8581 = vpop.f32.mrb[0].mxu0
        %v8582 = vadd.f32 %v8382, %v8581
        %v8583 = vpop.f32.mrb[0].mxu0
        %v8584 = vpop.f32.mrb[0].mxu0
        %v8585 = vadd.f32 %v8385, %v8584
        %v8586 = vpop.f32.mrb[0].mxu0
        %8587 = vmatprep.mubr.bf16.mxu0 0
        %8588 = vmatmul.mubr.bf16.gmra.mrb[0].mxu0 %v8193
        %v8589 = vpop.f32.mrb[0].mxu0
        %v8590 = vadd.f32 %v8390, %v8589
        %v8591 = vpop.f32.mrb[0].mxu0
        %v8592 = vpop.f32.mrb[0].mxu0
        %v8593 = vadd.f32 %v8393, %v8592
        %v8594 = vpop.f32.mrb[0].mxu0
        %8595 = vmatprep.mubr.bf16.mxu0 0
        %8596 = vmatmul.mubr.bf16.gmra.mrb[0].mxu0 %v8194
        %v8597 = vpop.f32.mrb[0].mxu0
        %v8598 = vadd.f32 %v8398, %v8597
        %v8599 = vpop.f32.mrb[0].mxu0
        %v8600 = vpop.f32.mrb[0].mxu0
        %v8601 = vadd.f32 %v8401, %v8600
        %v8602 = vpop.f32.mrb[0].mxu0
        %8603 = vmatprep.mubr.bf16.mxu0 0
        %8604 = vmatmul.mubr.bf16.gmra.mrb[0].mxu0 %v8195
        %v8605 = vpop.f32.mrb[0].mxu0
        %v8606 = vadd.f32 %v8406, %v8605
        %v8607 = vpop.f32.mrb[0].mxu0
        %v8608 = vpop.f32.mrb[0].mxu0
        %v8609 = vadd.f32 %v8409, %v8608
        %v8610 = vpop.f32.mrb[0].mxu0
        %8611 = vmatprep.mubr.bf16.mxu0 0
        %8612 = vmatmul.mubr.bf16.gmra.mrb[0].mxu0 %v8196
        %v8613 = vpop.f32.mrb[0].mxu0
        %v8614 = vadd.f32 %v8414, %v8613
        %v8615 = vpop.f32.mrb[0].mxu0
        %v8616 = vpop.f32.mrb[0].mxu0
        %v8617 = vadd.f32 %v8417, %v8616
        %v8618 = vpop.f32.mrb[0].mxu0
        %8619 = vmatprep.mubr.bf16.mxu0 0
        %8620 = vmatmul.mubr.bf16.gmra.mrb[0].mxu0 %v8197
        %v8621 = vpop.f32.mrb[0].mxu0
        %v8622 = vadd.f32 %v8422, %v8621
        %v8623 = vpop.f32.mrb[0].mxu0
        %v8624 = vpop.f32.mrb[0].mxu0
        %v8625 = vadd.f32 %v8425, %v8624
        %v8626 = vpop.f32.mrb[0].mxu0
        %8627 = vmatprep.mubr.bf16.mxu0 0
        %8628 = vmatmul.mubr.bf16.gmra.mrb[0].mxu0 %v8198
        %v8629 = vpop.f32.mrb[0].mxu0
        %v8630 = vadd.f32 %v8430, %v8629
        %v8631 = vpop.f32.mrb[0].mxu0
        %v8632 = vpop.f32.mrb[0].mxu0
        %v8633 = vadd.f32 %v8433, %v8632
        %v8634 = vpop.f32.mrb[0].mxu0
        %8635 = vmatprep.mubr.bf16.mxu0 0
        %8636 = vmatmul.mubr.bf16.gmra.mrb[0].mxu0 %v8199
        %v8637 = vpop.f32.mrb[0].mxu0
        %v8638 = vadd.f32 %v8438, %v8637
        %v8639 = vpop.f32.mrb[0].mxu0
        %v8640 = vpop.f32.mrb[0].mxu0
        %v8641 = vadd.f32 %v8441, %v8640
        %v8642 = vpop.f32.mrb[0].mxu0
        %8643 = vmatprep.mubr.bf16.mxu0 0
        %8644 = vmatmul.mubr.bf16.gmra.mrb[0].mxu0 %v8200
        %v8645 = vpop.f32.mrb[0].mxu0
        %v8646 = vadd.f32 %v8446, %v8645
        %v8647 = vpop.f32.mrb[0].mxu0
        %v8648 = vpop.f32.mrb[0].mxu0
        %v8649 = vadd.f32 %v8449, %v8648
        %v8650 = vpop.f32.mrb[0].mxu0
        %8651 = vmatprep.mubr.bf16.mxu0 0
        %8652 = vmatmul.mubr.bf16.gmra.mrb[0].mxu0 %v8201
        %v8653 = vpop.f32.mrb[0].mxu0
        %v8654 = vadd.f32 %v8454, %v8653
        %v8655 = vpop.f32.mrb[0].mxu0
        %v8656 = vpop.f32.mrb[0].mxu0
        %v8657 = vadd.f32 %v8457, %v8656
        %v8658 = vpop.f32.mrb[0].mxu0
        %8659 = vmatprep.mubr.bf16.mxu0 0
        %8660 = vmatmul.mubr.bf16.gmra.mrb[0].mxu0 %v8202
        %v8661 = vpop.f32.mrb[0].mxu0
        %v8662 = vadd.f32 %v8462, %v8661
        %v8663 = vpop.f32.mrb[0].mxu0
        %v8664 = vpop.f32.mrb[0].mxu0
        %v8665 = vadd.f32 %v8465, %v8664
        %v8666 = vpop.f32.mrb[0].mxu0
        %8667 = vmatprep.mubr.bf16.mxu0 0
        %8668 = vmatmul.mubr.bf16.gmra.mrb[0].mxu0 %v8203
        %v8669 = vpop.f32.mrb[0].mxu0
        %v8670 = vadd.f32 %v8470, %v8669
        %v8671 = vpop.f32.mrb[0].mxu0
        %v8672 = vpop.f32.mrb[0].mxu0
        %v8673 = vadd.f32 %v8473, %v8672
        %v8674 = vpop.f32.mrb[0].mxu0
        %8675 = vmatprep.mubr.bf16.mxu0 0
        %8676 = vmatmul.mubr.bf16.gmra.mrb[0].mxu0 %v8204
        %v8677 = vpop.f32.mrb[0].mxu0
        %v8678 = vadd.f32 %v8478, %v8677
        %v8679 = vpop.f32.mrb[0].mxu0
        %v8680 = vpop.f32.mrb[0].mxu0
        %v8681 = vadd.f32 %v8481, %v8680
        %v8682 = vpop.f32.mrb[0].mxu0
        %8683 = vmatprep.mubr.bf16.mxu0 0
        %8684 = vmatmul.mubr.bf16.gmra.mrb[0].mxu0 %v8205
        %v8685 = vpop.f32.mrb[0].mxu0
        %v8686 = vadd.f32 %v8486, %v8685
        %v8687 = vpop.f32.mrb[0].mxu0
        %v8688 = vpop.f32.mrb[0].mxu0
        %v8689 = vadd.f32 %v8489, %v8688
        %v8690 = vpop.f32.mrb[0].mxu0
        %8691 = vmatprep.mubr.bf16.mxu0 0
        %8692 = vmatmul.mubr.bf16.gmra.mrb[0].mxu0 %v8206
        %v8693 = vpop.f32.mrb[0].mxu0
        %v8694 = vadd.f32 %v8494, %v8693
        %v8695 = vpop.f32.mrb[0].mxu0
        %v8696 = vpop.f32.mrb[0].mxu0
        %v8697 = vpop.f32.mrb[0].mxu0
        %8698 = vdwg.mxu0
        %s8699 = scalar_lea.vmem %s8, 128
        %v8700 = vld [vmem:[%s8699] sm:$0xf]
        %v8701 = vld [vmem:[%s8699 + $0x4] sm:$0xf]
        %v8702 = vld [vmem:[%s8699 + $0x8] sm:$0xf]
        %v8703 = vld [vmem:[%s8699 + $0xc] sm:$0xf]
        %v8704 = vld [vmem:[%s8699 + $0x10] sm:$0xf]
        %v8705 = vld [vmem:[%s8699 + $0x14] sm:$0xf]
        %v8706 = vld [vmem:[%s8699 + $0x18] sm:$0xf]
        %v8707 = vld [vmem:[%s8699 + $0x1c] sm:$0xf]
        %v8708 = vld [vmem:[%s8699 + $0x20] sm:$0xf]
        %v8709 = vld [vmem:[%s8699 + $0x24] sm:$0xf]
        %v8710 = vld [vmem:[%s8699 + $0x28] sm:$0xf]
        %v8711 = vld [vmem:[%s8699 + $0x2c] sm:$0xf]
        %v8712 = vld [vmem:[%s8699 + $0x30] sm:$0xf]
        %v8713 = vld [vmem:[%s8699 + $0x34] sm:$0xf]
        %v8714 = vld [vmem:[%s8699 + $0x38] sm:$0xf]
        %v8715 = vld [vmem:[%s8699 + $0x3c] sm:$0xf]
        %v8716 = vrot.slane %v8192, 2
        %v8717 = vrot.slane %v8193, 2
        %v8718 = vsel %vm2186, %v8716, %v8717
        %v8719 = vrot.slane %v8194, 2
        %v8720 = vsel %vm2186, %v8717, %v8719
        %v8721 = vrot.slane %v8195, 2
        %v8722 = vsel %vm2186, %v8719, %v8721
        %v8723 = vrot.slane %v8196, 2
        %v8724 = vsel %vm2186, %v8721, %v8723
        %v8725 = vrot.slane %v8197, 2
        %v8726 = vsel %vm2186, %v8723, %v8725
        %v8727 = vrot.slane %v8198, 2
        %v8728 = vsel %vm2186, %v8725, %v8727
        %v8729 = vrot.slane %v8199, 2
        %v8730 = vsel %vm2186, %v8727, %v8729
        %v8731 = vrot.slane %v8200, 2
        %v8732 = vsel %vm2186, %v8729, %v8731
        %v8733 = vrot.slane %v8201, 2
        %v8734 = vsel %vm2186, %v8731, %v8733
        %v8735 = vrot.slane %v8202, 2
        %v8736 = vsel %vm2186, %v8733, %v8735
        %v8737 = vrot.slane %v8203, 2
        %v8738 = vsel %vm2186, %v8735, %v8737
        %v8739 = vrot.slane %v8204, 2
        %v8740 = vsel %vm2186, %v8737, %v8739
        %v8741 = vrot.slane %v8205, 2
        %v8742 = vsel %vm2186, %v8739, %v8741
        %v8743 = vrot.slane %v8206, 2
        %v8744 = vsel %vm2186, %v8741, %v8743
        %v8776 = vunpack.c.l.b16 %v8700
        %v8777 = vunpack.c.l.b16 %v8701
        %v8778 = vunpack.c.l.b16 %v8702
        %v8779 = vunpack.c.l.b16 %v8703
        %v8780 = vunpack.c.l.b16 %v8704
        %v8781 = vunpack.c.l.b16 %v8705
        %v8782 = vunpack.c.l.b16 %v8706
        %v8783 = vunpack.c.l.b16 %v8707
        %v8784 = vunpack.c.l.b16 %v8708
        %v8785 = vunpack.c.l.b16 %v8709
        %v8786 = vunpack.c.l.b16 %v8710
        %v8787 = vunpack.c.l.b16 %v8711
        %v8788 = vunpack.c.l.b16 %v8712
        %v8789 = vunpack.c.l.b16 %v8713
        %v8790 = vunpack.c.l.b16 %v8714
        %v8791 = vunpack.c.l.b16 %v8715
        %v8792 = vpack.c.b16 %v8777, %v8776
        %v8793 = vpack.c.b16 %v8779, %v8778
        %v8794 = vpack.c.b16 %v8781, %v8780
        %v8795 = vpack.c.b16 %v8783, %v8782
        %v8796 = vpack.c.b16 %v8785, %v8784
        %v8797 = vpack.c.b16 %v8787, %v8786
        %v8798 = vpack.c.b16 %v8789, %v8788
        %v8799 = vpack.c.b16 %v8791, %v8790
        %8808 = vmatprep.subr.bf16.mxu0 0
        %8809 = vmatpush1.bf16.msra.mxu0 %v8792
        %8810 = vmatprep.subr.bf16.mxu0 0
        %8811 = vmatpush1.bf16.msra.mxu0 %v8793
        %8812 = vmatprep.subr.bf16.mxu0 0
        %8813 = vmatpush1.bf16.msra.mxu0 %v8794
        %8814 = vmatprep.subr.bf16.mxu0 0
        %8815 = vmatpush1.bf16.msra.mxu0 %v8795
        %8816 = vmatprep.subr.bf16.mxu0 0
        %8817 = vmatpush1.bf16.msra.mxu0 %v8796
        %8818 = vmatprep.subr.bf16.mxu0 0
        %8819 = vmatpush1.bf16.msra.mxu0 %v8797
        %8820 = vmatprep.subr.bf16.mxu0 0
        %8821 = vmatpush1.bf16.msra.mxu0 %v8798
        %8822 = vmatprep.subr.bf16.mxu0 0
        %8823 = vmatpush1.bf16.msra.mxu0 %v8799
        %8824 = vmatprep.subr.bf16.mxu0 0
        %8825 = vmatpush1.bf16.msra.mxu0 0
        %8826 = vmatprep.subr.bf16.mxu0 0
        %8827 = vmatpush1.bf16.msra.mxu0 0
        %8828 = vmatprep.subr.bf16.mxu0 0
        %8829 = vmatpush1.bf16.msra.mxu0 0
        %8830 = vmatprep.subr.bf16.mxu0 0
        %8831 = vmatpush1.bf16.msra.mxu0 0
        %8832 = vmatprep.subr.bf16.mxu0 0
        %8833 = vmatpush1.bf16.msra.mxu0 0
        %8834 = vmatprep.subr.bf16.mxu0 0
        %8835 = vmatpush1.bf16.msra.mxu0 0
        %8836 = vmatprep.subr.bf16.mxu0 0
        %8837 = vmatpush1.bf16.msra.mxu0 0
        %8838 = vmatprep.subr.bf16.mxu0 0
        %8839 = vmatpush1.bf16.msra.mxu0 0
        %8840 = vmatprep.mubr.bf16.mxu0 0
        %8841 = vmatmul.mubr.bf16.gmra.mrb[0].mxu0 %v8718
        %v8842 = vpop.f32.mrb[0].mxu0
        %v8843 = vadd.f32 0.0, %v8842
        %v8844 = vpop.f32.mrb[0].mxu0
        %v8845 = vpop.f32.mrb[0].mxu0
        %v8846 = vadd.f32 0.0, %v8845
        %v8847 = vpop.f32.mrb[0].mxu0
        %8848 = vmatprep.mubr.bf16.mxu0 0
        %8849 = vmatmul.mubr.bf16.gmra.mrb[0].mxu0 %v8720
        %v8850 = vpop.f32.mrb[0].mxu0
        %v8851 = vadd.f32 0.0, %v8850
        %v8852 = vpop.f32.mrb[0].mxu0
        %v8853 = vpop.f32.mrb[0].mxu0
        %v8854 = vadd.f32 0.0, %v8853
        %v8855 = vpop.f32.mrb[0].mxu0
        %8856 = vmatprep.mubr.bf16.mxu0 0
        %8857 = vmatmul.mubr.bf16.gmra.mrb[0].mxu0 %v8722
        %v8858 = vpop.f32.mrb[0].mxu0
        %v8859 = vadd.f32 0.0, %v8858
        %v8860 = vpop.f32.mrb[0].mxu0
        %v8861 = vpop.f32.mrb[0].mxu0
        %v8862 = vadd.f32 0.0, %v8861
        %v8863 = vpop.f32.mrb[0].mxu0
        %8864 = vmatprep.mubr.bf16.mxu0 0
        %8865 = vmatmul.mubr.bf16.gmra.mrb[0].mxu0 %v8724
        %v8866 = vpop.f32.mrb[0].mxu0
        %v8867 = vadd.f32 0.0, %v8866
        %v8868 = vpop.f32.mrb[0].mxu0
        %v8869 = vpop.f32.mrb[0].mxu0
        %v8870 = vadd.f32 0.0, %v8869
        %v8871 = vpop.f32.mrb[0].mxu0
        %8872 = vmatprep.mubr.bf16.mxu0 0
        %8873 = vmatmul.mubr.bf16.gmra.mrb[0].mxu0 %v8726
        %v8874 = vpop.f32.mrb[0].mxu0
        %v8875 = vadd.f32 0.0, %v8874
        %v8876 = vpop.f32.mrb[0].mxu0
        %v8877 = vpop.f32.mrb[0].mxu0
        %v8878 = vadd.f32 0.0, %v8877
        %v8879 = vpop.f32.mrb[0].mxu0
        %8880 = vmatprep.mubr.bf16.mxu0 0
        %8881 = vmatmul.mubr.bf16.gmra.mrb[0].mxu0 %v8728
        %v8882 = vpop.f32.mrb[0].mxu0
        %v8883 = vadd.f32 0.0, %v8882
        %v8884 = vpop.f32.mrb[0].mxu0
        %v8885 = vpop.f32.mrb[0].mxu0
        %v8886 = vadd.f32 0.0, %v8885
        %v8887 = vpop.f32.mrb[0].mxu0
        %8888 = vmatprep.mubr.bf16.mxu0 0
        %8889 = vmatmul.mubr.bf16.gmra.mrb[0].mxu0 %v8730
        %v8890 = vpop.f32.mrb[0].mxu0
        %v8891 = vadd.f32 0.0, %v8890
        %v8892 = vpop.f32.mrb[0].mxu0
        %v8893 = vpop.f32.mrb[0].mxu0
        %v8894 = vadd.f32 0.0, %v8893
        %v8895 = vpop.f32.mrb[0].mxu0
        %8896 = vmatprep.mubr.bf16.mxu0 0
        %8897 = vmatmul.mubr.bf16.gmra.mrb[0].mxu0 %v8732
        %v8898 = vpop.f32.mrb[0].mxu0
        %v8899 = vadd.f32 0.0, %v8898
        %v8900 = vpop.f32.mrb[0].mxu0
        %v8901 = vpop.f32.mrb[0].mxu0
        %v8902 = vadd.f32 0.0, %v8901
        %v8903 = vpop.f32.mrb[0].mxu0
        %8904 = vmatprep.mubr.bf16.mxu0 0
        %8905 = vmatmul.mubr.bf16.gmra.mrb[0].mxu0 %v8734
        %v8906 = vpop.f32.mrb[0].mxu0
        %v8907 = vadd.f32 0.0, %v8906
        %v8908 = vpop.f32.mrb[0].mxu0
        %v8909 = vpop.f32.mrb[0].mxu0
        %v8910 = vadd.f32 0.0, %v8909
        %v8911 = vpop.f32.mrb[0].mxu0
        %8912 = vmatprep.mubr.bf16.mxu0 0
        %8913 = vmatmul.mubr.bf16.gmra.mrb[0].mxu0 %v8736
        %v8914 = vpop.f32.mrb[0].mxu0
        %v8915 = vadd.f32 0.0, %v8914
        %v8916 = vpop.f32.mrb[0].mxu0
        %v8917 = vpop.f32.mrb[0].mxu0
        %v8918 = vadd.f32 0.0, %v8917
        %v8919 = vpop.f32.mrb[0].mxu0
        %8920 = vmatprep.mubr.bf16.mxu0 0
        %8921 = vmatmul.mubr.bf16.gmra.mrb[0].mxu0 %v8738
        %v8922 = vpop.f32.mrb[0].mxu0
        %v8923 = vadd.f32 0.0, %v8922
        %v8924 = vpop.f32.mrb[0].mxu0
        %v8925 = vpop.f32.mrb[0].mxu0
        %v8926 = vadd.f32 0.0, %v8925
        %v8927 = vpop.f32.mrb[0].mxu0
        %8928 = vmatprep.mubr.bf16.mxu0 0
        %8929 = vmatmul.mubr.bf16.gmra.mrb[0].mxu0 %v8740
        %v8930 = vpop.f32.mrb[0].mxu0
        %v8931 = vadd.f32 0.0, %v8930
        %v8932 = vpop.f32.mrb[0].mxu0
        %v8933 = vpop.f32.mrb[0].mxu0
        %v8934 = vadd.f32 0.0, %v8933
        %v8935 = vpop.f32.mrb[0].mxu0
        %8936 = vmatprep.mubr.bf16.mxu0 0
        %8937 = vmatmul.mubr.bf16.gmra.mrb[0].mxu0 %v8742
        %v8938 = vpop.f32.mrb[0].mxu0
        %v8939 = vadd.f32 0.0, %v8938
        %v8940 = vpop.f32.mrb[0].mxu0
        %v8941 = vpop.f32.mrb[0].mxu0
        %v8942 = vadd.f32 0.0, %v8941
        %v8943 = vpop.f32.mrb[0].mxu0
        %8944 = vmatprep.mubr.bf16.mxu0 0
        %8945 = vmatmul.mubr.bf16.gmra.mrb[0].mxu0 %v8744
        %v8946 = vpop.f32.mrb[0].mxu0
        %v8947 = vadd.f32 0.0, %v8946
        %v8948 = vpop.f32.mrb[0].mxu0
        %v8949 = vpop.f32.mrb[0].mxu0
        %v8950 = vadd.f32 0.0, %v8949
        %v8951 = vpop.f32.mrb[0].mxu0
        %8952 = vmatprep.mubr.bf16.mxu0 0
        %8953 = vmatmul.mubr.bf16.gmra.mrb[0].mxu0 %v8743
        %v8954 = vpop.f32.mrb[0].mxu0
        %v8955 = vadd.f32 0.0, %v8954
        %v8956 = vpop.f32.mrb[0].mxu0
        %v8957 = vpop.f32.mrb[0].mxu0
        %v8958 = vpop.f32.mrb[0].mxu0
        %8959 = vdwg.mxu0
        %v8960 = vadd.f32 %v8582, %v8843
        %v8961 = vadd.f32 %v8585, %v8846
        %v8962 = vadd.f32 %v8590, %v8851
        %v8963 = vadd.f32 %v8593, %v8854
        %v8964 = vadd.f32 %v8598, %v8859
        %v8965 = vadd.f32 %v8601, %v8862
        %v8966 = vadd.f32 %v8606, %v8867
        %v8967 = vadd.f32 %v8609, %v8870
        %v8968 = vadd.f32 %v8614, %v8875
        %v8969 = vadd.f32 %v8617, %v8878
        %v8970 = vadd.f32 %v8622, %v8883
        %v8971 = vadd.f32 %v8625, %v8886
        %v8972 = vadd.f32 %v8630, %v8891
        %v8973 = vadd.f32 %v8633, %v8894
        %v8974 = vadd.f32 %v8638, %v8899
        %v8975 = vadd.f32 %v8641, %v8902
        %v8976 = vadd.f32 %v8646, %v8907
        %v8977 = vadd.f32 %v8649, %v8910
        %v8978 = vadd.f32 %v8654, %v8915
        %v8979 = vadd.f32 %v8657, %v8918
        %v8980 = vadd.f32 %v8662, %v8923
        %v8981 = vadd.f32 %v8665, %v8926
        %v8982 = vadd.f32 %v8670, %v8931
        %v8983 = vadd.f32 %v8673, %v8934
        %v8984 = vadd.f32 %v8678, %v8939
        %v8985 = vadd.f32 %v8681, %v8942
        %v8986 = vadd.f32 %v8686, %v8947
        %v8987 = vadd.f32 %v8689, %v8950
        %v8988 = vadd.f32 %v8694, %v8955
        %s8989 = scalar_lea.vmem %s8, 192
        %v8990 = vld [vmem:[%s8989] sm:$0xf]
        %v8991 = vld [vmem:[%s8989 + $0x4] sm:$0xf]
        %v8992 = vld [vmem:[%s8989 + $0x8] sm:$0xf]
        %v8993 = vld [vmem:[%s8989 + $0xc] sm:$0xf]
        %v8994 = vld [vmem:[%s8989 + $0x10] sm:$0xf]
        %v8995 = vld [vmem:[%s8989 + $0x14] sm:$0xf]
        %v8996 = vld [vmem:[%s8989 + $0x18] sm:$0xf]
        %v8997 = vld [vmem:[%s8989 + $0x1c] sm:$0xf]
        %v8998 = vld [vmem:[%s8989 + $0x20] sm:$0xf]
        %v8999 = vld [vmem:[%s8989 + $0x24] sm:$0xf]
        %v9000 = vld [vmem:[%s8989 + $0x28] sm:$0xf]
        %v9001 = vld [vmem:[%s8989 + $0x2c] sm:$0xf]
        %v9002 = vld [vmem:[%s8989 + $0x30] sm:$0xf]
        %v9003 = vld [vmem:[%s8989 + $0x34] sm:$0xf]
        %v9004 = vld [vmem:[%s8989 + $0x38] sm:$0xf]
        %v9005 = vld [vmem:[%s8989 + $0x3c] sm:$0xf]
        %v9006 = vrot.slane %v8192, 3
        %v9007 = vrot.slane %v8193, 3
        %v9008 = vsel %vm7520, %v9006, %v9007
        %v9009 = vrot.slane %v8194, 3
        %v9010 = vsel %vm7520, %v9007, %v9009
        %v9011 = vrot.slane %v8195, 3
        %v9012 = vsel %vm7520, %v9009, %v9011
        %v9013 = vrot.slane %v8196, 3
        %v9014 = vsel %vm7520, %v9011, %v9013
        %v9015 = vrot.slane %v8197, 3
        %v9016 = vsel %vm7520, %v9013, %v9015
        %v9017 = vrot.slane %v8198, 3
        %v9018 = vsel %vm7520, %v9015, %v9017
        %v9019 = vrot.slane %v8199, 3
        %v9020 = vsel %vm7520, %v9017, %v9019
        %v9021 = vrot.slane %v8200, 3
        %v9022 = vsel %vm7520, %v9019, %v9021
        %v9023 = vrot.slane %v8201, 3
        %v9024 = vsel %vm7520, %v9021, %v9023
        %v9025 = vrot.slane %v8202, 3
        %v9026 = vsel %vm7520, %v9023, %v9025
        %v9027 = vrot.slane %v8203, 3
        %v9028 = vsel %vm7520, %v9025, %v9027
        %v9029 = vrot.slane %v8204, 3
        %v9030 = vsel %vm7520, %v9027, %v9029
        %v9031 = vrot.slane %v8205, 3
        %v9032 = vsel %vm7520, %v9029, %v9031
        %v9033 = vrot.slane %v8206, 3
        %v9034 = vsel %vm7520, %v9031, %v9033
        %v9066 = vunpack.c.l.b16 %v8990
        %v9067 = vunpack.c.l.b16 %v8991
        %v9068 = vunpack.c.l.b16 %v8992
        %v9069 = vunpack.c.l.b16 %v8993
        %v9070 = vunpack.c.l.b16 %v8994
        %v9071 = vunpack.c.l.b16 %v8995
        %v9072 = vunpack.c.l.b16 %v8996
        %v9073 = vunpack.c.l.b16 %v8997
        %v9074 = vunpack.c.l.b16 %v8998
        %v9075 = vunpack.c.l.b16 %v8999
        %v9076 = vunpack.c.l.b16 %v9000
        %v9077 = vunpack.c.l.b16 %v9001
        %v9078 = vunpack.c.l.b16 %v9002
        %v9079 = vunpack.c.l.b16 %v9003
        %v9080 = vunpack.c.l.b16 %v9004
        %v9081 = vunpack.c.l.b16 %v9005
        %v9082 = vpack.c.b16 %v9067, %v9066
        %v9083 = vpack.c.b16 %v9069, %v9068
        %v9084 = vpack.c.b16 %v9071, %v9070
        %v9085 = vpack.c.b16 %v9073, %v9072
        %v9086 = vpack.c.b16 %v9075, %v9074
        %v9087 = vpack.c.b16 %v9077, %v9076
        %v9088 = vpack.c.b16 %v9079, %v9078
        %v9089 = vpack.c.b16 %v9081, %v9080
        %9098 = vmatprep.subr.bf16.mxu0 0
        %9099 = vmatpush1.bf16.msra.mxu0 %v9082
        %9100 = vmatprep.subr.bf16.mxu0 0
        %9101 = vmatpush1.bf16.msra.mxu0 %v9083
        %9102 = vmatprep.subr.bf16.mxu0 0
        %9103 = vmatpush1.bf16.msra.mxu0 %v9084
        %9104 = vmatprep.subr.bf16.mxu0 0
        %9105 = vmatpush1.bf16.msra.mxu0 %v9085
        %9106 = vmatprep.subr.bf16.mxu0 0
        %9107 = vmatpush1.bf16.msra.mxu0 %v9086
        %9108 = vmatprep.subr.bf16.mxu0 0
        %9109 = vmatpush1.bf16.msra.mxu0 %v9087
        %9110 = vmatprep.subr.bf16.mxu0 0
        %9111 = vmatpush1.bf16.msra.mxu0 %v9088
        %9112 = vmatprep.subr.bf16.mxu0 0
        %9113 = vmatpush1.bf16.msra.mxu0 %v9089
        %9114 = vmatprep.subr.bf16.mxu0 0
        %9115 = vmatpush1.bf16.msra.mxu0 0
        %9116 = vmatprep.subr.bf16.mxu0 0
        %9117 = vmatpush1.bf16.msra.mxu0 0
        %9118 = vmatprep.subr.bf16.mxu0 0
        %9119 = vmatpush1.bf16.msra.mxu0 0
        %9120 = vmatprep.subr.bf16.mxu0 0
        %9121 = vmatpush1.bf16.msra.mxu0 0
        %9122 = vmatprep.subr.bf16.mxu0 0
        %9123 = vmatpush1.bf16.msra.mxu0 0
        %9124 = vmatprep.subr.bf16.mxu0 0
        %9125 = vmatpush1.bf16.msra.mxu0 0
        %9126 = vmatprep.subr.bf16.mxu0 0
        %9127 = vmatpush1.bf16.msra.mxu0 0
        %9128 = vmatprep.subr.bf16.mxu0 0
        %9129 = vmatpush1.bf16.msra.mxu0 0
        %9130 = vmatprep.mubr.bf16.mxu0 0
        %9131 = vmatmul.mubr.bf16.gmra.mrb[0].mxu0 %v9008
        %v9132 = vpop.f32.mrb[0].mxu0
        %v9133 = vadd.f32 0.0, %v9132
        %v9134 = vpop.f32.mrb[0].mxu0
        %v9135 = vpop.f32.mrb[0].mxu0
        %v9136 = vadd.f32 0.0, %v9135
        %v9137 = vpop.f32.mrb[0].mxu0
        %9138 = vmatprep.mubr.bf16.mxu0 0
        %9139 = vmatmul.mubr.bf16.gmra.mrb[0].mxu0 %v9010
        %v9140 = vpop.f32.mrb[0].mxu0
        %v9141 = vadd.f32 0.0, %v9140
        %v9142 = vpop.f32.mrb[0].mxu0
        %v9143 = vpop.f32.mrb[0].mxu0
        %v9144 = vadd.f32 0.0, %v9143
        %v9145 = vpop.f32.mrb[0].mxu0
        %9146 = vmatprep.mubr.bf16.mxu0 0
        %9147 = vmatmul.mubr.bf16.gmra.mrb[0].mxu0 %v9012
        %v9148 = vpop.f32.mrb[0].mxu0
        %v9149 = vadd.f32 0.0, %v9148
        %v9150 = vpop.f32.mrb[0].mxu0
        %v9151 = vpop.f32.mrb[0].mxu0
        %v9152 = vadd.f32 0.0, %v9151
        %v9153 = vpop.f32.mrb[0].mxu0
        %9154 = vmatprep.mubr.bf16.mxu0 0
        %9155 = vmatmul.mubr.bf16.gmra.mrb[0].mxu0 %v9014
        %v9156 = vpop.f32.mrb[0].mxu0
        %v9157 = vadd.f32 0.0, %v9156
        %v9158 = vpop.f32.mrb[0].mxu0
        %v9159 = vpop.f32.mrb[0].mxu0
        %v9160 = vadd.f32 0.0, %v9159
        %v9161 = vpop.f32.mrb[0].mxu0
        %9162 = vmatprep.mubr.bf16.mxu0 0
        %9163 = vmatmul.mubr.bf16.gmra.mrb[0].mxu0 %v9016
        %v9164 = vpop.f32.mrb[0].mxu0
        %v9165 = vadd.f32 0.0, %v9164
        %v9166 = vpop.f32.mrb[0].mxu0
        %v9167 = vpop.f32.mrb[0].mxu0
        %v9168 = vadd.f32 0.0, %v9167
        %v9169 = vpop.f32.mrb[0].mxu0
        %9170 = vmatprep.mubr.bf16.mxu0 0
        %9171 = vmatmul.mubr.bf16.gmra.mrb[0].mxu0 %v9018
        %v9172 = vpop.f32.mrb[0].mxu0
        %v9173 = vadd.f32 0.0, %v9172
        %v9174 = vpop.f32.mrb[0].mxu0
        %v9175 = vpop.f32.mrb[0].mxu0
        %v9176 = vadd.f32 0.0, %v9175
        %v9177 = vpop.f32.mrb[0].mxu0
        %9178 = vmatprep.mubr.bf16.mxu0 0
        %9179 = vmatmul.mubr.bf16.gmra.mrb[0].mxu0 %v9020
        %v9180 = vpop.f32.mrb[0].mxu0
        %v9181 = vadd.f32 0.0, %v9180
        %v9182 = vpop.f32.mrb[0].mxu0
        %v9183 = vpop.f32.mrb[0].mxu0
        %v9184 = vadd.f32 0.0, %v9183
        %v9185 = vpop.f32.mrb[0].mxu0
        %9186 = vmatprep.mubr.bf16.mxu0 0
        %9187 = vmatmul.mubr.bf16.gmra.mrb[0].mxu0 %v9022
        %v9188 = vpop.f32.mrb[0].mxu0
        %v9189 = vadd.f32 0.0, %v9188
        %v9190 = vpop.f32.mrb[0].mxu0
        %v9191 = vpop.f32.mrb[0].mxu0
        %v9192 = vadd.f32 0.0, %v9191
        %v9193 = vpop.f32.mrb[0].mxu0
        %9194 = vmatprep.mubr.bf16.mxu0 0
        %9195 = vmatmul.mubr.bf16.gmra.mrb[0].mxu0 %v9024
        %v9196 = vpop.f32.mrb[0].mxu0
        %v9197 = vadd.f32 0.0, %v9196
        %v9198 = vpop.f32.mrb[0].mxu0
        %v9199 = vpop.f32.mrb[0].mxu0
        %v9200 = vadd.f32 0.0, %v9199
        %v9201 = vpop.f32.mrb[0].mxu0
        %9202 = vmatprep.mubr.bf16.mxu0 0
        %9203 = vmatmul.mubr.bf16.gmra.mrb[0].mxu0 %v9026
        %v9204 = vpop.f32.mrb[0].mxu0
        %v9205 = vadd.f32 0.0, %v9204
        %v9206 = vpop.f32.mrb[0].mxu0
        %v9207 = vpop.f32.mrb[0].mxu0
        %v9208 = vadd.f32 0.0, %v9207
        %v9209 = vpop.f32.mrb[0].mxu0
        %9210 = vmatprep.mubr.bf16.mxu0 0
        %9211 = vmatmul.mubr.bf16.gmra.mrb[0].mxu0 %v9028
        %v9212 = vpop.f32.mrb[0].mxu0
        %v9213 = vadd.f32 0.0, %v9212
        %v9214 = vpop.f32.mrb[0].mxu0
        %v9215 = vpop.f32.mrb[0].mxu0
        %v9216 = vadd.f32 0.0, %v9215
        %v9217 = vpop.f32.mrb[0].mxu0
        %9218 = vmatprep.mubr.bf16.mxu0 0
        %9219 = vmatmul.mubr.bf16.gmra.mrb[0].mxu0 %v9030
        %v9220 = vpop.f32.mrb[0].mxu0
        %v9221 = vadd.f32 0.0, %v9220
        %v9222 = vpop.f32.mrb[0].mxu0
        %v9223 = vpop.f32.mrb[0].mxu0
        %v9224 = vadd.f32 0.0, %v9223
        %v9225 = vpop.f32.mrb[0].mxu0
        %9226 = vmatprep.mubr.bf16.mxu0 0
        %9227 = vmatmul.mubr.bf16.gmra.mrb[0].mxu0 %v9032
        %v9228 = vpop.f32.mrb[0].mxu0
        %v9229 = vadd.f32 0.0, %v9228
        %v9230 = vpop.f32.mrb[0].mxu0
        %v9231 = vpop.f32.mrb[0].mxu0
        %v9232 = vadd.f32 0.0, %v9231
        %v9233 = vpop.f32.mrb[0].mxu0
        %9234 = vmatprep.mubr.bf16.mxu0 0
        %9235 = vmatmul.mubr.bf16.gmra.mrb[0].mxu0 %v9034
        %v9236 = vpop.f32.mrb[0].mxu0
        %v9237 = vadd.f32 0.0, %v9236
        %v9238 = vpop.f32.mrb[0].mxu0
        %v9239 = vpop.f32.mrb[0].mxu0
        %v9240 = vadd.f32 0.0, %v9239
        %v9241 = vpop.f32.mrb[0].mxu0
        %9242 = vmatprep.mubr.bf16.mxu0 0
        %9243 = vmatmul.mubr.bf16.gmra.mrb[0].mxu0 %v9033
        %v9244 = vpop.f32.mrb[0].mxu0
        %v9245 = vadd.f32 0.0, %v9244
        %v9246 = vpop.f32.mrb[0].mxu0
        %v9247 = vpop.f32.mrb[0].mxu0
        %v9248 = vpop.f32.mrb[0].mxu0
        %9249 = vdwg.mxu0
        %v9250 = vadd.f32 %v8960, %v9133
        %v9251 = vadd.f32 %v8961, %v9136
        %v9252 = vadd.f32 %v8962, %v9141
        %v9253 = vadd.f32 %v8963, %v9144
        %v9254 = vadd.f32 %v8964, %v9149
        %v9255 = vadd.f32 %v8965, %v9152
        %v9256 = vadd.f32 %v8966, %v9157
        %v9257 = vadd.f32 %v8967, %v9160
        %v9258 = vadd.f32 %v8968, %v9165
        %v9259 = vadd.f32 %v8969, %v9168
        %v9260 = vadd.f32 %v8970, %v9173
        %v9261 = vadd.f32 %v8971, %v9176
        %v9262 = vadd.f32 %v8972, %v9181
        %v9263 = vadd.f32 %v8973, %v9184
        %v9264 = vadd.f32 %v8974, %v9189
        %v9265 = vadd.f32 %v8975, %v9192
        %v9266 = vadd.f32 %v8976, %v9197
        %v9267 = vadd.f32 %v8977, %v9200
        %v9268 = vadd.f32 %v8978, %v9205
        %v9269 = vadd.f32 %v8979, %v9208
        %v9270 = vadd.f32 %v8980, %v9213
        %v9271 = vadd.f32 %v8981, %v9216
        %v9272 = vadd.f32 %v8982, %v9221
        %v9273 = vadd.f32 %v8983, %v9224
        %v9274 = vadd.f32 %v8984, %v9229
        %v9275 = vadd.f32 %v8985, %v9232
        %v9276 = vadd.f32 %v8986, %v9237
        %v9277 = vadd.f32 %v8987, %v9240
        %v9278 = vadd.f32 %v8988, %v9245
        %s9279 = scalar_lea.vmem %s8, 256
        %v9280 = vld [vmem:[%s9279] sm:$0xf]
        %v9281 = vld [vmem:[%s9279 + $0x4] sm:$0xf]
        %v9282 = vld [vmem:[%s9279 + $0x8] sm:$0xf]
        %v9283 = vld [vmem:[%s9279 + $0xc] sm:$0xf]
        %v9284 = vld [vmem:[%s9279 + $0x10] sm:$0xf]
        %v9285 = vld [vmem:[%s9279 + $0x14] sm:$0xf]
        %v9286 = vld [vmem:[%s9279 + $0x18] sm:$0xf]
        %v9287 = vld [vmem:[%s9279 + $0x1c] sm:$0xf]
        %v9288 = vld [vmem:[%s9279 + $0x20] sm:$0xf]
        %v9289 = vld [vmem:[%s9279 + $0x24] sm:$0xf]
        %v9290 = vld [vmem:[%s9279 + $0x28] sm:$0xf]
        %v9291 = vld [vmem:[%s9279 + $0x2c] sm:$0xf]
        %v9292 = vld [vmem:[%s9279 + $0x30] sm:$0xf]
        %v9293 = vld [vmem:[%s9279 + $0x34] sm:$0xf]
        %v9294 = vld [vmem:[%s9279 + $0x38] sm:$0xf]
        %v9295 = vld [vmem:[%s9279 + $0x3c] sm:$0xf]
        %v9296 = vrot.slane %v8192, 4
        %v9297 = vrot.slane %v8193, 4
        %v9298 = vsel %vm7829, %v9296, %v9297
        %v9299 = vrot.slane %v8194, 4
        %v9300 = vsel %vm7829, %v9297, %v9299
        %v9301 = vrot.slane %v8195, 4
        %v9302 = vsel %vm7829, %v9299, %v9301
        %v9303 = vrot.slane %v8196, 4
        %v9304 = vsel %vm7829, %v9301, %v9303
        %v9305 = vrot.slane %v8197, 4
        %v9306 = vsel %vm7829, %v9303, %v9305
        %v9307 = vrot.slane %v8198, 4
        %v9308 = vsel %vm7829, %v9305, %v9307
        %v9309 = vrot.slane %v8199, 4
        %v9310 = vsel %vm7829, %v9307, %v9309
        %v9311 = vrot.slane %v8200, 4
        %v9312 = vsel %vm7829, %v9309, %v9311
        %v9313 = vrot.slane %v8201, 4
        %v9314 = vsel %vm7829, %v9311, %v9313
        %v9315 = vrot.slane %v8202, 4
        %v9316 = vsel %vm7829, %v9313, %v9315
        %v9317 = vrot.slane %v8203, 4
        %v9318 = vsel %vm7829, %v9315, %v9317
        %v9319 = vrot.slane %v8204, 4
        %v9320 = vsel %vm7829, %v9317, %v9319
        %v9321 = vrot.slane %v8205, 4
        %v9322 = vsel %vm7829, %v9319, %v9321
        %v9323 = vrot.slane %v8206, 4
        %v9324 = vsel %vm7829, %v9321, %v9323
        %v9356 = vunpack.c.l.b16 %v9280
        %v9357 = vunpack.c.l.b16 %v9281
        %v9358 = vunpack.c.l.b16 %v9282
        %v9359 = vunpack.c.l.b16 %v9283
        %v9360 = vunpack.c.l.b16 %v9284
        %v9361 = vunpack.c.l.b16 %v9285
        %v9362 = vunpack.c.l.b16 %v9286
        %v9363 = vunpack.c.l.b16 %v9287
        %v9364 = vunpack.c.l.b16 %v9288
        %v9365 = vunpack.c.l.b16 %v9289
        %v9366 = vunpack.c.l.b16 %v9290
        %v9367 = vunpack.c.l.b16 %v9291
        %v9368 = vunpack.c.l.b16 %v9292
        %v9369 = vunpack.c.l.b16 %v9293
        %v9370 = vunpack.c.l.b16 %v9294
        %v9371 = vunpack.c.l.b16 %v9295
        %v9372 = vpack.c.b16 %v9357, %v9356
        %v9373 = vpack.c.b16 %v9359, %v9358
        %v9374 = vpack.c.b16 %v9361, %v9360
        %v9375 = vpack.c.b16 %v9363, %v9362
        %v9376 = vpack.c.b16 %v9365, %v9364
        %v9377 = vpack.c.b16 %v9367, %v9366
        %v9378 = vpack.c.b16 %v9369, %v9368
        %v9379 = vpack.c.b16 %v9371, %v9370
        %9388 = vmatprep.subr.bf16.mxu0 0
        %9389 = vmatpush1.bf16.msra.mxu0 %v9372
        %9390 = vmatprep.subr.bf16.mxu0 0
        %9391 = vmatpush1.bf16.msra.mxu0 %v9373
        %9392 = vmatprep.subr.bf16.mxu0 0
        %9393 = vmatpush1.bf16.msra.mxu0 %v9374
        %9394 = vmatprep.subr.bf16.mxu0 0
        %9395 = vmatpush1.bf16.msra.mxu0 %v9375
        %9396 = vmatprep.subr.bf16.mxu0 0
        %9397 = vmatpush1.bf16.msra.mxu0 %v9376
        %9398 = vmatprep.subr.bf16.mxu0 0
        %9399 = vmatpush1.bf16.msra.mxu0 %v9377
        %9400 = vmatprep.subr.bf16.mxu0 0
        %9401 = vmatpush1.bf16.msra.mxu0 %v9378
        %9402 = vmatprep.subr.bf16.mxu0 0
        %9403 = vmatpush1.bf16.msra.mxu0 %v9379
        %9404 = vmatprep.subr.bf16.mxu0 0
        %9405 = vmatpush1.bf16.msra.mxu0 0
        %9406 = vmatprep.subr.bf16.mxu0 0
        %9407 = vmatpush1.bf16.msra.mxu0 0
        %9408 = vmatprep.subr.bf16.mxu0 0
        %9409 = vmatpush1.bf16.msra.mxu0 0
        %9410 = vmatprep.subr.bf16.mxu0 0
        %9411 = vmatpush1.bf16.msra.mxu0 0
        %9412 = vmatprep.subr.bf16.mxu0 0
        %9413 = vmatpush1.bf16.msra.mxu0 0
        %9414 = vmatprep.subr.bf16.mxu0 0
        %9415 = vmatpush1.bf16.msra.mxu0 0
        %9416 = vmatprep.subr.bf16.mxu0 0
        %9417 = vmatpush1.bf16.msra.mxu0 0
        %9418 = vmatprep.subr.bf16.mxu0 0
        %9419 = vmatpush1.bf16.msra.mxu0 0
        %9420 = vmatprep.mubr.bf16.mxu0 0
        %9421 = vmatmul.mubr.bf16.gmra.mrb[0].mxu0 %v9298
        %v9422 = vpop.f32.mrb[0].mxu0
        %v9423 = vadd.f32 0.0, %v9422
        %v9424 = vpop.f32.mrb[0].mxu0
        %v9425 = vpop.f32.mrb[0].mxu0
        %v9426 = vadd.f32 0.0, %v9425
        %v9427 = vpop.f32.mrb[0].mxu0
        %9428 = vmatprep.mubr.bf16.mxu0 0
        %9429 = vmatmul.mubr.bf16.gmra.mrb[0].mxu0 %v9300
        %v9430 = vpop.f32.mrb[0].mxu0
        %v9431 = vadd.f32 0.0, %v9430
        %v9432 = vpop.f32.mrb[0].mxu0
        %v9433 = vpop.f32.mrb[0].mxu0
        %v9434 = vadd.f32 0.0, %v9433
        %v9435 = vpop.f32.mrb[0].mxu0
        %9436 = vmatprep.mubr.bf16.mxu0 0
        %9437 = vmatmul.mubr.bf16.gmra.mrb[0].mxu0 %v9302
        %v9438 = vpop.f32.mrb[0].mxu0
        %v9439 = vadd.f32 0.0, %v9438
        %v9440 = vpop.f32.mrb[0].mxu0
        %v9441 = vpop.f32.mrb[0].mxu0
        %v9442 = vadd.f32 0.0, %v9441
        %v9443 = vpop.f32.mrb[0].mxu0
        %9444 = vmatprep.mubr.bf16.mxu0 0
        %9445 = vmatmul.mubr.bf16.gmra.mrb[0].mxu0 %v9304
        %v9446 = vpop.f32.mrb[0].mxu0
        %v9447 = vadd.f32 0.0, %v9446
        %v9448 = vpop.f32.mrb[0].mxu0
        %v9449 = vpop.f32.mrb[0].mxu0
        %v9450 = vadd.f32 0.0, %v9449
        %v9451 = vpop.f32.mrb[0].mxu0
        %9452 = vmatprep.mubr.bf16.mxu0 0
        %9453 = vmatmul.mubr.bf16.gmra.mrb[0].mxu0 %v9306
        %v9454 = vpop.f32.mrb[0].mxu0
        %v9455 = vadd.f32 0.0, %v9454
        %v9456 = vpop.f32.mrb[0].mxu0
        %v9457 = vpop.f32.mrb[0].mxu0
        %v9458 = vadd.f32 0.0, %v9457
        %v9459 = vpop.f32.mrb[0].mxu0
        %9460 = vmatprep.mubr.bf16.mxu0 0
        %9461 = vmatmul.mubr.bf16.gmra.mrb[0].mxu0 %v9308
        %v9462 = vpop.f32.mrb[0].mxu0
        %v9463 = vadd.f32 0.0, %v9462
        %v9464 = vpop.f32.mrb[0].mxu0
        %v9465 = vpop.f32.mrb[0].mxu0
        %v9466 = vadd.f32 0.0, %v9465
        %v9467 = vpop.f32.mrb[0].mxu0
        %9468 = vmatprep.mubr.bf16.mxu0 0
        %9469 = vmatmul.mubr.bf16.gmra.mrb[0].mxu0 %v9310
        %v9470 = vpop.f32.mrb[0].mxu0
        %v9471 = vadd.f32 0.0, %v9470
        %v9472 = vpop.f32.mrb[0].mxu0
        %v9473 = vpop.f32.mrb[0].mxu0
        %v9474 = vadd.f32 0.0, %v9473
        %v9475 = vpop.f32.mrb[0].mxu0
        %9476 = vmatprep.mubr.bf16.mxu0 0
        %9477 = vmatmul.mubr.bf16.gmra.mrb[0].mxu0 %v9312
        %v9478 = vpop.f32.mrb[0].mxu0
        %v9479 = vadd.f32 0.0, %v9478
        %v9480 = vpop.f32.mrb[0].mxu0
        %v9481 = vpop.f32.mrb[0].mxu0
        %v9482 = vadd.f32 0.0, %v9481
        %v9483 = vpop.f32.mrb[0].mxu0
        %9484 = vmatprep.mubr.bf16.mxu0 0
        %9485 = vmatmul.mubr.bf16.gmra.mrb[0].mxu0 %v9314
        %v9486 = vpop.f32.mrb[0].mxu0
        %v9487 = vadd.f32 0.0, %v9486
        %v9488 = vpop.f32.mrb[0].mxu0
        %v9489 = vpop.f32.mrb[0].mxu0
        %v9490 = vadd.f32 0.0, %v9489
        %v9491 = vpop.f32.mrb[0].mxu0
        %9492 = vmatprep.mubr.bf16.mxu0 0
        %9493 = vmatmul.mubr.bf16.gmra.mrb[0].mxu0 %v9316
        %v9494 = vpop.f32.mrb[0].mxu0
        %v9495 = vadd.f32 0.0, %v9494
        %v9496 = vpop.f32.mrb[0].mxu0
        %v9497 = vpop.f32.mrb[0].mxu0
        %v9498 = vadd.f32 0.0, %v9497
        %v9499 = vpop.f32.mrb[0].mxu0
        %9500 = vmatprep.mubr.bf16.mxu0 0
        %9501 = vmatmul.mubr.bf16.gmra.mrb[0].mxu0 %v9318
        %v9502 = vpop.f32.mrb[0].mxu0
        %v9503 = vadd.f32 0.0, %v9502
        %v9504 = vpop.f32.mrb[0].mxu0
        %v9505 = vpop.f32.mrb[0].mxu0
        %v9506 = vadd.f32 0.0, %v9505
        %v9507 = vpop.f32.mrb[0].mxu0
        %9508 = vmatprep.mubr.bf16.mxu0 0
        %9509 = vmatmul.mubr.bf16.gmra.mrb[0].mxu0 %v9320
        %v9510 = vpop.f32.mrb[0].mxu0
        %v9511 = vadd.f32 0.0, %v9510
        %v9512 = vpop.f32.mrb[0].mxu0
        %v9513 = vpop.f32.mrb[0].mxu0
        %v9514 = vadd.f32 0.0, %v9513
        %v9515 = vpop.f32.mrb[0].mxu0
        %9516 = vmatprep.mubr.bf16.mxu0 0
        %9517 = vmatmul.mubr.bf16.gmra.mrb[0].mxu0 %v9322
        %v9518 = vpop.f32.mrb[0].mxu0
        %v9519 = vadd.f32 0.0, %v9518
        %v9520 = vpop.f32.mrb[0].mxu0
        %v9521 = vpop.f32.mrb[0].mxu0
        %v9522 = vadd.f32 0.0, %v9521
        %v9523 = vpop.f32.mrb[0].mxu0
        %9524 = vmatprep.mubr.bf16.mxu0 0
        %9525 = vmatmul.mubr.bf16.gmra.mrb[0].mxu0 %v9324
        %v9526 = vpop.f32.mrb[0].mxu0
        %v9527 = vadd.f32 0.0, %v9526
        %v9528 = vpop.f32.mrb[0].mxu0
        %v9529 = vpop.f32.mrb[0].mxu0
        %v9530 = vadd.f32 0.0, %v9529
        %v9531 = vpop.f32.mrb[0].mxu0
        %9532 = vmatprep.mubr.bf16.mxu0 0
        %9533 = vmatmul.mubr.bf16.gmra.mrb[0].mxu0 %v9323
        %v9534 = vpop.f32.mrb[0].mxu0
        %v9535 = vadd.f32 0.0, %v9534
        %v9536 = vpop.f32.mrb[0].mxu0
        %v9537 = vpop.f32.mrb[0].mxu0
        %v9538 = vpop.f32.mrb[0].mxu0
        %9539 = vdwg.mxu0
        %v9540 = vadd.f32 %v9250, %v9423
        %v9541 = vadd.f32 %v9251, %v9426
        %v9542 = vadd.f32 %v9252, %v9431
        %v9543 = vadd.f32 %v9253, %v9434
        %v9544 = vadd.f32 %v9254, %v9439
        %v9545 = vadd.f32 %v9255, %v9442
        %v9546 = vadd.f32 %v9256, %v9447
        %v9547 = vadd.f32 %v9257, %v9450
        %v9548 = vadd.f32 %v9258, %v9455
        %v9549 = vadd.f32 %v9259, %v9458
        %v9550 = vadd.f32 %v9260, %v9463
        %v9551 = vadd.f32 %v9261, %v9466
        %v9552 = vadd.f32 %v9262, %v9471
        %v9553 = vadd.f32 %v9263, %v9474
        %v9554 = vadd.f32 %v9264, %v9479
        %v9555 = vadd.f32 %v9265, %v9482
        %v9556 = vadd.f32 %v9266, %v9487
        %v9557 = vadd.f32 %v9267, %v9490
        %v9558 = vadd.f32 %v9268, %v9495
        %v9559 = vadd.f32 %v9269, %v9498
        %v9560 = vadd.f32 %v9270, %v9503
        %v9561 = vadd.f32 %v9271, %v9506
        %v9562 = vadd.f32 %v9272, %v9511
        %v9563 = vadd.f32 %v9273, %v9514
        %v9564 = vadd.f32 %v9274, %v9519
        %v9565 = vadd.f32 %v9275, %v9522
        %v9566 = vadd.f32 %v9276, %v9527
        %v9567 = vadd.f32 %v9277, %v9530
        %v9568 = vadd.f32 %v9278, %v9535
        %v9569 = vld [vmem:[%s9] sm:$0x1]
        %v9571 = vlaneseq
        %v9572 = vshrl.u32 %v9571, 7
        %v9573 = vsub.s32 0, %v9572
        %v9574 = vrot.slane %v9569, %v9573
        %v9576 = vadd.f32 %v9540, %v9574
        %v9577 = vadd.f32 %v9541, %v9574
        %v9578 = vadd.f32 %v9542, %v9574
        %v9579 = vadd.f32 %v9543, %v9574
        %v9580 = vadd.f32 %v9544, %v9574
        %v9581 = vadd.f32 %v9545, %v9574
        %v9582 = vadd.f32 %v9546, %v9574
        %v9583 = vadd.f32 %v9547, %v9574
        %v9584 = vadd.f32 %v9548, %v9574
        %v9585 = vadd.f32 %v9549, %v9574
        %v9586 = vadd.f32 %v9550, %v9574
        %v9587 = vadd.f32 %v9551, %v9574
        %v9588 = vadd.f32 %v9552, %v9574
        %v9589 = vadd.f32 %v9553, %v9574
        %v9590 = vadd.f32 %v9554, %v9574
        %v9591 = vadd.f32 %v9555, %v9574
        %v9592 = vadd.f32 %v9556, %v9574
        %v9593 = vadd.f32 %v9557, %v9574
        %v9594 = vadd.f32 %v9558, %v9574
        %v9595 = vadd.f32 %v9559, %v9574
        %v9596 = vadd.f32 %v9560, %v9574
        %v9597 = vadd.f32 %v9561, %v9574
        %v9598 = vadd.f32 %v9562, %v9574
        %v9599 = vadd.f32 %v9563, %v9574
        %v9600 = vadd.f32 %v9564, %v9574
        %v9601 = vadd.f32 %v9565, %v9574
        %v9602 = vadd.f32 %v9566, %v9574
        %v9603 = vadd.f32 %v9567, %v9574
        %v9604 = vadd.f32 %v9568, %v9574
        %v9605 = vmax.f32 %v9576, 0.0
        %v9606 = vmax.f32 %v9577, 0.0
        %v9607 = vmax.f32 %v9578, 0.0
        %v9608 = vmax.f32 %v9579, 0.0
        %v9609 = vmax.f32 %v9580, 0.0
        %v9610 = vmax.f32 %v9581, 0.0
        %v9611 = vmax.f32 %v9582, 0.0
        %v9612 = vmax.f32 %v9583, 0.0
        %v9613 = vmax.f32 %v9584, 0.0
        %v9614 = vmax.f32 %v9585, 0.0
        %v9615 = vmax.f32 %v9586, 0.0
        %v9616 = vmax.f32 %v9587, 0.0
        %v9617 = vmax.f32 %v9588, 0.0
        %v9618 = vmax.f32 %v9589, 0.0
        %v9619 = vmax.f32 %v9590, 0.0
        %v9620 = vmax.f32 %v9591, 0.0
        %v9621 = vmax.f32 %v9592, 0.0
        %v9622 = vmax.f32 %v9593, 0.0
        %v9623 = vmax.f32 %v9594, 0.0
        %v9624 = vmax.f32 %v9595, 0.0
        %v9625 = vmax.f32 %v9596, 0.0
        %v9626 = vmax.f32 %v9597, 0.0
        %v9627 = vmax.f32 %v9598, 0.0
        %v9628 = vmax.f32 %v9599, 0.0
        %v9629 = vmax.f32 %v9600, 0.0
        %v9630 = vmax.f32 %v9601, 0.0
        %v9631 = vmax.f32 %v9602, 0.0
        %v9632 = vmax.f32 %v9603, 0.0
        %v9633 = vmax.f32 %v9604, 0.0
        %v9634 = vpack.c.bf16 %v9606, %v9605
        %v9635 = vpack.c.bf16 %v9608, %v9607
        %v9636 = vpack.c.bf16 %v9610, %v9609
        %v9637 = vpack.c.bf16 %v9612, %v9611
        %v9638 = vpack.c.bf16 %v9614, %v9613
        %v9639 = vpack.c.bf16 %v9616, %v9615
        %v9640 = vpack.c.bf16 %v9618, %v9617
        %v9641 = vpack.c.bf16 %v9620, %v9619
        %v9642 = vpack.c.bf16 %v9622, %v9621
        %v9643 = vpack.c.bf16 %v9624, %v9623
        %v9644 = vpack.c.bf16 %v9626, %v9625
        %v9645 = vpack.c.bf16 %v9628, %v9627
        %v9646 = vpack.c.bf16 %v9630, %v9629
        %v9647 = vpack.c.bf16 %v9632, %v9631
        %v9648 = vpack.c.bf16 %v9633, %v9633
        %v9664 = vrot.slane %v9634, 1
        %v9665 = vrot.slane %v9635, 1
        %v9666 = vsel %vm1334, %v9664, %v9665
        %v9667 = vrot.slane %v9636, 1
        %v9668 = vsel %vm1334, %v9665, %v9667
        %v9669 = vrot.slane %v9637, 1
        %v9670 = vsel %vm1334, %v9667, %v9669
        %v9671 = vrot.slane %v9638, 1
        %v9672 = vsel %vm1334, %v9669, %v9671
        %v9673 = vrot.slane %v9639, 1
        %v9674 = vsel %vm1334, %v9671, %v9673
        %v9675 = vrot.slane %v9640, 1
        %v9676 = vsel %vm1334, %v9673, %v9675
        %v9677 = vrot.slane %v9641, 1
        %v9678 = vsel %vm1334, %v9675, %v9677
        %v9679 = vrot.slane %v9642, 1
        %v9680 = vsel %vm1334, %v9677, %v9679
        %v9681 = vrot.slane %v9643, 1
        %v9682 = vsel %vm1334, %v9679, %v9681
        %v9683 = vrot.slane %v9644, 1
        %v9684 = vsel %vm1334, %v9681, %v9683
        %v9685 = vrot.slane %v9645, 1
        %v9686 = vsel %vm1334, %v9683, %v9685
        %v9687 = vrot.slane %v9646, 1
        %v9688 = vsel %vm1334, %v9685, %v9687
        %v9689 = vrot.slane %v9647, 1
        %v9690 = vsel %vm1334, %v9687, %v9689
        %v9691 = vrot.slane %v9648, 1
        %v9692 = vsel %vm1334, %v9689, %v9691
        %v9708 = vmax.bf16 %v9634, %v9666
        %v9709 = vmax.bf16 %v9635, %v9668
        %v9710 = vmax.bf16 %v9636, %v9670
        %v9711 = vmax.bf16 %v9637, %v9672
        %v9712 = vmax.bf16 %v9638, %v9674
        %v9713 = vmax.bf16 %v9639, %v9676
        %v9714 = vmax.bf16 %v9640, %v9678
        %v9715 = vmax.bf16 %v9641, %v9680
        %v9716 = vmax.bf16 %v9642, %v9682
        %v9717 = vmax.bf16 %v9643, %v9684
        %v9718 = vmax.bf16 %v9644, %v9686
        %v9719 = vmax.bf16 %v9645, %v9688
        %v9720 = vmax.bf16 %v9646, %v9690
        %v9721 = vmax.bf16 %v9647, %v9692
        %v9722 = vmax.bf16 %v9648, %v9691
        %v9723 = vld [vmem:[%s10] sm:$0xf]
        %v9724 = vld [vmem:[%s10 + $0x4] sm:$0xf]
        %v9725 = vld [vmem:[%s10 + $0x8] sm:$0xf]
        %v9726 = vld [vmem:[%s10 + $0xc] sm:$0xf]
        %v9727 = vld [vmem:[%s10 + $0x10] sm:$0xf]
        %v9728 = vld [vmem:[%s10 + $0x14] sm:$0xf]
        %v9729 = vld [vmem:[%s10 + $0x18] sm:$0xf]
        %v9730 = vld [vmem:[%s10 + $0x1c] sm:$0xf]
        %v9739 = vunpack.c.l.b16 %v9723
        %v9740 = vunpack.c.l.b16 %v9724
        %v9741 = vunpack.c.l.b16 %v9725
        %v9742 = vunpack.c.l.b16 %v9726
        %v9743 = vunpack.c.l.b16 %v9727
        %v9744 = vunpack.c.l.b16 %v9728
        %v9745 = vunpack.c.l.b16 %v9729
        %v9746 = vunpack.c.l.b16 %v9730
        %v9747 = vpack.c.b16 %v9740, %v9739
        %v9748 = vpack.c.b16 %v9742, %v9741
        %v9749 = vpack.c.b16 %v9744, %v9743
        %v9750 = vpack.c.b16 %v9746, %v9745
        %v9756 = vsel %vm6146, %v9708, 0
        %v9759 = vsel %vm6146, %v9709, 0
        %v9762 = vsel %vm6146, %v9710, 0
        %v9765 = vsel %vm6146, %v9711, 0
        %v9768 = vsel %vm6146, %v9712, 0
        %v9771 = vsel %vm6146, %v9713, 0
        %v9774 = vsel %vm6146, %v9714, 0
        %v9777 = vsel %vm6146, %v9715, 0
        %v9780 = vsel %vm6146, %v9716, 0
        %v9783 = vsel %vm6146, %v9717, 0
        %v9786 = vsel %vm6146, %v9718, 0
        %v9789 = vsel %vm6146, %v9719, 0
        %v9792 = vsel %vm6146, %v9720, 0
        %v9795 = vsel %vm6146, %v9721, 0
        %v9798 = vsel %vm6146, %v9722, 0
        %9800 = vmatprep.subr.bf16.mxu0 0
        %9801 = vmatpush1.bf16.msra.mxu0 %v9747
        %9802 = vmatprep.subr.bf16.mxu0 0
        %9803 = vmatpush1.bf16.msra.mxu0 %v9748
        %9804 = vmatprep.subr.bf16.mxu0 0
        %9805 = vmatpush1.bf16.msra.mxu0 %v9749
        %9806 = vmatprep.subr.bf16.mxu0 0
        %9807 = vmatpush1.bf16.msra.mxu0 %v9750
        %9808 = vmatprep.subr.bf16.mxu0 0
        %9809 = vmatpush1.bf16.msra.mxu0 0
        %9810 = vmatprep.subr.bf16.mxu0 0
        %9811 = vmatpush1.bf16.msra.mxu0 0
        %9812 = vmatprep.subr.bf16.mxu0 0
        %9813 = vmatpush1.bf16.msra.mxu0 0
        %9814 = vmatprep.subr.bf16.mxu0 0
        %9815 = vmatpush1.bf16.msra.mxu0 0
        %9816 = vmatprep.subr.bf16.mxu0 0
        %9817 = vmatpush1.bf16.msra.mxu0 0
        %9818 = vmatprep.subr.bf16.mxu0 0
        %9819 = vmatpush1.bf16.msra.mxu0 0
        %9820 = vmatprep.subr.bf16.mxu0 0
        %9821 = vmatpush1.bf16.msra.mxu0 0
        %9822 = vmatprep.subr.bf16.mxu0 0
        %9823 = vmatpush1.bf16.msra.mxu0 0
        %9824 = vmatprep.subr.bf16.mxu0 0
        %9825 = vmatpush1.bf16.msra.mxu0 0
        %9826 = vmatprep.subr.bf16.mxu0 0
        %9827 = vmatpush1.bf16.msra.mxu0 0
        %9828 = vmatprep.subr.bf16.mxu0 0
        %9829 = vmatpush1.bf16.msra.mxu0 0
        %9830 = vmatprep.subr.bf16.mxu0 0
        %9831 = vmatpush1.bf16.msra.mxu0 0
        %9832 = vmatprep.mubr.bf16.mxu0 0
        %9833 = vmatmul.mubr.bf16.gmra.mrb[0].mxu0 %v9756
        %v9834 = vpop.f32.mrb[0].mxu0
        %v9835 = vadd.f32 0.0, %v9834
        %v9836 = vpop.f32.mrb[0].mxu0
        %v9837 = vpop.f32.mrb[0].mxu0
        %v9838 = vadd.f32 0.0, %v9837
        %v9839 = vpop.f32.mrb[0].mxu0
        %9840 = vmatprep.mubr.bf16.mxu0 0
        %9841 = vmatmul.mubr.bf16.gmra.mrb[0].mxu0 %v9759
        %v9842 = vpop.f32.mrb[0].mxu0
        %v9843 = vadd.f32 0.0, %v9842
        %v9844 = vpop.f32.mrb[0].mxu0
        %v9845 = vpop.f32.mrb[0].mxu0
        %v9846 = vadd.f32 0.0, %v9845
        %v9847 = vpop.f32.mrb[0].mxu0
        %9848 = vmatprep.mubr.bf16.mxu0 0
        %9849 = vmatmul.mubr.bf16.gmra.mrb[0].mxu0 %v9762
        %v9850 = vpop.f32.mrb[0].mxu0
        %v9851 = vadd.f32 0.0, %v9850
        %v9852 = vpop.f32.mrb[0].mxu0
        %v9853 = vpop.f32.mrb[0].mxu0
        %v9854 = vadd.f32 0.0, %v9853
        %v9855 = vpop.f32.mrb[0].mxu0
        %9856 = vmatprep.mubr.bf16.mxu0 0
        %9857 = vmatmul.mubr.bf16.gmra.mrb[0].mxu0 %v9765
        %v9858 = vpop.f32.mrb[0].mxu0
        %v9859 = vadd.f32 0.0, %v9858
        %v9860 = vpop.f32.mrb[0].mxu0
        %v9861 = vpop.f32.mrb[0].mxu0
        %v9862 = vadd.f32 0.0, %v9861
        %v9863 = vpop.f32.mrb[0].mxu0
        %9864 = vmatprep.mubr.bf16.mxu0 0
        %9865 = vmatmul.mubr.bf16.gmra.mrb[0].mxu0 %v9768
        %v9866 = vpop.f32.mrb[0].mxu0
        %v9867 = vadd.f32 0.0, %v9866
        %v9868 = vpop.f32.mrb[0].mxu0
        %v9869 = vpop.f32.mrb[0].mxu0
        %v9870 = vadd.f32 0.0, %v9869
        %v9871 = vpop.f32.mrb[0].mxu0
        %9872 = vmatprep.mubr.bf16.mxu0 0
        %9873 = vmatmul.mubr.bf16.gmra.mrb[0].mxu0 %v9771
        %v9874 = vpop.f32.mrb[0].mxu0
        %v9875 = vadd.f32 0.0, %v9874
        %v9876 = vpop.f32.mrb[0].mxu0
        %v9877 = vpop.f32.mrb[0].mxu0
        %v9878 = vadd.f32 0.0, %v9877
        %v9879 = vpop.f32.mrb[0].mxu0
        %9880 = vmatprep.mubr.bf16.mxu0 0
        %9881 = vmatmul.mubr.bf16.gmra.mrb[0].mxu0 %v9774
        %v9882 = vpop.f32.mrb[0].mxu0
        %v9883 = vadd.f32 0.0, %v9882
        %v9884 = vpop.f32.mrb[0].mxu0
        %v9885 = vpop.f32.mrb[0].mxu0
        %v9886 = vadd.f32 0.0, %v9885
        %v9887 = vpop.f32.mrb[0].mxu0
        %9888 = vmatprep.mubr.bf16.mxu0 0
        %9889 = vmatmul.mubr.bf16.gmra.mrb[0].mxu0 %v9777
        %v9890 = vpop.f32.mrb[0].mxu0
        %v9891 = vadd.f32 0.0, %v9890
        %v9892 = vpop.f32.mrb[0].mxu0
        %v9893 = vpop.f32.mrb[0].mxu0
        %v9894 = vadd.f32 0.0, %v9893
        %v9895 = vpop.f32.mrb[0].mxu0
        %9896 = vmatprep.mubr.bf16.mxu0 0
        %9897 = vmatmul.mubr.bf16.gmra.mrb[0].mxu0 %v9780
        %v9898 = vpop.f32.mrb[0].mxu0
        %v9899 = vadd.f32 0.0, %v9898
        %v9900 = vpop.f32.mrb[0].mxu0
        %v9901 = vpop.f32.mrb[0].mxu0
        %v9902 = vadd.f32 0.0, %v9901
        %v9903 = vpop.f32.mrb[0].mxu0
        %9904 = vmatprep.mubr.bf16.mxu0 0
        %9905 = vmatmul.mubr.bf16.gmra.mrb[0].mxu0 %v9783
        %v9906 = vpop.f32.mrb[0].mxu0
        %v9907 = vadd.f32 0.0, %v9906
        %v9908 = vpop.f32.mrb[0].mxu0
        %v9909 = vpop.f32.mrb[0].mxu0
        %v9910 = vadd.f32 0.0, %v9909
        %v9911 = vpop.f32.mrb[0].mxu0
        %9912 = vmatprep.mubr.bf16.mxu0 0
        %9913 = vmatmul.mubr.bf16.gmra.mrb[0].mxu0 %v9786
        %v9914 = vpop.f32.mrb[0].mxu0
        %v9915 = vadd.f32 0.0, %v9914
        %v9916 = vpop.f32.mrb[0].mxu0
        %v9917 = vpop.f32.mrb[0].mxu0
        %v9918 = vadd.f32 0.0, %v9917
        %v9919 = vpop.f32.mrb[0].mxu0
        %9920 = vmatprep.mubr.bf16.mxu0 0
        %9921 = vmatmul.mubr.bf16.gmra.mrb[0].mxu0 %v9789
        %v9922 = vpop.f32.mrb[0].mxu0
        %v9923 = vadd.f32 0.0, %v9922
        %v9924 = vpop.f32.mrb[0].mxu0
        %v9925 = vpop.f32.mrb[0].mxu0
        %v9926 = vadd.f32 0.0, %v9925
        %v9927 = vpop.f32.mrb[0].mxu0
        %9928 = vmatprep.mubr.bf16.mxu0 0
        %9929 = vmatmul.mubr.bf16.gmra.mrb[0].mxu0 %v9792
        %v9930 = vpop.f32.mrb[0].mxu0
        %v9931 = vadd.f32 0.0, %v9930
        %v9932 = vpop.f32.mrb[0].mxu0
        %v9933 = vpop.f32.mrb[0].mxu0
        %v9934 = vadd.f32 0.0, %v9933
        %v9935 = vpop.f32.mrb[0].mxu0
        %9936 = vmatprep.mubr.bf16.mxu0 0
        %9937 = vmatmul.mubr.bf16.gmra.mrb[0].mxu0 %v9795
        %v9938 = vpop.f32.mrb[0].mxu0
        %v9939 = vadd.f32 0.0, %v9938
        %v9940 = vpop.f32.mrb[0].mxu0
        %v9941 = vpop.f32.mrb[0].mxu0
        %v9942 = vadd.f32 0.0, %v9941
        %v9943 = vpop.f32.mrb[0].mxu0
        %9944 = vmatprep.mubr.bf16.mxu0 0
        %9945 = vmatmul.mubr.bf16.gmra.mrb[0].mxu0 %v9798
        %v9946 = vpop.f32.mrb[0].mxu0
        %v9947 = vadd.f32 0.0, %v9946
        %v9948 = vpop.f32.mrb[0].mxu0
        %v9949 = vpop.f32.mrb[0].mxu0
        %v9950 = vpop.f32.mrb[0].mxu0
        %9951 = vdwg.mxu0
        %s9952 = scalar_lea.vmem %s10, 32
        %v9953 = vld [vmem:[%s9952] sm:$0xf]
        %v9954 = vld [vmem:[%s9952 + $0x4] sm:$0xf]
        %v9955 = vld [vmem:[%s9952 + $0x8] sm:$0xf]
        %v9956 = vld [vmem:[%s9952 + $0xc] sm:$0xf]
        %v9957 = vld [vmem:[%s9952 + $0x10] sm:$0xf]
        %v9958 = vld [vmem:[%s9952 + $0x14] sm:$0xf]
        %v9959 = vld [vmem:[%s9952 + $0x18] sm:$0xf]
        %v9960 = vld [vmem:[%s9952 + $0x1c] sm:$0xf]
        %v9969 = vunpack.c.l.b16 %v9953
        %v9970 = vunpack.c.l.b16 %v9954
        %v9971 = vunpack.c.l.b16 %v9955
        %v9972 = vunpack.c.l.b16 %v9956
        %v9973 = vunpack.c.l.b16 %v9957
        %v9974 = vunpack.c.l.b16 %v9958
        %v9975 = vunpack.c.l.b16 %v9959
        %v9976 = vunpack.c.l.b16 %v9960
        %v9977 = vpack.c.b16 %v9970, %v9969
        %v9978 = vpack.c.b16 %v9972, %v9971
        %v9979 = vpack.c.b16 %v9974, %v9973
        %v9980 = vpack.c.b16 %v9976, %v9975
        %9985 = vmatprep.subr.bf16.mxu0 0
        %9986 = vmatpush1.bf16.msra.mxu0 %v9977
        %9987 = vmatprep.subr.bf16.mxu0 0
        %9988 = vmatpush1.bf16.msra.mxu0 %v9978
        %9989 = vmatprep.subr.bf16.mxu0 0
        %9990 = vmatpush1.bf16.msra.mxu0 %v9979
        %9991 = vmatprep.subr.bf16.mxu0 0
        %9992 = vmatpush1.bf16.msra.mxu0 %v9980
        %9993 = vmatprep.subr.bf16.mxu0 0
        %9994 = vmatpush1.bf16.msra.mxu0 0
        %9995 = vmatprep.subr.bf16.mxu0 0
        %9996 = vmatpush1.bf16.msra.mxu0 0
        %9997 = vmatprep.subr.bf16.mxu0 0
        %9998 = vmatpush1.bf16.msra.mxu0 0
        %9999 = vmatprep.subr.bf16.mxu0 0
        %10000 = vmatpush1.bf16.msra.mxu0 0
        %10001 = vmatprep.subr.bf16.mxu0 0
        %10002 = vmatpush1.bf16.msra.mxu0 0
        %10003 = vmatprep.subr.bf16.mxu0 0
        %10004 = vmatpush1.bf16.msra.mxu0 0
        %10005 = vmatprep.subr.bf16.mxu0 0
        %10006 = vmatpush1.bf16.msra.mxu0 0
        %10007 = vmatprep.subr.bf16.mxu0 0
        %10008 = vmatpush1.bf16.msra.mxu0 0
        %10009 = vmatprep.subr.bf16.mxu0 0
        %10010 = vmatpush1.bf16.msra.mxu0 0
        %10011 = vmatprep.subr.bf16.mxu0 0
        %10012 = vmatpush1.bf16.msra.mxu0 0
        %10013 = vmatprep.subr.bf16.mxu0 0
        %10014 = vmatpush1.bf16.msra.mxu0 0
        %10015 = vmatprep.subr.bf16.mxu0 0
        %10016 = vmatpush1.bf16.msra.mxu0 0
        %10017 = vmatprep.mubr.bf16.mxu0 0
        %10018 = vmatmul.mubr.bf16.gmra.mrb[0].mxu0 %v9756
        %v10019 = vpop.f32.mrb[0].mxu0
        %v10020 = vadd.f32 0.0, %v10019
        %v10021 = vpop.f32.mrb[0].mxu0
        %v10022 = vpop.f32.mrb[0].mxu0
        %v10023 = vadd.f32 0.0, %v10022
        %v10024 = vpop.f32.mrb[0].mxu0
        %10025 = vmatprep.mubr.bf16.mxu0 0
        %10026 = vmatmul.mubr.bf16.gmra.mrb[0].mxu0 %v9759
        %v10027 = vpop.f32.mrb[0].mxu0
        %v10028 = vadd.f32 0.0, %v10027
        %v10029 = vpop.f32.mrb[0].mxu0
        %v10030 = vpop.f32.mrb[0].mxu0
        %v10031 = vadd.f32 0.0, %v10030
        %v10032 = vpop.f32.mrb[0].mxu0
        %10033 = vmatprep.mubr.bf16.mxu0 0
        %10034 = vmatmul.mubr.bf16.gmra.mrb[0].mxu0 %v9762
        %v10035 = vpop.f32.mrb[0].mxu0
        %v10036 = vadd.f32 0.0, %v10035
        %v10037 = vpop.f32.mrb[0].mxu0
        %v10038 = vpop.f32.mrb[0].mxu0
        %v10039 = vadd.f32 0.0, %v10038
        %v10040 = vpop.f32.mrb[0].mxu0
        %10041 = vmatprep.mubr.bf16.mxu0 0
        %10042 = vmatmul.mubr.bf16.gmra.mrb[0].mxu0 %v9765
        %v10043 = vpop.f32.mrb[0].mxu0
        %v10044 = vadd.f32 0.0, %v10043
        %v10045 = vpop.f32.mrb[0].mxu0
        %v10046 = vpop.f32.mrb[0].mxu0
        %v10047 = vadd.f32 0.0, %v10046
        %v10048 = vpop.f32.mrb[0].mxu0
        %10049 = vmatprep.mubr.bf16.mxu0 0
        %10050 = vmatmul.mubr.bf16.gmra.mrb[0].mxu0 %v9768
        %v10051 = vpop.f32.mrb[0].mxu0
        %v10052 = vadd.f32 0.0, %v10051
        %v10053 = vpop.f32.mrb[0].mxu0
        %v10054 = vpop.f32.mrb[0].mxu0
        %v10055 = vadd.f32 0.0, %v10054
        %v10056 = vpop.f32.mrb[0].mxu0
        %10057 = vmatprep.mubr.bf16.mxu0 0
        %10058 = vmatmul.mubr.bf16.gmra.mrb[0].mxu0 %v9771
        %v10059 = vpop.f32.mrb[0].mxu0
        %v10060 = vadd.f32 0.0, %v10059
        %v10061 = vpop.f32.mrb[0].mxu0
        %v10062 = vpop.f32.mrb[0].mxu0
        %v10063 = vadd.f32 0.0, %v10062
        %v10064 = vpop.f32.mrb[0].mxu0
        %10065 = vmatprep.mubr.bf16.mxu0 0
        %10066 = vmatmul.mubr.bf16.gmra.mrb[0].mxu0 %v9774
        %v10067 = vpop.f32.mrb[0].mxu0
        %v10068 = vadd.f32 0.0, %v10067
        %v10069 = vpop.f32.mrb[0].mxu0
        %v10070 = vpop.f32.mrb[0].mxu0
        %v10071 = vadd.f32 0.0, %v10070
        %v10072 = vpop.f32.mrb[0].mxu0
        %10073 = vmatprep.mubr.bf16.mxu0 0
        %10074 = vmatmul.mubr.bf16.gmra.mrb[0].mxu0 %v9777
        %v10075 = vpop.f32.mrb[0].mxu0
        %v10076 = vadd.f32 0.0, %v10075
        %v10077 = vpop.f32.mrb[0].mxu0
        %v10078 = vpop.f32.mrb[0].mxu0
        %v10079 = vadd.f32 0.0, %v10078
        %v10080 = vpop.f32.mrb[0].mxu0
        %10081 = vmatprep.mubr.bf16.mxu0 0
        %10082 = vmatmul.mubr.bf16.gmra.mrb[0].mxu0 %v9780
        %v10083 = vpop.f32.mrb[0].mxu0
        %v10084 = vadd.f32 0.0, %v10083
        %v10085 = vpop.f32.mrb[0].mxu0
        %v10086 = vpop.f32.mrb[0].mxu0
        %v10087 = vadd.f32 0.0, %v10086
        %v10088 = vpop.f32.mrb[0].mxu0
        %10089 = vmatprep.mubr.bf16.mxu0 0
        %10090 = vmatmul.mubr.bf16.gmra.mrb[0].mxu0 %v9783
        %v10091 = vpop.f32.mrb[0].mxu0
        %v10092 = vadd.f32 0.0, %v10091
        %v10093 = vpop.f32.mrb[0].mxu0
        %v10094 = vpop.f32.mrb[0].mxu0
        %v10095 = vadd.f32 0.0, %v10094
        %v10096 = vpop.f32.mrb[0].mxu0
        %10097 = vmatprep.mubr.bf16.mxu0 0
        %10098 = vmatmul.mubr.bf16.gmra.mrb[0].mxu0 %v9786
        %v10099 = vpop.f32.mrb[0].mxu0
        %v10100 = vadd.f32 0.0, %v10099
        %v10101 = vpop.f32.mrb[0].mxu0
        %v10102 = vpop.f32.mrb[0].mxu0
        %v10103 = vadd.f32 0.0, %v10102
        %v10104 = vpop.f32.mrb[0].mxu0
        %10105 = vmatprep.mubr.bf16.mxu0 0
        %10106 = vmatmul.mubr.bf16.gmra.mrb[0].mxu0 %v9789
        %v10107 = vpop.f32.mrb[0].mxu0
        %v10108 = vadd.f32 0.0, %v10107
        %v10109 = vpop.f32.mrb[0].mxu0
        %v10110 = vpop.f32.mrb[0].mxu0
        %v10111 = vadd.f32 0.0, %v10110
        %v10112 = vpop.f32.mrb[0].mxu0
        %10113 = vmatprep.mubr.bf16.mxu0 0
        %10114 = vmatmul.mubr.bf16.gmra.mrb[0].mxu0 %v9792
        %v10115 = vpop.f32.mrb[0].mxu0
        %v10116 = vadd.f32 0.0, %v10115
        %v10117 = vpop.f32.mrb[0].mxu0
        %v10118 = vpop.f32.mrb[0].mxu0
        %v10119 = vadd.f32 0.0, %v10118
        %v10120 = vpop.f32.mrb[0].mxu0
        %10121 = vmatprep.mubr.bf16.mxu0 0
        %10122 = vmatmul.mubr.bf16.gmra.mrb[0].mxu0 %v9795
        %v10123 = vpop.f32.mrb[0].mxu0
        %v10124 = vadd.f32 0.0, %v10123
        %v10125 = vpop.f32.mrb[0].mxu0
        %v10126 = vpop.f32.mrb[0].mxu0
        %v10127 = vadd.f32 0.0, %v10126
        %v10128 = vpop.f32.mrb[0].mxu0
        %10129 = vmatprep.mubr.bf16.mxu0 0
        %10130 = vmatmul.mubr.bf16.gmra.mrb[0].mxu0 %v9798
        %v10131 = vpop.f32.mrb[0].mxu0
        %v10132 = vadd.f32 0.0, %v10131
        %v10133 = vpop.f32.mrb[0].mxu0
        %v10134 = vpop.f32.mrb[0].mxu0
        %v10135 = vpop.f32.mrb[0].mxu0
        %10136 = vdwg.mxu0
        %v10137 = vmax.f32 %v9835, %v10020
        %v10138 = vmax.f32 %v9838, %v10023
        %v10139 = vmax.f32 %v9843, %v10028
        %v10140 = vmax.f32 %v9846, %v10031
        %v10141 = vmax.f32 %v9851, %v10036
        %v10142 = vmax.f32 %v9854, %v10039
        %v10143 = vmax.f32 %v9859, %v10044
        %v10144 = vmax.f32 %v9862, %v10047
        %v10145 = vmax.f32 %v9867, %v10052
        %v10146 = vmax.f32 %v9870, %v10055
        %v10147 = vmax.f32 %v9875, %v10060
        %v10148 = vmax.f32 %v9878, %v10063
        %v10149 = vmax.f32 %v9883, %v10068
        %v10150 = vmax.f32 %v9886, %v10071
        %v10151 = vmax.f32 %v9891, %v10076
        %v10152 = vmax.f32 %v9894, %v10079
        %v10153 = vmax.f32 %v9899, %v10084
        %v10154 = vmax.f32 %v9902, %v10087
        %v10155 = vmax.f32 %v9907, %v10092
        %v10156 = vmax.f32 %v9910, %v10095
        %v10157 = vmax.f32 %v9915, %v10100
        %v10158 = vmax.f32 %v9918, %v10103
        %v10159 = vmax.f32 %v9923, %v10108
        %v10160 = vmax.f32 %v9926, %v10111
        %v10161 = vmax.f32 %v9931, %v10116
        %v10162 = vmax.f32 %v9934, %v10119
        %v10163 = vmax.f32 %v9939, %v10124
        %v10164 = vmax.f32 %v9942, %v10127
        %v10165 = vmax.f32 %v9947, %v10132
        %v10166 = vpack.c.bf16 %v10138, %v10137
        %v10167 = vpack.c.bf16 %v10140, %v10139
        %v10168 = vpack.c.bf16 %v10142, %v10141
        %v10169 = vpack.c.bf16 %v10144, %v10143
        %v10170 = vpack.c.bf16 %v10146, %v10145
        %v10171 = vpack.c.bf16 %v10148, %v10147
        %v10172 = vpack.c.bf16 %v10150, %v10149
        %v10173 = vpack.c.bf16 %v10152, %v10151
        %v10174 = vpack.c.bf16 %v10154, %v10153
        %v10175 = vpack.c.bf16 %v10156, %v10155
        %v10176 = vpack.c.bf16 %v10158, %v10157
        %v10177 = vpack.c.bf16 %v10160, %v10159
        %v10178 = vpack.c.bf16 %v10162, %v10161
        %v10179 = vpack.c.bf16 %v10164, %v10163
        %v10180 = vpack.c.bf16 %v10165, %v10165
        %v10181 = vld [vmem:[%s11] sm:$0xff]
        %v10183 = vunpack.c.l.b16 %v10181
        %v10184 = vunpack.c.h.b16 %v10181
        %v10185 = vpack.c.b16 %v10183, %v10183
        %v10186 = vpack.c.b16 %v10184, %v10184
        %vm10188 = vcmask 826368
        %v10190 = vsel %vm10188, %v10186, 0
        %vm10192 = vcmask 1041408
        %vm10193 = vcmask 1042432
        %v10194 = vsel %vm10192, 4294967295, 65535
        %v10195 = vsel %vm10193, %v10194, 0
        %v10197 = vand.u32 %v10180, %v10195
        %10199 = vmatprep.subr.bf16.mxu0 0
        %10200 = vmatpush1.bf16.msra.mxu0 %v10166
        %10201 = vmatprep.subr.bf16.mxu0 0
        %10202 = vmatpush1.bf16.msra.mxu0 %v10167
        %10203 = vmatprep.subr.bf16.mxu0 0
        %10204 = vmatpush1.bf16.msra.mxu0 %v10168
        %10205 = vmatprep.subr.bf16.mxu0 0
        %10206 = vmatpush1.bf16.msra.mxu0 %v10169
        %10207 = vmatprep.subr.bf16.mxu0 0
        %10208 = vmatpush1.bf16.msra.mxu0 %v10170
        %10209 = vmatprep.subr.bf16.mxu0 0
        %10210 = vmatpush1.bf16.msra.mxu0 %v10171
        %10211 = vmatprep.subr.bf16.mxu0 0
        %10212 = vmatpush1.bf16.msra.mxu0 %v10172
        %10213 = vmatprep.subr.bf16.mxu0 0
        %10214 = vmatpush1.bf16.msra.mxu0 %v10173
        %10215 = vmatprep.subr.bf16.mxu0 0
        %10216 = vmatpush1.bf16.msra.mxu0 %v10174
        %10217 = vmatprep.subr.bf16.mxu0 0
        %10218 = vmatpush1.bf16.msra.mxu0 %v10175
        %10219 = vmatprep.subr.bf16.mxu0 0
        %10220 = vmatpush1.bf16.msra.mxu0 %v10176
        %10221 = vmatprep.subr.bf16.mxu0 0
        %10222 = vmatpush1.bf16.msra.mxu0 %v10177
        %10223 = vmatprep.subr.bf16.mxu0 0
        %10224 = vmatpush1.bf16.msra.mxu0 %v10178
        %10225 = vmatprep.subr.bf16.mxu0 0
        %10226 = vmatpush1.bf16.msra.mxu0 %v10179
        %10227 = vmatprep.subr.bf16.mxu0 0
        %10228 = vmatpush1.bf16.msra.mxu0 %v10197
        %10229 = vmatprep.subr.bf16.mxu0 0
        %10230 = vmatpush1.bf16.msra.mxu0 0
        %10231 = vmatprep.mubr.bf16.mxu0 %v10190
        %10232 = vmatmul.mubr.bf16.gmra.mrb[0].mxu0 %v10185
        %v10233 = vpop.f32.mrb[0].mxu0
        %v10234 = vadd.f32 0.0, %v10233
        %v10235 = vpop.f32.mrb[0].mxu0
        %v10236 = vpop.f32.mrb[0].mxu0
        %v10237 = vpop.f32.mrb[0].mxu0
        %10238 = vdwg.mxu0
        %s10239 = scalar_lea.vmem %s11, 8
        %v10240 = vld [vmem:[%s10239] sm:$0xff]
        %v10242 = vunpack.c.l.b16 %v10240
        %v10243 = vunpack.c.h.b16 %v10240
        %v10244 = vpack.c.b16 %v10242, %v10242
        %v10245 = vpack.c.b16 %v10243, %v10243
        %v10248 = vsel %vm10188, %v10245, 0
        %10250 = vmatprep.subr.bf16.mxu0 0
        %10251 = vmatpush1.bf16.msra.mxu0 %v10166
        %10252 = vmatprep.subr.bf16.mxu0 0
        %10253 = vmatpush1.bf16.msra.mxu0 %v10167
        %10254 = vmatprep.subr.bf16.mxu0 0
        %10255 = vmatpush1.bf16.msra.mxu0 %v10168
        %10256 = vmatprep.subr.bf16.mxu0 0
        %10257 = vmatpush1.bf16.msra.mxu0 %v10169
        %10258 = vmatprep.subr.bf16.mxu0 0
        %10259 = vmatpush1.bf16.msra.mxu0 %v10170
        %10260 = vmatprep.subr.bf16.mxu0 0
        %10261 = vmatpush1.bf16.msra.mxu0 %v10171
        %10262 = vmatprep.subr.bf16.mxu0 0
        %10263 = vmatpush1.bf16.msra.mxu0 %v10172
        %10264 = vmatprep.subr.bf16.mxu0 0
        %10265 = vmatpush1.bf16.msra.mxu0 %v10173
        %10266 = vmatprep.subr.bf16.mxu0 0
        %10267 = vmatpush1.bf16.msra.mxu0 %v10174
        %10268 = vmatprep.subr.bf16.mxu0 0
        %10269 = vmatpush1.bf16.msra.mxu0 %v10175
        %10270 = vmatprep.subr.bf16.mxu0 0
        %10271 = vmatpush1.bf16.msra.mxu0 %v10176
        %10272 = vmatprep.subr.bf16.mxu0 0
        %10273 = vmatpush1.bf16.msra.mxu0 %v10177
        %10274 = vmatprep.subr.bf16.mxu0 0
        %10275 = vmatpush1.bf16.msra.mxu0 %v10178
        %10276 = vmatprep.subr.bf16.mxu0 0
        %10277 = vmatpush1.bf16.msra.mxu0 %v10179
        %10278 = vmatprep.subr.bf16.mxu0 0
        %10279 = vmatpush1.bf16.msra.mxu0 %v10197
        %10280 = vmatprep.subr.bf16.mxu0 0
        %10281 = vmatpush1.bf16.msra.mxu0 0
        %10282 = vmatprep.mubr.bf16.mxu0 %v10248
        %10283 = vmatmul.mubr.bf16.gmra.mrb[0].mxu0 %v10244
        %v10284 = vpop.f32.mrb[0].mxu0
        %v10285 = vadd.f32 0.0, %v10284
        %v10286 = vpop.f32.mrb[0].mxu0
        %v10287 = vpop.f32.mrb[0].mxu0
        %v10288 = vpop.f32.mrb[0].mxu0
        %10289 = vdwg.mxu0
        %v10290 = vpack.c.bf16 %v10234, %v10234
        %v10291 = vld [vmem:[%s12] sm:$0xf]
        %v10292 = vld [vmem:[%s12 + $0x4] sm:$0xf]
        %v10293 = vld [vmem:[%s12 + $0x8] sm:$0xf]
        %v10294 = vld [vmem:[%s12 + $0xc] sm:$0xf]
        %v10295 = vpack.c.bf16 %v10285, %v10285
        %s10296 = scalar_lea.vmem %s12, 16
        %v10297 = vld [vmem:[%s10296] sm:$0xf]
        %v10298 = vld [vmem:[%s10296 + $0x4] sm:$0xf]
        %v10299 = vld [vmem:[%s10296 + $0x8] sm:$0xf]
        %v10300 = vld [vmem:[%s10296 + $0xc] sm:$0xf]
        %v10305 = vunpack.c.l.b16 %v10297
        %v10306 = vunpack.c.l.b16 %v10298
        %v10307 = vunpack.c.l.b16 %v10299
        %v10308 = vunpack.c.l.b16 %v10300
        %v10309 = vpack.c.b16 %v10306, %v10305
        %v10310 = vpack.c.b16 %v10308, %v10307
        %vm10313 = vcmask 261120
        %v10315 = vsel %vm10313, %v10295, 0
        %10317 = vmatprep.subr.bf16.mxu0 0
        %10318 = vmatpush1.bf16.msra.mxu0 %v10309
        %10319 = vmatprep.subr.bf16.mxu0 0
        %10320 = vmatpush1.bf16.msra.mxu0 %v10310
        %10321 = vmatprep.subr.bf16.mxu0 0
        %10322 = vmatpush1.bf16.msra.mxu0 0
        %10323 = vmatprep.subr.bf16.mxu0 0
        %10324 = vmatpush1.bf16.msra.mxu0 0
        %10325 = vmatprep.subr.bf16.mxu0 0
        %10326 = vmatpush1.bf16.msra.mxu0 0
        %10327 = vmatprep.subr.bf16.mxu0 0
        %10328 = vmatpush1.bf16.msra.mxu0 0
        %10329 = vmatprep.subr.bf16.mxu0 0
        %10330 = vmatpush1.bf16.msra.mxu0 0
        %10331 = vmatprep.subr.bf16.mxu0 0
        %10332 = vmatpush1.bf16.msra.mxu0 0
        %10333 = vmatprep.subr.bf16.mxu0 0
        %10334 = vmatpush1.bf16.msra.mxu0 0
        %10335 = vmatprep.subr.bf16.mxu0 0
        %10336 = vmatpush1.bf16.msra.mxu0 0
        %10337 = vmatprep.subr.bf16.mxu0 0
        %10338 = vmatpush1.bf16.msra.mxu0 0
        %10339 = vmatprep.subr.bf16.mxu0 0
        %10340 = vmatpush1.bf16.msra.mxu0 0
        %10341 = vmatprep.subr.bf16.mxu0 0
        %10342 = vmatpush1.bf16.msra.mxu0 0
        %10343 = vmatprep.subr.bf16.mxu0 0
        %10344 = vmatpush1.bf16.msra.mxu0 0
        %10345 = vmatprep.subr.bf16.mxu0 0
        %10346 = vmatpush1.bf16.msra.mxu0 0
        %10347 = vmatprep.subr.bf16.mxu0 0
        %10348 = vmatpush1.bf16.msra.mxu0 0
        %10349 = vmatprep.mubr.bf16.mxu0 0
        %10350 = vmatmul.mubr.bf16.gmra.mrb[0].mxu0 %v10315
        %v10351 = vpop.f32.mrb[0].mxu0
        %v10352 = vadd.f32 0.0, %v10351
        %v10353 = vpop.f32.mrb[0].mxu0
        %v10354 = vpop.f32.mrb[0].mxu0
        %v10355 = vpop.f32.mrb[0].mxu0
        %10356 = vdwg.mxu0
        %v10361 = vunpack.c.l.b16 %v10291
        %v10362 = vunpack.c.l.b16 %v10292
        %v10363 = vunpack.c.l.b16 %v10293
        %v10364 = vunpack.c.l.b16 %v10294
        %v10365 = vpack.c.b16 %v10362, %v10361
        %v10366 = vpack.c.b16 %v10364, %v10363
        %v10370 = vsel %vm10313, %v10290, 0
        %10372 = vmatprep.subr.bf16.mxu0 0
        %10373 = vmatpush1.bf16.msra.mxu0 %v10365
        %10374 = vmatprep.subr.bf16.mxu0 0
        %10375 = vmatpush1.bf16.msra.mxu0 %v10366
        %10376 = vmatprep.subr.bf16.mxu0 0
        %10377 = vmatpush1.bf16.msra.mxu0 0
        %10378 = vmatprep.subr.bf16.mxu0 0
        %10379 = vmatpush1.bf16.msra.mxu0 0
        %10380 = vmatprep.subr.bf16.mxu0 0
        %10381 = vmatpush1.bf16.msra.mxu0 0
        %10382 = vmatprep.subr.bf16.mxu0 0
        %10383 = vmatpush1.bf16.msra.mxu0 0
        %10384 = vmatprep.subr.bf16.mxu0 0
        %10385 = vmatpush1.bf16.msra.mxu0 0
        %10386 = vmatprep.subr.bf16.mxu0 0
        %10387 = vmatpush1.bf16.msra.mxu0 0
        %10388 = vmatprep.subr.bf16.mxu0 0
        %10389 = vmatpush1.bf16.msra.mxu0 0
        %10390 = vmatprep.subr.bf16.mxu0 0
        %10391 = vmatpush1.bf16.msra.mxu0 0
        %10392 = vmatprep.subr.bf16.mxu0 0
        %10393 = vmatpush1.bf16.msra.mxu0 0
        %10394 = vmatprep.subr.bf16.mxu0 0
        %10395 = vmatpush1.bf16.msra.mxu0 0
        %10396 = vmatprep.subr.bf16.mxu0 0
        %10397 = vmatpush1.bf16.msra.mxu0 0
        %10398 = vmatprep.subr.bf16.mxu0 0
        %10399 = vmatpush1.bf16.msra.mxu0 0
        %10400 = vmatprep.subr.bf16.mxu0 0
        %10401 = vmatpush1.bf16.msra.mxu0 0
        %10402 = vmatprep.subr.bf16.mxu0 0
        %10403 = vmatpush1.bf16.msra.mxu0 0
        %10404 = vmatprep.mubr.bf16.mxu0 0
        %10405 = vmatmul.mubr.bf16.gmra.mrb[0].mxu0 %v10370
        %v10406 = vpop.f32.mrb[0].mxu0
        %v10407 = vadd.f32 %v10352, %v10406
        %v10408 = vpop.f32.mrb[0].mxu0
        %v10409 = vpop.f32.mrb[0].mxu0
        %v10410 = vpop.f32.mrb[0].mxu0
        %10411 = vdwg.mxu0
        %v10412 = vld [vmem:[%s13] sm:$0x1]
        %v10414 = vlaneseq
        %v10415 = vshrl.u32 %v10414, 7
        %v10416 = vsub.s32 0, %v10415
        %v10417 = vrot.slane %v10412, %v10416
        %v10419 = vadd.f32 %v10407, %v10417
        %vm10420 = vcmask 80896
        %10421 = vst.msk [vmem:[%s461] sm:$0xff] %vm10420, %v10419
        %s10422 = sand.u32 %s335, 1
        %s10423 = scalar_lea.sflag [#allocation3], %s10422
        %s10424 = sand.u32 %s335, 1
        %s10425 = smul.addr %s10424, 8
        %s10426 = scalar_lea.vmem [#allocation2], %s10425
        // Predicated region
        $region77: #{simple_cnn_forward.1} parent=75 // pred_check
          %p10427 = pneg %p345
        $region78: #{simple_cnn_forward.1} parent=75 // pred_check_branch
          %10429 = sbr.rel (%p10427) target = $region80
        $region79: #{simple_cnn_forward.1} parent=75 // pred_region
          %s10431 = ssub.s32 128, 128
          %10432 = vsyncadd %s10423, %s10431
          %s10433 = smul.addr %s28, 128
          %s10434 = scalar_lea.hbm %s14, %s10433
          %s10436 = sshll.u32 %s10426, 4
          %s10437 = int_to_ptr.vmem [resolvable:$true] %s10436
          %10439 = dma.vmem_to_hbm [thread:$0]  %s10437, 128, %s10434, %s10423
        $region80: #{simple_cnn_forward.1} parent=75 // pred_fallthru
          _
      $region76: #{simple_cnn_forward.1} parent=5 // pred_fallthru
        _
      %p10440 = scmp.le.s32.totalorder 2, %s23
      // Predicated region
      $region81: #{simple_cnn_forward.1} parent=5 // pred_check
        %p10441 = pneg %p10440
      $region82: #{simple_cnn_forward.1} parent=5 // pred_check_branch
        %10443 = sbr.rel (%p10441) target = $region84
      $region83: #{simple_cnn_forward.1} parent=5 // pred_region
        %s10444 = ssub.s32 %s23, 2
        // Predicated region
        $region85: #{simple_cnn_forward.1} parent=83 // pred_check
          %p10445 = pneg %p351
        $region86: #{simple_cnn_forward.1} parent=83 // pred_check_branch
          %10447 = sbr.rel (%p10445) target = $region88
        $region87: #{simple_cnn_forward.1} parent=83 // pred_region
          %s10448 = sand.u32 %s336, 1
          %s10449 = scalar_lea.sflag [#allocation3], %s10448
          %s10450 = sand.u32 %s336, 1
          %s10451 = smul.addr %s10450, 8
          %s10452 = scalar_lea.vmem [#allocation2], %s10451
          %10453 = dma.done %s10449, 128
        $region88: #{simple_cnn_forward.1} parent=83 // pred_fallthru
          _
      $region84: #{simple_cnn_forward.1} parent=5 // pred_fallthru
        _
    $region6: #{simple_cnn_forward.1} parent=1 // loop_footer
      %s27 = sadd.s32 1, %s23
    $region7: #{simple_cnn_forward.1} parent=1 // loop_footer_branch
      %22 = sbr.rel target = $region3
    $region8: #{simple_cnn_forward.1} parent=1 // loop_exit
      _
    %10454 = vsyncpa [#allocation3], 1
    %s10455 = scalar_lea.sflag [#allocation3], 1
    %10456 = vsyncpa %s10455, 1

</llo_original>
